<compile_context>
chip_gen: v6e
topology: v6e:2x2x1
jax: 0.10.0
libtpu: 0.0.40
codegen_flags: <defaults>
</compile_context>

<pallas_src>
import functools

import jax
import jax.numpy as jnp
from jax.experimental import pallas as pl
from jax.experimental.pallas import tpu as pltpu

IN_FEATURES = 36 * 36          # 1296
K_PAD = 1408                   # 1296 rounded up to a multiple of 128
H3_PAD = 128                   # fc3 output 64 padded to a full 128-lane tile
C_PAD = 128                    # class dim padded to 128 lanes (lane-dense stores)
BN_EPS = 1e-5


def _round_up(x, m):
    return ((x + m - 1) // m) * m


def _device_defaults():
    """(vmem_limit_bytes, tile_b) tuned per TPU generation (conservative fallback)."""
    try:
        kind = jax.devices()[0].device_kind.lower()
    except Exception:  # pragma: no cover
        kind = ""
    if ("v6" in kind) or ("v5e" in kind) or ("v5 lite" in kind) or ("v5litepod" in kind):
        return 100 << 20, 1024       # 128 MiB physical VMEM parts
    return 48 << 20, 512             # safe for v7x (64 MiB physical VMEM)


# --------------------- kernel 1: MLP logits + per-tile BN partial stats -------------
def _logits_kernel(x_ref, w1_ref, b1_ref, w2_ref, b2_ref, w3_ref, b3_ref,
                   w4_ref, b4_ref, z_ref, stat_ref, *, batch: int, tile_b: int):
    i = pl.program_id(0)

    # bf16 operands, f32 accumulation on the MXU.
    x = x_ref[...]                                                   # (tile_b, K_PAD) bf16
    h = jnp.dot(x, w1_ref[...], preferred_element_type=jnp.float32) + b1_ref[...]
    h = jnp.maximum(h, 0.0)
    h = jnp.dot(h.astype(jnp.bfloat16), w2_ref[...],
                preferred_element_type=jnp.float32) + b2_ref[...]
    h = jnp.maximum(h, 0.0)
    h = jnp.dot(h.astype(jnp.bfloat16), w3_ref[...],
                preferred_element_type=jnp.float32) + b3_ref[...]
    h = jnp.maximum(h, 0.0)
    z = jnp.dot(h.astype(jnp.bfloat16), w4_ref[...],
                preferred_element_type=jnp.float32) + b4_ref[...]    # (tile_b, C_PAD) f32

    # Lane-dense (tile_b, 128) store of the pre-BN logits for this tile.
    z_ref[...] = z

    # Online BatchNorm statistics: per-tile partial sum / sum-of-squares with padded
    # batch rows masked out. These overlap with the MXU work (VPU slack) instead of a
    # serial full-block reduction epilogue.
    row = jax.lax.broadcasted_iota(jnp.int32, z.shape, 0) + i * tile_b
    zm = jnp.where(row < batch, z, 0.0)
    ssum = jnp.sum(zm, axis=0, keepdims=True)                        # (1, C_PAD)
    ssq = jnp.sum(zm * zm, axis=0, keepdims=True)                    # (1, C_PAD)
    stat_ref[...] = jnp.concatenate([ssum, ssq], axis=0).reshape(1, 2, zm.shape[1])


# --------------------- kernel 2: BatchNorm + ReLU (+ masked softmax) ----------------
def _bn_softmax_kernel(z_ref, stat_ref, gamma_ref, beta_ref, o_ref,
                       *, batch: int, num_classes: int, include_softmax: bool):
    # Fold the per-tile partial statistics (tiny: grid x 2 x 128, VMEM-resident).
    s = jnp.sum(stat_ref[...], axis=0)                               # (2, C_PAD)
    inv_n = 1.0 / batch
    mean = s[0:1, :] * inv_n
    var = s[1:2, :] * inv_n - mean * mean                            # biased var (PyTorch BN)
    scale = gamma_ref[...] * jax.lax.rsqrt(var + BN_EPS)
    shift = beta_ref[...] - mean * scale

    y = jnp.maximum(z_ref[...] * scale + shift, 0.0)                 # BN + ReLU
    if include_softmax:
        col = jax.lax.broadcasted_iota(jnp.int32, y.shape, 1)
        y = jnp.where(col < num_classes, y, -1e30)                   # mask padded classes
        y = y - jnp.max(y, axis=1, keepdims=True)
        e = jnp.exp(y)
        # approx reciprocal runs on the EUP slot (free); use approx=False for bit parity.
        y = e * pl.reciprocal(jnp.sum(e, axis=1, keepdims=True), approx=True)
    o_ref[...] = y


# ------------------------------------ wrapper ---------------------------------------
def jigsaw_forward(x, params, num_classes, *, include_softmax=False,
                   tile_b=None, vmem_limit_bytes=None):
    """x: (B, 36, 36) or (B, 1296). params from init_params (bf16 kernel layout)."""
    w1, b1, w2, b2, w3, b3, w4, b4, gamma, beta = params
    B = x.shape[0]
    k_pad = w1.shape[0]                    # 1408
    c_pad = w4.shape[1]                    # 128

    dflt_vmem, dflt_tile = _device_defaults()
    if vmem_limit_bytes is None:
        vmem_limit_bytes = dflt_vmem
    if tile_b is None:
        tile_b = dflt_tile

    # Batch tiling; keep the tile a multiple of 16 so bf16 sublane packing stays clean.
    tb = _round_up(min(tile_b, _round_up(B, 16)), 16)
    b_pad = _round_up(B, tb)
    grid = b_pad // tb

    # bf16 x fused with the pad: halves the dominant per-step HBM stream and the pad
    # materialization (the only per-step stream -- weights are VMEM-resident).
    x2d = jnp.pad(x.reshape(B, -1).astype(jnp.bfloat16),
                  ((0, b_pad - B), (0, k_pad - IN_FEATURES)))

    def resident(arr):
        # Constant index_map -> fetched once, stays VMEM-resident across grid steps.
        return pl.BlockSpec(arr.shape, lambda i: (0,) * arr.ndim)

    cp = pltpu.CompilerParams(dimension_semantics=("parallel",),
                              vmem_limit_bytes=vmem_limit_bytes)

    logits_kernel = functools.partial(_logits_kernel, batch=B, tile_b=tb)
    z, stats = pl.pallas_call(
        logits_kernel,
        out_shape=(jax.ShapeDtypeStruct((b_pad, c_pad), jnp.float32),
                   jax.ShapeDtypeStruct((grid, 2, c_pad), jnp.float32)),
        grid=(grid,),
        in_specs=[pl.BlockSpec((tb, k_pad), lambda i: (i, 0)),       # x tile per step
                  resident(w1), resident(b1), resident(w2), resident(b2),
                  resident(w3), resident(b3), resident(w4), resident(b4)],
        out_specs=[pl.BlockSpec((tb, c_pad), lambda i: (i, 0)),
                   pl.BlockSpec((1, 2, c_pad), lambda i: (i, 0, 0))],
        compiler_params=cp,
    )(x2d, w1, b1, w2, b2, w3, b3, w4, b4)

    bn_kernel = functools.partial(_bn_softmax_kernel, batch=B, num_classes=num_classes,
                                  include_softmax=include_softmax)
    out = pl.pallas_call(
        bn_kernel,
        out_shape=jax.ShapeDtypeStruct((b_pad, c_pad), jnp.float32),
        grid=(grid,),
        in_specs=[pl.BlockSpec((tb, c_pad), lambda i: (i, 0)),
                  resident(stats), resident(gamma), resident(beta)],
        out_specs=pl.BlockSpec((tb, c_pad), lambda i: (i, 0)),
        compiler_params=cp,
    )(z, stats, gamma, beta)

    return out[:B, :num_classes]


def init_params(key, num_classes):
    """Params in kernel layout, prepared once (offline).
       - Linear weights (in, out) bf16; fc1 rows padded 1296->1408, fc3/fc4 padded to
         128 lanes, class dim padded to 128. Zero padding is exact (ReLU(0)=0, 0-rows).
       - biases / BN gamma,beta float32 (1, out_padded) rows (gamma padding = 0).
       Init matches nn.Linear default U(+-1/sqrt(fan_in)); BN weight=1, bias=0."""
    assert num_classes <= C_PAD
    real = [(IN_FEATURES, 1024), (1024, 512), (512, 64), (64, num_classes)]
    padded = [(K_PAD, 1024), (1024, 512), (512, H3_PAD), (H3_PAD, C_PAD)]
    params = []
    keys = jax.random.split(key, 2 * len(real))
    for idx, ((fin, fout), (pin, pout)) in enumerate(zip(real, padded)):
        bound = 1.0 / (fin ** 0.5)
        w = jax.random.uniform(keys[2 * idx], (fin, fout), jnp.float32, -bound, bound)
        b = jax.random.uniform(keys[2 * idx + 1], (1, fout), jnp.float32, -bound, bound)
        w = jnp.pad(w, ((0, pin - fin), (0, pout - fout)))
        b = jnp.pad(b, ((0, 0), (0, pout - fout)))
        params += [w.astype(jnp.bfloat16), b]
    gamma = jnp.pad(jnp.ones((1, num_classes), jnp.float32),
                    ((0, 0), (0, C_PAD - num_classes)))
    beta = jnp.zeros((1, C_PAD), jnp.float32)
    return tuple(params) + (gamma, beta)


def _reference(x, params, num_classes, include_softmax):
    """Pure-JAX reference mirroring the kernel math (bf16 weights/activations, f32 acc)."""
    w1, b1, w2, b2, w3, b3, w4, b4, gamma, beta = params
    h = x.reshape(x.shape[0], -1).astype(jnp.float32)
    h = jnp.pad(h, ((0, 0), (0, w1.shape[0] - h.shape[1])))

    def lin(a, w, b):
        return jnp.dot(a.astype(jnp.bfloat16), w,
                       preferred_element_type=jnp.float32) + b

    h = jax.nn.relu(lin(h, w1, b1))
    h = jax.nn.relu(lin(h, w2, b2))
    h = jax.nn.relu(lin(h, w3, b3))
    z = lin(h, w4, b4)[:, :num_classes]
    mean = jnp.mean(z, axis=0, keepdims=True)
    var = jnp.mean((z - mean) ** 2, axis=0, keepdims=True)
    z = gamma[:, :num_classes] * (z - mean) * jax.lax.rsqrt(var + BN_EPS) \
        + beta[:, :num_classes]
    z = jax.nn.relu(z)
    if include_softmax:
        z = jax.nn.softmax(z, axis=1)
    return z


if __name__ == "__main__":
    num_classes = 10
    key = jax.random.PRNGKey(0)
    k_param, k_x1, k_x2 = jax.random.split(key, 3)
    params = init_params(k_param, num_classes)

    # Case 1: small batch (B=8), single grid step, with softmax.
    x = jax.random.normal(k_x1, (8, 36, 36), jnp.float32)
    out = jax.block_until_ready(
        jigsaw_forward(x, params, num_classes, include_softmax=True))
    ref = _reference(x, params, num_classes, True)
    assert out.shape == (8, num_classes)
    assert jnp.allclose(out, ref, atol=5e-3, rtol=5e-3), \
        float(jnp.max(jnp.abs(out - ref)))

    # Case 2: gridded batch with padding (B=20, tile=16 -> 2 steps, 12 padded rows),
    # exercising the parallel batch grid + masked partial BN statistics, no softmax.
    xg = jax.random.normal(k_x2, (20, 36, 36), jnp.float32)
    outg = jax.block_until_ready(
        jigsaw_forward(xg, params, num_classes, include_softmax=False, tile_b=16))
    refg = _reference(xg, params, num_classes, False)
    assert outg.shape == (20, num_classes)
    assert jnp.allclose(outg, refg, atol=5e-3, rtol=5e-3), \
        float(jnp.max(jnp.abs(outg - refg)))

    print("KERNEL_OK")
</pallas_src>

<mosaic_0001>
module attributes {stable_mosaic.version = 11 : i64} {
  func.func @_logits_kernel(%arg0: i32, %arg1: memref<16x1408xbf16, #tpu.memory_space<vmem>>, %arg2: memref<1408x1024xbf16, #tpu.memory_space<vmem>>, %arg3: memref<1x1024xf32, #tpu.memory_space<vmem>>, %arg4: memref<1024x512xbf16, #tpu.memory_space<vmem>>, %arg5: memref<1x512xf32, #tpu.memory_space<vmem>>, %arg6: memref<512x128xbf16, #tpu.memory_space<vmem>>, %arg7: memref<1x128xf32, #tpu.memory_space<vmem>>, %arg8: memref<128x128xbf16, #tpu.memory_space<vmem>>, %arg9: memref<1x128xf32, #tpu.memory_space<vmem>>, %arg10: memref<16x128xf32, #tpu.memory_space<vmem>>, %arg11: memref<1x2x128xf32, #tpu.memory_space<vmem>>) attributes {dimension_semantics = [#tpu.dimension_semantics<parallel>], iteration_bounds = array<i64: 1>, scalar_prefetch = 0 : i64, scratch_operands = 0 : i64, tpu.core_type = #tpu.core_type<tc>, window_params = [{transform_indices = @transform_0, window_bounds = array<i64: 16, 1408>}, {pipeline_mode = #tpu.pipeline_mode<synchronous>, transform_indices = @transform_1, window_bounds = array<i64: 1408, 1024>}, {pipeline_mode = #tpu.pipeline_mode<synchronous>, transform_indices = @transform_2, window_bounds = array<i64: 1, 1024>}, {pipeline_mode = #tpu.pipeline_mode<synchronous>, transform_indices = @transform_3, window_bounds = array<i64: 1024, 512>}, {pipeline_mode = #tpu.pipeline_mode<synchronous>, transform_indices = @transform_4, window_bounds = array<i64: 1, 512>}, {pipeline_mode = #tpu.pipeline_mode<synchronous>, transform_indices = @transform_5, window_bounds = array<i64: 512, 128>}, {pipeline_mode = #tpu.pipeline_mode<synchronous>, transform_indices = @transform_6, window_bounds = array<i64: 1, 128>}, {pipeline_mode = #tpu.pipeline_mode<synchronous>, transform_indices = @transform_7, window_bounds = array<i64: 128, 128>}, {pipeline_mode = #tpu.pipeline_mode<synchronous>, transform_indices = @transform_8, window_bounds = array<i64: 1, 128>}, {transform_indices = @transform_9, window_bounds = array<i64: 16, 128>}, {transform_indices = @transform_10, window_bounds = array<i64: 1, 2, 128>}]} {
    %c0 = arith.constant 0 : index
    %c0_0 = arith.constant 0 : index
    %0 = vector.load %arg1[%c0, %c0_0] : memref<16x1408xbf16, #tpu.memory_space<vmem>>, vector<16x1408xbf16>
    %c0_1 = arith.constant 0 : index
    %c0_2 = arith.constant 0 : index
    %1 = vector.load %arg2[%c0_1, %c0_2] : memref<1408x1024xbf16, #tpu.memory_space<vmem>>, vector<1408x1024xbf16>
    %cst = arith.constant dense<0.000000e+00> : vector<16x1024xf32>
    %2 = tpu.matmul %0, %1, %cst {dimension_numbers = #tpu.dot_dimension_numbers<[1], [0], [0], [1], [0, 0, 1, 1], [], []>} : vector<16x1408xbf16>, vector<1408x1024xbf16>, vector<16x1024xf32> -> vector<16x1024xf32>
    %c0_3 = arith.constant 0 : index
    %c0_4 = arith.constant 0 : index
    %3 = vector.load %arg3[%c0_3, %c0_4] : memref<1x1024xf32, #tpu.memory_space<vmem>>, vector<1x1024xf32>
    %4 = vector.broadcast %3 : vector<1x1024xf32> to vector<16x1024xf32>
    %5 = arith.addf %2, %4 : vector<16x1024xf32>
    %cst_5 = arith.constant 0.000000e+00 : f32
    %6 = vector.broadcast %cst_5 : f32 to vector<16x1024xf32>
    %7 = arith.maximumf %5, %6 : vector<16x1024xf32>
    %8 = arith.truncf %7 : vector<16x1024xf32> to vector<16x1024xbf16>
    %c0_6 = arith.constant 0 : index
    %c0_7 = arith.constant 0 : index
    %9 = vector.load %arg4[%c0_6, %c0_7] : memref<1024x512xbf16, #tpu.memory_space<vmem>>, vector<1024x512xbf16>
    %cst_8 = arith.constant dense<0.000000e+00> : vector<16x512xf32>
    %10 = tpu.matmul %8, %9, %cst_8 {dimension_numbers = #tpu.dot_dimension_numbers<[1], [0], [0], [1], [0, 0, 1, 1], [], []>} : vector<16x1024xbf16>, vector<1024x512xbf16>, vector<16x512xf32> -> vector<16x512xf32>
    %c0_9 = arith.constant 0 : index
    %c0_10 = arith.constant 0 : index
    %11 = vector.load %arg5[%c0_9, %c0_10] : memref<1x512xf32, #tpu.memory_space<vmem>>, vector<1x512xf32>
    %12 = vector.broadcast %11 : vector<1x512xf32> to vector<16x512xf32>
    %13 = arith.addf %10, %12 : vector<16x512xf32>
    %cst_11 = arith.constant 0.000000e+00 : f32
    %14 = vector.broadcast %cst_11 : f32 to vector<16x512xf32>
    %15 = arith.maximumf %13, %14 : vector<16x512xf32>
    %16 = arith.truncf %15 : vector<16x512xf32> to vector<16x512xbf16>
    %c0_12 = arith.constant 0 : index
    %c0_13 = arith.constant 0 : index
    %17 = vector.load %arg6[%c0_12, %c0_13] : memref<512x128xbf16, #tpu.memory_space<vmem>>, vector<512x128xbf16>
    %cst_14 = arith.constant dense<0.000000e+00> : vector<16x128xf32>
    %18 = tpu.matmul %16, %17, %cst_14 {dimension_numbers = #tpu.dot_dimension_numbers<[1], [0], [0], [1], [0, 0, 1, 1], [], []>} : vector<16x512xbf16>, vector<512x128xbf16>, vector<16x128xf32> -> vector<16x128xf32>
    %c0_15 = arith.constant 0 : index
    %c0_16 = arith.constant 0 : index
    %19 = vector.load %arg7[%c0_15, %c0_16] : memref<1x128xf32, #tpu.memory_space<vmem>>, vector<1x128xf32>
    %20 = vector.broadcast %19 : vector<1x128xf32> to vector<16x128xf32>
    %21 = arith.addf %18, %20 : vector<16x128xf32>
    %cst_17 = arith.constant 0.000000e+00 : f32
    %22 = vector.broadcast %cst_17 : f32 to vector<16x128xf32>
    %23 = arith.maximumf %21, %22 : vector<16x128xf32>
    %24 = arith.truncf %23 : vector<16x128xf32> to vector<16x128xbf16>
    %c0_18 = arith.constant 0 : index
    %c0_19 = arith.constant 0 : index
    %25 = vector.load %arg8[%c0_18, %c0_19] : memref<128x128xbf16, #tpu.memory_space<vmem>>, vector<128x128xbf16>
    %cst_20 = arith.constant dense<0.000000e+00> : vector<16x128xf32>
    %26 = tpu.matmul %24, %25, %cst_20 {dimension_numbers = #tpu.dot_dimension_numbers<[1], [0], [0], [1], [0, 0, 1, 1], [], []>} : vector<16x128xbf16>, vector<128x128xbf16>, vector<16x128xf32> -> vector<16x128xf32>
    %c0_21 = arith.constant 0 : index
    %c0_22 = arith.constant 0 : index
    %27 = vector.load %arg9[%c0_21, %c0_22] : memref<1x128xf32, #tpu.memory_space<vmem>>, vector<1x128xf32>
    %28 = vector.broadcast %27 : vector<1x128xf32> to vector<16x128xf32>
    %29 = arith.addf %26, %28 : vector<16x128xf32>
    %c0_23 = arith.constant 0 : index
    %c0_24 = arith.constant 0 : index
    %30 = vector.load %arg10[%c0_23, %c0_24] : memref<16x128xf32, #tpu.memory_space<vmem>>, vector<16x128xf32>
    tpu.vector_store %arg10[%c0_23, %c0_24], %29 {strides = array<i32>} : memref<16x128xf32, #tpu.memory_space<vmem>>, vector<16x128xf32>,
    %31 = tpu.iota {dimensions = array<i32: 0>} : vector<16x128xi32>
    %c16_i32 = arith.constant 16 : i32
    %32 = arith.muli %arg0, %c16_i32 : i32
    %33 = vector.broadcast %32 : i32 to vector<16x128xi32>
    %34 = arith.addi %31, %33 : vector<16x128xi32>
    %c8_i32 = arith.constant 8 : i32
    %35 = vector.broadcast %c8_i32 : i32 to vector<16x128xi32>
    %36 = arith.cmpi slt, %34, %35 : vector<16x128xi32>
    %cst_25 = arith.constant 0.000000e+00 : f32
    %37 = vector.broadcast %cst_25 : f32 to vector<16x128xf32>
    %38 = arith.select %36, %29, %37 : vector<16x128xi1>, vector<16x128xf32>
    %cst_26 = arith.constant dense<0.000000e+00> : vector<128xf32>
    %39 = vector.multi_reduction <add>, %38, %cst_26 [0] : vector<16x128xf32> to vector<128xf32>
    %40 = vector.shape_cast %39 : vector<128xf32> to vector<1x128xf32>
    %41 = arith.mulf %38, %38 : vector<16x128xf32>
    %cst_27 = arith.constant dense<0.000000e+00> : vector<128xf32>
    %42 = vector.multi_reduction <add>, %41, %cst_27 [0] : vector<16x128xf32> to vector<128xf32>
    %43 = vector.shape_cast %42 : vector<128xf32> to vector<1x128xf32>
    %44 = tpu.concatenate %40, %43 in 0 : vector<1x128xf32>, vector<1x128xf32> -> vector<2x128xf32>
    %45 = vector.shape_cast %44 : vector<2x128xf32> to vector<1x2x128xf32>
    %c0_28 = arith.constant 0 : index
    %c0_29 = arith.constant 0 : index
    %c0_30 = arith.constant 0 : index
    %46 = vector.load %arg11[%c0_28, %c0_29, %c0_30] : memref<1x2x128xf32, #tpu.memory_space<vmem>>, vector<1x2x128xf32>
    tpu.vector_store %arg11[%c0_28, %c0_29, %c0_30], %45 {strides = array<i32>} : memref<1x2x128xf32, #tpu.memory_space<vmem>>, vector<1x2x128xf32>,
    return
  }
  func.func @transform_0(%arg0: i32) -> (i32, i32) {
    %c0_i32 = arith.constant 0 : i32
    %c0_i32_0 = arith.constant 0 : i32
    return %arg0, %c0_i32 : i32, i32
  }
  func.func @transform_1(%arg0: i32) -> (i32, i32) {
    %c0_i32 = arith.constant 0 : i32
    %c0_i32_0 = arith.constant 0 : i32
    %c0_i32_1 = arith.constant 0 : i32
    return %c0_i32, %c0_i32_0 : i32, i32
  }
  func.func @transform_2(%arg0: i32) -> (i32, i32) {
    %c0_i32 = arith.constant 0 : i32
    %c0_i32_0 = arith.constant 0 : i32
    %c0_i32_1 = arith.constant 0 : i32
    return %c0_i32, %c0_i32_0 : i32, i32
  }
  func.func @transform_3(%arg0: i32) -> (i32, i32) {
    %c0_i32 = arith.constant 0 : i32
    %c0_i32_0 = arith.constant 0 : i32
    %c0_i32_1 = arith.constant 0 : i32
    return %c0_i32, %c0_i32_0 : i32, i32
  }
  func.func @transform_4(%arg0: i32) -> (i32, i32) {
    %c0_i32 = arith.constant 0 : i32
    %c0_i32_0 = arith.constant 0 : i32
    %c0_i32_1 = arith.constant 0 : i32
    return %c0_i32, %c0_i32_0 : i32, i32
  }
  func.func @transform_5(%arg0: i32) -> (i32, i32) {
    %c0_i32 = arith.constant 0 : i32
    %c0_i32_0 = arith.constant 0 : i32
    %c0_i32_1 = arith.constant 0 : i32
    return %c0_i32, %c0_i32_0 : i32, i32
  }
  func.func @transform_6(%arg0: i32) -> (i32, i32) {
    %c0_i32 = arith.constant 0 : i32
    %c0_i32_0 = arith.constant 0 : i32
    %c0_i32_1 = arith.constant 0 : i32
    return %c0_i32, %c0_i32_0 : i32, i32
  }
  func.func @transform_7(%arg0: i32) -> (i32, i32) {
    %c0_i32 = arith.constant 0 : i32
    %c0_i32_0 = arith.constant 0 : i32
    %c0_i32_1 = arith.constant 0 : i32
    return %c0_i32, %c0_i32_0 : i32, i32
  }
  func.func @transform_8(%arg0: i32) -> (i32, i32) {
    %c0_i32 = arith.constant 0 : i32
    %c0_i32_0 = arith.constant 0 : i32
    %c0_i32_1 = arith.constant 0 : i32
    return %c0_i32, %c0_i32_0 : i32, i32
  }
  func.func @transform_9(%arg0: i32) -> (i32, i32) {
    %c0_i32 = arith.constant 0 : i32
    %c0_i32_0 = arith.constant 0 : i32
    return %arg0, %c0_i32 : i32, i32
  }
  func.func @transform_10(%arg0: i32) -> (i32, i32, i32) {
    %c0_i32 = arith.constant 0 : i32
    %c0_i32_0 = arith.constant 0 : i32
    %c0_i32_1 = arith.constant 0 : i32
    return %arg0, %c0_i32, %c0_i32_0 : i32, i32, i32
  }
}

</mosaic_0001>

<llo_original>
// kernel: tpu_custom_call.1
$region0: #{tpu_custom_call.1}
  #allocation0 [shape = 'u32[]', space=smem, size = 0x4, offset = 0x4, fixed_abs, tag = 'smem constant byte address 0x4 - core index']
  #allocation1 [shape = 'u32[144,128]{1,0:T(1,128)}', space=vmem, size = 0x12000, scoped, tag = 'internal scratch']
  %s0 = inlined_call_operand.hbm [shape: bf16[16,1408], index: 0, kind: input, shape index: {}]
  %s1 = inlined_call_operand.hbm [shape: bf16[1408,1024], index: 1, kind: input, shape index: {}]
  %s2 = inlined_call_operand.hbm [shape: f32[1,1024], index: 2, kind: input, shape index: {}]
  %s3 = inlined_call_operand.hbm [shape: bf16[1024,512], index: 3, kind: input, shape index: {}]
  %s4 = inlined_call_operand.hbm [shape: f32[1,512], index: 4, kind: input, shape index: {}]
  %s5 = inlined_call_operand.hbm [shape: bf16[512,128], index: 5, kind: input, shape index: {}]
  %s6 = inlined_call_operand.hbm [shape: f32[1,128], index: 6, kind: input, shape index: {}]
  %s7 = inlined_call_operand.hbm [shape: bf16[128,128], index: 7, kind: input, shape index: {}]
  %s8 = inlined_call_operand.hbm [shape: f32[1,128], index: 8, kind: input, shape index: {}]
  %s9 = inlined_call_operand.hbm [shape: f32[16,128], index: 9, kind: output, shape index: {0}]
  %s10 = inlined_call_operand.hbm [shape: f32[1,2,128], index: 10, kind: output, shape index: {1}]
  %11 = xla_tuple %s9, %s10
  %s12 = sld [smem:[#allocation0]]
  $region90: #{tpu_custom_call.1} parent=0
    _
  %s14 = ssub.s32 1, %s12
  %s15 = scalar_select 0, %s14, %s12
  $region1: #{tpu_custom_call.1} parent=0
    #allocation2 [shape = 'u8[45056]{0}', space=vmem, size = 0xb000, scoped, tag = 'input window, operand 0, single buffered']
    #allocation3 [shape = 's32[1]{0}', space=sflag, size = 0x4, scoped, tag = 'scoped memory for tpu_custom_call.1']
    #allocation4 [shape = 's32[1]{0}', space=sflag, size = 0x4, scoped, tag = 'scoped memory for tpu_custom_call.1']
    #allocation5 [shape = 'u8[2883584]{0}', space=vmem, size = 0x2c0000, scoped, tag = 'input window, operand 1, single buffered']
    #allocation6 [shape = 's32[1]{0}', space=sflag, size = 0x4, scoped, tag = 'scoped memory for tpu_custom_call.1']
    #allocation7 [shape = 'u8[4096]{0}', space=vmem, size = 0x1000, scoped, tag = 'input window, operand 2, single buffered']
    #allocation8 [shape = 'u8[1048576]{0}', space=vmem, size = 0x100000, scoped, tag = 'input window, operand 3, single buffered']
    #allocation9 [shape = 's32[1]{0}', space=sflag, size = 0x4, scoped, tag = 'scoped memory for tpu_custom_call.1']
    #allocation10 [shape = 'u8[2048]{0}', space=vmem, size = 0x800, scoped, tag = 'input window, operand 4, single buffered']
    #allocation11 [shape = 'u8[131072]{0}', space=vmem, size = 0x20000, scoped, tag = 'input window, operand 5, single buffered']
    #allocation12 [shape = 's32[1]{0}', space=sflag, size = 0x4, scoped, tag = 'scoped memory for tpu_custom_call.1']
    #allocation13 [shape = 'u8[512]{0}', space=vmem, size = 0x400, scoped, tag = 'input window, operand 6, single buffered']
    #allocation14 [shape = 'u8[32768]{0}', space=vmem, size = 0x8000, scoped, tag = 'input window, operand 7, single buffered']
    #allocation15 [shape = 's32[1]{0}', space=sflag, size = 0x4, scoped, tag = 'scoped memory for tpu_custom_call.1']
    #allocation16 [shape = 'u8[512]{0}', space=vmem, size = 0x400, scoped, tag = 'input window, operand 8, single buffered']
    #allocation17 [shape = 'u8[8192]{0}', space=vmem, size = 0x2000, scoped, tag = 'output window, operand 0, single buffered']
    #allocation18 [shape = 'u8[1024]{0}', space=vmem, size = 0x400, scoped, tag = 'output window, operand 1, single buffered']
    #allocation19 [shape = 's32[1]{0}', space=sflag, size = 0x4, scoped, tag = 'scoped memory for tpu_custom_call.1']
    %16 = vsyncpa [#allocation3], 0
    %17 = vsyncpa [#allocation6], 0
    %18 = vsyncpa [#allocation9], 0
    %19 = vsyncpa [#allocation12], 0
    %20 = vsyncpa [#allocation15], 0
    %21 = vsyncpa [#allocation4], 0
    %22 = vsyncpa [#allocation19], 0
    // Predicated region
    $region2: #{tpu_custom_call.1} parent=1 // pred_check
      _
    $region3: #{tpu_custom_call.1} parent=1 // pred_check_branch
      %24 = sbr.rel (0) target = $region5
    $region4: #{tpu_custom_call.1} parent=1 // pred_region
      %s26 = ssub.s32 1408, 1408
      %27 = vsyncadd [#allocation3], %s26
      %s28 = sshll.u32 [#allocation2], 4
      %s29 = int_to_ptr.vmem [resolvable:$true] %s28
      %34 = dma.hbm_to_vmem [thread:$0]  %s0, 1408, %s29, [#allocation3], 704, 704, 44
    $region5: #{tpu_custom_call.1} parent=1 // pred_fallthru
      _
    // Predicated region
    $region6: #{tpu_custom_call.1} parent=1 // pred_check
      _
    $region7: #{tpu_custom_call.1} parent=1 // pred_check_branch
      %36 = sbr.rel (0) target = $region9
    $region8: #{tpu_custom_call.1} parent=1 // pred_region
      %s38 = ssub.s32 90112, 90112
      %39 = vsyncadd [#allocation6], %s38
      %s40 = sshll.u32 [#allocation5], 4
      %s41 = int_to_ptr.vmem [resolvable:$true] %s40
      %46 = dma.hbm_to_vmem [thread:$0]  %s1, 90112, %s41, [#allocation6], 512, 512, 32
    $region9: #{tpu_custom_call.1} parent=1 // pred_fallthru
      _
    // Predicated region
    $region10: #{tpu_custom_call.1} parent=1 // pred_check
      _
    $region11: #{tpu_custom_call.1} parent=1 // pred_check_branch
      %48 = sbr.rel (0) target = $region13
    $region12: #{tpu_custom_call.1} parent=1 // pred_region
      %s50 = ssub.s32 128, 128
      %51 = vsyncadd [#allocation6], %s50
      %s53 = sshll.u32 [#allocation7], 4
      %s54 = int_to_ptr.vmem [resolvable:$true] %s53
      %56 = dma.hbm_to_vmem [thread:$0]  %s2, 128, %s54, [#allocation6]
    $region13: #{tpu_custom_call.1} parent=1 // pred_fallthru
      _
    // Predicated region
    $region14: #{tpu_custom_call.1} parent=1 // pred_check
      _
    $region15: #{tpu_custom_call.1} parent=1 // pred_check_branch
      %58 = sbr.rel (0) target = $region17
    $region16: #{tpu_custom_call.1} parent=1 // pred_region
      %s60 = ssub.s32 32768, 32768
      %61 = vsyncadd [#allocation9], %s60
      %s62 = sshll.u32 [#allocation8], 4
      %s63 = int_to_ptr.vmem [resolvable:$true] %s62
      %68 = dma.hbm_to_vmem [thread:$0]  %s3, 32768, %s63, [#allocation9], 256, 256, 16
    $region17: #{tpu_custom_call.1} parent=1 // pred_fallthru
      _
    // Predicated region
    $region18: #{tpu_custom_call.1} parent=1 // pred_check
      _
    $region19: #{tpu_custom_call.1} parent=1 // pred_check_branch
      %70 = sbr.rel (0) target = $region21
    $region20: #{tpu_custom_call.1} parent=1 // pred_region
      %s72 = ssub.s32 64, 64
      %73 = vsyncadd [#allocation9], %s72
      %s75 = sshll.u32 [#allocation10], 4
      %s76 = int_to_ptr.vmem [resolvable:$true] %s75
      %78 = dma.hbm_to_vmem [thread:$0]  %s4, 64, %s76, [#allocation9]
    $region21: #{tpu_custom_call.1} parent=1 // pred_fallthru
      _
    // Predicated region
    $region22: #{tpu_custom_call.1} parent=1 // pred_check
      _
    $region23: #{tpu_custom_call.1} parent=1 // pred_check_branch
      %80 = sbr.rel (0) target = $region25
    $region24: #{tpu_custom_call.1} parent=1 // pred_region
      %s82 = ssub.s32 4096, 4096
      %83 = vsyncadd [#allocation12], %s82
      %s84 = sshll.u32 [#allocation11], 4
      %s85 = int_to_ptr.vmem [resolvable:$true] %s84
      %90 = dma.hbm_to_vmem [thread:$0]  %s5, 4096, %s85, [#allocation12], 64, 64, 4
    $region25: #{tpu_custom_call.1} parent=1 // pred_fallthru
      _
    // Predicated region
    $region26: #{tpu_custom_call.1} parent=1 // pred_check
      _
    $region27: #{tpu_custom_call.1} parent=1 // pred_check_branch
      %92 = sbr.rel (0) target = $region29
    $region28: #{tpu_custom_call.1} parent=1 // pred_region
      %s94 = ssub.s32 16, 16
      %95 = vsyncadd [#allocation12], %s94
      %s97 = sshll.u32 [#allocation13], 4
      %s98 = int_to_ptr.vmem [resolvable:$true] %s97
      %100 = dma.hbm_to_vmem [thread:$0]  %s6, 16, %s98, [#allocation12]
    $region29: #{tpu_custom_call.1} parent=1 // pred_fallthru
      _
    // Predicated region
    $region30: #{tpu_custom_call.1} parent=1 // pred_check
      _
    $region31: #{tpu_custom_call.1} parent=1 // pred_check_branch
      %102 = sbr.rel (0) target = $region33
    $region32: #{tpu_custom_call.1} parent=1 // pred_region
      %s104 = ssub.s32 1024, 1024
      %105 = vsyncadd [#allocation15], %s104
      %s106 = sshll.u32 [#allocation14], 4
      %s107 = int_to_ptr.vmem [resolvable:$true] %s106
      %112 = dma.hbm_to_vmem [thread:$0]  %s7, 1024, %s107, [#allocation15], 64, 64, 4
    $region33: #{tpu_custom_call.1} parent=1 // pred_fallthru
      _
    // Predicated region
    $region34: #{tpu_custom_call.1} parent=1 // pred_check
      _
    $region35: #{tpu_custom_call.1} parent=1 // pred_check_branch
      %114 = sbr.rel (0) target = $region37
    $region36: #{tpu_custom_call.1} parent=1 // pred_region
      %s116 = ssub.s32 16, 16
      %117 = vsyncadd [#allocation15], %s116
      %s119 = sshll.u32 [#allocation16], 4
      %s120 = int_to_ptr.vmem [resolvable:$true] %s119
      %122 = dma.hbm_to_vmem [thread:$0]  %s8, 16, %s120, [#allocation15]
    $region37: #{tpu_custom_call.1} parent=1 // pred_fallthru
      _
    // Predicated region
    $region38: #{tpu_custom_call.1} parent=1 // pred_check
      _
    $region39: #{tpu_custom_call.1} parent=1 // pred_check_branch
      %124 = sbr.rel (0) target = $region41
    $region40: #{tpu_custom_call.1} parent=1 // pred_region
      %125 = dma.done [#allocation3], 1408
    $region41: #{tpu_custom_call.1} parent=1 // pred_fallthru
      _
    // Predicated region
    $region42: #{tpu_custom_call.1} parent=1 // pred_check
      _
    $region43: #{tpu_custom_call.1} parent=1 // pred_check_branch
      %127 = sbr.rel (0) target = $region45
    $region44: #{tpu_custom_call.1} parent=1 // pred_region
      %128 = dma.done [#allocation6], 90112
    $region45: #{tpu_custom_call.1} parent=1 // pred_fallthru
      _
    // Predicated region
    $region46: #{tpu_custom_call.1} parent=1 // pred_check
      _
    $region47: #{tpu_custom_call.1} parent=1 // pred_check_branch
      %130 = sbr.rel (0) target = $region49
    $region48: #{tpu_custom_call.1} parent=1 // pred_region
      %131 = dma.done [#allocation6], 128
    $region49: #{tpu_custom_call.1} parent=1 // pred_fallthru
      _
    // Predicated region
    $region50: #{tpu_custom_call.1} parent=1 // pred_check
      _
    $region51: #{tpu_custom_call.1} parent=1 // pred_check_branch
      %133 = sbr.rel (0) target = $region53
    $region52: #{tpu_custom_call.1} parent=1 // pred_region
      %134 = dma.done [#allocation9], 32768
    $region53: #{tpu_custom_call.1} parent=1 // pred_fallthru
      _
    // Predicated region
    $region54: #{tpu_custom_call.1} parent=1 // pred_check
      _
    $region55: #{tpu_custom_call.1} parent=1 // pred_check_branch
      %136 = sbr.rel (0) target = $region57
    $region56: #{tpu_custom_call.1} parent=1 // pred_region
      %137 = dma.done [#allocation9], 64
    $region57: #{tpu_custom_call.1} parent=1 // pred_fallthru
      _
    // Predicated region
    $region58: #{tpu_custom_call.1} parent=1 // pred_check
      _
    $region59: #{tpu_custom_call.1} parent=1 // pred_check_branch
      %139 = sbr.rel (0) target = $region61
    $region60: #{tpu_custom_call.1} parent=1 // pred_region
      %140 = dma.done [#allocation12], 4096
    $region61: #{tpu_custom_call.1} parent=1 // pred_fallthru
      _
    // Predicated region
    $region62: #{tpu_custom_call.1} parent=1 // pred_check
      _
    $region63: #{tpu_custom_call.1} parent=1 // pred_check_branch
      %142 = sbr.rel (0) target = $region65
    $region64: #{tpu_custom_call.1} parent=1 // pred_region
      %143 = dma.done [#allocation12], 16
    $region65: #{tpu_custom_call.1} parent=1 // pred_fallthru
      _
    // Predicated region
    $region66: #{tpu_custom_call.1} parent=1 // pred_check
      _
    $region67: #{tpu_custom_call.1} parent=1 // pred_check_branch
      %145 = sbr.rel (0) target = $region69
    $region68: #{tpu_custom_call.1} parent=1 // pred_region
      %146 = dma.done [#allocation15], 1024
    $region69: #{tpu_custom_call.1} parent=1 // pred_fallthru
      _
    // Predicated region
    $region70: #{tpu_custom_call.1} parent=1 // pred_check
      _
    $region71: #{tpu_custom_call.1} parent=1 // pred_check_branch
      %148 = sbr.rel (0) target = $region73
    $region72: #{tpu_custom_call.1} parent=1 // pred_region
      %149 = dma.done [#allocation15], 16
    $region73: #{tpu_custom_call.1} parent=1 // pred_fallthru
      _
    %v151 = vld [vmem:[#allocation2] sm:$0xff]
    %v152 = vld [vmem:[#allocation2 + $0x8] sm:$0xff]
    %v153 = vld [vmem:[#allocation2 + $0x10] sm:$0xff]
    %v154 = vld [vmem:[#allocation2 + $0x18] sm:$0xff]
    %v155 = vld [vmem:[#allocation2 + $0x20] sm:$0xff]
    %v156 = vld [vmem:[#allocation2 + $0x28] sm:$0xf]
    %v157 = vld [vmem:[#allocation2 + $0x2c] sm:$0xff]
    %v158 = vld [vmem:[#allocation2 + $0x34] sm:$0xff]
    %v159 = vld [vmem:[#allocation2 + $0x3c] sm:$0xff]
    %v160 = vld [vmem:[#allocation2 + $0x44] sm:$0xff]
    %v161 = vld [vmem:[#allocation2 + $0x4c] sm:$0xff]
    %v162 = vld [vmem:[#allocation2 + $0x54] sm:$0xf]
    %v163 = vld [vmem:[#allocation5] sm:$0xff]
    %v164 = vld [vmem:[#allocation5 + $0x8] sm:$0xff]
    %v165 = vld [vmem:[#allocation5 + $0x10] sm:$0xff]
    %v166 = vld [vmem:[#allocation5 + $0x18] sm:$0xff]
    %v167 = vld [vmem:[#allocation5 + $0x20] sm:$0xff]
    %v168 = vld [vmem:[#allocation5 + $0x28] sm:$0xff]
    %v169 = vld [vmem:[#allocation5 + $0x30] sm:$0xff]
    %v170 = vld [vmem:[#allocation5 + $0x38] sm:$0xff]
    %v171 = vld [vmem:[#allocation5 + $0x40] sm:$0xff]
    %v172 = vld [vmem:[#allocation5 + $0x48] sm:$0xff]
    %v173 = vld [vmem:[#allocation5 + $0x50] sm:$0xff]
    %v174 = vld [vmem:[#allocation5 + $0x58] sm:$0xff]
    %v175 = vld [vmem:[#allocation5 + $0x60] sm:$0xff]
    %v176 = vld [vmem:[#allocation5 + $0x68] sm:$0xff]
    %v177 = vld [vmem:[#allocation5 + $0x70] sm:$0xff]
    %v178 = vld [vmem:[#allocation5 + $0x78] sm:$0xff]
    %v179 = vld [vmem:[#allocation5 + $0x80] sm:$0xff]
    %v180 = vld [vmem:[#allocation5 + $0x88] sm:$0xff]
    %v181 = vld [vmem:[#allocation5 + $0x90] sm:$0xff]
    %v182 = vld [vmem:[#allocation5 + $0x98] sm:$0xff]
    %v183 = vld [vmem:[#allocation5 + $0xa0] sm:$0xff]
    %v184 = vld [vmem:[#allocation5 + $0xa8] sm:$0xff]
    %v185 = vld [vmem:[#allocation5 + $0xb0] sm:$0xff]
    %v186 = vld [vmem:[#allocation5 + $0xb8] sm:$0xff]
    %v187 = vld [vmem:[#allocation5 + $0xc0] sm:$0xff]
    %v188 = vld [vmem:[#allocation5 + $0xc8] sm:$0xff]
    %v189 = vld [vmem:[#allocation5 + $0xd0] sm:$0xff]
    %v190 = vld [vmem:[#allocation5 + $0xd8] sm:$0xff]
    %v191 = vld [vmem:[#allocation5 + $0xe0] sm:$0xff]
    %v192 = vld [vmem:[#allocation5 + $0xe8] sm:$0xff]
    %v193 = vld [vmem:[#allocation5 + $0xf0] sm:$0xff]
    %v194 = vld [vmem:[#allocation5 + $0xf8] sm:$0xff]
    %v195 = vld [vmem:[#allocation5 + $0x100] sm:$0xff]
    %v196 = vld [vmem:[#allocation5 + $0x108] sm:$0xff]
    %v197 = vld [vmem:[#allocation5 + $0x110] sm:$0xff]
    %v198 = vld [vmem:[#allocation5 + $0x118] sm:$0xff]
    %v199 = vld [vmem:[#allocation5 + $0x120] sm:$0xff]
    %v200 = vld [vmem:[#allocation5 + $0x128] sm:$0xff]
    %v201 = vld [vmem:[#allocation5 + $0x130] sm:$0xff]
    %v202 = vld [vmem:[#allocation5 + $0x138] sm:$0xff]
    %v203 = vld [vmem:[#allocation5 + $0x140] sm:$0xff]
    %v204 = vld [vmem:[#allocation5 + $0x148] sm:$0xff]
    %v205 = vld [vmem:[#allocation5 + $0x150] sm:$0xff]
    %v206 = vld [vmem:[#allocation5 + $0x158] sm:$0xff]
    %v207 = vld [vmem:[#allocation5 + $0x160] sm:$0xff]
    %v208 = vld [vmem:[#allocation5 + $0x168] sm:$0xff]
    %v209 = vld [vmem:[#allocation5 + $0x170] sm:$0xff]
    %v210 = vld [vmem:[#allocation5 + $0x178] sm:$0xff]
    %v211 = vld [vmem:[#allocation5 + $0x180] sm:$0xff]
    %v212 = vld [vmem:[#allocation5 + $0x188] sm:$0xff]
    %v213 = vld [vmem:[#allocation5 + $0x190] sm:$0xff]
    %v214 = vld [vmem:[#allocation5 + $0x198] sm:$0xff]
    %v215 = vld [vmem:[#allocation5 + $0x1a0] sm:$0xff]
    %v216 = vld [vmem:[#allocation5 + $0x1a8] sm:$0xff]
    %v217 = vld [vmem:[#allocation5 + $0x1b0] sm:$0xff]
    %v218 = vld [vmem:[#allocation5 + $0x1b8] sm:$0xff]
    %v219 = vld [vmem:[#allocation5 + $0x1c0] sm:$0xff]
    %v220 = vld [vmem:[#allocation5 + $0x1c8] sm:$0xff]
    %v221 = vld [vmem:[#allocation5 + $0x1d0] sm:$0xff]
    %v222 = vld [vmem:[#allocation5 + $0x1d8] sm:$0xff]
    %v223 = vld [vmem:[#allocation5 + $0x1e0] sm:$0xff]
    %v224 = vld [vmem:[#allocation5 + $0x1e8] sm:$0xff]
    %v225 = vld [vmem:[#allocation5 + $0x1f0] sm:$0xff]
    %v226 = vld [vmem:[#allocation5 + $0x1f8] sm:$0xff]
    %v227 = vld [vmem:[#allocation5 + $0x200] sm:$0xff]
    %v228 = vld [vmem:[#allocation5 + $0x208] sm:$0xff]
    %v229 = vld [vmem:[#allocation5 + $0x210] sm:$0xff]
    %v230 = vld [vmem:[#allocation5 + $0x218] sm:$0xff]
    %v231 = vld [vmem:[#allocation5 + $0x220] sm:$0xff]
    %v232 = vld [vmem:[#allocation5 + $0x228] sm:$0xff]
    %v233 = vld [vmem:[#allocation5 + $0x230] sm:$0xff]
    %v234 = vld [vmem:[#allocation5 + $0x238] sm:$0xff]
    %v235 = vld [vmem:[#allocation5 + $0x240] sm:$0xff]
    %v236 = vld [vmem:[#allocation5 + $0x248] sm:$0xff]
    %v237 = vld [vmem:[#allocation5 + $0x250] sm:$0xff]
    %v238 = vld [vmem:[#allocation5 + $0x258] sm:$0xff]
    %v239 = vld [vmem:[#allocation5 + $0x260] sm:$0xff]
    %v240 = vld [vmem:[#allocation5 + $0x268] sm:$0xff]
    %v241 = vld [vmem:[#allocation5 + $0x270] sm:$0xff]
    %v242 = vld [vmem:[#allocation5 + $0x278] sm:$0xff]
    %v243 = vld [vmem:[#allocation5 + $0x280] sm:$0xff]
    %v244 = vld [vmem:[#allocation5 + $0x288] sm:$0xff]
    %v245 = vld [vmem:[#allocation5 + $0x290] sm:$0xff]
    %v246 = vld [vmem:[#allocation5 + $0x298] sm:$0xff]
    %v247 = vld [vmem:[#allocation5 + $0x2a0] sm:$0xff]
    %v248 = vld [vmem:[#allocation5 + $0x2a8] sm:$0xff]
    %v249 = vld [vmem:[#allocation5 + $0x2b0] sm:$0xff]
    %v250 = vld [vmem:[#allocation5 + $0x2b8] sm:$0xff]
    %v251 = vld [vmem:[#allocation5 + $0x2c0] sm:$0xff]
    %v252 = vld [vmem:[#allocation5 + $0x2c8] sm:$0xff]
    %v253 = vld [vmem:[#allocation5 + $0x2d0] sm:$0xff]
    %v254 = vld [vmem:[#allocation5 + $0x2d8] sm:$0xff]
    %v255 = vld [vmem:[#allocation5 + $0x2e0] sm:$0xff]
    %v256 = vld [vmem:[#allocation5 + $0x2e8] sm:$0xff]
    %v257 = vld [vmem:[#allocation5 + $0x2f0] sm:$0xff]
    %v258 = vld [vmem:[#allocation5 + $0x2f8] sm:$0xff]
    %v259 = vld [vmem:[#allocation5 + $0x300] sm:$0xff]
    %v260 = vld [vmem:[#allocation5 + $0x308] sm:$0xff]
    %v261 = vld [vmem:[#allocation5 + $0x310] sm:$0xff]
    %v262 = vld [vmem:[#allocation5 + $0x318] sm:$0xff]
    %v263 = vld [vmem:[#allocation5 + $0x320] sm:$0xff]
    %v264 = vld [vmem:[#allocation5 + $0x328] sm:$0xff]
    %v265 = vld [vmem:[#allocation5 + $0x330] sm:$0xff]
    %v266 = vld [vmem:[#allocation5 + $0x338] sm:$0xff]
    %v267 = vld [vmem:[#allocation5 + $0x340] sm:$0xff]
    %v268 = vld [vmem:[#allocation5 + $0x348] sm:$0xff]
    %v269 = vld [vmem:[#allocation5 + $0x350] sm:$0xff]
    %v270 = vld [vmem:[#allocation5 + $0x358] sm:$0xff]
    %v271 = vld [vmem:[#allocation5 + $0x360] sm:$0xff]
    %v272 = vld [vmem:[#allocation5 + $0x368] sm:$0xff]
    %v273 = vld [vmem:[#allocation5 + $0x370] sm:$0xff]
    %v274 = vld [vmem:[#allocation5 + $0x378] sm:$0xff]
    %v275 = vld [vmem:[#allocation5 + $0x380] sm:$0xff]
    %v276 = vld [vmem:[#allocation5 + $0x388] sm:$0xff]
    %v277 = vld [vmem:[#allocation5 + $0x390] sm:$0xff]
    %v278 = vld [vmem:[#allocation5 + $0x398] sm:$0xff]
    %v279 = vld [vmem:[#allocation5 + $0x3a0] sm:$0xff]
    %v280 = vld [vmem:[#allocation5 + $0x3a8] sm:$0xff]
    %v281 = vld [vmem:[#allocation5 + $0x3b0] sm:$0xff]
    %v282 = vld [vmem:[#allocation5 + $0x3b8] sm:$0xff]
    %v283 = vld [vmem:[#allocation5 + $0x3c0] sm:$0xff]
    %v284 = vld [vmem:[#allocation5 + $0x3c8] sm:$0xff]
    %v285 = vld [vmem:[#allocation5 + $0x3d0] sm:$0xff]
    %v286 = vld [vmem:[#allocation5 + $0x3d8] sm:$0xff]
    %v287 = vld [vmem:[#allocation5 + $0x3e0] sm:$0xff]
    %v288 = vld [vmem:[#allocation5 + $0x3e8] sm:$0xff]
    %v289 = vld [vmem:[#allocation5 + $0x3f0] sm:$0xff]
    %v290 = vld [vmem:[#allocation5 + $0x3f8] sm:$0xff]
    %v291 = vld [vmem:[#allocation5 + $0x400] sm:$0xff]
    %v292 = vld [vmem:[#allocation5 + $0x408] sm:$0xff]
    %v293 = vld [vmem:[#allocation5 + $0x410] sm:$0xff]
    %v294 = vld [vmem:[#allocation5 + $0x418] sm:$0xff]
    %v295 = vld [vmem:[#allocation5 + $0x420] sm:$0xff]
    %v296 = vld [vmem:[#allocation5 + $0x428] sm:$0xff]
    %v297 = vld [vmem:[#allocation5 + $0x430] sm:$0xff]
    %v298 = vld [vmem:[#allocation5 + $0x438] sm:$0xff]
    %v299 = vld [vmem:[#allocation5 + $0x440] sm:$0xff]
    %v300 = vld [vmem:[#allocation5 + $0x448] sm:$0xff]
    %v301 = vld [vmem:[#allocation5 + $0x450] sm:$0xff]
    %v302 = vld [vmem:[#allocation5 + $0x458] sm:$0xff]
    %v303 = vld [vmem:[#allocation5 + $0x460] sm:$0xff]
    %v304 = vld [vmem:[#allocation5 + $0x468] sm:$0xff]
    %v305 = vld [vmem:[#allocation5 + $0x470] sm:$0xff]
    %v306 = vld [vmem:[#allocation5 + $0x478] sm:$0xff]
    %v307 = vld [vmem:[#allocation5 + $0x480] sm:$0xff]
    %v308 = vld [vmem:[#allocation5 + $0x488] sm:$0xff]
    %v309 = vld [vmem:[#allocation5 + $0x490] sm:$0xff]
    %v310 = vld [vmem:[#allocation5 + $0x498] sm:$0xff]
    %v311 = vld [vmem:[#allocation5 + $0x4a0] sm:$0xff]
    %v312 = vld [vmem:[#allocation5 + $0x4a8] sm:$0xff]
    %v313 = vld [vmem:[#allocation5 + $0x4b0] sm:$0xff]
    %v314 = vld [vmem:[#allocation5 + $0x4b8] sm:$0xff]
    %v315 = vld [vmem:[#allocation5 + $0x4c0] sm:$0xff]
    %v316 = vld [vmem:[#allocation5 + $0x4c8] sm:$0xff]
    %v317 = vld [vmem:[#allocation5 + $0x4d0] sm:$0xff]
    %v318 = vld [vmem:[#allocation5 + $0x4d8] sm:$0xff]
    %v319 = vld [vmem:[#allocation5 + $0x4e0] sm:$0xff]
    %v320 = vld [vmem:[#allocation5 + $0x4e8] sm:$0xff]
    %v321 = vld [vmem:[#allocation5 + $0x4f0] sm:$0xff]
    %v322 = vld [vmem:[#allocation5 + $0x4f8] sm:$0xff]
    %v323 = vld [vmem:[#allocation5 + $0x500] sm:$0xff]
    %v324 = vld [vmem:[#allocation5 + $0x508] sm:$0xff]
    %v325 = vld [vmem:[#allocation5 + $0x510] sm:$0xff]
    %v326 = vld [vmem:[#allocation5 + $0x518] sm:$0xff]
    %v327 = vld [vmem:[#allocation5 + $0x520] sm:$0xff]
    %v328 = vld [vmem:[#allocation5 + $0x528] sm:$0xff]
    %v329 = vld [vmem:[#allocation5 + $0x530] sm:$0xff]
    %v330 = vld [vmem:[#allocation5 + $0x538] sm:$0xff]
    %v331 = vld [vmem:[#allocation5 + $0x540] sm:$0xff]
    %v332 = vld [vmem:[#allocation5 + $0x548] sm:$0xff]
    %v333 = vld [vmem:[#allocation5 + $0x550] sm:$0xff]
    %v334 = vld [vmem:[#allocation5 + $0x558] sm:$0xff]
    %v335 = vld [vmem:[#allocation5 + $0x560] sm:$0xff]
    %v336 = vld [vmem:[#allocation5 + $0x568] sm:$0xff]
    %v337 = vld [vmem:[#allocation5 + $0x570] sm:$0xff]
    %v338 = vld [vmem:[#allocation5 + $0x578] sm:$0xff]
    %v339 = vld [vmem:[#allocation5 + $0x580] sm:$0xff]
    %v340 = vld [vmem:[#allocation5 + $0x588] sm:$0xff]
    %v341 = vld [vmem:[#allocation5 + $0x590] sm:$0xff]
    %v342 = vld [vmem:[#allocation5 + $0x598] sm:$0xff]
    %v343 = vld [vmem:[#allocation5 + $0x5a0] sm:$0xff]
    %v344 = vld [vmem:[#allocation5 + $0x5a8] sm:$0xff]
    %v345 = vld [vmem:[#allocation5 + $0x5b0] sm:$0xff]
    %v346 = vld [vmem:[#allocation5 + $0x5b8] sm:$0xff]
    %v347 = vld [vmem:[#allocation5 + $0x5c0] sm:$0xff]
    %v348 = vld [vmem:[#allocation5 + $0x5c8] sm:$0xff]
    %v349 = vld [vmem:[#allocation5 + $0x5d0] sm:$0xff]
    %v350 = vld [vmem:[#allocation5 + $0x5d8] sm:$0xff]
    %v351 = vld [vmem:[#allocation5 + $0x5e0] sm:$0xff]
    %v352 = vld [vmem:[#allocation5 + $0x5e8] sm:$0xff]
    %v353 = vld [vmem:[#allocation5 + $0x5f0] sm:$0xff]
    %v354 = vld [vmem:[#allocation5 + $0x5f8] sm:$0xff]
    %v355 = vld [vmem:[#allocation5 + $0x600] sm:$0xff]
    %v356 = vld [vmem:[#allocation5 + $0x608] sm:$0xff]
    %v357 = vld [vmem:[#allocation5 + $0x610] sm:$0xff]
    %v358 = vld [vmem:[#allocation5 + $0x618] sm:$0xff]
    %v359 = vld [vmem:[#allocation5 + $0x620] sm:$0xff]
    %v360 = vld [vmem:[#allocation5 + $0x628] sm:$0xff]
    %v361 = vld [vmem:[#allocation5 + $0x630] sm:$0xff]
    %v362 = vld [vmem:[#allocation5 + $0x638] sm:$0xff]
    %v363 = vld [vmem:[#allocation5 + $0x640] sm:$0xff]
    %v364 = vld [vmem:[#allocation5 + $0x648] sm:$0xff]
    %v365 = vld [vmem:[#allocation5 + $0x650] sm:$0xff]
    %v366 = vld [vmem:[#allocation5 + $0x658] sm:$0xff]
    %v367 = vld [vmem:[#allocation5 + $0x660] sm:$0xff]
    %v368 = vld [vmem:[#allocation5 + $0x668] sm:$0xff]
    %v369 = vld [vmem:[#allocation5 + $0x670] sm:$0xff]
    %v370 = vld [vmem:[#allocation5 + $0x678] sm:$0xff]
    %v371 = vld [vmem:[#allocation5 + $0x680] sm:$0xff]
    %v372 = vld [vmem:[#allocation5 + $0x688] sm:$0xff]
    %v373 = vld [vmem:[#allocation5 + $0x690] sm:$0xff]
    %v374 = vld [vmem:[#allocation5 + $0x698] sm:$0xff]
    %v375 = vld [vmem:[#allocation5 + $0x6a0] sm:$0xff]
    %v376 = vld [vmem:[#allocation5 + $0x6a8] sm:$0xff]
    %v377 = vld [vmem:[#allocation5 + $0x6b0] sm:$0xff]
    %v378 = vld [vmem:[#allocation5 + $0x6b8] sm:$0xff]
    %v379 = vld [vmem:[#allocation5 + $0x6c0] sm:$0xff]
    %v380 = vld [vmem:[#allocation5 + $0x6c8] sm:$0xff]
    %v381 = vld [vmem:[#allocation5 + $0x6d0] sm:$0xff]
    %v382 = vld [vmem:[#allocation5 + $0x6d8] sm:$0xff]
    %v383 = vld [vmem:[#allocation5 + $0x6e0] sm:$0xff]
    %v384 = vld [vmem:[#allocation5 + $0x6e8] sm:$0xff]
    %v385 = vld [vmem:[#allocation5 + $0x6f0] sm:$0xff]
    %v386 = vld [vmem:[#allocation5 + $0x6f8] sm:$0xff]
    %v387 = vld [vmem:[#allocation5 + $0x700] sm:$0xff]
    %v388 = vld [vmem:[#allocation5 + $0x708] sm:$0xff]
    %v389 = vld [vmem:[#allocation5 + $0x710] sm:$0xff]
    %v390 = vld [vmem:[#allocation5 + $0x718] sm:$0xff]
    %v391 = vld [vmem:[#allocation5 + $0x720] sm:$0xff]
    %v392 = vld [vmem:[#allocation5 + $0x728] sm:$0xff]
    %v393 = vld [vmem:[#allocation5 + $0x730] sm:$0xff]
    %v394 = vld [vmem:[#allocation5 + $0x738] sm:$0xff]
    %v395 = vld [vmem:[#allocation5 + $0x740] sm:$0xff]
    %v396 = vld [vmem:[#allocation5 + $0x748] sm:$0xff]
    %v397 = vld [vmem:[#allocation5 + $0x750] sm:$0xff]
    %v398 = vld [vmem:[#allocation5 + $0x758] sm:$0xff]
    %v399 = vld [vmem:[#allocation5 + $0x760] sm:$0xff]
    %v400 = vld [vmem:[#allocation5 + $0x768] sm:$0xff]
    %v401 = vld [vmem:[#allocation5 + $0x770] sm:$0xff]
    %v402 = vld [vmem:[#allocation5 + $0x778] sm:$0xff]
    %v403 = vld [vmem:[#allocation5 + $0x780] sm:$0xff]
    %v404 = vld [vmem:[#allocation5 + $0x788] sm:$0xff]
    %v405 = vld [vmem:[#allocation5 + $0x790] sm:$0xff]
    %v406 = vld [vmem:[#allocation5 + $0x798] sm:$0xff]
    %v407 = vld [vmem:[#allocation5 + $0x7a0] sm:$0xff]
    %v408 = vld [vmem:[#allocation5 + $0x7a8] sm:$0xff]
    %v409 = vld [vmem:[#allocation5 + $0x7b0] sm:$0xff]
    %v410 = vld [vmem:[#allocation5 + $0x7b8] sm:$0xff]
    %v411 = vld [vmem:[#allocation5 + $0x7c0] sm:$0xff]
    %v412 = vld [vmem:[#allocation5 + $0x7c8] sm:$0xff]
    %v413 = vld [vmem:[#allocation5 + $0x7d0] sm:$0xff]
    %v414 = vld [vmem:[#allocation5 + $0x7d8] sm:$0xff]
    %v415 = vld [vmem:[#allocation5 + $0x7e0] sm:$0xff]
    %v416 = vld [vmem:[#allocation5 + $0x7e8] sm:$0xff]
    %v417 = vld [vmem:[#allocation5 + $0x7f0] sm:$0xff]
    %v418 = vld [vmem:[#allocation5 + $0x7f8] sm:$0xff]
    %v419 = vld [vmem:[#allocation5 + $0x800] sm:$0xff]
    %v420 = vld [vmem:[#allocation5 + $0x808] sm:$0xff]
    %v421 = vld [vmem:[#allocation5 + $0x810] sm:$0xff]
    %v422 = vld [vmem:[#allocation5 + $0x818] sm:$0xff]
    %v423 = vld [vmem:[#allocation5 + $0x820] sm:$0xff]
    %v424 = vld [vmem:[#allocation5 + $0x828] sm:$0xff]
    %v425 = vld [vmem:[#allocation5 + $0x830] sm:$0xff]
    %v426 = vld [vmem:[#allocation5 + $0x838] sm:$0xff]
    %v427 = vld [vmem:[#allocation5 + $0x840] sm:$0xff]
    %v428 = vld [vmem:[#allocation5 + $0x848] sm:$0xff]
    %v429 = vld [vmem:[#allocation5 + $0x850] sm:$0xff]
    %v430 = vld [vmem:[#allocation5 + $0x858] sm:$0xff]
    %v431 = vld [vmem:[#allocation5 + $0x860] sm:$0xff]
    %v432 = vld [vmem:[#allocation5 + $0x868] sm:$0xff]
    %v433 = vld [vmem:[#allocation5 + $0x870] sm:$0xff]
    %v434 = vld [vmem:[#allocation5 + $0x878] sm:$0xff]
    %v435 = vld [vmem:[#allocation5 + $0x880] sm:$0xff]
    %v436 = vld [vmem:[#allocation5 + $0x888] sm:$0xff]
    %v437 = vld [vmem:[#allocation5 + $0x890] sm:$0xff]
    %v438 = vld [vmem:[#allocation5 + $0x898] sm:$0xff]
    %v439 = vld [vmem:[#allocation5 + $0x8a0] sm:$0xff]
    %v440 = vld [vmem:[#allocation5 + $0x8a8] sm:$0xff]
    %v441 = vld [vmem:[#allocation5 + $0x8b0] sm:$0xff]
    %v442 = vld [vmem:[#allocation5 + $0x8b8] sm:$0xff]
    %v443 = vld [vmem:[#allocation5 + $0x8c0] sm:$0xff]
    %v444 = vld [vmem:[#allocation5 + $0x8c8] sm:$0xff]
    %v445 = vld [vmem:[#allocation5 + $0x8d0] sm:$0xff]
    %v446 = vld [vmem:[#allocation5 + $0x8d8] sm:$0xff]
    %v447 = vld [vmem:[#allocation5 + $0x8e0] sm:$0xff]
    %v448 = vld [vmem:[#allocation5 + $0x8e8] sm:$0xff]
    %v449 = vld [vmem:[#allocation5 + $0x8f0] sm:$0xff]
    %v450 = vld [vmem:[#allocation5 + $0x8f8] sm:$0xff]
    %v451 = vld [vmem:[#allocation5 + $0x900] sm:$0xff]
    %v452 = vld [vmem:[#allocation5 + $0x908] sm:$0xff]
    %v453 = vld [vmem:[#allocation5 + $0x910] sm:$0xff]
    %v454 = vld [vmem:[#allocation5 + $0x918] sm:$0xff]
    %v455 = vld [vmem:[#allocation5 + $0x920] sm:$0xff]
    %v456 = vld [vmem:[#allocation5 + $0x928] sm:$0xff]
    %v457 = vld [vmem:[#allocation5 + $0x930] sm:$0xff]
    %v458 = vld [vmem:[#allocation5 + $0x938] sm:$0xff]
    %v459 = vld [vmem:[#allocation5 + $0x940] sm:$0xff]
    %v460 = vld [vmem:[#allocation5 + $0x948] sm:$0xff]
    %v461 = vld [vmem:[#allocation5 + $0x950] sm:$0xff]
    %v462 = vld [vmem:[#allocation5 + $0x958] sm:$0xff]
    %v463 = vld [vmem:[#allocation5 + $0x960] sm:$0xff]
    %v464 = vld [vmem:[#allocation5 + $0x968] sm:$0xff]
    %v465 = vld [vmem:[#allocation5 + $0x970] sm:$0xff]
    %v466 = vld [vmem:[#allocation5 + $0x978] sm:$0xff]
    %v467 = vld [vmem:[#allocation5 + $0x980] sm:$0xff]
    %v468 = vld [vmem:[#allocation5 + $0x988] sm:$0xff]
    %v469 = vld [vmem:[#allocation5 + $0x990] sm:$0xff]
    %v470 = vld [vmem:[#allocation5 + $0x998] sm:$0xff]
    %v471 = vld [vmem:[#allocation5 + $0x9a0] sm:$0xff]
    %v472 = vld [vmem:[#allocation5 + $0x9a8] sm:$0xff]
    %v473 = vld [vmem:[#allocation5 + $0x9b0] sm:$0xff]
    %v474 = vld [vmem:[#allocation5 + $0x9b8] sm:$0xff]
    %v475 = vld [vmem:[#allocation5 + $0x9c0] sm:$0xff]
    %v476 = vld [vmem:[#allocation5 + $0x9c8] sm:$0xff]
    %v477 = vld [vmem:[#allocation5 + $0x9d0] sm:$0xff]
    %v478 = vld [vmem:[#allocation5 + $0x9d8] sm:$0xff]
    %v479 = vld [vmem:[#allocation5 + $0x9e0] sm:$0xff]
    %v480 = vld [vmem:[#allocation5 + $0x9e8] sm:$0xff]
    %v481 = vld [vmem:[#allocation5 + $0x9f0] sm:$0xff]
    %v482 = vld [vmem:[#allocation5 + $0x9f8] sm:$0xff]
    %v483 = vld [vmem:[#allocation5 + $0xa00] sm:$0xff]
    %v484 = vld [vmem:[#allocation5 + $0xa08] sm:$0xff]
    %v485 = vld [vmem:[#allocation5 + $0xa10] sm:$0xff]
    %v486 = vld [vmem:[#allocation5 + $0xa18] sm:$0xff]
    %v487 = vld [vmem:[#allocation5 + $0xa20] sm:$0xff]
    %v488 = vld [vmem:[#allocation5 + $0xa28] sm:$0xff]
    %v489 = vld [vmem:[#allocation5 + $0xa30] sm:$0xff]
    %v490 = vld [vmem:[#allocation5 + $0xa38] sm:$0xff]
    %v491 = vld [vmem:[#allocation5 + $0xa40] sm:$0xff]
    %v492 = vld [vmem:[#allocation5 + $0xa48] sm:$0xff]
    %v493 = vld [vmem:[#allocation5 + $0xa50] sm:$0xff]
    %v494 = vld [vmem:[#allocation5 + $0xa58] sm:$0xff]
    %v495 = vld [vmem:[#allocation5 + $0xa60] sm:$0xff]
    %v496 = vld [vmem:[#allocation5 + $0xa68] sm:$0xff]
    %v497 = vld [vmem:[#allocation5 + $0xa70] sm:$0xff]
    %v498 = vld [vmem:[#allocation5 + $0xa78] sm:$0xff]
    %v499 = vld [vmem:[#allocation5 + $0xa80] sm:$0xff]
    %v500 = vld [vmem:[#allocation5 + $0xa88] sm:$0xff]
    %v501 = vld [vmem:[#allocation5 + $0xa90] sm:$0xff]
    %v502 = vld [vmem:[#allocation5 + $0xa98] sm:$0xff]
    %v503 = vld [vmem:[#allocation5 + $0xaa0] sm:$0xff]
    %v504 = vld [vmem:[#allocation5 + $0xaa8] sm:$0xff]
    %v505 = vld [vmem:[#allocation5 + $0xab0] sm:$0xff]
    %v506 = vld [vmem:[#allocation5 + $0xab8] sm:$0xff]
    %v507 = vld [vmem:[#allocation5 + $0xac0] sm:$0xff]
    %v508 = vld [vmem:[#allocation5 + $0xac8] sm:$0xff]
    %v509 = vld [vmem:[#allocation5 + $0xad0] sm:$0xff]
    %v510 = vld [vmem:[#allocation5 + $0xad8] sm:$0xff]
    %v511 = vld [vmem:[#allocation5 + $0xae0] sm:$0xff]
    %v512 = vld [vmem:[#allocation5 + $0xae8] sm:$0xff]
    %v513 = vld [vmem:[#allocation5 + $0xaf0] sm:$0xff]
    %v514 = vld [vmem:[#allocation5 + $0xaf8] sm:$0xff]
    %v515 = vld [vmem:[#allocation5 + $0xb00] sm:$0xff]
    %v516 = vld [vmem:[#allocation5 + $0xb08] sm:$0xff]
    %v517 = vld [vmem:[#allocation5 + $0xb10] sm:$0xff]
    %v518 = vld [vmem:[#allocation5 + $0xb18] sm:$0xff]
    %v519 = vld [vmem:[#allocation5 + $0xb20] sm:$0xff]
    %v520 = vld [vmem:[#allocation5 + $0xb28] sm:$0xff]
    %v521 = vld [vmem:[#allocation5 + $0xb30] sm:$0xff]
    %v522 = vld [vmem:[#allocation5 + $0xb38] sm:$0xff]
    %v523 = vld [vmem:[#allocation5 + $0xb40] sm:$0xff]
    %v524 = vld [vmem:[#allocation5 + $0xb48] sm:$0xff]
    %v525 = vld [vmem:[#allocation5 + $0xb50] sm:$0xff]
    %v526 = vld [vmem:[#allocation5 + $0xb58] sm:$0xff]
    %v527 = vld [vmem:[#allocation5 + $0xb60] sm:$0xff]
    %v528 = vld [vmem:[#allocation5 + $0xb68] sm:$0xff]
    %v529 = vld [vmem:[#allocation5 + $0xb70] sm:$0xff]
    %v530 = vld [vmem:[#allocation5 + $0xb78] sm:$0xff]
    %v531 = vld [vmem:[#allocation5 + $0xb80] sm:$0xff]
    %v532 = vld [vmem:[#allocation5 + $0xb88] sm:$0xff]
    %v533 = vld [vmem:[#allocation5 + $0xb90] sm:$0xff]
    %v534 = vld [vmem:[#allocation5 + $0xb98] sm:$0xff]
    %v535 = vld [vmem:[#allocation5 + $0xba0] sm:$0xff]
    %v536 = vld [vmem:[#allocation5 + $0xba8] sm:$0xff]
    %v537 = vld [vmem:[#allocation5 + $0xbb0] sm:$0xff]
    %v538 = vld [vmem:[#allocation5 + $0xbb8] sm:$0xff]
    %v539 = vld [vmem:[#allocation5 + $0xbc0] sm:$0xff]
    %v540 = vld [vmem:[#allocation5 + $0xbc8] sm:$0xff]
    %v541 = vld [vmem:[#allocation5 + $0xbd0] sm:$0xff]
    %v542 = vld [vmem:[#allocation5 + $0xbd8] sm:$0xff]
    %v543 = vld [vmem:[#allocation5 + $0xbe0] sm:$0xff]
    %v544 = vld [vmem:[#allocation5 + $0xbe8] sm:$0xff]
    %v545 = vld [vmem:[#allocation5 + $0xbf0] sm:$0xff]
    %v546 = vld [vmem:[#allocation5 + $0xbf8] sm:$0xff]
    %v547 = vld [vmem:[#allocation5 + $0xc00] sm:$0xff]
    %v548 = vld [vmem:[#allocation5 + $0xc08] sm:$0xff]
    %v549 = vld [vmem:[#allocation5 + $0xc10] sm:$0xff]
    %v550 = vld [vmem:[#allocation5 + $0xc18] sm:$0xff]
    %v551 = vld [vmem:[#allocation5 + $0xc20] sm:$0xff]
    %v552 = vld [vmem:[#allocation5 + $0xc28] sm:$0xff]
    %v553 = vld [vmem:[#allocation5 + $0xc30] sm:$0xff]
    %v554 = vld [vmem:[#allocation5 + $0xc38] sm:$0xff]
    %v555 = vld [vmem:[#allocation5 + $0xc40] sm:$0xff]
    %v556 = vld [vmem:[#allocation5 + $0xc48] sm:$0xff]
    %v557 = vld [vmem:[#allocation5 + $0xc50] sm:$0xff]
    %v558 = vld [vmem:[#allocation5 + $0xc58] sm:$0xff]
    %v559 = vld [vmem:[#allocation5 + $0xc60] sm:$0xff]
    %v560 = vld [vmem:[#allocation5 + $0xc68] sm:$0xff]
    %v561 = vld [vmem:[#allocation5 + $0xc70] sm:$0xff]
    %v562 = vld [vmem:[#allocation5 + $0xc78] sm:$0xff]
    %v563 = vld [vmem:[#allocation5 + $0xc80] sm:$0xff]
    %v564 = vld [vmem:[#allocation5 + $0xc88] sm:$0xff]
    %v565 = vld [vmem:[#allocation5 + $0xc90] sm:$0xff]
    %v566 = vld [vmem:[#allocation5 + $0xc98] sm:$0xff]
    %v567 = vld [vmem:[#allocation5 + $0xca0] sm:$0xff]
    %v568 = vld [vmem:[#allocation5 + $0xca8] sm:$0xff]
    %v569 = vld [vmem:[#allocation5 + $0xcb0] sm:$0xff]
    %v570 = vld [vmem:[#allocation5 + $0xcb8] sm:$0xff]
    %v571 = vld [vmem:[#allocation5 + $0xcc0] sm:$0xff]
    %v572 = vld [vmem:[#allocation5 + $0xcc8] sm:$0xff]
    %v573 = vld [vmem:[#allocation5 + $0xcd0] sm:$0xff]
    %v574 = vld [vmem:[#allocation5 + $0xcd8] sm:$0xff]
    %v575 = vld [vmem:[#allocation5 + $0xce0] sm:$0xff]
    %v576 = vld [vmem:[#allocation5 + $0xce8] sm:$0xff]
    %v577 = vld [vmem:[#allocation5 + $0xcf0] sm:$0xff]
    %v578 = vld [vmem:[#allocation5 + $0xcf8] sm:$0xff]
    %v579 = vld [vmem:[#allocation5 + $0xd00] sm:$0xff]
    %v580 = vld [vmem:[#allocation5 + $0xd08] sm:$0xff]
    %v581 = vld [vmem:[#allocation5 + $0xd10] sm:$0xff]
    %v582 = vld [vmem:[#allocation5 + $0xd18] sm:$0xff]
    %v583 = vld [vmem:[#allocation5 + $0xd20] sm:$0xff]
    %v584 = vld [vmem:[#allocation5 + $0xd28] sm:$0xff]
    %v585 = vld [vmem:[#allocation5 + $0xd30] sm:$0xff]
    %v586 = vld [vmem:[#allocation5 + $0xd38] sm:$0xff]
    %v587 = vld [vmem:[#allocation5 + $0xd40] sm:$0xff]
    %v588 = vld [vmem:[#allocation5 + $0xd48] sm:$0xff]
    %v589 = vld [vmem:[#allocation5 + $0xd50] sm:$0xff]
    %v590 = vld [vmem:[#allocation5 + $0xd58] sm:$0xff]
    %v591 = vld [vmem:[#allocation5 + $0xd60] sm:$0xff]
    %v592 = vld [vmem:[#allocation5 + $0xd68] sm:$0xff]
    %v593 = vld [vmem:[#allocation5 + $0xd70] sm:$0xff]
    %v594 = vld [vmem:[#allocation5 + $0xd78] sm:$0xff]
    %v595 = vld [vmem:[#allocation5 + $0xd80] sm:$0xff]
    %v596 = vld [vmem:[#allocation5 + $0xd88] sm:$0xff]
    %v597 = vld [vmem:[#allocation5 + $0xd90] sm:$0xff]
    %v598 = vld [vmem:[#allocation5 + $0xd98] sm:$0xff]
    %v599 = vld [vmem:[#allocation5 + $0xda0] sm:$0xff]
    %v600 = vld [vmem:[#allocation5 + $0xda8] sm:$0xff]
    %v601 = vld [vmem:[#allocation5 + $0xdb0] sm:$0xff]
    %v602 = vld [vmem:[#allocation5 + $0xdb8] sm:$0xff]
    %v603 = vld [vmem:[#allocation5 + $0xdc0] sm:$0xff]
    %v604 = vld [vmem:[#allocation5 + $0xdc8] sm:$0xff]
    %v605 = vld [vmem:[#allocation5 + $0xdd0] sm:$0xff]
    %v606 = vld [vmem:[#allocation5 + $0xdd8] sm:$0xff]
    %v607 = vld [vmem:[#allocation5 + $0xde0] sm:$0xff]
    %v608 = vld [vmem:[#allocation5 + $0xde8] sm:$0xff]
    %v609 = vld [vmem:[#allocation5 + $0xdf0] sm:$0xff]
    %v610 = vld [vmem:[#allocation5 + $0xdf8] sm:$0xff]
    %v611 = vld [vmem:[#allocation5 + $0xe00] sm:$0xff]
    %v612 = vld [vmem:[#allocation5 + $0xe08] sm:$0xff]
    %v613 = vld [vmem:[#allocation5 + $0xe10] sm:$0xff]
    %v614 = vld [vmem:[#allocation5 + $0xe18] sm:$0xff]
    %v615 = vld [vmem:[#allocation5 + $0xe20] sm:$0xff]
    %v616 = vld [vmem:[#allocation5 + $0xe28] sm:$0xff]
    %v617 = vld [vmem:[#allocation5 + $0xe30] sm:$0xff]
    %v618 = vld [vmem:[#allocation5 + $0xe38] sm:$0xff]
    %v619 = vld [vmem:[#allocation5 + $0xe40] sm:$0xff]
    %v620 = vld [vmem:[#allocation5 + $0xe48] sm:$0xff]
    %v621 = vld [vmem:[#allocation5 + $0xe50] sm:$0xff]
    %v622 = vld [vmem:[#allocation5 + $0xe58] sm:$0xff]
    %v623 = vld [vmem:[#allocation5 + $0xe60] sm:$0xff]
    %v624 = vld [vmem:[#allocation5 + $0xe68] sm:$0xff]
    %v625 = vld [vmem:[#allocation5 + $0xe70] sm:$0xff]
    %v626 = vld [vmem:[#allocation5 + $0xe78] sm:$0xff]
    %v627 = vld [vmem:[#allocation5 + $0xe80] sm:$0xff]
    %v628 = vld [vmem:[#allocation5 + $0xe88] sm:$0xff]
    %v629 = vld [vmem:[#allocation5 + $0xe90] sm:$0xff]
    %v630 = vld [vmem:[#allocation5 + $0xe98] sm:$0xff]
    %v631 = vld [vmem:[#allocation5 + $0xea0] sm:$0xff]
    %v632 = vld [vmem:[#allocation5 + $0xea8] sm:$0xff]
    %v633 = vld [vmem:[#allocation5 + $0xeb0] sm:$0xff]
    %v634 = vld [vmem:[#allocation5 + $0xeb8] sm:$0xff]
    %v635 = vld [vmem:[#allocation5 + $0xec0] sm:$0xff]
    %v636 = vld [vmem:[#allocation5 + $0xec8] sm:$0xff]
    %v637 = vld [vmem:[#allocation5 + $0xed0] sm:$0xff]
    %v638 = vld [vmem:[#allocation5 + $0xed8] sm:$0xff]
    %v639 = vld [vmem:[#allocation5 + $0xee0] sm:$0xff]
    %v640 = vld [vmem:[#allocation5 + $0xee8] sm:$0xff]
    %v641 = vld [vmem:[#allocation5 + $0xef0] sm:$0xff]
    %v642 = vld [vmem:[#allocation5 + $0xef8] sm:$0xff]
    %v643 = vld [vmem:[#allocation5 + $0xf00] sm:$0xff]
    %v644 = vld [vmem:[#allocation5 + $0xf08] sm:$0xff]
    %v645 = vld [vmem:[#allocation5 + $0xf10] sm:$0xff]
    %v646 = vld [vmem:[#allocation5 + $0xf18] sm:$0xff]
    %v647 = vld [vmem:[#allocation5 + $0xf20] sm:$0xff]
    %v648 = vld [vmem:[#allocation5 + $0xf28] sm:$0xff]
    %v649 = vld [vmem:[#allocation5 + $0xf30] sm:$0xff]
    %v650 = vld [vmem:[#allocation5 + $0xf38] sm:$0xff]
    %v651 = vld [vmem:[#allocation5 + $0xf40] sm:$0xff]
    %v652 = vld [vmem:[#allocation5 + $0xf48] sm:$0xff]
    %v653 = vld [vmem:[#allocation5 + $0xf50] sm:$0xff]
    %v654 = vld [vmem:[#allocation5 + $0xf58] sm:$0xff]
    %v655 = vld [vmem:[#allocation5 + $0xf60] sm:$0xff]
    %v656 = vld [vmem:[#allocation5 + $0xf68] sm:$0xff]
    %v657 = vld [vmem:[#allocation5 + $0xf70] sm:$0xff]
    %v658 = vld [vmem:[#allocation5 + $0xf78] sm:$0xff]
    %v659 = vld [vmem:[#allocation5 + $0xf80] sm:$0xff]
    %v660 = vld [vmem:[#allocation5 + $0xf88] sm:$0xff]
    %v661 = vld [vmem:[#allocation5 + $0xf90] sm:$0xff]
    %v662 = vld [vmem:[#allocation5 + $0xf98] sm:$0xff]
    %v663 = vld [vmem:[#allocation5 + $0xfa0] sm:$0xff]
    %v664 = vld [vmem:[#allocation5 + $0xfa8] sm:$0xff]
    %v665 = vld [vmem:[#allocation5 + $0xfb0] sm:$0xff]
    %v666 = vld [vmem:[#allocation5 + $0xfb8] sm:$0xff]
    %v667 = vld [vmem:[#allocation5 + $0xfc0] sm:$0xff]
    %v668 = vld [vmem:[#allocation5 + $0xfc8] sm:$0xff]
    %v669 = vld [vmem:[#allocation5 + $0xfd0] sm:$0xff]
    %v670 = vld [vmem:[#allocation5 + $0xfd8] sm:$0xff]
    %v671 = vld [vmem:[#allocation5 + $0xfe0] sm:$0xff]
    %v672 = vld [vmem:[#allocation5 + $0xfe8] sm:$0xff]
    %v673 = vld [vmem:[#allocation5 + $0xff0] sm:$0xff]
    %v674 = vld [vmem:[#allocation5 + $0xff8] sm:$0xff]
    %v675 = vld [vmem:[#allocation5 + $0x1000] sm:$0xff]
    %v676 = vld [vmem:[#allocation5 + $0x1008] sm:$0xff]
    %v677 = vld [vmem:[#allocation5 + $0x1010] sm:$0xff]
    %v678 = vld [vmem:[#allocation5 + $0x1018] sm:$0xff]
    %v679 = vld [vmem:[#allocation5 + $0x1020] sm:$0xff]
    %v680 = vld [vmem:[#allocation5 + $0x1028] sm:$0xff]
    %v681 = vld [vmem:[#allocation5 + $0x1030] sm:$0xff]
    %v682 = vld [vmem:[#allocation5 + $0x1038] sm:$0xff]
    %v683 = vld [vmem:[#allocation5 + $0x1040] sm:$0xff]
    %v684 = vld [vmem:[#allocation5 + $0x1048] sm:$0xff]
    %v685 = vld [vmem:[#allocation5 + $0x1050] sm:$0xff]
    %v686 = vld [vmem:[#allocation5 + $0x1058] sm:$0xff]
    %v687 = vld [vmem:[#allocation5 + $0x1060] sm:$0xff]
    %v688 = vld [vmem:[#allocation5 + $0x1068] sm:$0xff]
    %v689 = vld [vmem:[#allocation5 + $0x1070] sm:$0xff]
    %v690 = vld [vmem:[#allocation5 + $0x1078] sm:$0xff]
    %v691 = vld [vmem:[#allocation5 + $0x1080] sm:$0xff]
    %v692 = vld [vmem:[#allocation5 + $0x1088] sm:$0xff]
    %v693 = vld [vmem:[#allocation5 + $0x1090] sm:$0xff]
    %v694 = vld [vmem:[#allocation5 + $0x1098] sm:$0xff]
    %v695 = vld [vmem:[#allocation5 + $0x10a0] sm:$0xff]
    %v696 = vld [vmem:[#allocation5 + $0x10a8] sm:$0xff]
    %v697 = vld [vmem:[#allocation5 + $0x10b0] sm:$0xff]
    %v698 = vld [vmem:[#allocation5 + $0x10b8] sm:$0xff]
    %v699 = vld [vmem:[#allocation5 + $0x10c0] sm:$0xff]
    %v700 = vld [vmem:[#allocation5 + $0x10c8] sm:$0xff]
    %v701 = vld [vmem:[#allocation5 + $0x10d0] sm:$0xff]
    %v702 = vld [vmem:[#allocation5 + $0x10d8] sm:$0xff]
    %v703 = vld [vmem:[#allocation5 + $0x10e0] sm:$0xff]
    %v704 = vld [vmem:[#allocation5 + $0x10e8] sm:$0xff]
    %v705 = vld [vmem:[#allocation5 + $0x10f0] sm:$0xff]
    %v706 = vld [vmem:[#allocation5 + $0x10f8] sm:$0xff]
    %v707 = vld [vmem:[#allocation5 + $0x1100] sm:$0xff]
    %v708 = vld [vmem:[#allocation5 + $0x1108] sm:$0xff]
    %v709 = vld [vmem:[#allocation5 + $0x1110] sm:$0xff]
    %v710 = vld [vmem:[#allocation5 + $0x1118] sm:$0xff]
    %v711 = vld [vmem:[#allocation5 + $0x1120] sm:$0xff]
    %v712 = vld [vmem:[#allocation5 + $0x1128] sm:$0xff]
    %v713 = vld [vmem:[#allocation5 + $0x1130] sm:$0xff]
    %v714 = vld [vmem:[#allocation5 + $0x1138] sm:$0xff]
    %v715 = vld [vmem:[#allocation5 + $0x1140] sm:$0xff]
    %v716 = vld [vmem:[#allocation5 + $0x1148] sm:$0xff]
    %v717 = vld [vmem:[#allocation5 + $0x1150] sm:$0xff]
    %v718 = vld [vmem:[#allocation5 + $0x1158] sm:$0xff]
    %v719 = vld [vmem:[#allocation5 + $0x1160] sm:$0xff]
    %v720 = vld [vmem:[#allocation5 + $0x1168] sm:$0xff]
    %v721 = vld [vmem:[#allocation5 + $0x1170] sm:$0xff]
    %v722 = vld [vmem:[#allocation5 + $0x1178] sm:$0xff]
    %v723 = vld [vmem:[#allocation5 + $0x1180] sm:$0xff]
    %v724 = vld [vmem:[#allocation5 + $0x1188] sm:$0xff]
    %v725 = vld [vmem:[#allocation5 + $0x1190] sm:$0xff]
    %v726 = vld [vmem:[#allocation5 + $0x1198] sm:$0xff]
    %v727 = vld [vmem:[#allocation5 + $0x11a0] sm:$0xff]
    %v728 = vld [vmem:[#allocation5 + $0x11a8] sm:$0xff]
    %v729 = vld [vmem:[#allocation5 + $0x11b0] sm:$0xff]
    %v730 = vld [vmem:[#allocation5 + $0x11b8] sm:$0xff]
    %v731 = vld [vmem:[#allocation5 + $0x11c0] sm:$0xff]
    %v732 = vld [vmem:[#allocation5 + $0x11c8] sm:$0xff]
    %v733 = vld [vmem:[#allocation5 + $0x11d0] sm:$0xff]
    %v734 = vld [vmem:[#allocation5 + $0x11d8] sm:$0xff]
    %v735 = vld [vmem:[#allocation5 + $0x11e0] sm:$0xff]
    %v736 = vld [vmem:[#allocation5 + $0x11e8] sm:$0xff]
    %v737 = vld [vmem:[#allocation5 + $0x11f0] sm:$0xff]
    %v738 = vld [vmem:[#allocation5 + $0x11f8] sm:$0xff]
    %v739 = vld [vmem:[#allocation5 + $0x1200] sm:$0xff]
    %v740 = vld [vmem:[#allocation5 + $0x1208] sm:$0xff]
    %v741 = vld [vmem:[#allocation5 + $0x1210] sm:$0xff]
    %v742 = vld [vmem:[#allocation5 + $0x1218] sm:$0xff]
    %v743 = vld [vmem:[#allocation5 + $0x1220] sm:$0xff]
    %v744 = vld [vmem:[#allocation5 + $0x1228] sm:$0xff]
    %v745 = vld [vmem:[#allocation5 + $0x1230] sm:$0xff]
    %v746 = vld [vmem:[#allocation5 + $0x1238] sm:$0xff]
    %v747 = vld [vmem:[#allocation5 + $0x1240] sm:$0xff]
    %v748 = vld [vmem:[#allocation5 + $0x1248] sm:$0xff]
    %v749 = vld [vmem:[#allocation5 + $0x1250] sm:$0xff]
    %v750 = vld [vmem:[#allocation5 + $0x1258] sm:$0xff]
    %v751 = vld [vmem:[#allocation5 + $0x1260] sm:$0xff]
    %v752 = vld [vmem:[#allocation5 + $0x1268] sm:$0xff]
    %v753 = vld [vmem:[#allocation5 + $0x1270] sm:$0xff]
    %v754 = vld [vmem:[#allocation5 + $0x1278] sm:$0xff]
    %v755 = vld [vmem:[#allocation5 + $0x1280] sm:$0xff]
    %v756 = vld [vmem:[#allocation5 + $0x1288] sm:$0xff]
    %v757 = vld [vmem:[#allocation5 + $0x1290] sm:$0xff]
    %v758 = vld [vmem:[#allocation5 + $0x1298] sm:$0xff]
    %v759 = vld [vmem:[#allocation5 + $0x12a0] sm:$0xff]
    %v760 = vld [vmem:[#allocation5 + $0x12a8] sm:$0xff]
    %v761 = vld [vmem:[#allocation5 + $0x12b0] sm:$0xff]
    %v762 = vld [vmem:[#allocation5 + $0x12b8] sm:$0xff]
    %v763 = vld [vmem:[#allocation5 + $0x12c0] sm:$0xff]
    %v764 = vld [vmem:[#allocation5 + $0x12c8] sm:$0xff]
    %v765 = vld [vmem:[#allocation5 + $0x12d0] sm:$0xff]
    %v766 = vld [vmem:[#allocation5 + $0x12d8] sm:$0xff]
    %v767 = vld [vmem:[#allocation5 + $0x12e0] sm:$0xff]
    %v768 = vld [vmem:[#allocation5 + $0x12e8] sm:$0xff]
    %v769 = vld [vmem:[#allocation5 + $0x12f0] sm:$0xff]
    %v770 = vld [vmem:[#allocation5 + $0x12f8] sm:$0xff]
    %v771 = vld [vmem:[#allocation5 + $0x1300] sm:$0xff]
    %v772 = vld [vmem:[#allocation5 + $0x1308] sm:$0xff]
    %v773 = vld [vmem:[#allocation5 + $0x1310] sm:$0xff]
    %v774 = vld [vmem:[#allocation5 + $0x1318] sm:$0xff]
    %v775 = vld [vmem:[#allocation5 + $0x1320] sm:$0xff]
    %v776 = vld [vmem:[#allocation5 + $0x1328] sm:$0xff]
    %v777 = vld [vmem:[#allocation5 + $0x1330] sm:$0xff]
    %v778 = vld [vmem:[#allocation5 + $0x1338] sm:$0xff]
    %v779 = vld [vmem:[#allocation5 + $0x1340] sm:$0xff]
    %v780 = vld [vmem:[#allocation5 + $0x1348] sm:$0xff]
    %v781 = vld [vmem:[#allocation5 + $0x1350] sm:$0xff]
    %v782 = vld [vmem:[#allocation5 + $0x1358] sm:$0xff]
    %v783 = vld [vmem:[#allocation5 + $0x1360] sm:$0xff]
    %v784 = vld [vmem:[#allocation5 + $0x1368] sm:$0xff]
    %v785 = vld [vmem:[#allocation5 + $0x1370] sm:$0xff]
    %v786 = vld [vmem:[#allocation5 + $0x1378] sm:$0xff]
    %v787 = vld [vmem:[#allocation5 + $0x1380] sm:$0xff]
    %v788 = vld [vmem:[#allocation5 + $0x1388] sm:$0xff]
    %v789 = vld [vmem:[#allocation5 + $0x1390] sm:$0xff]
    %v790 = vld [vmem:[#allocation5 + $0x1398] sm:$0xff]
    %v791 = vld [vmem:[#allocation5 + $0x13a0] sm:$0xff]
    %v792 = vld [vmem:[#allocation5 + $0x13a8] sm:$0xff]
    %v793 = vld [vmem:[#allocation5 + $0x13b0] sm:$0xff]
    %v794 = vld [vmem:[#allocation5 + $0x13b8] sm:$0xff]
    %v795 = vld [vmem:[#allocation5 + $0x13c0] sm:$0xff]
    %v796 = vld [vmem:[#allocation5 + $0x13c8] sm:$0xff]
    %v797 = vld [vmem:[#allocation5 + $0x13d0] sm:$0xff]
    %v798 = vld [vmem:[#allocation5 + $0x13d8] sm:$0xff]
    %v799 = vld [vmem:[#allocation5 + $0x13e0] sm:$0xff]
    %v800 = vld [vmem:[#allocation5 + $0x13e8] sm:$0xff]
    %v801 = vld [vmem:[#allocation5 + $0x13f0] sm:$0xff]
    %v802 = vld [vmem:[#allocation5 + $0x13f8] sm:$0xff]
    %v803 = vld [vmem:[#allocation5 + $0x1400] sm:$0xff]
    %v804 = vld [vmem:[#allocation5 + $0x1408] sm:$0xff]
    %v805 = vld [vmem:[#allocation5 + $0x1410] sm:$0xff]
    %v806 = vld [vmem:[#allocation5 + $0x1418] sm:$0xff]
    %v807 = vld [vmem:[#allocation5 + $0x1420] sm:$0xff]
    %v808 = vld [vmem:[#allocation5 + $0x1428] sm:$0xff]
    %v809 = vld [vmem:[#allocation5 + $0x1430] sm:$0xff]
    %v810 = vld [vmem:[#allocation5 + $0x1438] sm:$0xff]
    %v811 = vld [vmem:[#allocation5 + $0x1440] sm:$0xff]
    %v812 = vld [vmem:[#allocation5 + $0x1448] sm:$0xff]
    %v813 = vld [vmem:[#allocation5 + $0x1450] sm:$0xff]
    %v814 = vld [vmem:[#allocation5 + $0x1458] sm:$0xff]
    %v815 = vld [vmem:[#allocation5 + $0x1460] sm:$0xff]
    %v816 = vld [vmem:[#allocation5 + $0x1468] sm:$0xff]
    %v817 = vld [vmem:[#allocation5 + $0x1470] sm:$0xff]
    %v818 = vld [vmem:[#allocation5 + $0x1478] sm:$0xff]
    %v819 = vld [vmem:[#allocation5 + $0x1480] sm:$0xff]
    %v820 = vld [vmem:[#allocation5 + $0x1488] sm:$0xff]
    %v821 = vld [vmem:[#allocation5 + $0x1490] sm:$0xff]
    %v822 = vld [vmem:[#allocation5 + $0x1498] sm:$0xff]
    %v823 = vld [vmem:[#allocation5 + $0x14a0] sm:$0xff]
    %v824 = vld [vmem:[#allocation5 + $0x14a8] sm:$0xff]
    %v825 = vld [vmem:[#allocation5 + $0x14b0] sm:$0xff]
    %v826 = vld [vmem:[#allocation5 + $0x14b8] sm:$0xff]
    %v827 = vld [vmem:[#allocation5 + $0x14c0] sm:$0xff]
    %v828 = vld [vmem:[#allocation5 + $0x14c8] sm:$0xff]
    %v829 = vld [vmem:[#allocation5 + $0x14d0] sm:$0xff]
    %v830 = vld [vmem:[#allocation5 + $0x14d8] sm:$0xff]
    %v831 = vld [vmem:[#allocation5 + $0x14e0] sm:$0xff]
    %v832 = vld [vmem:[#allocation5 + $0x14e8] sm:$0xff]
    %v833 = vld [vmem:[#allocation5 + $0x14f0] sm:$0xff]
    %v834 = vld [vmem:[#allocation5 + $0x14f8] sm:$0xff]
    %v835 = vld [vmem:[#allocation5 + $0x1500] sm:$0xff]
    %v836 = vld [vmem:[#allocation5 + $0x1508] sm:$0xff]
    %v837 = vld [vmem:[#allocation5 + $0x1510] sm:$0xff]
    %v838 = vld [vmem:[#allocation5 + $0x1518] sm:$0xff]
    %v839 = vld [vmem:[#allocation5 + $0x1520] sm:$0xff]
    %v840 = vld [vmem:[#allocation5 + $0x1528] sm:$0xff]
    %v841 = vld [vmem:[#allocation5 + $0x1530] sm:$0xff]
    %v842 = vld [vmem:[#allocation5 + $0x1538] sm:$0xff]
    %v843 = vld [vmem:[#allocation5 + $0x1540] sm:$0xff]
    %v844 = vld [vmem:[#allocation5 + $0x1548] sm:$0xff]
    %v845 = vld [vmem:[#allocation5 + $0x1550] sm:$0xff]
    %v846 = vld [vmem:[#allocation5 + $0x1558] sm:$0xff]
    %v847 = vld [vmem:[#allocation5 + $0x1560] sm:$0xff]
    %v848 = vld [vmem:[#allocation5 + $0x1568] sm:$0xff]
    %v849 = vld [vmem:[#allocation5 + $0x1570] sm:$0xff]
    %v850 = vld [vmem:[#allocation5 + $0x1578] sm:$0xff]
    %v851 = vld [vmem:[#allocation5 + $0x1580] sm:$0xff]
    %v852 = vld [vmem:[#allocation5 + $0x1588] sm:$0xff]
    %v853 = vld [vmem:[#allocation5 + $0x1590] sm:$0xff]
    %v854 = vld [vmem:[#allocation5 + $0x1598] sm:$0xff]
    %v855 = vld [vmem:[#allocation5 + $0x15a0] sm:$0xff]
    %v856 = vld [vmem:[#allocation5 + $0x15a8] sm:$0xff]
    %v857 = vld [vmem:[#allocation5 + $0x15b0] sm:$0xff]
    %v858 = vld [vmem:[#allocation5 + $0x15b8] sm:$0xff]
    %v859 = vld [vmem:[#allocation5 + $0x15c0] sm:$0xff]
    %v860 = vld [vmem:[#allocation5 + $0x15c8] sm:$0xff]
    %v861 = vld [vmem:[#allocation5 + $0x15d0] sm:$0xff]
    %v862 = vld [vmem:[#allocation5 + $0x15d8] sm:$0xff]
    %v863 = vld [vmem:[#allocation5 + $0x15e0] sm:$0xff]
    %v864 = vld [vmem:[#allocation5 + $0x15e8] sm:$0xff]
    %v865 = vld [vmem:[#allocation5 + $0x15f0] sm:$0xff]
    %v866 = vld [vmem:[#allocation5 + $0x15f8] sm:$0xff]
    %v867 = vld [vmem:[#allocation7] sm:$0xff]
    %v869 = vlaneseq
    %v870 = vshrl.u32 %v869, 7
    %v871 = vsub.s32 0, %v870
    %v872 = vrot.slane %v867, %v871
    %v873 = vlaneseq
    %v874 = vshrl.u32 %v873, 7
    %v875 = vsub.s32 1, %v874
    %v876 = vrot.slane %v867, %v875
    %v877 = vlaneseq
    %v878 = vshrl.u32 %v877, 7
    %v879 = vsub.s32 2, %v878
    %v880 = vrot.slane %v867, %v879
    %v881 = vlaneseq
    %v882 = vshrl.u32 %v881, 7
    %v883 = vsub.s32 3, %v882
    %v884 = vrot.slane %v867, %v883
    %v885 = vlaneseq
    %v886 = vshrl.u32 %v885, 7
    %v887 = vsub.s32 4, %v886
    %v888 = vrot.slane %v867, %v887
    %v889 = vlaneseq
    %v890 = vshrl.u32 %v889, 7
    %v891 = vsub.s32 5, %v890
    %v892 = vrot.slane %v867, %v891
    %v893 = vlaneseq
    %v894 = vshrl.u32 %v893, 7
    %v895 = vsub.s32 6, %v894
    %v896 = vrot.slane %v867, %v895
    %v897 = vlaneseq
    %v898 = vshrl.u32 %v897, 7
    %v899 = vsub.s32 7, %v898
    %v900 = vrot.slane %v867, %v899
    %v921 = vunpack.c.l.b16 %v151
    %v922 = vunpack.c.h.b16 %v151
    %v923 = vunpack.c.l.b16 %v152
    %v924 = vunpack.c.h.b16 %v152
    %v925 = vunpack.c.l.b16 %v153
    %v926 = vunpack.c.h.b16 %v153
    %v927 = vunpack.c.l.b16 %v154
    %v928 = vunpack.c.h.b16 %v154
    %v929 = vunpack.c.l.b16 %v155
    %v930 = vunpack.c.h.b16 %v155
    %v931 = vunpack.c.l.b16 %v156
    %v932 = vunpack.c.l.b16 %v157
    %v933 = vunpack.c.h.b16 %v157
    %v934 = vunpack.c.l.b16 %v158
    %v935 = vunpack.c.h.b16 %v158
    %v936 = vunpack.c.l.b16 %v159
    %v937 = vunpack.c.h.b16 %v159
    %v938 = vunpack.c.l.b16 %v160
    %v939 = vunpack.c.h.b16 %v160
    %v940 = vunpack.c.l.b16 %v161
    %v941 = vunpack.c.h.b16 %v161
    %v942 = vunpack.c.l.b16 %v162
    %v943 = vpack.c.b16 %v932, %v921
    %v944 = vpack.c.b16 %v933, %v922
    %v945 = vpack.c.b16 %v934, %v923
    %v946 = vpack.c.b16 %v935, %v924
    %v947 = vpack.c.b16 %v936, %v925
    %v948 = vpack.c.b16 %v937, %v926
    %v949 = vpack.c.b16 %v938, %v927
    %v950 = vpack.c.b16 %v939, %v928
    %v951 = vpack.c.b16 %v940, %v929
    %v952 = vpack.c.b16 %v941, %v930
    %v953 = vpack.c.b16 %v942, %v931
    %v1669 = vunpack.c.l.b16 %v163
    %v1670 = vunpack.c.h.b16 %v163
    %v1671 = vunpack.c.l.b16 %v164
    %v1672 = vunpack.c.h.b16 %v164
    %v1673 = vunpack.c.l.b16 %v165
    %v1674 = vunpack.c.h.b16 %v165
    %v1675 = vunpack.c.l.b16 %v166
    %v1676 = vunpack.c.h.b16 %v166
    %v1677 = vunpack.c.l.b16 %v167
    %v1678 = vunpack.c.h.b16 %v167
    %v1679 = vunpack.c.l.b16 %v168
    %v1680 = vunpack.c.h.b16 %v168
    %v1681 = vunpack.c.l.b16 %v169
    %v1682 = vunpack.c.h.b16 %v169
    %v1683 = vunpack.c.l.b16 %v170
    %v1684 = vunpack.c.h.b16 %v170
    %v1685 = vunpack.c.l.b16 %v171
    %v1686 = vunpack.c.h.b16 %v171
    %v1687 = vunpack.c.l.b16 %v172
    %v1688 = vunpack.c.h.b16 %v172
    %v1689 = vunpack.c.l.b16 %v173
    %v1690 = vunpack.c.h.b16 %v173
    %v1691 = vunpack.c.l.b16 %v174
    %v1692 = vunpack.c.h.b16 %v174
    %v1693 = vunpack.c.l.b16 %v175
    %v1694 = vunpack.c.h.b16 %v175
    %v1695 = vunpack.c.l.b16 %v176
    %v1696 = vunpack.c.h.b16 %v176
    %v1697 = vunpack.c.l.b16 %v177
    %v1698 = vunpack.c.h.b16 %v177
    %v1699 = vunpack.c.l.b16 %v178
    %v1700 = vunpack.c.h.b16 %v178
    %v1701 = vunpack.c.l.b16 %v179
    %v1702 = vunpack.c.h.b16 %v179
    %v1703 = vunpack.c.l.b16 %v180
    %v1704 = vunpack.c.h.b16 %v180
    %v1705 = vunpack.c.l.b16 %v181
    %v1706 = vunpack.c.h.b16 %v181
    %v1707 = vunpack.c.l.b16 %v182
    %v1708 = vunpack.c.h.b16 %v182
    %v1709 = vunpack.c.l.b16 %v183
    %v1710 = vunpack.c.h.b16 %v183
    %v1711 = vunpack.c.l.b16 %v184
    %v1712 = vunpack.c.h.b16 %v184
    %v1713 = vunpack.c.l.b16 %v185
    %v1714 = vunpack.c.h.b16 %v185
    %v1715 = vunpack.c.l.b16 %v186
    %v1716 = vunpack.c.h.b16 %v186
    %v1717 = vunpack.c.l.b16 %v187
    %v1718 = vunpack.c.h.b16 %v187
    %v1719 = vunpack.c.l.b16 %v188
    %v1720 = vunpack.c.h.b16 %v188
    %v1721 = vunpack.c.l.b16 %v189
    %v1722 = vunpack.c.h.b16 %v189
    %v1723 = vunpack.c.l.b16 %v190
    %v1724 = vunpack.c.h.b16 %v190
    %v1725 = vunpack.c.l.b16 %v191
    %v1726 = vunpack.c.h.b16 %v191
    %v1727 = vunpack.c.l.b16 %v192
    %v1728 = vunpack.c.h.b16 %v192
    %v1729 = vunpack.c.l.b16 %v193
    %v1730 = vunpack.c.h.b16 %v193
    %v1731 = vunpack.c.l.b16 %v194
    %v1732 = vunpack.c.h.b16 %v194
    %v1733 = vunpack.c.l.b16 %v195
    %v1734 = vunpack.c.h.b16 %v195
    %v1735 = vunpack.c.l.b16 %v196
    %v1736 = vunpack.c.h.b16 %v196
    %v1737 = vunpack.c.l.b16 %v197
    %v1738 = vunpack.c.h.b16 %v197
    %v1739 = vunpack.c.l.b16 %v198
    %v1740 = vunpack.c.h.b16 %v198
    %v1741 = vunpack.c.l.b16 %v199
    %v1742 = vunpack.c.h.b16 %v199
    %v1743 = vunpack.c.l.b16 %v200
    %v1744 = vunpack.c.h.b16 %v200
    %v1745 = vunpack.c.l.b16 %v201
    %v1746 = vunpack.c.h.b16 %v201
    %v1747 = vunpack.c.l.b16 %v202
    %v1748 = vunpack.c.h.b16 %v202
    %v1749 = vunpack.c.l.b16 %v203
    %v1750 = vunpack.c.h.b16 %v203
    %v1751 = vunpack.c.l.b16 %v204
    %v1752 = vunpack.c.h.b16 %v204
    %v1753 = vunpack.c.l.b16 %v205
    %v1754 = vunpack.c.h.b16 %v205
    %v1755 = vunpack.c.l.b16 %v206
    %v1756 = vunpack.c.h.b16 %v206
    %v1757 = vunpack.c.l.b16 %v207
    %v1758 = vunpack.c.h.b16 %v207
    %v1759 = vunpack.c.l.b16 %v208
    %v1760 = vunpack.c.h.b16 %v208
    %v1761 = vunpack.c.l.b16 %v209
    %v1762 = vunpack.c.h.b16 %v209
    %v1763 = vunpack.c.l.b16 %v210
    %v1764 = vunpack.c.h.b16 %v210
    %v1765 = vunpack.c.l.b16 %v211
    %v1766 = vunpack.c.h.b16 %v211
    %v1767 = vunpack.c.l.b16 %v212
    %v1768 = vunpack.c.h.b16 %v212
    %v1769 = vunpack.c.l.b16 %v213
    %v1770 = vunpack.c.h.b16 %v213
    %v1771 = vunpack.c.l.b16 %v214
    %v1772 = vunpack.c.h.b16 %v214
    %v1773 = vunpack.c.l.b16 %v215
    %v1774 = vunpack.c.h.b16 %v215
    %v1775 = vunpack.c.l.b16 %v216
    %v1776 = vunpack.c.h.b16 %v216
    %v1777 = vunpack.c.l.b16 %v217
    %v1778 = vunpack.c.h.b16 %v217
    %v1779 = vunpack.c.l.b16 %v218
    %v1780 = vunpack.c.h.b16 %v218
    %v1781 = vunpack.c.l.b16 %v219
    %v1782 = vunpack.c.h.b16 %v219
    %v1783 = vunpack.c.l.b16 %v220
    %v1784 = vunpack.c.h.b16 %v220
    %v1785 = vunpack.c.l.b16 %v221
    %v1786 = vunpack.c.h.b16 %v221
    %v1787 = vunpack.c.l.b16 %v222
    %v1788 = vunpack.c.h.b16 %v222
    %v1789 = vunpack.c.l.b16 %v223
    %v1790 = vunpack.c.h.b16 %v223
    %v1791 = vunpack.c.l.b16 %v224
    %v1792 = vunpack.c.h.b16 %v224
    %v1793 = vunpack.c.l.b16 %v225
    %v1794 = vunpack.c.h.b16 %v225
    %v1795 = vunpack.c.l.b16 %v226
    %v1796 = vunpack.c.h.b16 %v226
    %v1797 = vunpack.c.l.b16 %v227
    %v1798 = vunpack.c.h.b16 %v227
    %v1799 = vunpack.c.l.b16 %v228
    %v1800 = vunpack.c.h.b16 %v228
    %v1801 = vunpack.c.l.b16 %v229
    %v1802 = vunpack.c.h.b16 %v229
    %v1803 = vunpack.c.l.b16 %v230
    %v1804 = vunpack.c.h.b16 %v230
    %v1805 = vunpack.c.l.b16 %v231
    %v1806 = vunpack.c.h.b16 %v231
    %v1807 = vunpack.c.l.b16 %v232
    %v1808 = vunpack.c.h.b16 %v232
    %v1809 = vunpack.c.l.b16 %v233
    %v1810 = vunpack.c.h.b16 %v233
    %v1811 = vunpack.c.l.b16 %v234
    %v1812 = vunpack.c.h.b16 %v234
    %v1813 = vunpack.c.l.b16 %v235
    %v1814 = vunpack.c.h.b16 %v235
    %v1815 = vunpack.c.l.b16 %v236
    %v1816 = vunpack.c.h.b16 %v236
    %v1817 = vunpack.c.l.b16 %v237
    %v1818 = vunpack.c.h.b16 %v237
    %v1819 = vunpack.c.l.b16 %v238
    %v1820 = vunpack.c.h.b16 %v238
    %v1821 = vunpack.c.l.b16 %v239
    %v1822 = vunpack.c.h.b16 %v239
    %v1823 = vunpack.c.l.b16 %v240
    %v1824 = vunpack.c.h.b16 %v240
    %v1825 = vunpack.c.l.b16 %v241
    %v1826 = vunpack.c.h.b16 %v241
    %v1827 = vunpack.c.l.b16 %v242
    %v1828 = vunpack.c.h.b16 %v242
    %v1829 = vunpack.c.l.b16 %v243
    %v1830 = vunpack.c.h.b16 %v243
    %v1831 = vunpack.c.l.b16 %v244
    %v1832 = vunpack.c.h.b16 %v244
    %v1833 = vunpack.c.l.b16 %v245
    %v1834 = vunpack.c.h.b16 %v245
    %v1835 = vunpack.c.l.b16 %v246
    %v1836 = vunpack.c.h.b16 %v246
    %v1837 = vunpack.c.l.b16 %v247
    %v1838 = vunpack.c.h.b16 %v247
    %v1839 = vunpack.c.l.b16 %v248
    %v1840 = vunpack.c.h.b16 %v248
    %v1841 = vunpack.c.l.b16 %v249
    %v1842 = vunpack.c.h.b16 %v249
    %v1843 = vunpack.c.l.b16 %v250
    %v1844 = vunpack.c.h.b16 %v250
    %v1845 = vunpack.c.l.b16 %v251
    %v1846 = vunpack.c.h.b16 %v251
    %v1847 = vunpack.c.l.b16 %v252
    %v1848 = vunpack.c.h.b16 %v252
    %v1849 = vunpack.c.l.b16 %v253
    %v1850 = vunpack.c.h.b16 %v253
    %v1851 = vunpack.c.l.b16 %v254
    %v1852 = vunpack.c.h.b16 %v254
    %v1853 = vunpack.c.l.b16 %v255
    %v1854 = vunpack.c.h.b16 %v255
    %v1855 = vunpack.c.l.b16 %v256
    %v1856 = vunpack.c.h.b16 %v256
    %v1857 = vunpack.c.l.b16 %v257
    %v1858 = vunpack.c.h.b16 %v257
    %v1859 = vunpack.c.l.b16 %v258
    %v1860 = vunpack.c.h.b16 %v258
    %v1861 = vunpack.c.l.b16 %v259
    %v1862 = vunpack.c.h.b16 %v259
    %v1863 = vunpack.c.l.b16 %v260
    %v1864 = vunpack.c.h.b16 %v260
    %v1865 = vunpack.c.l.b16 %v261
    %v1866 = vunpack.c.h.b16 %v261
    %v1867 = vunpack.c.l.b16 %v262
    %v1868 = vunpack.c.h.b16 %v262
    %v1869 = vunpack.c.l.b16 %v263
    %v1870 = vunpack.c.h.b16 %v263
    %v1871 = vunpack.c.l.b16 %v264
    %v1872 = vunpack.c.h.b16 %v264
    %v1873 = vunpack.c.l.b16 %v265
    %v1874 = vunpack.c.h.b16 %v265
    %v1875 = vunpack.c.l.b16 %v266
    %v1876 = vunpack.c.h.b16 %v266
    %v1877 = vunpack.c.l.b16 %v267
    %v1878 = vunpack.c.h.b16 %v267
    %v1879 = vunpack.c.l.b16 %v268
    %v1880 = vunpack.c.h.b16 %v268
    %v1881 = vunpack.c.l.b16 %v269
    %v1882 = vunpack.c.h.b16 %v269
    %v1883 = vunpack.c.l.b16 %v270
    %v1884 = vunpack.c.h.b16 %v270
    %v1885 = vunpack.c.l.b16 %v271
    %v1886 = vunpack.c.h.b16 %v271
    %v1887 = vunpack.c.l.b16 %v272
    %v1888 = vunpack.c.h.b16 %v272
    %v1889 = vunpack.c.l.b16 %v273
    %v1890 = vunpack.c.h.b16 %v273
    %v1891 = vunpack.c.l.b16 %v274
    %v1892 = vunpack.c.h.b16 %v274
    %v1893 = vunpack.c.l.b16 %v275
    %v1894 = vunpack.c.h.b16 %v275
    %v1895 = vunpack.c.l.b16 %v276
    %v1896 = vunpack.c.h.b16 %v276
    %v1897 = vunpack.c.l.b16 %v277
    %v1898 = vunpack.c.h.b16 %v277
    %v1899 = vunpack.c.l.b16 %v278
    %v1900 = vunpack.c.h.b16 %v278
    %v1901 = vunpack.c.l.b16 %v279
    %v1902 = vunpack.c.h.b16 %v279
    %v1903 = vunpack.c.l.b16 %v280
    %v1904 = vunpack.c.h.b16 %v280
    %v1905 = vunpack.c.l.b16 %v281
    %v1906 = vunpack.c.h.b16 %v281
    %v1907 = vunpack.c.l.b16 %v282
    %v1908 = vunpack.c.h.b16 %v282
    %v1909 = vunpack.c.l.b16 %v283
    %v1910 = vunpack.c.h.b16 %v283
    %v1911 = vunpack.c.l.b16 %v284
    %v1912 = vunpack.c.h.b16 %v284
    %v1913 = vunpack.c.l.b16 %v285
    %v1914 = vunpack.c.h.b16 %v285
    %v1915 = vunpack.c.l.b16 %v286
    %v1916 = vunpack.c.h.b16 %v286
    %v1917 = vunpack.c.l.b16 %v287
    %v1918 = vunpack.c.h.b16 %v287
    %v1919 = vunpack.c.l.b16 %v288
    %v1920 = vunpack.c.h.b16 %v288
    %v1921 = vunpack.c.l.b16 %v289
    %v1922 = vunpack.c.h.b16 %v289
    %v1923 = vunpack.c.l.b16 %v290
    %v1924 = vunpack.c.h.b16 %v290
    %v1925 = vunpack.c.l.b16 %v291
    %v1926 = vunpack.c.h.b16 %v291
    %v1927 = vunpack.c.l.b16 %v292
    %v1928 = vunpack.c.h.b16 %v292
    %v1929 = vunpack.c.l.b16 %v293
    %v1930 = vunpack.c.h.b16 %v293
    %v1931 = vunpack.c.l.b16 %v294
    %v1932 = vunpack.c.h.b16 %v294
    %v1933 = vunpack.c.l.b16 %v295
    %v1934 = vunpack.c.h.b16 %v295
    %v1935 = vunpack.c.l.b16 %v296
    %v1936 = vunpack.c.h.b16 %v296
    %v1937 = vunpack.c.l.b16 %v297
    %v1938 = vunpack.c.h.b16 %v297
    %v1939 = vunpack.c.l.b16 %v298
    %v1940 = vunpack.c.h.b16 %v298
    %v1941 = vunpack.c.l.b16 %v299
    %v1942 = vunpack.c.h.b16 %v299
    %v1943 = vunpack.c.l.b16 %v300
    %v1944 = vunpack.c.h.b16 %v300
    %v1945 = vunpack.c.l.b16 %v301
    %v1946 = vunpack.c.h.b16 %v301
    %v1947 = vunpack.c.l.b16 %v302
    %v1948 = vunpack.c.h.b16 %v302
    %v1949 = vunpack.c.l.b16 %v303
    %v1950 = vunpack.c.h.b16 %v303
    %v1951 = vunpack.c.l.b16 %v304
    %v1952 = vunpack.c.h.b16 %v304
    %v1953 = vunpack.c.l.b16 %v305
    %v1954 = vunpack.c.h.b16 %v305
    %v1955 = vunpack.c.l.b16 %v306
    %v1956 = vunpack.c.h.b16 %v306
    %v1957 = vunpack.c.l.b16 %v307
    %v1958 = vunpack.c.h.b16 %v307
    %v1959 = vunpack.c.l.b16 %v308
    %v1960 = vunpack.c.h.b16 %v308
    %v1961 = vunpack.c.l.b16 %v309
    %v1962 = vunpack.c.h.b16 %v309
    %v1963 = vunpack.c.l.b16 %v310
    %v1964 = vunpack.c.h.b16 %v310
    %v1965 = vunpack.c.l.b16 %v311
    %v1966 = vunpack.c.h.b16 %v311
    %v1967 = vunpack.c.l.b16 %v312
    %v1968 = vunpack.c.h.b16 %v312
    %v1969 = vunpack.c.l.b16 %v313
    %v1970 = vunpack.c.h.b16 %v313
    %v1971 = vunpack.c.l.b16 %v314
    %v1972 = vunpack.c.h.b16 %v314
    %v1973 = vunpack.c.l.b16 %v315
    %v1974 = vunpack.c.h.b16 %v315
    %v1975 = vunpack.c.l.b16 %v316
    %v1976 = vunpack.c.h.b16 %v316
    %v1977 = vunpack.c.l.b16 %v317
    %v1978 = vunpack.c.h.b16 %v317
    %v1979 = vunpack.c.l.b16 %v318
    %v1980 = vunpack.c.h.b16 %v318
    %v1981 = vunpack.c.l.b16 %v319
    %v1982 = vunpack.c.h.b16 %v319
    %v1983 = vunpack.c.l.b16 %v320
    %v1984 = vunpack.c.h.b16 %v320
    %v1985 = vunpack.c.l.b16 %v321
    %v1986 = vunpack.c.h.b16 %v321
    %v1987 = vunpack.c.l.b16 %v322
    %v1988 = vunpack.c.h.b16 %v322
    %v1989 = vunpack.c.l.b16 %v323
    %v1990 = vunpack.c.h.b16 %v323
    %v1991 = vunpack.c.l.b16 %v324
    %v1992 = vunpack.c.h.b16 %v324
    %v1993 = vunpack.c.l.b16 %v325
    %v1994 = vunpack.c.h.b16 %v325
    %v1995 = vunpack.c.l.b16 %v326
    %v1996 = vunpack.c.h.b16 %v326
    %v1997 = vunpack.c.l.b16 %v327
    %v1998 = vunpack.c.h.b16 %v327
    %v1999 = vunpack.c.l.b16 %v328
    %v2000 = vunpack.c.h.b16 %v328
    %v2001 = vunpack.c.l.b16 %v329
    %v2002 = vunpack.c.h.b16 %v329
    %v2003 = vunpack.c.l.b16 %v330
    %v2004 = vunpack.c.h.b16 %v330
    %v2005 = vunpack.c.l.b16 %v331
    %v2006 = vunpack.c.h.b16 %v331
    %v2007 = vunpack.c.l.b16 %v332
    %v2008 = vunpack.c.h.b16 %v332
    %v2009 = vunpack.c.l.b16 %v333
    %v2010 = vunpack.c.h.b16 %v333
    %v2011 = vunpack.c.l.b16 %v334
    %v2012 = vunpack.c.h.b16 %v334
    %v2013 = vunpack.c.l.b16 %v335
    %v2014 = vunpack.c.h.b16 %v335
    %v2015 = vunpack.c.l.b16 %v336
    %v2016 = vunpack.c.h.b16 %v336
    %v2017 = vunpack.c.l.b16 %v337
    %v2018 = vunpack.c.h.b16 %v337
    %v2019 = vunpack.c.l.b16 %v338
    %v2020 = vunpack.c.h.b16 %v338
    %v2021 = vunpack.c.l.b16 %v339
    %v2022 = vunpack.c.h.b16 %v339
    %v2023 = vunpack.c.l.b16 %v340
    %v2024 = vunpack.c.h.b16 %v340
    %v2025 = vunpack.c.l.b16 %v341
    %v2026 = vunpack.c.h.b16 %v341
    %v2027 = vunpack.c.l.b16 %v342
    %v2028 = vunpack.c.h.b16 %v342
    %v2029 = vunpack.c.l.b16 %v343
    %v2030 = vunpack.c.h.b16 %v343
    %v2031 = vunpack.c.l.b16 %v344
    %v2032 = vunpack.c.h.b16 %v344
    %v2033 = vunpack.c.l.b16 %v345
    %v2034 = vunpack.c.h.b16 %v345
    %v2035 = vunpack.c.l.b16 %v346
    %v2036 = vunpack.c.h.b16 %v346
    %v2037 = vunpack.c.l.b16 %v347
    %v2038 = vunpack.c.h.b16 %v347
    %v2039 = vunpack.c.l.b16 %v348
    %v2040 = vunpack.c.h.b16 %v348
    %v2041 = vunpack.c.l.b16 %v349
    %v2042 = vunpack.c.h.b16 %v349
    %v2043 = vunpack.c.l.b16 %v350
    %v2044 = vunpack.c.h.b16 %v350
    %v2045 = vunpack.c.l.b16 %v351
    %v2046 = vunpack.c.h.b16 %v351
    %v2047 = vunpack.c.l.b16 %v352
    %v2048 = vunpack.c.h.b16 %v352
    %v2049 = vunpack.c.l.b16 %v353
    %v2050 = vunpack.c.h.b16 %v353
    %v2051 = vunpack.c.l.b16 %v354
    %v2052 = vunpack.c.h.b16 %v354
    %v2053 = vunpack.c.l.b16 %v355
    %v2054 = vunpack.c.h.b16 %v355
    %v2055 = vunpack.c.l.b16 %v356
    %v2056 = vunpack.c.h.b16 %v356
    %v2057 = vunpack.c.l.b16 %v357
    %v2058 = vunpack.c.h.b16 %v357
    %v2059 = vunpack.c.l.b16 %v358
    %v2060 = vunpack.c.h.b16 %v358
    %v2061 = vunpack.c.l.b16 %v359
    %v2062 = vunpack.c.h.b16 %v359
    %v2063 = vunpack.c.l.b16 %v360
    %v2064 = vunpack.c.h.b16 %v360
    %v2065 = vunpack.c.l.b16 %v361
    %v2066 = vunpack.c.h.b16 %v361
    %v2067 = vunpack.c.l.b16 %v362
    %v2068 = vunpack.c.h.b16 %v362
    %v2069 = vunpack.c.l.b16 %v363
    %v2070 = vunpack.c.h.b16 %v363
    %v2071 = vunpack.c.l.b16 %v364
    %v2072 = vunpack.c.h.b16 %v364
    %v2073 = vunpack.c.l.b16 %v365
    %v2074 = vunpack.c.h.b16 %v365
    %v2075 = vunpack.c.l.b16 %v366
    %v2076 = vunpack.c.h.b16 %v366
    %v2077 = vunpack.c.l.b16 %v367
    %v2078 = vunpack.c.h.b16 %v367
    %v2079 = vunpack.c.l.b16 %v368
    %v2080 = vunpack.c.h.b16 %v368
    %v2081 = vunpack.c.l.b16 %v369
    %v2082 = vunpack.c.h.b16 %v369
    %v2083 = vunpack.c.l.b16 %v370
    %v2084 = vunpack.c.h.b16 %v370
    %v2085 = vunpack.c.l.b16 %v371
    %v2086 = vunpack.c.h.b16 %v371
    %v2087 = vunpack.c.l.b16 %v372
    %v2088 = vunpack.c.h.b16 %v372
    %v2089 = vunpack.c.l.b16 %v373
    %v2090 = vunpack.c.h.b16 %v373
    %v2091 = vunpack.c.l.b16 %v374
    %v2092 = vunpack.c.h.b16 %v374
    %v2093 = vunpack.c.l.b16 %v375
    %v2094 = vunpack.c.h.b16 %v375
    %v2095 = vunpack.c.l.b16 %v376
    %v2096 = vunpack.c.h.b16 %v376
    %v2097 = vunpack.c.l.b16 %v377
    %v2098 = vunpack.c.h.b16 %v377
    %v2099 = vunpack.c.l.b16 %v378
    %v2100 = vunpack.c.h.b16 %v378
    %v2101 = vunpack.c.l.b16 %v379
    %v2102 = vunpack.c.h.b16 %v379
    %v2103 = vunpack.c.l.b16 %v380
    %v2104 = vunpack.c.h.b16 %v380
    %v2105 = vunpack.c.l.b16 %v381
    %v2106 = vunpack.c.h.b16 %v381
    %v2107 = vunpack.c.l.b16 %v382
    %v2108 = vunpack.c.h.b16 %v382
    %v2109 = vunpack.c.l.b16 %v383
    %v2110 = vunpack.c.h.b16 %v383
    %v2111 = vunpack.c.l.b16 %v384
    %v2112 = vunpack.c.h.b16 %v384
    %v2113 = vunpack.c.l.b16 %v385
    %v2114 = vunpack.c.h.b16 %v385
    %v2115 = vunpack.c.l.b16 %v386
    %v2116 = vunpack.c.h.b16 %v386
    %v2117 = vunpack.c.l.b16 %v387
    %v2118 = vunpack.c.h.b16 %v387
    %v2119 = vunpack.c.l.b16 %v388
    %v2120 = vunpack.c.h.b16 %v388
    %v2121 = vunpack.c.l.b16 %v389
    %v2122 = vunpack.c.h.b16 %v389
    %v2123 = vunpack.c.l.b16 %v390
    %v2124 = vunpack.c.h.b16 %v390
    %v2125 = vunpack.c.l.b16 %v391
    %v2126 = vunpack.c.h.b16 %v391
    %v2127 = vunpack.c.l.b16 %v392
    %v2128 = vunpack.c.h.b16 %v392
    %v2129 = vunpack.c.l.b16 %v393
    %v2130 = vunpack.c.h.b16 %v393
    %v2131 = vunpack.c.l.b16 %v394
    %v2132 = vunpack.c.h.b16 %v394
    %v2133 = vunpack.c.l.b16 %v395
    %v2134 = vunpack.c.h.b16 %v395
    %v2135 = vunpack.c.l.b16 %v396
    %v2136 = vunpack.c.h.b16 %v396
    %v2137 = vunpack.c.l.b16 %v397
    %v2138 = vunpack.c.h.b16 %v397
    %v2139 = vunpack.c.l.b16 %v398
    %v2140 = vunpack.c.h.b16 %v398
    %v2141 = vunpack.c.l.b16 %v399
    %v2142 = vunpack.c.h.b16 %v399
    %v2143 = vunpack.c.l.b16 %v400
    %v2144 = vunpack.c.h.b16 %v400
    %v2145 = vunpack.c.l.b16 %v401
    %v2146 = vunpack.c.h.b16 %v401
    %v2147 = vunpack.c.l.b16 %v402
    %v2148 = vunpack.c.h.b16 %v402
    %v2149 = vunpack.c.l.b16 %v403
    %v2150 = vunpack.c.h.b16 %v403
    %v2151 = vunpack.c.l.b16 %v404
    %v2152 = vunpack.c.h.b16 %v404
    %v2153 = vunpack.c.l.b16 %v405
    %v2154 = vunpack.c.h.b16 %v405
    %v2155 = vunpack.c.l.b16 %v406
    %v2156 = vunpack.c.h.b16 %v406
    %v2157 = vunpack.c.l.b16 %v407
    %v2158 = vunpack.c.h.b16 %v407
    %v2159 = vunpack.c.l.b16 %v408
    %v2160 = vunpack.c.h.b16 %v408
    %v2161 = vunpack.c.l.b16 %v409
    %v2162 = vunpack.c.h.b16 %v409
    %v2163 = vunpack.c.l.b16 %v410
    %v2164 = vunpack.c.h.b16 %v410
    %v2165 = vunpack.c.l.b16 %v411
    %v2166 = vunpack.c.h.b16 %v411
    %v2167 = vunpack.c.l.b16 %v412
    %v2168 = vunpack.c.h.b16 %v412
    %v2169 = vunpack.c.l.b16 %v413
    %v2170 = vunpack.c.h.b16 %v413
    %v2171 = vunpack.c.l.b16 %v414
    %v2172 = vunpack.c.h.b16 %v414
    %v2173 = vunpack.c.l.b16 %v415
    %v2174 = vunpack.c.h.b16 %v415
    %v2175 = vunpack.c.l.b16 %v416
    %v2176 = vunpack.c.h.b16 %v416
    %v2177 = vunpack.c.l.b16 %v417
    %v2178 = vunpack.c.h.b16 %v417
    %v2179 = vunpack.c.l.b16 %v418
    %v2180 = vunpack.c.h.b16 %v418
    %v2181 = vunpack.c.l.b16 %v419
    %v2182 = vunpack.c.h.b16 %v419
    %v2183 = vunpack.c.l.b16 %v420
    %v2184 = vunpack.c.h.b16 %v420
    %v2185 = vunpack.c.l.b16 %v421
    %v2186 = vunpack.c.h.b16 %v421
    %v2187 = vunpack.c.l.b16 %v422
    %v2188 = vunpack.c.h.b16 %v422
    %v2189 = vunpack.c.l.b16 %v423
    %v2190 = vunpack.c.h.b16 %v423
    %v2191 = vunpack.c.l.b16 %v424
    %v2192 = vunpack.c.h.b16 %v424
    %v2193 = vunpack.c.l.b16 %v425
    %v2194 = vunpack.c.h.b16 %v425
    %v2195 = vunpack.c.l.b16 %v426
    %v2196 = vunpack.c.h.b16 %v426
    %v2197 = vunpack.c.l.b16 %v427
    %v2198 = vunpack.c.h.b16 %v427
    %v2199 = vunpack.c.l.b16 %v428
    %v2200 = vunpack.c.h.b16 %v428
    %v2201 = vunpack.c.l.b16 %v429
    %v2202 = vunpack.c.h.b16 %v429
    %v2203 = vunpack.c.l.b16 %v430
    %v2204 = vunpack.c.h.b16 %v430
    %v2205 = vunpack.c.l.b16 %v431
    %v2206 = vunpack.c.h.b16 %v431
    %v2207 = vunpack.c.l.b16 %v432
    %v2208 = vunpack.c.h.b16 %v432
    %v2209 = vunpack.c.l.b16 %v433
    %v2210 = vunpack.c.h.b16 %v433
    %v2211 = vunpack.c.l.b16 %v434
    %v2212 = vunpack.c.h.b16 %v434
    %v2213 = vunpack.c.l.b16 %v435
    %v2214 = vunpack.c.h.b16 %v435
    %v2215 = vunpack.c.l.b16 %v436
    %v2216 = vunpack.c.h.b16 %v436
    %v2217 = vunpack.c.l.b16 %v437
    %v2218 = vunpack.c.h.b16 %v437
    %v2219 = vunpack.c.l.b16 %v438
    %v2220 = vunpack.c.h.b16 %v438
    %v2221 = vunpack.c.l.b16 %v439
    %v2222 = vunpack.c.h.b16 %v439
    %v2223 = vunpack.c.l.b16 %v440
    %v2224 = vunpack.c.h.b16 %v440
    %v2225 = vunpack.c.l.b16 %v441
    %v2226 = vunpack.c.h.b16 %v441
    %v2227 = vunpack.c.l.b16 %v442
    %v2228 = vunpack.c.h.b16 %v442
    %v2229 = vunpack.c.l.b16 %v443
    %v2230 = vunpack.c.h.b16 %v443
    %v2231 = vunpack.c.l.b16 %v444
    %v2232 = vunpack.c.h.b16 %v444
    %v2233 = vunpack.c.l.b16 %v445
    %v2234 = vunpack.c.h.b16 %v445
    %v2235 = vunpack.c.l.b16 %v446
    %v2236 = vunpack.c.h.b16 %v446
    %v2237 = vunpack.c.l.b16 %v447
    %v2238 = vunpack.c.h.b16 %v447
    %v2239 = vunpack.c.l.b16 %v448
    %v2240 = vunpack.c.h.b16 %v448
    %v2241 = vunpack.c.l.b16 %v449
    %v2242 = vunpack.c.h.b16 %v449
    %v2243 = vunpack.c.l.b16 %v450
    %v2244 = vunpack.c.h.b16 %v450
    %v2245 = vunpack.c.l.b16 %v451
    %v2246 = vunpack.c.h.b16 %v451
    %v2247 = vunpack.c.l.b16 %v452
    %v2248 = vunpack.c.h.b16 %v452
    %v2249 = vunpack.c.l.b16 %v453
    %v2250 = vunpack.c.h.b16 %v453
    %v2251 = vunpack.c.l.b16 %v454
    %v2252 = vunpack.c.h.b16 %v454
    %v2253 = vunpack.c.l.b16 %v455
    %v2254 = vunpack.c.h.b16 %v455
    %v2255 = vunpack.c.l.b16 %v456
    %v2256 = vunpack.c.h.b16 %v456
    %v2257 = vunpack.c.l.b16 %v457
    %v2258 = vunpack.c.h.b16 %v457
    %v2259 = vunpack.c.l.b16 %v458
    %v2260 = vunpack.c.h.b16 %v458
    %v2261 = vunpack.c.l.b16 %v459
    %v2262 = vunpack.c.h.b16 %v459
    %v2263 = vunpack.c.l.b16 %v460
    %v2264 = vunpack.c.h.b16 %v460
    %v2265 = vunpack.c.l.b16 %v461
    %v2266 = vunpack.c.h.b16 %v461
    %v2267 = vunpack.c.l.b16 %v462
    %v2268 = vunpack.c.h.b16 %v462
    %v2269 = vunpack.c.l.b16 %v463
    %v2270 = vunpack.c.h.b16 %v463
    %v2271 = vunpack.c.l.b16 %v464
    %v2272 = vunpack.c.h.b16 %v464
    %v2273 = vunpack.c.l.b16 %v465
    %v2274 = vunpack.c.h.b16 %v465
    %v2275 = vunpack.c.l.b16 %v466
    %v2276 = vunpack.c.h.b16 %v466
    %v2277 = vunpack.c.l.b16 %v467
    %v2278 = vunpack.c.h.b16 %v467
    %v2279 = vunpack.c.l.b16 %v468
    %v2280 = vunpack.c.h.b16 %v468
    %v2281 = vunpack.c.l.b16 %v469
    %v2282 = vunpack.c.h.b16 %v469
    %v2283 = vunpack.c.l.b16 %v470
    %v2284 = vunpack.c.h.b16 %v470
    %v2285 = vunpack.c.l.b16 %v471
    %v2286 = vunpack.c.h.b16 %v471
    %v2287 = vunpack.c.l.b16 %v472
    %v2288 = vunpack.c.h.b16 %v472
    %v2289 = vunpack.c.l.b16 %v473
    %v2290 = vunpack.c.h.b16 %v473
    %v2291 = vunpack.c.l.b16 %v474
    %v2292 = vunpack.c.h.b16 %v474
    %v2293 = vunpack.c.l.b16 %v475
    %v2294 = vunpack.c.h.b16 %v475
    %v2295 = vunpack.c.l.b16 %v476
    %v2296 = vunpack.c.h.b16 %v476
    %v2297 = vunpack.c.l.b16 %v477
    %v2298 = vunpack.c.h.b16 %v477
    %v2299 = vunpack.c.l.b16 %v478
    %v2300 = vunpack.c.h.b16 %v478
    %v2301 = vunpack.c.l.b16 %v479
    %v2302 = vunpack.c.h.b16 %v479
    %v2303 = vunpack.c.l.b16 %v480
    %v2304 = vunpack.c.h.b16 %v480
    %v2305 = vunpack.c.l.b16 %v481
    %v2306 = vunpack.c.h.b16 %v481
    %v2307 = vunpack.c.l.b16 %v482
    %v2308 = vunpack.c.h.b16 %v482
    %v2309 = vunpack.c.l.b16 %v483
    %v2310 = vunpack.c.h.b16 %v483
    %v2311 = vunpack.c.l.b16 %v484
    %v2312 = vunpack.c.h.b16 %v484
    %v2313 = vunpack.c.l.b16 %v485
    %v2314 = vunpack.c.h.b16 %v485
    %v2315 = vunpack.c.l.b16 %v486
    %v2316 = vunpack.c.h.b16 %v486
    %v2317 = vunpack.c.l.b16 %v487
    %v2318 = vunpack.c.h.b16 %v487
    %v2319 = vunpack.c.l.b16 %v488
    %v2320 = vunpack.c.h.b16 %v488
    %v2321 = vunpack.c.l.b16 %v489
    %v2322 = vunpack.c.h.b16 %v489
    %v2323 = vunpack.c.l.b16 %v490
    %v2324 = vunpack.c.h.b16 %v490
    %v2325 = vunpack.c.l.b16 %v491
    %v2326 = vunpack.c.h.b16 %v491
    %v2327 = vunpack.c.l.b16 %v492
    %v2328 = vunpack.c.h.b16 %v492
    %v2329 = vunpack.c.l.b16 %v493
    %v2330 = vunpack.c.h.b16 %v493
    %v2331 = vunpack.c.l.b16 %v494
    %v2332 = vunpack.c.h.b16 %v494
    %v2333 = vunpack.c.l.b16 %v495
    %v2334 = vunpack.c.h.b16 %v495
    %v2335 = vunpack.c.l.b16 %v496
    %v2336 = vunpack.c.h.b16 %v496
    %v2337 = vunpack.c.l.b16 %v497
    %v2338 = vunpack.c.h.b16 %v497
    %v2339 = vunpack.c.l.b16 %v498
    %v2340 = vunpack.c.h.b16 %v498
    %v2341 = vunpack.c.l.b16 %v499
    %v2342 = vunpack.c.h.b16 %v499
    %v2343 = vunpack.c.l.b16 %v500
    %v2344 = vunpack.c.h.b16 %v500
    %v2345 = vunpack.c.l.b16 %v501
    %v2346 = vunpack.c.h.b16 %v501
    %v2347 = vunpack.c.l.b16 %v502
    %v2348 = vunpack.c.h.b16 %v502
    %v2349 = vunpack.c.l.b16 %v503
    %v2350 = vunpack.c.h.b16 %v503
    %v2351 = vunpack.c.l.b16 %v504
    %v2352 = vunpack.c.h.b16 %v504
    %v2353 = vunpack.c.l.b16 %v505
    %v2354 = vunpack.c.h.b16 %v505
    %v2355 = vunpack.c.l.b16 %v506
    %v2356 = vunpack.c.h.b16 %v506
    %v2357 = vunpack.c.l.b16 %v507
    %v2358 = vunpack.c.h.b16 %v507
    %v2359 = vunpack.c.l.b16 %v508
    %v2360 = vunpack.c.h.b16 %v508
    %v2361 = vunpack.c.l.b16 %v509
    %v2362 = vunpack.c.h.b16 %v509
    %v2363 = vunpack.c.l.b16 %v510
    %v2364 = vunpack.c.h.b16 %v510
    %v2365 = vunpack.c.l.b16 %v511
    %v2366 = vunpack.c.h.b16 %v511
    %v2367 = vunpack.c.l.b16 %v512
    %v2368 = vunpack.c.h.b16 %v512
    %v2369 = vunpack.c.l.b16 %v513
    %v2370 = vunpack.c.h.b16 %v513
    %v2371 = vunpack.c.l.b16 %v514
    %v2372 = vunpack.c.h.b16 %v514
    %v2373 = vunpack.c.l.b16 %v515
    %v2374 = vunpack.c.h.b16 %v515
    %v2375 = vunpack.c.l.b16 %v516
    %v2376 = vunpack.c.h.b16 %v516
    %v2377 = vunpack.c.l.b16 %v517
    %v2378 = vunpack.c.h.b16 %v517
    %v2379 = vunpack.c.l.b16 %v518
    %v2380 = vunpack.c.h.b16 %v518
    %v2381 = vunpack.c.l.b16 %v519
    %v2382 = vunpack.c.h.b16 %v519
    %v2383 = vunpack.c.l.b16 %v520
    %v2384 = vunpack.c.h.b16 %v520
    %v2385 = vunpack.c.l.b16 %v521
    %v2386 = vunpack.c.h.b16 %v521
    %v2387 = vunpack.c.l.b16 %v522
    %v2388 = vunpack.c.h.b16 %v522
    %v2389 = vunpack.c.l.b16 %v523
    %v2390 = vunpack.c.h.b16 %v523
    %v2391 = vunpack.c.l.b16 %v524
    %v2392 = vunpack.c.h.b16 %v524
    %v2393 = vunpack.c.l.b16 %v525
    %v2394 = vunpack.c.h.b16 %v525
    %v2395 = vunpack.c.l.b16 %v526
    %v2396 = vunpack.c.h.b16 %v526
    %v2397 = vunpack.c.l.b16 %v527
    %v2398 = vunpack.c.h.b16 %v527
    %v2399 = vunpack.c.l.b16 %v528
    %v2400 = vunpack.c.h.b16 %v528
    %v2401 = vunpack.c.l.b16 %v529
    %v2402 = vunpack.c.h.b16 %v529
    %v2403 = vunpack.c.l.b16 %v530
    %v2404 = vunpack.c.h.b16 %v530
    %v2405 = vunpack.c.l.b16 %v531
    %v2406 = vunpack.c.h.b16 %v531
    %v2407 = vunpack.c.l.b16 %v532
    %v2408 = vunpack.c.h.b16 %v532
    %v2409 = vunpack.c.l.b16 %v533
    %v2410 = vunpack.c.h.b16 %v533
    %v2411 = vunpack.c.l.b16 %v534
    %v2412 = vunpack.c.h.b16 %v534
    %v2413 = vunpack.c.l.b16 %v535
    %v2414 = vunpack.c.h.b16 %v535
    %v2415 = vunpack.c.l.b16 %v536
    %v2416 = vunpack.c.h.b16 %v536
    %v2417 = vunpack.c.l.b16 %v537
    %v2418 = vunpack.c.h.b16 %v537
    %v2419 = vunpack.c.l.b16 %v538
    %v2420 = vunpack.c.h.b16 %v538
    %v2421 = vunpack.c.l.b16 %v539
    %v2422 = vunpack.c.h.b16 %v539
    %v2423 = vunpack.c.l.b16 %v540
    %v2424 = vunpack.c.h.b16 %v540
    %v2425 = vunpack.c.l.b16 %v541
    %v2426 = vunpack.c.h.b16 %v541
    %v2427 = vunpack.c.l.b16 %v542
    %v2428 = vunpack.c.h.b16 %v542
    %v2429 = vunpack.c.l.b16 %v543
    %v2430 = vunpack.c.h.b16 %v543
    %v2431 = vunpack.c.l.b16 %v544
    %v2432 = vunpack.c.h.b16 %v544
    %v2433 = vunpack.c.l.b16 %v545
    %v2434 = vunpack.c.h.b16 %v545
    %v2435 = vunpack.c.l.b16 %v546
    %v2436 = vunpack.c.h.b16 %v546
    %v2437 = vunpack.c.l.b16 %v547
    %v2438 = vunpack.c.h.b16 %v547
    %v2439 = vunpack.c.l.b16 %v548
    %v2440 = vunpack.c.h.b16 %v548
    %v2441 = vunpack.c.l.b16 %v549
    %v2442 = vunpack.c.h.b16 %v549
    %v2443 = vunpack.c.l.b16 %v550
    %v2444 = vunpack.c.h.b16 %v550
    %v2445 = vunpack.c.l.b16 %v551
    %v2446 = vunpack.c.h.b16 %v551
    %v2447 = vunpack.c.l.b16 %v552
    %v2448 = vunpack.c.h.b16 %v552
    %v2449 = vunpack.c.l.b16 %v553
    %v2450 = vunpack.c.h.b16 %v553
    %v2451 = vunpack.c.l.b16 %v554
    %v2452 = vunpack.c.h.b16 %v554
    %v2453 = vunpack.c.l.b16 %v555
    %v2454 = vunpack.c.h.b16 %v555
    %v2455 = vunpack.c.l.b16 %v556
    %v2456 = vunpack.c.h.b16 %v556
    %v2457 = vunpack.c.l.b16 %v557
    %v2458 = vunpack.c.h.b16 %v557
    %v2459 = vunpack.c.l.b16 %v558
    %v2460 = vunpack.c.h.b16 %v558
    %v2461 = vunpack.c.l.b16 %v559
    %v2462 = vunpack.c.h.b16 %v559
    %v2463 = vunpack.c.l.b16 %v560
    %v2464 = vunpack.c.h.b16 %v560
    %v2465 = vunpack.c.l.b16 %v561
    %v2466 = vunpack.c.h.b16 %v561
    %v2467 = vunpack.c.l.b16 %v562
    %v2468 = vunpack.c.h.b16 %v562
    %v2469 = vunpack.c.l.b16 %v563
    %v2470 = vunpack.c.h.b16 %v563
    %v2471 = vunpack.c.l.b16 %v564
    %v2472 = vunpack.c.h.b16 %v564
    %v2473 = vunpack.c.l.b16 %v565
    %v2474 = vunpack.c.h.b16 %v565
    %v2475 = vunpack.c.l.b16 %v566
    %v2476 = vunpack.c.h.b16 %v566
    %v2477 = vunpack.c.l.b16 %v567
    %v2478 = vunpack.c.h.b16 %v567
    %v2479 = vunpack.c.l.b16 %v568
    %v2480 = vunpack.c.h.b16 %v568
    %v2481 = vunpack.c.l.b16 %v569
    %v2482 = vunpack.c.h.b16 %v569
    %v2483 = vunpack.c.l.b16 %v570
    %v2484 = vunpack.c.h.b16 %v570
    %v2485 = vunpack.c.l.b16 %v571
    %v2486 = vunpack.c.h.b16 %v571
    %v2487 = vunpack.c.l.b16 %v572
    %v2488 = vunpack.c.h.b16 %v572
    %v2489 = vunpack.c.l.b16 %v573
    %v2490 = vunpack.c.h.b16 %v573
    %v2491 = vunpack.c.l.b16 %v574
    %v2492 = vunpack.c.h.b16 %v574
    %v2493 = vunpack.c.l.b16 %v575
    %v2494 = vunpack.c.h.b16 %v575
    %v2495 = vunpack.c.l.b16 %v576
    %v2496 = vunpack.c.h.b16 %v576
    %v2497 = vunpack.c.l.b16 %v577
    %v2498 = vunpack.c.h.b16 %v577
    %v2499 = vunpack.c.l.b16 %v578
    %v2500 = vunpack.c.h.b16 %v578
    %v2501 = vunpack.c.l.b16 %v579
    %v2502 = vunpack.c.h.b16 %v579
    %v2503 = vunpack.c.l.b16 %v580
    %v2504 = vunpack.c.h.b16 %v580
    %v2505 = vunpack.c.l.b16 %v581
    %v2506 = vunpack.c.h.b16 %v581
    %v2507 = vunpack.c.l.b16 %v582
    %v2508 = vunpack.c.h.b16 %v582
    %v2509 = vunpack.c.l.b16 %v583
    %v2510 = vunpack.c.h.b16 %v583
    %v2511 = vunpack.c.l.b16 %v584
    %v2512 = vunpack.c.h.b16 %v584
    %v2513 = vunpack.c.l.b16 %v585
    %v2514 = vunpack.c.h.b16 %v585
    %v2515 = vunpack.c.l.b16 %v586
    %v2516 = vunpack.c.h.b16 %v586
    %v2517 = vunpack.c.l.b16 %v587
    %v2518 = vunpack.c.h.b16 %v587
    %v2519 = vunpack.c.l.b16 %v588
    %v2520 = vunpack.c.h.b16 %v588
    %v2521 = vunpack.c.l.b16 %v589
    %v2522 = vunpack.c.h.b16 %v589
    %v2523 = vunpack.c.l.b16 %v590
    %v2524 = vunpack.c.h.b16 %v590
    %v2525 = vunpack.c.l.b16 %v591
    %v2526 = vunpack.c.h.b16 %v591
    %v2527 = vunpack.c.l.b16 %v592
    %v2528 = vunpack.c.h.b16 %v592
    %v2529 = vunpack.c.l.b16 %v593
    %v2530 = vunpack.c.h.b16 %v593
    %v2531 = vunpack.c.l.b16 %v594
    %v2532 = vunpack.c.h.b16 %v594
    %v2533 = vunpack.c.l.b16 %v595
    %v2534 = vunpack.c.h.b16 %v595
    %v2535 = vunpack.c.l.b16 %v596
    %v2536 = vunpack.c.h.b16 %v596
    %v2537 = vunpack.c.l.b16 %v597
    %v2538 = vunpack.c.h.b16 %v597
    %v2539 = vunpack.c.l.b16 %v598
    %v2540 = vunpack.c.h.b16 %v598
    %v2541 = vunpack.c.l.b16 %v599
    %v2542 = vunpack.c.h.b16 %v599
    %v2543 = vunpack.c.l.b16 %v600
    %v2544 = vunpack.c.h.b16 %v600
    %v2545 = vunpack.c.l.b16 %v601
    %v2546 = vunpack.c.h.b16 %v601
    %v2547 = vunpack.c.l.b16 %v602
    %v2548 = vunpack.c.h.b16 %v602
    %v2549 = vunpack.c.l.b16 %v603
    %v2550 = vunpack.c.h.b16 %v603
    %v2551 = vunpack.c.l.b16 %v604
    %v2552 = vunpack.c.h.b16 %v604
    %v2553 = vunpack.c.l.b16 %v605
    %v2554 = vunpack.c.h.b16 %v605
    %v2555 = vunpack.c.l.b16 %v606
    %v2556 = vunpack.c.h.b16 %v606
    %v2557 = vunpack.c.l.b16 %v607
    %v2558 = vunpack.c.h.b16 %v607
    %v2559 = vunpack.c.l.b16 %v608
    %v2560 = vunpack.c.h.b16 %v608
    %v2561 = vunpack.c.l.b16 %v609
    %v2562 = vunpack.c.h.b16 %v609
    %v2563 = vunpack.c.l.b16 %v610
    %v2564 = vunpack.c.h.b16 %v610
    %v2565 = vunpack.c.l.b16 %v611
    %v2566 = vunpack.c.h.b16 %v611
    %v2567 = vunpack.c.l.b16 %v612
    %v2568 = vunpack.c.h.b16 %v612
    %v2569 = vunpack.c.l.b16 %v613
    %v2570 = vunpack.c.h.b16 %v613
    %v2571 = vunpack.c.l.b16 %v614
    %v2572 = vunpack.c.h.b16 %v614
    %v2573 = vunpack.c.l.b16 %v615
    %v2574 = vunpack.c.h.b16 %v615
    %v2575 = vunpack.c.l.b16 %v616
    %v2576 = vunpack.c.h.b16 %v616
    %v2577 = vunpack.c.l.b16 %v617
    %v2578 = vunpack.c.h.b16 %v617
    %v2579 = vunpack.c.l.b16 %v618
    %v2580 = vunpack.c.h.b16 %v618
    %v2581 = vunpack.c.l.b16 %v619
    %v2582 = vunpack.c.h.b16 %v619
    %v2583 = vunpack.c.l.b16 %v620
    %v2584 = vunpack.c.h.b16 %v620
    %v2585 = vunpack.c.l.b16 %v621
    %v2586 = vunpack.c.h.b16 %v621
    %v2587 = vunpack.c.l.b16 %v622
    %v2588 = vunpack.c.h.b16 %v622
    %v2589 = vunpack.c.l.b16 %v623
    %v2590 = vunpack.c.h.b16 %v623
    %v2591 = vunpack.c.l.b16 %v624
    %v2592 = vunpack.c.h.b16 %v624
    %v2593 = vunpack.c.l.b16 %v625
    %v2594 = vunpack.c.h.b16 %v625
    %v2595 = vunpack.c.l.b16 %v626
    %v2596 = vunpack.c.h.b16 %v626
    %v2597 = vunpack.c.l.b16 %v627
    %v2598 = vunpack.c.h.b16 %v627
    %v2599 = vunpack.c.l.b16 %v628
    %v2600 = vunpack.c.h.b16 %v628
    %v2601 = vunpack.c.l.b16 %v629
    %v2602 = vunpack.c.h.b16 %v629
    %v2603 = vunpack.c.l.b16 %v630
    %v2604 = vunpack.c.h.b16 %v630
    %v2605 = vunpack.c.l.b16 %v631
    %v2606 = vunpack.c.h.b16 %v631
    %v2607 = vunpack.c.l.b16 %v632
    %v2608 = vunpack.c.h.b16 %v632
    %v2609 = vunpack.c.l.b16 %v633
    %v2610 = vunpack.c.h.b16 %v633
    %v2611 = vunpack.c.l.b16 %v634
    %v2612 = vunpack.c.h.b16 %v634
    %v2613 = vunpack.c.l.b16 %v635
    %v2614 = vunpack.c.h.b16 %v635
    %v2615 = vunpack.c.l.b16 %v636
    %v2616 = vunpack.c.h.b16 %v636
    %v2617 = vunpack.c.l.b16 %v637
    %v2618 = vunpack.c.h.b16 %v637
    %v2619 = vunpack.c.l.b16 %v638
    %v2620 = vunpack.c.h.b16 %v638
    %v2621 = vunpack.c.l.b16 %v639
    %v2622 = vunpack.c.h.b16 %v639
    %v2623 = vunpack.c.l.b16 %v640
    %v2624 = vunpack.c.h.b16 %v640
    %v2625 = vunpack.c.l.b16 %v641
    %v2626 = vunpack.c.h.b16 %v641
    %v2627 = vunpack.c.l.b16 %v642
    %v2628 = vunpack.c.h.b16 %v642
    %v2629 = vunpack.c.l.b16 %v643
    %v2630 = vunpack.c.h.b16 %v643
    %v2631 = vunpack.c.l.b16 %v644
    %v2632 = vunpack.c.h.b16 %v644
    %v2633 = vunpack.c.l.b16 %v645
    %v2634 = vunpack.c.h.b16 %v645
    %v2635 = vunpack.c.l.b16 %v646
    %v2636 = vunpack.c.h.b16 %v646
    %v2637 = vunpack.c.l.b16 %v647
    %v2638 = vunpack.c.h.b16 %v647
    %v2639 = vunpack.c.l.b16 %v648
    %v2640 = vunpack.c.h.b16 %v648
    %v2641 = vunpack.c.l.b16 %v649
    %v2642 = vunpack.c.h.b16 %v649
    %v2643 = vunpack.c.l.b16 %v650
    %v2644 = vunpack.c.h.b16 %v650
    %v2645 = vunpack.c.l.b16 %v651
    %v2646 = vunpack.c.h.b16 %v651
    %v2647 = vunpack.c.l.b16 %v652
    %v2648 = vunpack.c.h.b16 %v652
    %v2649 = vunpack.c.l.b16 %v653
    %v2650 = vunpack.c.h.b16 %v653
    %v2651 = vunpack.c.l.b16 %v654
    %v2652 = vunpack.c.h.b16 %v654
    %v2653 = vunpack.c.l.b16 %v655
    %v2654 = vunpack.c.h.b16 %v655
    %v2655 = vunpack.c.l.b16 %v656
    %v2656 = vunpack.c.h.b16 %v656
    %v2657 = vunpack.c.l.b16 %v657
    %v2658 = vunpack.c.h.b16 %v657
    %v2659 = vunpack.c.l.b16 %v658
    %v2660 = vunpack.c.h.b16 %v658
    %v2661 = vunpack.c.l.b16 %v659
    %v2662 = vunpack.c.h.b16 %v659
    %v2663 = vunpack.c.l.b16 %v660
    %v2664 = vunpack.c.h.b16 %v660
    %v2665 = vunpack.c.l.b16 %v661
    %v2666 = vunpack.c.h.b16 %v661
    %v2667 = vunpack.c.l.b16 %v662
    %v2668 = vunpack.c.h.b16 %v662
    %v2669 = vunpack.c.l.b16 %v663
    %v2670 = vunpack.c.h.b16 %v663
    %v2671 = vunpack.c.l.b16 %v664
    %v2672 = vunpack.c.h.b16 %v664
    %v2673 = vunpack.c.l.b16 %v665
    %v2674 = vunpack.c.h.b16 %v665
    %v2675 = vunpack.c.l.b16 %v666
    %v2676 = vunpack.c.h.b16 %v666
    %v2677 = vunpack.c.l.b16 %v667
    %v2678 = vunpack.c.h.b16 %v667
    %v2679 = vunpack.c.l.b16 %v668
    %v2680 = vunpack.c.h.b16 %v668
    %v2681 = vunpack.c.l.b16 %v669
    %v2682 = vunpack.c.h.b16 %v669
    %v2683 = vunpack.c.l.b16 %v670
    %v2684 = vunpack.c.h.b16 %v670
    %v2685 = vunpack.c.l.b16 %v671
    %v2686 = vunpack.c.h.b16 %v671
    %v2687 = vunpack.c.l.b16 %v672
    %v2688 = vunpack.c.h.b16 %v672
    %v2689 = vunpack.c.l.b16 %v673
    %v2690 = vunpack.c.h.b16 %v673
    %v2691 = vunpack.c.l.b16 %v674
    %v2692 = vunpack.c.h.b16 %v674
    %v2693 = vunpack.c.l.b16 %v675
    %v2694 = vunpack.c.h.b16 %v675
    %v2695 = vunpack.c.l.b16 %v676
    %v2696 = vunpack.c.h.b16 %v676
    %v2697 = vunpack.c.l.b16 %v677
    %v2698 = vunpack.c.h.b16 %v677
    %v2699 = vunpack.c.l.b16 %v678
    %v2700 = vunpack.c.h.b16 %v678
    %v2701 = vunpack.c.l.b16 %v679
    %v2702 = vunpack.c.h.b16 %v679
    %v2703 = vunpack.c.l.b16 %v680
    %v2704 = vunpack.c.h.b16 %v680
    %v2705 = vunpack.c.l.b16 %v681
    %v2706 = vunpack.c.h.b16 %v681
    %v2707 = vunpack.c.l.b16 %v682
    %v2708 = vunpack.c.h.b16 %v682
    %v2709 = vunpack.c.l.b16 %v683
    %v2710 = vunpack.c.h.b16 %v683
    %v2711 = vunpack.c.l.b16 %v684
    %v2712 = vunpack.c.h.b16 %v684
    %v2713 = vunpack.c.l.b16 %v685
    %v2714 = vunpack.c.h.b16 %v685
    %v2715 = vunpack.c.l.b16 %v686
    %v2716 = vunpack.c.h.b16 %v686
    %v2717 = vunpack.c.l.b16 %v687
    %v2718 = vunpack.c.h.b16 %v687
    %v2719 = vunpack.c.l.b16 %v688
    %v2720 = vunpack.c.h.b16 %v688
    %v2721 = vunpack.c.l.b16 %v689
    %v2722 = vunpack.c.h.b16 %v689
    %v2723 = vunpack.c.l.b16 %v690
    %v2724 = vunpack.c.h.b16 %v690
    %v2725 = vunpack.c.l.b16 %v691
    %v2726 = vunpack.c.h.b16 %v691
    %v2727 = vunpack.c.l.b16 %v692
    %v2728 = vunpack.c.h.b16 %v692
    %v2729 = vunpack.c.l.b16 %v693
    %v2730 = vunpack.c.h.b16 %v693
    %v2731 = vunpack.c.l.b16 %v694
    %v2732 = vunpack.c.h.b16 %v694
    %v2733 = vunpack.c.l.b16 %v695
    %v2734 = vunpack.c.h.b16 %v695
    %v2735 = vunpack.c.l.b16 %v696
    %v2736 = vunpack.c.h.b16 %v696
    %v2737 = vunpack.c.l.b16 %v697
    %v2738 = vunpack.c.h.b16 %v697
    %v2739 = vunpack.c.l.b16 %v698
    %v2740 = vunpack.c.h.b16 %v698
    %v2741 = vunpack.c.l.b16 %v699
    %v2742 = vunpack.c.h.b16 %v699
    %v2743 = vunpack.c.l.b16 %v700
    %v2744 = vunpack.c.h.b16 %v700
    %v2745 = vunpack.c.l.b16 %v701
    %v2746 = vunpack.c.h.b16 %v701
    %v2747 = vunpack.c.l.b16 %v702
    %v2748 = vunpack.c.h.b16 %v702
    %v2749 = vunpack.c.l.b16 %v703
    %v2750 = vunpack.c.h.b16 %v703
    %v2751 = vunpack.c.l.b16 %v704
    %v2752 = vunpack.c.h.b16 %v704
    %v2753 = vunpack.c.l.b16 %v705
    %v2754 = vunpack.c.h.b16 %v705
    %v2755 = vunpack.c.l.b16 %v706
    %v2756 = vunpack.c.h.b16 %v706
    %v2757 = vunpack.c.l.b16 %v707
    %v2758 = vunpack.c.h.b16 %v707
    %v2759 = vunpack.c.l.b16 %v708
    %v2760 = vunpack.c.h.b16 %v708
    %v2761 = vunpack.c.l.b16 %v709
    %v2762 = vunpack.c.h.b16 %v709
    %v2763 = vunpack.c.l.b16 %v710
    %v2764 = vunpack.c.h.b16 %v710
    %v2765 = vunpack.c.l.b16 %v711
    %v2766 = vunpack.c.h.b16 %v711
    %v2767 = vunpack.c.l.b16 %v712
    %v2768 = vunpack.c.h.b16 %v712
    %v2769 = vunpack.c.l.b16 %v713
    %v2770 = vunpack.c.h.b16 %v713
    %v2771 = vunpack.c.l.b16 %v714
    %v2772 = vunpack.c.h.b16 %v714
    %v2773 = vunpack.c.l.b16 %v715
    %v2774 = vunpack.c.h.b16 %v715
    %v2775 = vunpack.c.l.b16 %v716
    %v2776 = vunpack.c.h.b16 %v716
    %v2777 = vunpack.c.l.b16 %v717
    %v2778 = vunpack.c.h.b16 %v717
    %v2779 = vunpack.c.l.b16 %v718
    %v2780 = vunpack.c.h.b16 %v718
    %v2781 = vunpack.c.l.b16 %v719
    %v2782 = vunpack.c.h.b16 %v719
    %v2783 = vunpack.c.l.b16 %v720
    %v2784 = vunpack.c.h.b16 %v720
    %v2785 = vunpack.c.l.b16 %v721
    %v2786 = vunpack.c.h.b16 %v721
    %v2787 = vunpack.c.l.b16 %v722
    %v2788 = vunpack.c.h.b16 %v722
    %v2789 = vunpack.c.l.b16 %v723
    %v2790 = vunpack.c.h.b16 %v723
    %v2791 = vunpack.c.l.b16 %v724
    %v2792 = vunpack.c.h.b16 %v724
    %v2793 = vunpack.c.l.b16 %v725
    %v2794 = vunpack.c.h.b16 %v725
    %v2795 = vunpack.c.l.b16 %v726
    %v2796 = vunpack.c.h.b16 %v726
    %v2797 = vunpack.c.l.b16 %v727
    %v2798 = vunpack.c.h.b16 %v727
    %v2799 = vunpack.c.l.b16 %v728
    %v2800 = vunpack.c.h.b16 %v728
    %v2801 = vunpack.c.l.b16 %v729
    %v2802 = vunpack.c.h.b16 %v729
    %v2803 = vunpack.c.l.b16 %v730
    %v2804 = vunpack.c.h.b16 %v730
    %v2805 = vunpack.c.l.b16 %v731
    %v2806 = vunpack.c.h.b16 %v731
    %v2807 = vunpack.c.l.b16 %v732
    %v2808 = vunpack.c.h.b16 %v732
    %v2809 = vunpack.c.l.b16 %v733
    %v2810 = vunpack.c.h.b16 %v733
    %v2811 = vunpack.c.l.b16 %v734
    %v2812 = vunpack.c.h.b16 %v734
    %v2813 = vunpack.c.l.b16 %v735
    %v2814 = vunpack.c.h.b16 %v735
    %v2815 = vunpack.c.l.b16 %v736
    %v2816 = vunpack.c.h.b16 %v736
    %v2817 = vunpack.c.l.b16 %v737
    %v2818 = vunpack.c.h.b16 %v737
    %v2819 = vunpack.c.l.b16 %v738
    %v2820 = vunpack.c.h.b16 %v738
    %v2821 = vunpack.c.l.b16 %v739
    %v2822 = vunpack.c.h.b16 %v739
    %v2823 = vunpack.c.l.b16 %v740
    %v2824 = vunpack.c.h.b16 %v740
    %v2825 = vunpack.c.l.b16 %v741
    %v2826 = vunpack.c.h.b16 %v741
    %v2827 = vunpack.c.l.b16 %v742
    %v2828 = vunpack.c.h.b16 %v742
    %v2829 = vunpack.c.l.b16 %v743
    %v2830 = vunpack.c.h.b16 %v743
    %v2831 = vunpack.c.l.b16 %v744
    %v2832 = vunpack.c.h.b16 %v744
    %v2833 = vunpack.c.l.b16 %v745
    %v2834 = vunpack.c.h.b16 %v745
    %v2835 = vunpack.c.l.b16 %v746
    %v2836 = vunpack.c.h.b16 %v746
    %v2837 = vunpack.c.l.b16 %v747
    %v2838 = vunpack.c.h.b16 %v747
    %v2839 = vunpack.c.l.b16 %v748
    %v2840 = vunpack.c.h.b16 %v748
    %v2841 = vunpack.c.l.b16 %v749
    %v2842 = vunpack.c.h.b16 %v749
    %v2843 = vunpack.c.l.b16 %v750
    %v2844 = vunpack.c.h.b16 %v750
    %v2845 = vunpack.c.l.b16 %v751
    %v2846 = vunpack.c.h.b16 %v751
    %v2847 = vunpack.c.l.b16 %v752
    %v2848 = vunpack.c.h.b16 %v752
    %v2849 = vunpack.c.l.b16 %v753
    %v2850 = vunpack.c.h.b16 %v753
    %v2851 = vunpack.c.l.b16 %v754
    %v2852 = vunpack.c.h.b16 %v754
    %v2853 = vunpack.c.l.b16 %v755
    %v2854 = vunpack.c.h.b16 %v755
    %v2855 = vunpack.c.l.b16 %v756
    %v2856 = vunpack.c.h.b16 %v756
    %v2857 = vunpack.c.l.b16 %v757
    %v2858 = vunpack.c.h.b16 %v757
    %v2859 = vunpack.c.l.b16 %v758
    %v2860 = vunpack.c.h.b16 %v758
    %v2861 = vunpack.c.l.b16 %v759
    %v2862 = vunpack.c.h.b16 %v759
    %v2863 = vunpack.c.l.b16 %v760
    %v2864 = vunpack.c.h.b16 %v760
    %v2865 = vunpack.c.l.b16 %v761
    %v2866 = vunpack.c.h.b16 %v761
    %v2867 = vunpack.c.l.b16 %v762
    %v2868 = vunpack.c.h.b16 %v762
    %v2869 = vunpack.c.l.b16 %v763
    %v2870 = vunpack.c.h.b16 %v763
    %v2871 = vunpack.c.l.b16 %v764
    %v2872 = vunpack.c.h.b16 %v764
    %v2873 = vunpack.c.l.b16 %v765
    %v2874 = vunpack.c.h.b16 %v765
    %v2875 = vunpack.c.l.b16 %v766
    %v2876 = vunpack.c.h.b16 %v766
    %v2877 = vunpack.c.l.b16 %v767
    %v2878 = vunpack.c.h.b16 %v767
    %v2879 = vunpack.c.l.b16 %v768
    %v2880 = vunpack.c.h.b16 %v768
    %v2881 = vunpack.c.l.b16 %v769
    %v2882 = vunpack.c.h.b16 %v769
    %v2883 = vunpack.c.l.b16 %v770
    %v2884 = vunpack.c.h.b16 %v770
    %v2885 = vunpack.c.l.b16 %v771
    %v2886 = vunpack.c.h.b16 %v771
    %v2887 = vunpack.c.l.b16 %v772
    %v2888 = vunpack.c.h.b16 %v772
    %v2889 = vunpack.c.l.b16 %v773
    %v2890 = vunpack.c.h.b16 %v773
    %v2891 = vunpack.c.l.b16 %v774
    %v2892 = vunpack.c.h.b16 %v774
    %v2893 = vunpack.c.l.b16 %v775
    %v2894 = vunpack.c.h.b16 %v775
    %v2895 = vunpack.c.l.b16 %v776
    %v2896 = vunpack.c.h.b16 %v776
    %v2897 = vunpack.c.l.b16 %v777
    %v2898 = vunpack.c.h.b16 %v777
    %v2899 = vunpack.c.l.b16 %v778
    %v2900 = vunpack.c.h.b16 %v778
    %v2901 = vunpack.c.l.b16 %v779
    %v2902 = vunpack.c.h.b16 %v779
    %v2903 = vunpack.c.l.b16 %v780
    %v2904 = vunpack.c.h.b16 %v780
    %v2905 = vunpack.c.l.b16 %v781
    %v2906 = vunpack.c.h.b16 %v781
    %v2907 = vunpack.c.l.b16 %v782
    %v2908 = vunpack.c.h.b16 %v782
    %v2909 = vunpack.c.l.b16 %v783
    %v2910 = vunpack.c.h.b16 %v783
    %v2911 = vunpack.c.l.b16 %v784
    %v2912 = vunpack.c.h.b16 %v784
    %v2913 = vunpack.c.l.b16 %v785
    %v2914 = vunpack.c.h.b16 %v785
    %v2915 = vunpack.c.l.b16 %v786
    %v2916 = vunpack.c.h.b16 %v786
    %v2917 = vunpack.c.l.b16 %v787
    %v2918 = vunpack.c.h.b16 %v787
    %v2919 = vunpack.c.l.b16 %v788
    %v2920 = vunpack.c.h.b16 %v788
    %v2921 = vunpack.c.l.b16 %v789
    %v2922 = vunpack.c.h.b16 %v789
    %v2923 = vunpack.c.l.b16 %v790
    %v2924 = vunpack.c.h.b16 %v790
    %v2925 = vunpack.c.l.b16 %v791
    %v2926 = vunpack.c.h.b16 %v791
    %v2927 = vunpack.c.l.b16 %v792
    %v2928 = vunpack.c.h.b16 %v792
    %v2929 = vunpack.c.l.b16 %v793
    %v2930 = vunpack.c.h.b16 %v793
    %v2931 = vunpack.c.l.b16 %v794
    %v2932 = vunpack.c.h.b16 %v794
    %v2933 = vunpack.c.l.b16 %v795
    %v2934 = vunpack.c.h.b16 %v795
    %v2935 = vunpack.c.l.b16 %v796
    %v2936 = vunpack.c.h.b16 %v796
    %v2937 = vunpack.c.l.b16 %v797
    %v2938 = vunpack.c.h.b16 %v797
    %v2939 = vunpack.c.l.b16 %v798
    %v2940 = vunpack.c.h.b16 %v798
    %v2941 = vunpack.c.l.b16 %v799
    %v2942 = vunpack.c.h.b16 %v799
    %v2943 = vunpack.c.l.b16 %v800
    %v2944 = vunpack.c.h.b16 %v800
    %v2945 = vunpack.c.l.b16 %v801
    %v2946 = vunpack.c.h.b16 %v801
    %v2947 = vunpack.c.l.b16 %v802
    %v2948 = vunpack.c.h.b16 %v802
    %v2949 = vunpack.c.l.b16 %v803
    %v2950 = vunpack.c.h.b16 %v803
    %v2951 = vunpack.c.l.b16 %v804
    %v2952 = vunpack.c.h.b16 %v804
    %v2953 = vunpack.c.l.b16 %v805
    %v2954 = vunpack.c.h.b16 %v805
    %v2955 = vunpack.c.l.b16 %v806
    %v2956 = vunpack.c.h.b16 %v806
    %v2957 = vunpack.c.l.b16 %v807
    %v2958 = vunpack.c.h.b16 %v807
    %v2959 = vunpack.c.l.b16 %v808
    %v2960 = vunpack.c.h.b16 %v808
    %v2961 = vunpack.c.l.b16 %v809
    %v2962 = vunpack.c.h.b16 %v809
    %v2963 = vunpack.c.l.b16 %v810
    %v2964 = vunpack.c.h.b16 %v810
    %v2965 = vunpack.c.l.b16 %v811
    %v2966 = vunpack.c.h.b16 %v811
    %v2967 = vunpack.c.l.b16 %v812
    %v2968 = vunpack.c.h.b16 %v812
    %v2969 = vunpack.c.l.b16 %v813
    %v2970 = vunpack.c.h.b16 %v813
    %v2971 = vunpack.c.l.b16 %v814
    %v2972 = vunpack.c.h.b16 %v814
    %v2973 = vunpack.c.l.b16 %v815
    %v2974 = vunpack.c.h.b16 %v815
    %v2975 = vunpack.c.l.b16 %v816
    %v2976 = vunpack.c.h.b16 %v816
    %v2977 = vunpack.c.l.b16 %v817
    %v2978 = vunpack.c.h.b16 %v817
    %v2979 = vunpack.c.l.b16 %v818
    %v2980 = vunpack.c.h.b16 %v818
    %v2981 = vunpack.c.l.b16 %v819
    %v2982 = vunpack.c.h.b16 %v819
    %v2983 = vunpack.c.l.b16 %v820
    %v2984 = vunpack.c.h.b16 %v820
    %v2985 = vunpack.c.l.b16 %v821
    %v2986 = vunpack.c.h.b16 %v821
    %v2987 = vunpack.c.l.b16 %v822
    %v2988 = vunpack.c.h.b16 %v822
    %v2989 = vunpack.c.l.b16 %v823
    %v2990 = vunpack.c.h.b16 %v823
    %v2991 = vunpack.c.l.b16 %v824
    %v2992 = vunpack.c.h.b16 %v824
    %v2993 = vunpack.c.l.b16 %v825
    %v2994 = vunpack.c.h.b16 %v825
    %v2995 = vunpack.c.l.b16 %v826
    %v2996 = vunpack.c.h.b16 %v826
    %v2997 = vunpack.c.l.b16 %v827
    %v2998 = vunpack.c.h.b16 %v827
    %v2999 = vunpack.c.l.b16 %v828
    %v3000 = vunpack.c.h.b16 %v828
    %v3001 = vunpack.c.l.b16 %v829
    %v3002 = vunpack.c.h.b16 %v829
    %v3003 = vunpack.c.l.b16 %v830
    %v3004 = vunpack.c.h.b16 %v830
    %v3005 = vunpack.c.l.b16 %v831
    %v3006 = vunpack.c.h.b16 %v831
    %v3007 = vunpack.c.l.b16 %v832
    %v3008 = vunpack.c.h.b16 %v832
    %v3009 = vunpack.c.l.b16 %v833
    %v3010 = vunpack.c.h.b16 %v833
    %v3011 = vunpack.c.l.b16 %v834
    %v3012 = vunpack.c.h.b16 %v834
    %v3013 = vunpack.c.l.b16 %v835
    %v3014 = vunpack.c.h.b16 %v835
    %v3015 = vunpack.c.l.b16 %v836
    %v3016 = vunpack.c.h.b16 %v836
    %v3017 = vunpack.c.l.b16 %v837
    %v3018 = vunpack.c.h.b16 %v837
    %v3019 = vunpack.c.l.b16 %v838
    %v3020 = vunpack.c.h.b16 %v838
    %v3021 = vunpack.c.l.b16 %v839
    %v3022 = vunpack.c.h.b16 %v839
    %v3023 = vunpack.c.l.b16 %v840
    %v3024 = vunpack.c.h.b16 %v840
    %v3025 = vunpack.c.l.b16 %v841
    %v3026 = vunpack.c.h.b16 %v841
    %v3027 = vunpack.c.l.b16 %v842
    %v3028 = vunpack.c.h.b16 %v842
    %v3029 = vunpack.c.l.b16 %v843
    %v3030 = vunpack.c.h.b16 %v843
    %v3031 = vunpack.c.l.b16 %v844
    %v3032 = vunpack.c.h.b16 %v844
    %v3033 = vunpack.c.l.b16 %v845
    %v3034 = vunpack.c.h.b16 %v845
    %v3035 = vunpack.c.l.b16 %v846
    %v3036 = vunpack.c.h.b16 %v846
    %v3037 = vunpack.c.l.b16 %v847
    %v3038 = vunpack.c.h.b16 %v847
    %v3039 = vunpack.c.l.b16 %v848
    %v3040 = vunpack.c.h.b16 %v848
    %v3041 = vunpack.c.l.b16 %v849
    %v3042 = vunpack.c.h.b16 %v849
    %v3043 = vunpack.c.l.b16 %v850
    %v3044 = vunpack.c.h.b16 %v850
    %v3045 = vunpack.c.l.b16 %v851
    %v3046 = vunpack.c.h.b16 %v851
    %v3047 = vunpack.c.l.b16 %v852
    %v3048 = vunpack.c.h.b16 %v852
    %v3049 = vunpack.c.l.b16 %v853
    %v3050 = vunpack.c.h.b16 %v853
    %v3051 = vunpack.c.l.b16 %v854
    %v3052 = vunpack.c.h.b16 %v854
    %v3053 = vunpack.c.l.b16 %v855
    %v3054 = vunpack.c.h.b16 %v855
    %v3055 = vunpack.c.l.b16 %v856
    %v3056 = vunpack.c.h.b16 %v856
    %v3057 = vunpack.c.l.b16 %v857
    %v3058 = vunpack.c.h.b16 %v857
    %v3059 = vunpack.c.l.b16 %v858
    %v3060 = vunpack.c.h.b16 %v858
    %v3061 = vunpack.c.l.b16 %v859
    %v3062 = vunpack.c.h.b16 %v859
    %v3063 = vunpack.c.l.b16 %v860
    %v3064 = vunpack.c.h.b16 %v860
    %v3065 = vunpack.c.l.b16 %v861
    %v3066 = vunpack.c.h.b16 %v861
    %v3067 = vunpack.c.l.b16 %v862
    %v3068 = vunpack.c.h.b16 %v862
    %v3069 = vunpack.c.l.b16 %v863
    %v3070 = vunpack.c.h.b16 %v863
    %v3071 = vunpack.c.l.b16 %v864
    %v3072 = vunpack.c.h.b16 %v864
    %v3073 = vunpack.c.l.b16 %v865
    %v3074 = vunpack.c.h.b16 %v865
    %v3075 = vunpack.c.l.b16 %v866
    %v3076 = vunpack.c.h.b16 %v866
    %v3077 = vpack.c.b16 %v1677, %v1669
    %v3078 = vpack.c.b16 %v1678, %v1670
    %v3079 = vpack.c.b16 %v1679, %v1671
    %v3080 = vpack.c.b16 %v1680, %v1672
    %v3081 = vpack.c.b16 %v1681, %v1673
    %v3082 = vpack.c.b16 %v1682, %v1674
    %v3083 = vpack.c.b16 %v1683, %v1675
    %v3084 = vpack.c.b16 %v1684, %v1676
    %v3085 = vpack.c.b16 %v1693, %v1685
    %v3086 = vpack.c.b16 %v1694, %v1686
    %v3087 = vpack.c.b16 %v1695, %v1687
    %v3088 = vpack.c.b16 %v1696, %v1688
    %v3089 = vpack.c.b16 %v1697, %v1689
    %v3090 = vpack.c.b16 %v1698, %v1690
    %v3091 = vpack.c.b16 %v1699, %v1691
    %v3092 = vpack.c.b16 %v1700, %v1692
    %v3093 = vpack.c.b16 %v1709, %v1701
    %v3094 = vpack.c.b16 %v1710, %v1702
    %v3095 = vpack.c.b16 %v1711, %v1703
    %v3096 = vpack.c.b16 %v1712, %v1704
    %v3097 = vpack.c.b16 %v1713, %v1705
    %v3098 = vpack.c.b16 %v1714, %v1706
    %v3099 = vpack.c.b16 %v1715, %v1707
    %v3100 = vpack.c.b16 %v1716, %v1708
    %v3101 = vpack.c.b16 %v1725, %v1717
    %v3102 = vpack.c.b16 %v1726, %v1718
    %v3103 = vpack.c.b16 %v1727, %v1719
    %v3104 = vpack.c.b16 %v1728, %v1720
    %v3105 = vpack.c.b16 %v1729, %v1721
    %v3106 = vpack.c.b16 %v1730, %v1722
    %v3107 = vpack.c.b16 %v1731, %v1723
    %v3108 = vpack.c.b16 %v1732, %v1724
    %v3109 = vpack.c.b16 %v1741, %v1733
    %v3110 = vpack.c.b16 %v1742, %v1734
    %v3111 = vpack.c.b16 %v1743, %v1735
    %v3112 = vpack.c.b16 %v1744, %v1736
    %v3113 = vpack.c.b16 %v1745, %v1737
    %v3114 = vpack.c.b16 %v1746, %v1738
    %v3115 = vpack.c.b16 %v1747, %v1739
    %v3116 = vpack.c.b16 %v1748, %v1740
    %v3117 = vpack.c.b16 %v1757, %v1749
    %v3118 = vpack.c.b16 %v1758, %v1750
    %v3119 = vpack.c.b16 %v1759, %v1751
    %v3120 = vpack.c.b16 %v1760, %v1752
    %v3121 = vpack.c.b16 %v1761, %v1753
    %v3122 = vpack.c.b16 %v1762, %v1754
    %v3123 = vpack.c.b16 %v1763, %v1755
    %v3124 = vpack.c.b16 %v1764, %v1756
    %v3125 = vpack.c.b16 %v1773, %v1765
    %v3126 = vpack.c.b16 %v1774, %v1766
    %v3127 = vpack.c.b16 %v1775, %v1767
    %v3128 = vpack.c.b16 %v1776, %v1768
    %v3129 = vpack.c.b16 %v1777, %v1769
    %v3130 = vpack.c.b16 %v1778, %v1770
    %v3131 = vpack.c.b16 %v1779, %v1771
    %v3132 = vpack.c.b16 %v1780, %v1772
    %v3133 = vpack.c.b16 %v1789, %v1781
    %v3134 = vpack.c.b16 %v1790, %v1782
    %v3135 = vpack.c.b16 %v1791, %v1783
    %v3136 = vpack.c.b16 %v1792, %v1784
    %v3137 = vpack.c.b16 %v1793, %v1785
    %v3138 = vpack.c.b16 %v1794, %v1786
    %v3139 = vpack.c.b16 %v1795, %v1787
    %v3140 = vpack.c.b16 %v1796, %v1788
    %v3141 = vpack.c.b16 %v1805, %v1797
    %v3142 = vpack.c.b16 %v1806, %v1798
    %v3143 = vpack.c.b16 %v1807, %v1799
    %v3144 = vpack.c.b16 %v1808, %v1800
    %v3145 = vpack.c.b16 %v1809, %v1801
    %v3146 = vpack.c.b16 %v1810, %v1802
    %v3147 = vpack.c.b16 %v1811, %v1803
    %v3148 = vpack.c.b16 %v1812, %v1804
    %v3149 = vpack.c.b16 %v1821, %v1813
    %v3150 = vpack.c.b16 %v1822, %v1814
    %v3151 = vpack.c.b16 %v1823, %v1815
    %v3152 = vpack.c.b16 %v1824, %v1816
    %v3153 = vpack.c.b16 %v1825, %v1817
    %v3154 = vpack.c.b16 %v1826, %v1818
    %v3155 = vpack.c.b16 %v1827, %v1819
    %v3156 = vpack.c.b16 %v1828, %v1820
    %v3157 = vpack.c.b16 %v1837, %v1829
    %v3158 = vpack.c.b16 %v1838, %v1830
    %v3159 = vpack.c.b16 %v1839, %v1831
    %v3160 = vpack.c.b16 %v1840, %v1832
    %v3161 = vpack.c.b16 %v1841, %v1833
    %v3162 = vpack.c.b16 %v1842, %v1834
    %v3163 = vpack.c.b16 %v1843, %v1835
    %v3164 = vpack.c.b16 %v1844, %v1836
    %v3165 = vpack.c.b16 %v1853, %v1845
    %v3166 = vpack.c.b16 %v1854, %v1846
    %v3167 = vpack.c.b16 %v1855, %v1847
    %v3168 = vpack.c.b16 %v1856, %v1848
    %v3169 = vpack.c.b16 %v1857, %v1849
    %v3170 = vpack.c.b16 %v1858, %v1850
    %v3171 = vpack.c.b16 %v1859, %v1851
    %v3172 = vpack.c.b16 %v1860, %v1852
    %v3173 = vpack.c.b16 %v1869, %v1861
    %v3174 = vpack.c.b16 %v1870, %v1862
    %v3175 = vpack.c.b16 %v1871, %v1863
    %v3176 = vpack.c.b16 %v1872, %v1864
    %v3177 = vpack.c.b16 %v1873, %v1865
    %v3178 = vpack.c.b16 %v1874, %v1866
    %v3179 = vpack.c.b16 %v1875, %v1867
    %v3180 = vpack.c.b16 %v1876, %v1868
    %v3181 = vpack.c.b16 %v1885, %v1877
    %v3182 = vpack.c.b16 %v1886, %v1878
    %v3183 = vpack.c.b16 %v1887, %v1879
    %v3184 = vpack.c.b16 %v1888, %v1880
    %v3185 = vpack.c.b16 %v1889, %v1881
    %v3186 = vpack.c.b16 %v1890, %v1882
    %v3187 = vpack.c.b16 %v1891, %v1883
    %v3188 = vpack.c.b16 %v1892, %v1884
    %v3189 = vpack.c.b16 %v1901, %v1893
    %v3190 = vpack.c.b16 %v1902, %v1894
    %v3191 = vpack.c.b16 %v1903, %v1895
    %v3192 = vpack.c.b16 %v1904, %v1896
    %v3193 = vpack.c.b16 %v1905, %v1897
    %v3194 = vpack.c.b16 %v1906, %v1898
    %v3195 = vpack.c.b16 %v1907, %v1899
    %v3196 = vpack.c.b16 %v1908, %v1900
    %v3197 = vpack.c.b16 %v1917, %v1909
    %v3198 = vpack.c.b16 %v1918, %v1910
    %v3199 = vpack.c.b16 %v1919, %v1911
    %v3200 = vpack.c.b16 %v1920, %v1912
    %v3201 = vpack.c.b16 %v1921, %v1913
    %v3202 = vpack.c.b16 %v1922, %v1914
    %v3203 = vpack.c.b16 %v1923, %v1915
    %v3204 = vpack.c.b16 %v1924, %v1916
    %v3205 = vpack.c.b16 %v1933, %v1925
    %v3206 = vpack.c.b16 %v1934, %v1926
    %v3207 = vpack.c.b16 %v1935, %v1927
    %v3208 = vpack.c.b16 %v1936, %v1928
    %v3209 = vpack.c.b16 %v1937, %v1929
    %v3210 = vpack.c.b16 %v1938, %v1930
    %v3211 = vpack.c.b16 %v1939, %v1931
    %v3212 = vpack.c.b16 %v1940, %v1932
    %v3213 = vpack.c.b16 %v1949, %v1941
    %v3214 = vpack.c.b16 %v1950, %v1942
    %v3215 = vpack.c.b16 %v1951, %v1943
    %v3216 = vpack.c.b16 %v1952, %v1944
    %v3217 = vpack.c.b16 %v1953, %v1945
    %v3218 = vpack.c.b16 %v1954, %v1946
    %v3219 = vpack.c.b16 %v1955, %v1947
    %v3220 = vpack.c.b16 %v1956, %v1948
    %v3221 = vpack.c.b16 %v1965, %v1957
    %v3222 = vpack.c.b16 %v1966, %v1958
    %v3223 = vpack.c.b16 %v1967, %v1959
    %v3224 = vpack.c.b16 %v1968, %v1960
    %v3225 = vpack.c.b16 %v1969, %v1961
    %v3226 = vpack.c.b16 %v1970, %v1962
    %v3227 = vpack.c.b16 %v1971, %v1963
    %v3228 = vpack.c.b16 %v1972, %v1964
    %v3229 = vpack.c.b16 %v1981, %v1973
    %v3230 = vpack.c.b16 %v1982, %v1974
    %v3231 = vpack.c.b16 %v1983, %v1975
    %v3232 = vpack.c.b16 %v1984, %v1976
    %v3233 = vpack.c.b16 %v1985, %v1977
    %v3234 = vpack.c.b16 %v1986, %v1978
    %v3235 = vpack.c.b16 %v1987, %v1979
    %v3236 = vpack.c.b16 %v1988, %v1980
    %v3237 = vpack.c.b16 %v1997, %v1989
    %v3238 = vpack.c.b16 %v1998, %v1990
    %v3239 = vpack.c.b16 %v1999, %v1991
    %v3240 = vpack.c.b16 %v2000, %v1992
    %v3241 = vpack.c.b16 %v2001, %v1993
    %v3242 = vpack.c.b16 %v2002, %v1994
    %v3243 = vpack.c.b16 %v2003, %v1995
    %v3244 = vpack.c.b16 %v2004, %v1996
    %v3245 = vpack.c.b16 %v2013, %v2005
    %v3246 = vpack.c.b16 %v2014, %v2006
    %v3247 = vpack.c.b16 %v2015, %v2007
    %v3248 = vpack.c.b16 %v2016, %v2008
    %v3249 = vpack.c.b16 %v2017, %v2009
    %v3250 = vpack.c.b16 %v2018, %v2010
    %v3251 = vpack.c.b16 %v2019, %v2011
    %v3252 = vpack.c.b16 %v2020, %v2012
    %v3253 = vpack.c.b16 %v2029, %v2021
    %v3254 = vpack.c.b16 %v2030, %v2022
    %v3255 = vpack.c.b16 %v2031, %v2023
    %v3256 = vpack.c.b16 %v2032, %v2024
    %v3257 = vpack.c.b16 %v2033, %v2025
    %v3258 = vpack.c.b16 %v2034, %v2026
    %v3259 = vpack.c.b16 %v2035, %v2027
    %v3260 = vpack.c.b16 %v2036, %v2028
    %v3261 = vpack.c.b16 %v2045, %v2037
    %v3262 = vpack.c.b16 %v2046, %v2038
    %v3263 = vpack.c.b16 %v2047, %v2039
    %v3264 = vpack.c.b16 %v2048, %v2040
    %v3265 = vpack.c.b16 %v2049, %v2041
    %v3266 = vpack.c.b16 %v2050, %v2042
    %v3267 = vpack.c.b16 %v2051, %v2043
    %v3268 = vpack.c.b16 %v2052, %v2044
    %v3269 = vpack.c.b16 %v2061, %v2053
    %v3270 = vpack.c.b16 %v2062, %v2054
    %v3271 = vpack.c.b16 %v2063, %v2055
    %v3272 = vpack.c.b16 %v2064, %v2056
    %v3273 = vpack.c.b16 %v2065, %v2057
    %v3274 = vpack.c.b16 %v2066, %v2058
    %v3275 = vpack.c.b16 %v2067, %v2059
    %v3276 = vpack.c.b16 %v2068, %v2060
    %v3277 = vpack.c.b16 %v2077, %v2069
    %v3278 = vpack.c.b16 %v2078, %v2070
    %v3279 = vpack.c.b16 %v2079, %v2071
    %v3280 = vpack.c.b16 %v2080, %v2072
    %v3281 = vpack.c.b16 %v2081, %v2073
    %v3282 = vpack.c.b16 %v2082, %v2074
    %v3283 = vpack.c.b16 %v2083, %v2075
    %v3284 = vpack.c.b16 %v2084, %v2076
    %v3285 = vpack.c.b16 %v2093, %v2085
    %v3286 = vpack.c.b16 %v2094, %v2086
    %v3287 = vpack.c.b16 %v2095, %v2087
    %v3288 = vpack.c.b16 %v2096, %v2088
    %v3289 = vpack.c.b16 %v2097, %v2089
    %v3290 = vpack.c.b16 %v2098, %v2090
    %v3291 = vpack.c.b16 %v2099, %v2091
    %v3292 = vpack.c.b16 %v2100, %v2092
    %v3293 = vpack.c.b16 %v2109, %v2101
    %v3294 = vpack.c.b16 %v2110, %v2102
    %v3295 = vpack.c.b16 %v2111, %v2103
    %v3296 = vpack.c.b16 %v2112, %v2104
    %v3297 = vpack.c.b16 %v2113, %v2105
    %v3298 = vpack.c.b16 %v2114, %v2106
    %v3299 = vpack.c.b16 %v2115, %v2107
    %v3300 = vpack.c.b16 %v2116, %v2108
    %v3301 = vpack.c.b16 %v2125, %v2117
    %v3302 = vpack.c.b16 %v2126, %v2118
    %v3303 = vpack.c.b16 %v2127, %v2119
    %v3304 = vpack.c.b16 %v2128, %v2120
    %v3305 = vpack.c.b16 %v2129, %v2121
    %v3306 = vpack.c.b16 %v2130, %v2122
    %v3307 = vpack.c.b16 %v2131, %v2123
    %v3308 = vpack.c.b16 %v2132, %v2124
    %v3309 = vpack.c.b16 %v2141, %v2133
    %v3310 = vpack.c.b16 %v2142, %v2134
    %v3311 = vpack.c.b16 %v2143, %v2135
    %v3312 = vpack.c.b16 %v2144, %v2136
    %v3313 = vpack.c.b16 %v2145, %v2137
    %v3314 = vpack.c.b16 %v2146, %v2138
    %v3315 = vpack.c.b16 %v2147, %v2139
    %v3316 = vpack.c.b16 %v2148, %v2140
    %v3317 = vpack.c.b16 %v2157, %v2149
    %v3318 = vpack.c.b16 %v2158, %v2150
    %v3319 = vpack.c.b16 %v2159, %v2151
    %v3320 = vpack.c.b16 %v2160, %v2152
    %v3321 = vpack.c.b16 %v2161, %v2153
    %v3322 = vpack.c.b16 %v2162, %v2154
    %v3323 = vpack.c.b16 %v2163, %v2155
    %v3324 = vpack.c.b16 %v2164, %v2156
    %v3325 = vpack.c.b16 %v2173, %v2165
    %v3326 = vpack.c.b16 %v2174, %v2166
    %v3327 = vpack.c.b16 %v2175, %v2167
    %v3328 = vpack.c.b16 %v2176, %v2168
    %v3329 = vpack.c.b16 %v2177, %v2169
    %v3330 = vpack.c.b16 %v2178, %v2170
    %v3331 = vpack.c.b16 %v2179, %v2171
    %v3332 = vpack.c.b16 %v2180, %v2172
    %v3333 = vpack.c.b16 %v2189, %v2181
    %v3334 = vpack.c.b16 %v2190, %v2182
    %v3335 = vpack.c.b16 %v2191, %v2183
    %v3336 = vpack.c.b16 %v2192, %v2184
    %v3337 = vpack.c.b16 %v2193, %v2185
    %v3338 = vpack.c.b16 %v2194, %v2186
    %v3339 = vpack.c.b16 %v2195, %v2187
    %v3340 = vpack.c.b16 %v2196, %v2188
    %v3341 = vpack.c.b16 %v2205, %v2197
    %v3342 = vpack.c.b16 %v2206, %v2198
    %v3343 = vpack.c.b16 %v2207, %v2199
    %v3344 = vpack.c.b16 %v2208, %v2200
    %v3345 = vpack.c.b16 %v2209, %v2201
    %v3346 = vpack.c.b16 %v2210, %v2202
    %v3347 = vpack.c.b16 %v2211, %v2203
    %v3348 = vpack.c.b16 %v2212, %v2204
    %v3349 = vpack.c.b16 %v2221, %v2213
    %v3350 = vpack.c.b16 %v2222, %v2214
    %v3351 = vpack.c.b16 %v2223, %v2215
    %v3352 = vpack.c.b16 %v2224, %v2216
    %v3353 = vpack.c.b16 %v2225, %v2217
    %v3354 = vpack.c.b16 %v2226, %v2218
    %v3355 = vpack.c.b16 %v2227, %v2219
    %v3356 = vpack.c.b16 %v2228, %v2220
    %v3357 = vpack.c.b16 %v2237, %v2229
    %v3358 = vpack.c.b16 %v2238, %v2230
    %v3359 = vpack.c.b16 %v2239, %v2231
    %v3360 = vpack.c.b16 %v2240, %v2232
    %v3361 = vpack.c.b16 %v2241, %v2233
    %v3362 = vpack.c.b16 %v2242, %v2234
    %v3363 = vpack.c.b16 %v2243, %v2235
    %v3364 = vpack.c.b16 %v2244, %v2236
    %v3365 = vpack.c.b16 %v2253, %v2245
    %v3366 = vpack.c.b16 %v2254, %v2246
    %v3367 = vpack.c.b16 %v2255, %v2247
    %v3368 = vpack.c.b16 %v2256, %v2248
    %v3369 = vpack.c.b16 %v2257, %v2249
    %v3370 = vpack.c.b16 %v2258, %v2250
    %v3371 = vpack.c.b16 %v2259, %v2251
    %v3372 = vpack.c.b16 %v2260, %v2252
    %v3373 = vpack.c.b16 %v2269, %v2261
    %v3374 = vpack.c.b16 %v2270, %v2262
    %v3375 = vpack.c.b16 %v2271, %v2263
    %v3376 = vpack.c.b16 %v2272, %v2264
    %v3377 = vpack.c.b16 %v2273, %v2265
    %v3378 = vpack.c.b16 %v2274, %v2266
    %v3379 = vpack.c.b16 %v2275, %v2267
    %v3380 = vpack.c.b16 %v2276, %v2268
    %v3381 = vpack.c.b16 %v2285, %v2277
    %v3382 = vpack.c.b16 %v2286, %v2278
    %v3383 = vpack.c.b16 %v2287, %v2279
    %v3384 = vpack.c.b16 %v2288, %v2280
    %v3385 = vpack.c.b16 %v2289, %v2281
    %v3386 = vpack.c.b16 %v2290, %v2282
    %v3387 = vpack.c.b16 %v2291, %v2283
    %v3388 = vpack.c.b16 %v2292, %v2284
    %v3389 = vpack.c.b16 %v2301, %v2293
    %v3390 = vpack.c.b16 %v2302, %v2294
    %v3391 = vpack.c.b16 %v2303, %v2295
    %v3392 = vpack.c.b16 %v2304, %v2296
    %v3393 = vpack.c.b16 %v2305, %v2297
    %v3394 = vpack.c.b16 %v2306, %v2298
    %v3395 = vpack.c.b16 %v2307, %v2299
    %v3396 = vpack.c.b16 %v2308, %v2300
    %v3397 = vpack.c.b16 %v2317, %v2309
    %v3398 = vpack.c.b16 %v2318, %v2310
    %v3399 = vpack.c.b16 %v2319, %v2311
    %v3400 = vpack.c.b16 %v2320, %v2312
    %v3401 = vpack.c.b16 %v2321, %v2313
    %v3402 = vpack.c.b16 %v2322, %v2314
    %v3403 = vpack.c.b16 %v2323, %v2315
    %v3404 = vpack.c.b16 %v2324, %v2316
    %v3405 = vpack.c.b16 %v2333, %v2325
    %v3406 = vpack.c.b16 %v2334, %v2326
    %v3407 = vpack.c.b16 %v2335, %v2327
    %v3408 = vpack.c.b16 %v2336, %v2328
    %v3409 = vpack.c.b16 %v2337, %v2329
    %v3410 = vpack.c.b16 %v2338, %v2330
    %v3411 = vpack.c.b16 %v2339, %v2331
    %v3412 = vpack.c.b16 %v2340, %v2332
    %v3413 = vpack.c.b16 %v2349, %v2341
    %v3414 = vpack.c.b16 %v2350, %v2342
    %v3415 = vpack.c.b16 %v2351, %v2343
    %v3416 = vpack.c.b16 %v2352, %v2344
    %v3417 = vpack.c.b16 %v2353, %v2345
    %v3418 = vpack.c.b16 %v2354, %v2346
    %v3419 = vpack.c.b16 %v2355, %v2347
    %v3420 = vpack.c.b16 %v2356, %v2348
    %v3421 = vpack.c.b16 %v2365, %v2357
    %v3422 = vpack.c.b16 %v2366, %v2358
    %v3423 = vpack.c.b16 %v2367, %v2359
    %v3424 = vpack.c.b16 %v2368, %v2360
    %v3425 = vpack.c.b16 %v2369, %v2361
    %v3426 = vpack.c.b16 %v2370, %v2362
    %v3427 = vpack.c.b16 %v2371, %v2363
    %v3428 = vpack.c.b16 %v2372, %v2364
    %v3429 = vpack.c.b16 %v2381, %v2373
    %v3430 = vpack.c.b16 %v2382, %v2374
    %v3431 = vpack.c.b16 %v2383, %v2375
    %v3432 = vpack.c.b16 %v2384, %v2376
    %v3433 = vpack.c.b16 %v2385, %v2377
    %v3434 = vpack.c.b16 %v2386, %v2378
    %v3435 = vpack.c.b16 %v2387, %v2379
    %v3436 = vpack.c.b16 %v2388, %v2380
    %v3437 = vpack.c.b16 %v2397, %v2389
    %v3438 = vpack.c.b16 %v2398, %v2390
    %v3439 = vpack.c.b16 %v2399, %v2391
    %v3440 = vpack.c.b16 %v2400, %v2392
    %v3441 = vpack.c.b16 %v2401, %v2393
    %v3442 = vpack.c.b16 %v2402, %v2394
    %v3443 = vpack.c.b16 %v2403, %v2395
    %v3444 = vpack.c.b16 %v2404, %v2396
    %v3445 = vpack.c.b16 %v2413, %v2405
    %v3446 = vpack.c.b16 %v2414, %v2406
    %v3447 = vpack.c.b16 %v2415, %v2407
    %v3448 = vpack.c.b16 %v2416, %v2408
    %v3449 = vpack.c.b16 %v2417, %v2409
    %v3450 = vpack.c.b16 %v2418, %v2410
    %v3451 = vpack.c.b16 %v2419, %v2411
    %v3452 = vpack.c.b16 %v2420, %v2412
    %v3453 = vpack.c.b16 %v2429, %v2421
    %v3454 = vpack.c.b16 %v2430, %v2422
    %v3455 = vpack.c.b16 %v2431, %v2423
    %v3456 = vpack.c.b16 %v2432, %v2424
    %v3457 = vpack.c.b16 %v2433, %v2425
    %v3458 = vpack.c.b16 %v2434, %v2426
    %v3459 = vpack.c.b16 %v2435, %v2427
    %v3460 = vpack.c.b16 %v2436, %v2428
    %v3461 = vpack.c.b16 %v2445, %v2437
    %v3462 = vpack.c.b16 %v2446, %v2438
    %v3463 = vpack.c.b16 %v2447, %v2439
    %v3464 = vpack.c.b16 %v2448, %v2440
    %v3465 = vpack.c.b16 %v2449, %v2441
    %v3466 = vpack.c.b16 %v2450, %v2442
    %v3467 = vpack.c.b16 %v2451, %v2443
    %v3468 = vpack.c.b16 %v2452, %v2444
    %v3469 = vpack.c.b16 %v2461, %v2453
    %v3470 = vpack.c.b16 %v2462, %v2454
    %v3471 = vpack.c.b16 %v2463, %v2455
    %v3472 = vpack.c.b16 %v2464, %v2456
    %v3473 = vpack.c.b16 %v2465, %v2457
    %v3474 = vpack.c.b16 %v2466, %v2458
    %v3475 = vpack.c.b16 %v2467, %v2459
    %v3476 = vpack.c.b16 %v2468, %v2460
    %v3477 = vpack.c.b16 %v2477, %v2469
    %v3478 = vpack.c.b16 %v2478, %v2470
    %v3479 = vpack.c.b16 %v2479, %v2471
    %v3480 = vpack.c.b16 %v2480, %v2472
    %v3481 = vpack.c.b16 %v2481, %v2473
    %v3482 = vpack.c.b16 %v2482, %v2474
    %v3483 = vpack.c.b16 %v2483, %v2475
    %v3484 = vpack.c.b16 %v2484, %v2476
    %v3485 = vpack.c.b16 %v2493, %v2485
    %v3486 = vpack.c.b16 %v2494, %v2486
    %v3487 = vpack.c.b16 %v2495, %v2487
    %v3488 = vpack.c.b16 %v2496, %v2488
    %v3489 = vpack.c.b16 %v2497, %v2489
    %v3490 = vpack.c.b16 %v2498, %v2490
    %v3491 = vpack.c.b16 %v2499, %v2491
    %v3492 = vpack.c.b16 %v2500, %v2492
    %v3493 = vpack.c.b16 %v2509, %v2501
    %v3494 = vpack.c.b16 %v2510, %v2502
    %v3495 = vpack.c.b16 %v2511, %v2503
    %v3496 = vpack.c.b16 %v2512, %v2504
    %v3497 = vpack.c.b16 %v2513, %v2505
    %v3498 = vpack.c.b16 %v2514, %v2506
    %v3499 = vpack.c.b16 %v2515, %v2507
    %v3500 = vpack.c.b16 %v2516, %v2508
    %v3501 = vpack.c.b16 %v2525, %v2517
    %v3502 = vpack.c.b16 %v2526, %v2518
    %v3503 = vpack.c.b16 %v2527, %v2519
    %v3504 = vpack.c.b16 %v2528, %v2520
    %v3505 = vpack.c.b16 %v2529, %v2521
    %v3506 = vpack.c.b16 %v2530, %v2522
    %v3507 = vpack.c.b16 %v2531, %v2523
    %v3508 = vpack.c.b16 %v2532, %v2524
    %v3509 = vpack.c.b16 %v2541, %v2533
    %v3510 = vpack.c.b16 %v2542, %v2534
    %v3511 = vpack.c.b16 %v2543, %v2535
    %v3512 = vpack.c.b16 %v2544, %v2536
    %v3513 = vpack.c.b16 %v2545, %v2537
    %v3514 = vpack.c.b16 %v2546, %v2538
    %v3515 = vpack.c.b16 %v2547, %v2539
    %v3516 = vpack.c.b16 %v2548, %v2540
    %v3517 = vpack.c.b16 %v2557, %v2549
    %v3518 = vpack.c.b16 %v2558, %v2550
    %v3519 = vpack.c.b16 %v2559, %v2551
    %v3520 = vpack.c.b16 %v2560, %v2552
    %v3521 = vpack.c.b16 %v2561, %v2553
    %v3522 = vpack.c.b16 %v2562, %v2554
    %v3523 = vpack.c.b16 %v2563, %v2555
    %v3524 = vpack.c.b16 %v2564, %v2556
    %v3525 = vpack.c.b16 %v2573, %v2565
    %v3526 = vpack.c.b16 %v2574, %v2566
    %v3527 = vpack.c.b16 %v2575, %v2567
    %v3528 = vpack.c.b16 %v2576, %v2568
    %v3529 = vpack.c.b16 %v2577, %v2569
    %v3530 = vpack.c.b16 %v2578, %v2570
    %v3531 = vpack.c.b16 %v2579, %v2571
    %v3532 = vpack.c.b16 %v2580, %v2572
    %v3533 = vpack.c.b16 %v2589, %v2581
    %v3534 = vpack.c.b16 %v2590, %v2582
    %v3535 = vpack.c.b16 %v2591, %v2583
    %v3536 = vpack.c.b16 %v2592, %v2584
    %v3537 = vpack.c.b16 %v2593, %v2585
    %v3538 = vpack.c.b16 %v2594, %v2586
    %v3539 = vpack.c.b16 %v2595, %v2587
    %v3540 = vpack.c.b16 %v2596, %v2588
    %v3541 = vpack.c.b16 %v2605, %v2597
    %v3542 = vpack.c.b16 %v2606, %v2598
    %v3543 = vpack.c.b16 %v2607, %v2599
    %v3544 = vpack.c.b16 %v2608, %v2600
    %v3545 = vpack.c.b16 %v2609, %v2601
    %v3546 = vpack.c.b16 %v2610, %v2602
    %v3547 = vpack.c.b16 %v2611, %v2603
    %v3548 = vpack.c.b16 %v2612, %v2604
    %v3549 = vpack.c.b16 %v2621, %v2613
    %v3550 = vpack.c.b16 %v2622, %v2614
    %v3551 = vpack.c.b16 %v2623, %v2615
    %v3552 = vpack.c.b16 %v2624, %v2616
    %v3553 = vpack.c.b16 %v2625, %v2617
    %v3554 = vpack.c.b16 %v2626, %v2618
    %v3555 = vpack.c.b16 %v2627, %v2619
    %v3556 = vpack.c.b16 %v2628, %v2620
    %v3557 = vpack.c.b16 %v2637, %v2629
    %v3558 = vpack.c.b16 %v2638, %v2630
    %v3559 = vpack.c.b16 %v2639, %v2631
    %v3560 = vpack.c.b16 %v2640, %v2632
    %v3561 = vpack.c.b16 %v2641, %v2633
    %v3562 = vpack.c.b16 %v2642, %v2634
    %v3563 = vpack.c.b16 %v2643, %v2635
    %v3564 = vpack.c.b16 %v2644, %v2636
    %v3565 = vpack.c.b16 %v2653, %v2645
    %v3566 = vpack.c.b16 %v2654, %v2646
    %v3567 = vpack.c.b16 %v2655, %v2647
    %v3568 = vpack.c.b16 %v2656, %v2648
    %v3569 = vpack.c.b16 %v2657, %v2649
    %v3570 = vpack.c.b16 %v2658, %v2650
    %v3571 = vpack.c.b16 %v2659, %v2651
    %v3572 = vpack.c.b16 %v2660, %v2652
    %v3573 = vpack.c.b16 %v2669, %v2661
    %v3574 = vpack.c.b16 %v2670, %v2662
    %v3575 = vpack.c.b16 %v2671, %v2663
    %v3576 = vpack.c.b16 %v2672, %v2664
    %v3577 = vpack.c.b16 %v2673, %v2665
    %v3578 = vpack.c.b16 %v2674, %v2666
    %v3579 = vpack.c.b16 %v2675, %v2667
    %v3580 = vpack.c.b16 %v2676, %v2668
    %v3581 = vpack.c.b16 %v2685, %v2677
    %v3582 = vpack.c.b16 %v2686, %v2678
    %v3583 = vpack.c.b16 %v2687, %v2679
    %v3584 = vpack.c.b16 %v2688, %v2680
    %v3585 = vpack.c.b16 %v2689, %v2681
    %v3586 = vpack.c.b16 %v2690, %v2682
    %v3587 = vpack.c.b16 %v2691, %v2683
    %v3588 = vpack.c.b16 %v2692, %v2684
    %v3589 = vpack.c.b16 %v2701, %v2693
    %v3590 = vpack.c.b16 %v2702, %v2694
    %v3591 = vpack.c.b16 %v2703, %v2695
    %v3592 = vpack.c.b16 %v2704, %v2696
    %v3593 = vpack.c.b16 %v2705, %v2697
    %v3594 = vpack.c.b16 %v2706, %v2698
    %v3595 = vpack.c.b16 %v2707, %v2699
    %v3596 = vpack.c.b16 %v2708, %v2700
    %v3597 = vpack.c.b16 %v2717, %v2709
    %v3598 = vpack.c.b16 %v2718, %v2710
    %v3599 = vpack.c.b16 %v2719, %v2711
    %v3600 = vpack.c.b16 %v2720, %v2712
    %v3601 = vpack.c.b16 %v2721, %v2713
    %v3602 = vpack.c.b16 %v2722, %v2714
    %v3603 = vpack.c.b16 %v2723, %v2715
    %v3604 = vpack.c.b16 %v2724, %v2716
    %v3605 = vpack.c.b16 %v2733, %v2725
    %v3606 = vpack.c.b16 %v2734, %v2726
    %v3607 = vpack.c.b16 %v2735, %v2727
    %v3608 = vpack.c.b16 %v2736, %v2728
    %v3609 = vpack.c.b16 %v2737, %v2729
    %v3610 = vpack.c.b16 %v2738, %v2730
    %v3611 = vpack.c.b16 %v2739, %v2731
    %v3612 = vpack.c.b16 %v2740, %v2732
    %v3613 = vpack.c.b16 %v2749, %v2741
    %v3614 = vpack.c.b16 %v2750, %v2742
    %v3615 = vpack.c.b16 %v2751, %v2743
    %v3616 = vpack.c.b16 %v2752, %v2744
    %v3617 = vpack.c.b16 %v2753, %v2745
    %v3618 = vpack.c.b16 %v2754, %v2746
    %v3619 = vpack.c.b16 %v2755, %v2747
    %v3620 = vpack.c.b16 %v2756, %v2748
    %v3621 = vpack.c.b16 %v2765, %v2757
    %v3622 = vpack.c.b16 %v2766, %v2758
    %v3623 = vpack.c.b16 %v2767, %v2759
    %v3624 = vpack.c.b16 %v2768, %v2760
    %v3625 = vpack.c.b16 %v2769, %v2761
    %v3626 = vpack.c.b16 %v2770, %v2762
    %v3627 = vpack.c.b16 %v2771, %v2763
    %v3628 = vpack.c.b16 %v2772, %v2764
    %v3629 = vpack.c.b16 %v2781, %v2773
    %v3630 = vpack.c.b16 %v2782, %v2774
    %v3631 = vpack.c.b16 %v2783, %v2775
    %v3632 = vpack.c.b16 %v2784, %v2776
    %v3633 = vpack.c.b16 %v2785, %v2777
    %v3634 = vpack.c.b16 %v2786, %v2778
    %v3635 = vpack.c.b16 %v2787, %v2779
    %v3636 = vpack.c.b16 %v2788, %v2780
    %v3637 = vpack.c.b16 %v2797, %v2789
    %v3638 = vpack.c.b16 %v2798, %v2790
    %v3639 = vpack.c.b16 %v2799, %v2791
    %v3640 = vpack.c.b16 %v2800, %v2792
    %v3641 = vpack.c.b16 %v2801, %v2793
    %v3642 = vpack.c.b16 %v2802, %v2794
    %v3643 = vpack.c.b16 %v2803, %v2795
    %v3644 = vpack.c.b16 %v2804, %v2796
    %v3645 = vpack.c.b16 %v2813, %v2805
    %v3646 = vpack.c.b16 %v2814, %v2806
    %v3647 = vpack.c.b16 %v2815, %v2807
    %v3648 = vpack.c.b16 %v2816, %v2808
    %v3649 = vpack.c.b16 %v2817, %v2809
    %v3650 = vpack.c.b16 %v2818, %v2810
    %v3651 = vpack.c.b16 %v2819, %v2811
    %v3652 = vpack.c.b16 %v2820, %v2812
    %v3653 = vpack.c.b16 %v2829, %v2821
    %v3654 = vpack.c.b16 %v2830, %v2822
    %v3655 = vpack.c.b16 %v2831, %v2823
    %v3656 = vpack.c.b16 %v2832, %v2824
    %v3657 = vpack.c.b16 %v2833, %v2825
    %v3658 = vpack.c.b16 %v2834, %v2826
    %v3659 = vpack.c.b16 %v2835, %v2827
    %v3660 = vpack.c.b16 %v2836, %v2828
    %v3661 = vpack.c.b16 %v2845, %v2837
    %v3662 = vpack.c.b16 %v2846, %v2838
    %v3663 = vpack.c.b16 %v2847, %v2839
    %v3664 = vpack.c.b16 %v2848, %v2840
    %v3665 = vpack.c.b16 %v2849, %v2841
    %v3666 = vpack.c.b16 %v2850, %v2842
    %v3667 = vpack.c.b16 %v2851, %v2843
    %v3668 = vpack.c.b16 %v2852, %v2844
    %v3669 = vpack.c.b16 %v2861, %v2853
    %v3670 = vpack.c.b16 %v2862, %v2854
    %v3671 = vpack.c.b16 %v2863, %v2855
    %v3672 = vpack.c.b16 %v2864, %v2856
    %v3673 = vpack.c.b16 %v2865, %v2857
    %v3674 = vpack.c.b16 %v2866, %v2858
    %v3675 = vpack.c.b16 %v2867, %v2859
    %v3676 = vpack.c.b16 %v2868, %v2860
    %v3677 = vpack.c.b16 %v2877, %v2869
    %v3678 = vpack.c.b16 %v2878, %v2870
    %v3679 = vpack.c.b16 %v2879, %v2871
    %v3680 = vpack.c.b16 %v2880, %v2872
    %v3681 = vpack.c.b16 %v2881, %v2873
    %v3682 = vpack.c.b16 %v2882, %v2874
    %v3683 = vpack.c.b16 %v2883, %v2875
    %v3684 = vpack.c.b16 %v2884, %v2876
    %v3685 = vpack.c.b16 %v2893, %v2885
    %v3686 = vpack.c.b16 %v2894, %v2886
    %v3687 = vpack.c.b16 %v2895, %v2887
    %v3688 = vpack.c.b16 %v2896, %v2888
    %v3689 = vpack.c.b16 %v2897, %v2889
    %v3690 = vpack.c.b16 %v2898, %v2890
    %v3691 = vpack.c.b16 %v2899, %v2891
    %v3692 = vpack.c.b16 %v2900, %v2892
    %v3693 = vpack.c.b16 %v2909, %v2901
    %v3694 = vpack.c.b16 %v2910, %v2902
    %v3695 = vpack.c.b16 %v2911, %v2903
    %v3696 = vpack.c.b16 %v2912, %v2904
    %v3697 = vpack.c.b16 %v2913, %v2905
    %v3698 = vpack.c.b16 %v2914, %v2906
    %v3699 = vpack.c.b16 %v2915, %v2907
    %v3700 = vpack.c.b16 %v2916, %v2908
    %v3701 = vpack.c.b16 %v2925, %v2917
    %v3702 = vpack.c.b16 %v2926, %v2918
    %v3703 = vpack.c.b16 %v2927, %v2919
    %v3704 = vpack.c.b16 %v2928, %v2920
    %v3705 = vpack.c.b16 %v2929, %v2921
    %v3706 = vpack.c.b16 %v2930, %v2922
    %v3707 = vpack.c.b16 %v2931, %v2923
    %v3708 = vpack.c.b16 %v2932, %v2924
    %v3709 = vpack.c.b16 %v2941, %v2933
    %v3710 = vpack.c.b16 %v2942, %v2934
    %v3711 = vpack.c.b16 %v2943, %v2935
    %v3712 = vpack.c.b16 %v2944, %v2936
    %v3713 = vpack.c.b16 %v2945, %v2937
    %v3714 = vpack.c.b16 %v2946, %v2938
    %v3715 = vpack.c.b16 %v2947, %v2939
    %v3716 = vpack.c.b16 %v2948, %v2940
    %v3717 = vpack.c.b16 %v2957, %v2949
    %v3718 = vpack.c.b16 %v2958, %v2950
    %v3719 = vpack.c.b16 %v2959, %v2951
    %v3720 = vpack.c.b16 %v2960, %v2952
    %v3721 = vpack.c.b16 %v2961, %v2953
    %v3722 = vpack.c.b16 %v2962, %v2954
    %v3723 = vpack.c.b16 %v2963, %v2955
    %v3724 = vpack.c.b16 %v2964, %v2956
    %v3725 = vpack.c.b16 %v2973, %v2965
    %v3726 = vpack.c.b16 %v2974, %v2966
    %v3727 = vpack.c.b16 %v2975, %v2967
    %v3728 = vpack.c.b16 %v2976, %v2968
    %v3729 = vpack.c.b16 %v2977, %v2969
    %v3730 = vpack.c.b16 %v2978, %v2970
    %v3731 = vpack.c.b16 %v2979, %v2971
    %v3732 = vpack.c.b16 %v2980, %v2972
    %v3733 = vpack.c.b16 %v2989, %v2981
    %v3734 = vpack.c.b16 %v2990, %v2982
    %v3735 = vpack.c.b16 %v2991, %v2983
    %v3736 = vpack.c.b16 %v2992, %v2984
    %v3737 = vpack.c.b16 %v2993, %v2985
    %v3738 = vpack.c.b16 %v2994, %v2986
    %v3739 = vpack.c.b16 %v2995, %v2987
    %v3740 = vpack.c.b16 %v2996, %v2988
    %v3741 = vpack.c.b16 %v3005, %v2997
    %v3742 = vpack.c.b16 %v3006, %v2998
    %v3743 = vpack.c.b16 %v3007, %v2999
    %v3744 = vpack.c.b16 %v3008, %v3000
    %v3745 = vpack.c.b16 %v3009, %v3001
    %v3746 = vpack.c.b16 %v3010, %v3002
    %v3747 = vpack.c.b16 %v3011, %v3003
    %v3748 = vpack.c.b16 %v3012, %v3004
    %v3749 = vpack.c.b16 %v3021, %v3013
    %v3750 = vpack.c.b16 %v3022, %v3014
    %v3751 = vpack.c.b16 %v3023, %v3015
    %v3752 = vpack.c.b16 %v3024, %v3016
    %v3753 = vpack.c.b16 %v3025, %v3017
    %v3754 = vpack.c.b16 %v3026, %v3018
    %v3755 = vpack.c.b16 %v3027, %v3019
    %v3756 = vpack.c.b16 %v3028, %v3020
    %v3757 = vpack.c.b16 %v3037, %v3029
    %v3758 = vpack.c.b16 %v3038, %v3030
    %v3759 = vpack.c.b16 %v3039, %v3031
    %v3760 = vpack.c.b16 %v3040, %v3032
    %v3761 = vpack.c.b16 %v3041, %v3033
    %v3762 = vpack.c.b16 %v3042, %v3034
    %v3763 = vpack.c.b16 %v3043, %v3035
    %v3764 = vpack.c.b16 %v3044, %v3036
    %v3765 = vpack.c.b16 %v3053, %v3045
    %v3766 = vpack.c.b16 %v3054, %v3046
    %v3767 = vpack.c.b16 %v3055, %v3047
    %v3768 = vpack.c.b16 %v3056, %v3048
    %v3769 = vpack.c.b16 %v3057, %v3049
    %v3770 = vpack.c.b16 %v3058, %v3050
    %v3771 = vpack.c.b16 %v3059, %v3051
    %v3772 = vpack.c.b16 %v3060, %v3052
    %v3773 = vpack.c.b16 %v3069, %v3061
    %v3774 = vpack.c.b16 %v3070, %v3062
    %v3775 = vpack.c.b16 %v3071, %v3063
    %v3776 = vpack.c.b16 %v3072, %v3064
    %v3777 = vpack.c.b16 %v3073, %v3065
    %v3778 = vpack.c.b16 %v3074, %v3066
    %v3779 = vpack.c.b16 %v3075, %v3067
    %v3780 = vpack.c.b16 %v3076, %v3068
    %4485 = vmatprep.subr.bf16.mxu0 %v3134
    %4486 = vmatpush1.bf16.msra.mxu0 %v3133
    %4487 = vmatprep.subr.bf16.mxu0 %v3126
    %4488 = vmatpush1.bf16.msra.mxu0 %v3125
    %4489 = vmatprep.subr.bf16.mxu0 %v3118
    %4490 = vmatpush1.bf16.msra.mxu0 %v3117
    %4491 = vmatprep.subr.bf16.mxu0 %v3110
    %4492 = vmatpush1.bf16.msra.mxu0 %v3109
    %4493 = vmatprep.subr.bf16.mxu0 %v3102
    %4494 = vmatpush1.bf16.msra.mxu0 %v3101
    %4495 = vmatprep.subr.bf16.mxu0 %v3094
    %4496 = vmatpush1.bf16.msra.mxu0 %v3093
    %4497 = vmatprep.subr.bf16.mxu0 %v3086
    %4498 = vmatpush1.bf16.msra.mxu0 %v3085
    %4499 = vmatprep.subr.bf16.mxu0 %v3078
    %4500 = vmatpush1.bf16.msra.mxu0 %v3077
    %4501 = vmatprep.subr.bf16.mxu0 %v3198
    %4502 = vmatpush2.bf16.msra.mxu0 %v3197
    %4503 = vmatprep.subr.bf16.mxu0 %v3190
    %4504 = vmatpush2.bf16.msra.mxu0 %v3189
    %4505 = vmatprep.subr.bf16.mxu0 %v3182
    %4506 = vmatpush2.bf16.msra.mxu0 %v3181
    %4507 = vmatprep.subr.bf16.mxu0 %v3174
    %4508 = vmatpush2.bf16.msra.mxu0 %v3173
    %4509 = vmatprep.subr.bf16.mxu0 %v3166
    %4510 = vmatpush2.bf16.msra.mxu0 %v3165
    %4511 = vmatprep.subr.bf16.mxu0 %v3158
    %4512 = vmatpush2.bf16.msra.mxu0 %v3157
    %4513 = vmatprep.subr.bf16.mxu0 %v3150
    %4514 = vmatpush2.bf16.msra.mxu0 %v3149
    %4515 = vmatprep.subr.bf16.mxu0 %v3142
    %4516 = vmatpush2.bf16.msra.mxu0 %v3141
    %4517 = vmatprep.mubr.bf16.mxu0 %v944
    %4518 = vmatmul.mubr.bf16.gmra.mxu0 %v943
    %v4519 = vpop.f32.mrf.mxu0
    %v4520 = vadd.f32 %v872, %v4519
    %v4521 = vpop.f32.mrf.mxu0
    %v4522 = vadd.f32 %v876, %v4521
    %v4523 = vpop.f32.mrf.mxu0
    %v4524 = vadd.f32 %v872, %v4523
    %v4525 = vpop.f32.mrf.mxu0
    %v4526 = vadd.f32 %v876, %v4525
    %4527 = vdwg.mxu0
    %4528 = vmatprep.subr.bf16.mxu0 %v3262
    %4529 = vmatpush1.bf16.msra.mxu0 %v3261
    %4530 = vmatprep.subr.bf16.mxu0 %v3254
    %4531 = vmatpush1.bf16.msra.mxu0 %v3253
    %4532 = vmatprep.subr.bf16.mxu0 %v3246
    %4533 = vmatpush1.bf16.msra.mxu0 %v3245
    %4534 = vmatprep.subr.bf16.mxu0 %v3238
    %4535 = vmatpush1.bf16.msra.mxu0 %v3237
    %4536 = vmatprep.subr.bf16.mxu0 %v3230
    %4537 = vmatpush1.bf16.msra.mxu0 %v3229
    %4538 = vmatprep.subr.bf16.mxu0 %v3222
    %4539 = vmatpush1.bf16.msra.mxu0 %v3221
    %4540 = vmatprep.subr.bf16.mxu0 %v3214
    %4541 = vmatpush1.bf16.msra.mxu0 %v3213
    %4542 = vmatprep.subr.bf16.mxu0 %v3206
    %4543 = vmatpush1.bf16.msra.mxu0 %v3205
    %4544 = vmatprep.subr.bf16.mxu0 %v3326
    %4545 = vmatpush2.bf16.msra.mxu0 %v3325
    %4546 = vmatprep.subr.bf16.mxu0 %v3318
    %4547 = vmatpush2.bf16.msra.mxu0 %v3317
    %4548 = vmatprep.subr.bf16.mxu0 %v3310
    %4549 = vmatpush2.bf16.msra.mxu0 %v3309
    %4550 = vmatprep.subr.bf16.mxu0 %v3302
    %4551 = vmatpush2.bf16.msra.mxu0 %v3301
    %4552 = vmatprep.subr.bf16.mxu0 %v3294
    %4553 = vmatpush2.bf16.msra.mxu0 %v3293
    %4554 = vmatprep.subr.bf16.mxu0 %v3286
    %4555 = vmatpush2.bf16.msra.mxu0 %v3285
    %4556 = vmatprep.subr.bf16.mxu0 %v3278
    %4557 = vmatpush2.bf16.msra.mxu0 %v3277
    %4558 = vmatprep.subr.bf16.mxu0 %v3270
    %4559 = vmatpush2.bf16.msra.mxu0 %v3269
    %4560 = vmatprep.mubr.bf16.mxu0 %v946
    %4561 = vmatmul.mubr.bf16.gmra.mxu0 %v945
    %v4562 = vpop.f32.mrf.mxu0
    %v4563 = vadd.f32 %v4520, %v4562
    %v4564 = vpop.f32.mrf.mxu0
    %v4565 = vadd.f32 %v4522, %v4564
    %v4566 = vpop.f32.mrf.mxu0
    %v4567 = vadd.f32 %v4524, %v4566
    %v4568 = vpop.f32.mrf.mxu0
    %v4569 = vadd.f32 %v4526, %v4568
    %4570 = vdwg.mxu0
    %4571 = vmatprep.subr.bf16.mxu0 %v3390
    %4572 = vmatpush1.bf16.msra.mxu0 %v3389
    %4573 = vmatprep.subr.bf16.mxu0 %v3382
    %4574 = vmatpush1.bf16.msra.mxu0 %v3381
    %4575 = vmatprep.subr.bf16.mxu0 %v3374
    %4576 = vmatpush1.bf16.msra.mxu0 %v3373
    %4577 = vmatprep.subr.bf16.mxu0 %v3366
    %4578 = vmatpush1.bf16.msra.mxu0 %v3365
    %4579 = vmatprep.subr.bf16.mxu0 %v3358
    %4580 = vmatpush1.bf16.msra.mxu0 %v3357
    %4581 = vmatprep.subr.bf16.mxu0 %v3350
    %4582 = vmatpush1.bf16.msra.mxu0 %v3349
    %4583 = vmatprep.subr.bf16.mxu0 %v3342
    %4584 = vmatpush1.bf16.msra.mxu0 %v3341
    %4585 = vmatprep.subr.bf16.mxu0 %v3334
    %4586 = vmatpush1.bf16.msra.mxu0 %v3333
    %4587 = vmatprep.subr.bf16.mxu0 %v3454
    %4588 = vmatpush2.bf16.msra.mxu0 %v3453
    %4589 = vmatprep.subr.bf16.mxu0 %v3446
    %4590 = vmatpush2.bf16.msra.mxu0 %v3445
    %4591 = vmatprep.subr.bf16.mxu0 %v3438
    %4592 = vmatpush2.bf16.msra.mxu0 %v3437
    %4593 = vmatprep.subr.bf16.mxu0 %v3430
    %4594 = vmatpush2.bf16.msra.mxu0 %v3429
    %4595 = vmatprep.subr.bf16.mxu0 %v3422
    %4596 = vmatpush2.bf16.msra.mxu0 %v3421
    %4597 = vmatprep.subr.bf16.mxu0 %v3414
    %4598 = vmatpush2.bf16.msra.mxu0 %v3413
    %4599 = vmatprep.subr.bf16.mxu0 %v3406
    %4600 = vmatpush2.bf16.msra.mxu0 %v3405
    %4601 = vmatprep.subr.bf16.mxu0 %v3398
    %4602 = vmatpush2.bf16.msra.mxu0 %v3397
    %4603 = vmatprep.mubr.bf16.mxu0 %v948
    %4604 = vmatmul.mubr.bf16.gmra.mxu0 %v947
    %v4605 = vpop.f32.mrf.mxu0
    %v4606 = vadd.f32 %v4563, %v4605
    %v4607 = vpop.f32.mrf.mxu0
    %v4608 = vadd.f32 %v4565, %v4607
    %v4609 = vpop.f32.mrf.mxu0
    %v4610 = vadd.f32 %v4567, %v4609
    %v4611 = vpop.f32.mrf.mxu0
    %v4612 = vadd.f32 %v4569, %v4611
    %4613 = vdwg.mxu0
    %4614 = vmatprep.subr.bf16.mxu0 %v3518
    %4615 = vmatpush1.bf16.msra.mxu0 %v3517
    %4616 = vmatprep.subr.bf16.mxu0 %v3510
    %4617 = vmatpush1.bf16.msra.mxu0 %v3509
    %4618 = vmatprep.subr.bf16.mxu0 %v3502
    %4619 = vmatpush1.bf16.msra.mxu0 %v3501
    %4620 = vmatprep.subr.bf16.mxu0 %v3494
    %4621 = vmatpush1.bf16.msra.mxu0 %v3493
    %4622 = vmatprep.subr.bf16.mxu0 %v3486
    %4623 = vmatpush1.bf16.msra.mxu0 %v3485
    %4624 = vmatprep.subr.bf16.mxu0 %v3478
    %4625 = vmatpush1.bf16.msra.mxu0 %v3477
    %4626 = vmatprep.subr.bf16.mxu0 %v3470
    %4627 = vmatpush1.bf16.msra.mxu0 %v3469
    %4628 = vmatprep.subr.bf16.mxu0 %v3462
    %4629 = vmatpush1.bf16.msra.mxu0 %v3461
    %4630 = vmatprep.subr.bf16.mxu0 %v3582
    %4631 = vmatpush2.bf16.msra.mxu0 %v3581
    %4632 = vmatprep.subr.bf16.mxu0 %v3574
    %4633 = vmatpush2.bf16.msra.mxu0 %v3573
    %4634 = vmatprep.subr.bf16.mxu0 %v3566
    %4635 = vmatpush2.bf16.msra.mxu0 %v3565
    %4636 = vmatprep.subr.bf16.mxu0 %v3558
    %4637 = vmatpush2.bf16.msra.mxu0 %v3557
    %4638 = vmatprep.subr.bf16.mxu0 %v3550
    %4639 = vmatpush2.bf16.msra.mxu0 %v3549
    %4640 = vmatprep.subr.bf16.mxu0 %v3542
    %4641 = vmatpush2.bf16.msra.mxu0 %v3541
    %4642 = vmatprep.subr.bf16.mxu0 %v3534
    %4643 = vmatpush2.bf16.msra.mxu0 %v3533
    %4644 = vmatprep.subr.bf16.mxu0 %v3526
    %4645 = vmatpush2.bf16.msra.mxu0 %v3525
    %4646 = vmatprep.mubr.bf16.mxu0 %v950
    %4647 = vmatmul.mubr.bf16.gmra.mxu0 %v949
    %v4648 = vpop.f32.mrf.mxu0
    %v4649 = vadd.f32 %v4606, %v4648
    %v4650 = vpop.f32.mrf.mxu0
    %v4651 = vadd.f32 %v4608, %v4650
    %v4652 = vpop.f32.mrf.mxu0
    %v4653 = vadd.f32 %v4610, %v4652
    %v4654 = vpop.f32.mrf.mxu0
    %v4655 = vadd.f32 %v4612, %v4654
    %4656 = vdwg.mxu0
    %4657 = vmatprep.subr.bf16.mxu0 %v3646
    %4658 = vmatpush1.bf16.msra.mxu0 %v3645
    %4659 = vmatprep.subr.bf16.mxu0 %v3638
    %4660 = vmatpush1.bf16.msra.mxu0 %v3637
    %4661 = vmatprep.subr.bf16.mxu0 %v3630
    %4662 = vmatpush1.bf16.msra.mxu0 %v3629
    %4663 = vmatprep.subr.bf16.mxu0 %v3622
    %4664 = vmatpush1.bf16.msra.mxu0 %v3621
    %4665 = vmatprep.subr.bf16.mxu0 %v3614
    %4666 = vmatpush1.bf16.msra.mxu0 %v3613
    %4667 = vmatprep.subr.bf16.mxu0 %v3606
    %4668 = vmatpush1.bf16.msra.mxu0 %v3605
    %4669 = vmatprep.subr.bf16.mxu0 %v3598
    %4670 = vmatpush1.bf16.msra.mxu0 %v3597
    %4671 = vmatprep.subr.bf16.mxu0 %v3590
    %4672 = vmatpush1.bf16.msra.mxu0 %v3589
    %4673 = vmatprep.subr.bf16.mxu0 %v3710
    %4674 = vmatpush2.bf16.msra.mxu0 %v3709
    %4675 = vmatprep.subr.bf16.mxu0 %v3702
    %4676 = vmatpush2.bf16.msra.mxu0 %v3701
    %4677 = vmatprep.subr.bf16.mxu0 %v3694
    %4678 = vmatpush2.bf16.msra.mxu0 %v3693
    %4679 = vmatprep.subr.bf16.mxu0 %v3686
    %4680 = vmatpush2.bf16.msra.mxu0 %v3685
    %4681 = vmatprep.subr.bf16.mxu0 %v3678
    %4682 = vmatpush2.bf16.msra.mxu0 %v3677
    %4683 = vmatprep.subr.bf16.mxu0 %v3670
    %4684 = vmatpush2.bf16.msra.mxu0 %v3669
    %4685 = vmatprep.subr.bf16.mxu0 %v3662
    %4686 = vmatpush2.bf16.msra.mxu0 %v3661
    %4687 = vmatprep.subr.bf16.mxu0 %v3654
    %4688 = vmatpush2.bf16.msra.mxu0 %v3653
    %4689 = vmatprep.mubr.bf16.mxu0 %v952
    %4690 = vmatmul.mubr.bf16.gmra.mxu0 %v951
    %v4691 = vpop.f32.mrf.mxu0
    %v4692 = vadd.f32 %v4649, %v4691
    %v4693 = vpop.f32.mrf.mxu0
    %v4694 = vadd.f32 %v4651, %v4693
    %v4695 = vpop.f32.mrf.mxu0
    %v4696 = vadd.f32 %v4653, %v4695
    %v4697 = vpop.f32.mrf.mxu0
    %v4698 = vadd.f32 %v4655, %v4697
    %4699 = vdwg.mxu0
    %4700 = vmatprep.subr.bf16.mxu0 %v3774
    %4701 = vmatpush1.bf16.msra.mxu0 %v3773
    %4702 = vmatprep.subr.bf16.mxu0 %v3766
    %4703 = vmatpush1.bf16.msra.mxu0 %v3765
    %4704 = vmatprep.subr.bf16.mxu0 %v3758
    %4705 = vmatpush1.bf16.msra.mxu0 %v3757
    %4706 = vmatprep.subr.bf16.mxu0 %v3750
    %4707 = vmatpush1.bf16.msra.mxu0 %v3749
    %4708 = vmatprep.subr.bf16.mxu0 %v3742
    %4709 = vmatpush1.bf16.msra.mxu0 %v3741
    %4710 = vmatprep.subr.bf16.mxu0 %v3734
    %4711 = vmatpush1.bf16.msra.mxu0 %v3733
    %4712 = vmatprep.subr.bf16.mxu0 %v3726
    %4713 = vmatpush1.bf16.msra.mxu0 %v3725
    %4714 = vmatprep.subr.bf16.mxu0 %v3718
    %4715 = vmatpush1.bf16.msra.mxu0 %v3717
    %4716 = vmatprep.subr.bf16.mxu0 0
    %4717 = vmatpush2.bf16.msra.mxu0 0
    %4718 = vmatprep.subr.bf16.mxu0 0
    %4719 = vmatpush2.bf16.msra.mxu0 0
    %4720 = vmatprep.subr.bf16.mxu0 0
    %4721 = vmatpush2.bf16.msra.mxu0 0
    %4722 = vmatprep.subr.bf16.mxu0 0
    %4723 = vmatpush2.bf16.msra.mxu0 0
    %4724 = vmatprep.subr.bf16.mxu0 0
    %4725 = vmatpush2.bf16.msra.mxu0 0
    %4726 = vmatprep.subr.bf16.mxu0 0
    %4727 = vmatpush2.bf16.msra.mxu0 0
    %4728 = vmatprep.subr.bf16.mxu0 0
    %4729 = vmatpush2.bf16.msra.mxu0 0
    %4730 = vmatprep.subr.bf16.mxu0 0
    %4731 = vmatpush2.bf16.msra.mxu0 0
    %4732 = vmatprep.mubr.bf16.mxu0 0
    %4733 = vmatmul.mubr.bf16.gmra.mxu0 %v953
    %v4734 = vpop.f32.mrf.mxu0
    %v4735 = vadd.f32 %v4692, %v4734
    %v4736 = vpop.f32.mrf.mxu0
    %v4737 = vadd.f32 %v4694, %v4736
    %v4738 = vpop.f32.mrf.mxu0
    %v4739 = vadd.f32 %v4696, %v4738
    %v4740 = vpop.f32.mrf.mxu0
    %v4741 = vadd.f32 %v4698, %v4740
    %4742 = vdwg.mxu0
    %4743 = vmatprep.subr.bf16.mxu0 %v3136
    %4744 = vmatpush1.bf16.msra.mxu0 %v3135
    %4745 = vmatprep.subr.bf16.mxu0 %v3128
    %4746 = vmatpush1.bf16.msra.mxu0 %v3127
    %4747 = vmatprep.subr.bf16.mxu0 %v3120
    %4748 = vmatpush1.bf16.msra.mxu0 %v3119
    %4749 = vmatprep.subr.bf16.mxu0 %v3112
    %4750 = vmatpush1.bf16.msra.mxu0 %v3111
    %4751 = vmatprep.subr.bf16.mxu0 %v3104
    %4752 = vmatpush1.bf16.msra.mxu0 %v3103
    %4753 = vmatprep.subr.bf16.mxu0 %v3096
    %4754 = vmatpush1.bf16.msra.mxu0 %v3095
    %4755 = vmatprep.subr.bf16.mxu0 %v3088
    %4756 = vmatpush1.bf16.msra.mxu0 %v3087
    %4757 = vmatprep.subr.bf16.mxu0 %v3080
    %4758 = vmatpush1.bf16.msra.mxu0 %v3079
    %4759 = vmatprep.subr.bf16.mxu0 %v3200
    %4760 = vmatpush2.bf16.msra.mxu0 %v3199
    %4761 = vmatprep.subr.bf16.mxu0 %v3192
    %4762 = vmatpush2.bf16.msra.mxu0 %v3191
    %4763 = vmatprep.subr.bf16.mxu0 %v3184
    %4764 = vmatpush2.bf16.msra.mxu0 %v3183
    %4765 = vmatprep.subr.bf16.mxu0 %v3176
    %4766 = vmatpush2.bf16.msra.mxu0 %v3175
    %4767 = vmatprep.subr.bf16.mxu0 %v3168
    %4768 = vmatpush2.bf16.msra.mxu0 %v3167
    %4769 = vmatprep.subr.bf16.mxu0 %v3160
    %4770 = vmatpush2.bf16.msra.mxu0 %v3159
    %4771 = vmatprep.subr.bf16.mxu0 %v3152
    %4772 = vmatpush2.bf16.msra.mxu0 %v3151
    %4773 = vmatprep.subr.bf16.mxu0 %v3144
    %4774 = vmatpush2.bf16.msra.mxu0 %v3143
    %4775 = vmatprep.mubr.bf16.mxu0 %v944
    %4776 = vmatmul.mubr.bf16.gmra.mxu0 %v943
    %v4777 = vpop.f32.mrf.mxu0
    %v4778 = vadd.f32 %v880, %v4777
    %v4779 = vpop.f32.mrf.mxu0
    %v4780 = vadd.f32 %v884, %v4779
    %v4781 = vpop.f32.mrf.mxu0
    %v4782 = vadd.f32 %v880, %v4781
    %v4783 = vpop.f32.mrf.mxu0
    %v4784 = vadd.f32 %v884, %v4783
    %4785 = vdwg.mxu0
    %4786 = vmatprep.subr.bf16.mxu0 %v3264
    %4787 = vmatpush1.bf16.msra.mxu0 %v3263
    %4788 = vmatprep.subr.bf16.mxu0 %v3256
    %4789 = vmatpush1.bf16.msra.mxu0 %v3255
    %4790 = vmatprep.subr.bf16.mxu0 %v3248
    %4791 = vmatpush1.bf16.msra.mxu0 %v3247
    %4792 = vmatprep.subr.bf16.mxu0 %v3240
    %4793 = vmatpush1.bf16.msra.mxu0 %v3239
    %4794 = vmatprep.subr.bf16.mxu0 %v3232
    %4795 = vmatpush1.bf16.msra.mxu0 %v3231
    %4796 = vmatprep.subr.bf16.mxu0 %v3224
    %4797 = vmatpush1.bf16.msra.mxu0 %v3223
    %4798 = vmatprep.subr.bf16.mxu0 %v3216
    %4799 = vmatpush1.bf16.msra.mxu0 %v3215
    %4800 = vmatprep.subr.bf16.mxu0 %v3208
    %4801 = vmatpush1.bf16.msra.mxu0 %v3207
    %4802 = vmatprep.subr.bf16.mxu0 %v3328
    %4803 = vmatpush2.bf16.msra.mxu0 %v3327
    %4804 = vmatprep.subr.bf16.mxu0 %v3320
    %4805 = vmatpush2.bf16.msra.mxu0 %v3319
    %4806 = vmatprep.subr.bf16.mxu0 %v3312
    %4807 = vmatpush2.bf16.msra.mxu0 %v3311
    %4808 = vmatprep.subr.bf16.mxu0 %v3304
    %4809 = vmatpush2.bf16.msra.mxu0 %v3303
    %4810 = vmatprep.subr.bf16.mxu0 %v3296
    %4811 = vmatpush2.bf16.msra.mxu0 %v3295
    %4812 = vmatprep.subr.bf16.mxu0 %v3288
    %4813 = vmatpush2.bf16.msra.mxu0 %v3287
    %4814 = vmatprep.subr.bf16.mxu0 %v3280
    %4815 = vmatpush2.bf16.msra.mxu0 %v3279
    %4816 = vmatprep.subr.bf16.mxu0 %v3272
    %4817 = vmatpush2.bf16.msra.mxu0 %v3271
    %4818 = vmatprep.mubr.bf16.mxu0 %v946
    %4819 = vmatmul.mubr.bf16.gmra.mxu0 %v945
    %v4820 = vpop.f32.mrf.mxu0
    %v4821 = vadd.f32 %v4778, %v4820
    %v4822 = vpop.f32.mrf.mxu0
    %v4823 = vadd.f32 %v4780, %v4822
    %v4824 = vpop.f32.mrf.mxu0
    %v4825 = vadd.f32 %v4782, %v4824
    %v4826 = vpop.f32.mrf.mxu0
    %v4827 = vadd.f32 %v4784, %v4826
    %4828 = vdwg.mxu0
    %4829 = vmatprep.subr.bf16.mxu0 %v3392
    %4830 = vmatpush1.bf16.msra.mxu0 %v3391
    %4831 = vmatprep.subr.bf16.mxu0 %v3384
    %4832 = vmatpush1.bf16.msra.mxu0 %v3383
    %4833 = vmatprep.subr.bf16.mxu0 %v3376
    %4834 = vmatpush1.bf16.msra.mxu0 %v3375
    %4835 = vmatprep.subr.bf16.mxu0 %v3368
    %4836 = vmatpush1.bf16.msra.mxu0 %v3367
    %4837 = vmatprep.subr.bf16.mxu0 %v3360
    %4838 = vmatpush1.bf16.msra.mxu0 %v3359
    %4839 = vmatprep.subr.bf16.mxu0 %v3352
    %4840 = vmatpush1.bf16.msra.mxu0 %v3351
    %4841 = vmatprep.subr.bf16.mxu0 %v3344
    %4842 = vmatpush1.bf16.msra.mxu0 %v3343
    %4843 = vmatprep.subr.bf16.mxu0 %v3336
    %4844 = vmatpush1.bf16.msra.mxu0 %v3335
    %4845 = vmatprep.subr.bf16.mxu0 %v3456
    %4846 = vmatpush2.bf16.msra.mxu0 %v3455
    %4847 = vmatprep.subr.bf16.mxu0 %v3448
    %4848 = vmatpush2.bf16.msra.mxu0 %v3447
    %4849 = vmatprep.subr.bf16.mxu0 %v3440
    %4850 = vmatpush2.bf16.msra.mxu0 %v3439
    %4851 = vmatprep.subr.bf16.mxu0 %v3432
    %4852 = vmatpush2.bf16.msra.mxu0 %v3431
    %4853 = vmatprep.subr.bf16.mxu0 %v3424
    %4854 = vmatpush2.bf16.msra.mxu0 %v3423
    %4855 = vmatprep.subr.bf16.mxu0 %v3416
    %4856 = vmatpush2.bf16.msra.mxu0 %v3415
    %4857 = vmatprep.subr.bf16.mxu0 %v3408
    %4858 = vmatpush2.bf16.msra.mxu0 %v3407
    %4859 = vmatprep.subr.bf16.mxu0 %v3400
    %4860 = vmatpush2.bf16.msra.mxu0 %v3399
    %4861 = vmatprep.mubr.bf16.mxu0 %v948
    %4862 = vmatmul.mubr.bf16.gmra.mxu0 %v947
    %v4863 = vpop.f32.mrf.mxu0
    %v4864 = vadd.f32 %v4821, %v4863
    %v4865 = vpop.f32.mrf.mxu0
    %v4866 = vadd.f32 %v4823, %v4865
    %v4867 = vpop.f32.mrf.mxu0
    %v4868 = vadd.f32 %v4825, %v4867
    %v4869 = vpop.f32.mrf.mxu0
    %v4870 = vadd.f32 %v4827, %v4869
    %4871 = vdwg.mxu0
    %4872 = vmatprep.subr.bf16.mxu0 %v3520
    %4873 = vmatpush1.bf16.msra.mxu0 %v3519
    %4874 = vmatprep.subr.bf16.mxu0 %v3512
    %4875 = vmatpush1.bf16.msra.mxu0 %v3511
    %4876 = vmatprep.subr.bf16.mxu0 %v3504
    %4877 = vmatpush1.bf16.msra.mxu0 %v3503
    %4878 = vmatprep.subr.bf16.mxu0 %v3496
    %4879 = vmatpush1.bf16.msra.mxu0 %v3495
    %4880 = vmatprep.subr.bf16.mxu0 %v3488
    %4881 = vmatpush1.bf16.msra.mxu0 %v3487
    %4882 = vmatprep.subr.bf16.mxu0 %v3480
    %4883 = vmatpush1.bf16.msra.mxu0 %v3479
    %4884 = vmatprep.subr.bf16.mxu0 %v3472
    %4885 = vmatpush1.bf16.msra.mxu0 %v3471
    %4886 = vmatprep.subr.bf16.mxu0 %v3464
    %4887 = vmatpush1.bf16.msra.mxu0 %v3463
    %4888 = vmatprep.subr.bf16.mxu0 %v3584
    %4889 = vmatpush2.bf16.msra.mxu0 %v3583
    %4890 = vmatprep.subr.bf16.mxu0 %v3576
    %4891 = vmatpush2.bf16.msra.mxu0 %v3575
    %4892 = vmatprep.subr.bf16.mxu0 %v3568
    %4893 = vmatpush2.bf16.msra.mxu0 %v3567
    %4894 = vmatprep.subr.bf16.mxu0 %v3560
    %4895 = vmatpush2.bf16.msra.mxu0 %v3559
    %4896 = vmatprep.subr.bf16.mxu0 %v3552
    %4897 = vmatpush2.bf16.msra.mxu0 %v3551
    %4898 = vmatprep.subr.bf16.mxu0 %v3544
    %4899 = vmatpush2.bf16.msra.mxu0 %v3543
    %4900 = vmatprep.subr.bf16.mxu0 %v3536
    %4901 = vmatpush2.bf16.msra.mxu0 %v3535
    %4902 = vmatprep.subr.bf16.mxu0 %v3528
    %4903 = vmatpush2.bf16.msra.mxu0 %v3527
    %4904 = vmatprep.mubr.bf16.mxu0 %v950
    %4905 = vmatmul.mubr.bf16.gmra.mxu0 %v949
    %v4906 = vpop.f32.mrf.mxu0
    %v4907 = vadd.f32 %v4864, %v4906
    %v4908 = vpop.f32.mrf.mxu0
    %v4909 = vadd.f32 %v4866, %v4908
    %v4910 = vpop.f32.mrf.mxu0
    %v4911 = vadd.f32 %v4868, %v4910
    %v4912 = vpop.f32.mrf.mxu0
    %v4913 = vadd.f32 %v4870, %v4912
    %4914 = vdwg.mxu0
    %4915 = vmatprep.subr.bf16.mxu0 %v3648
    %4916 = vmatpush1.bf16.msra.mxu0 %v3647
    %4917 = vmatprep.subr.bf16.mxu0 %v3640
    %4918 = vmatpush1.bf16.msra.mxu0 %v3639
    %4919 = vmatprep.subr.bf16.mxu0 %v3632
    %4920 = vmatpush1.bf16.msra.mxu0 %v3631
    %4921 = vmatprep.subr.bf16.mxu0 %v3624
    %4922 = vmatpush1.bf16.msra.mxu0 %v3623
    %4923 = vmatprep.subr.bf16.mxu0 %v3616
    %4924 = vmatpush1.bf16.msra.mxu0 %v3615
    %4925 = vmatprep.subr.bf16.mxu0 %v3608
    %4926 = vmatpush1.bf16.msra.mxu0 %v3607
    %4927 = vmatprep.subr.bf16.mxu0 %v3600
    %4928 = vmatpush1.bf16.msra.mxu0 %v3599
    %4929 = vmatprep.subr.bf16.mxu0 %v3592
    %4930 = vmatpush1.bf16.msra.mxu0 %v3591
    %4931 = vmatprep.subr.bf16.mxu0 %v3712
    %4932 = vmatpush2.bf16.msra.mxu0 %v3711
    %4933 = vmatprep.subr.bf16.mxu0 %v3704
    %4934 = vmatpush2.bf16.msra.mxu0 %v3703
    %4935 = vmatprep.subr.bf16.mxu0 %v3696
    %4936 = vmatpush2.bf16.msra.mxu0 %v3695
    %4937 = vmatprep.subr.bf16.mxu0 %v3688
    %4938 = vmatpush2.bf16.msra.mxu0 %v3687
    %4939 = vmatprep.subr.bf16.mxu0 %v3680
    %4940 = vmatpush2.bf16.msra.mxu0 %v3679
    %4941 = vmatprep.subr.bf16.mxu0 %v3672
    %4942 = vmatpush2.bf16.msra.mxu0 %v3671
    %4943 = vmatprep.subr.bf16.mxu0 %v3664
    %4944 = vmatpush2.bf16.msra.mxu0 %v3663
    %4945 = vmatprep.subr.bf16.mxu0 %v3656
    %4946 = vmatpush2.bf16.msra.mxu0 %v3655
    %4947 = vmatprep.mubr.bf16.mxu0 %v952
    %4948 = vmatmul.mubr.bf16.gmra.mxu0 %v951
    %v4949 = vpop.f32.mrf.mxu0
    %v4950 = vadd.f32 %v4907, %v4949
    %v4951 = vpop.f32.mrf.mxu0
    %v4952 = vadd.f32 %v4909, %v4951
    %v4953 = vpop.f32.mrf.mxu0
    %v4954 = vadd.f32 %v4911, %v4953
    %v4955 = vpop.f32.mrf.mxu0
    %v4956 = vadd.f32 %v4913, %v4955
    %4957 = vdwg.mxu0
    %4958 = vmatprep.subr.bf16.mxu0 %v3776
    %4959 = vmatpush1.bf16.msra.mxu0 %v3775
    %4960 = vmatprep.subr.bf16.mxu0 %v3768
    %4961 = vmatpush1.bf16.msra.mxu0 %v3767
    %4962 = vmatprep.subr.bf16.mxu0 %v3760
    %4963 = vmatpush1.bf16.msra.mxu0 %v3759
    %4964 = vmatprep.subr.bf16.mxu0 %v3752
    %4965 = vmatpush1.bf16.msra.mxu0 %v3751
    %4966 = vmatprep.subr.bf16.mxu0 %v3744
    %4967 = vmatpush1.bf16.msra.mxu0 %v3743
    %4968 = vmatprep.subr.bf16.mxu0 %v3736
    %4969 = vmatpush1.bf16.msra.mxu0 %v3735
    %4970 = vmatprep.subr.bf16.mxu0 %v3728
    %4971 = vmatpush1.bf16.msra.mxu0 %v3727
    %4972 = vmatprep.subr.bf16.mxu0 %v3720
    %4973 = vmatpush1.bf16.msra.mxu0 %v3719
    %4974 = vmatprep.subr.bf16.mxu0 0
    %4975 = vmatpush2.bf16.msra.mxu0 0
    %4976 = vmatprep.subr.bf16.mxu0 0
    %4977 = vmatpush2.bf16.msra.mxu0 0
    %4978 = vmatprep.subr.bf16.mxu0 0
    %4979 = vmatpush2.bf16.msra.mxu0 0
    %4980 = vmatprep.subr.bf16.mxu0 0
    %4981 = vmatpush2.bf16.msra.mxu0 0
    %4982 = vmatprep.subr.bf16.mxu0 0
    %4983 = vmatpush2.bf16.msra.mxu0 0
    %4984 = vmatprep.subr.bf16.mxu0 0
    %4985 = vmatpush2.bf16.msra.mxu0 0
    %4986 = vmatprep.subr.bf16.mxu0 0
    %4987 = vmatpush2.bf16.msra.mxu0 0
    %4988 = vmatprep.subr.bf16.mxu0 0
    %4989 = vmatpush2.bf16.msra.mxu0 0
    %4990 = vmatprep.mubr.bf16.mxu0 0
    %4991 = vmatmul.mubr.bf16.gmra.mxu0 %v953
    %v4992 = vpop.f32.mrf.mxu0
    %v4993 = vadd.f32 %v4950, %v4992
    %v4994 = vpop.f32.mrf.mxu0
    %v4995 = vadd.f32 %v4952, %v4994
    %v4996 = vpop.f32.mrf.mxu0
    %v4997 = vadd.f32 %v4954, %v4996
    %v4998 = vpop.f32.mrf.mxu0
    %v4999 = vadd.f32 %v4956, %v4998
    %5000 = vdwg.mxu0
    %5001 = vmatprep.subr.bf16.mxu0 %v3138
    %5002 = vmatpush1.bf16.msra.mxu0 %v3137
    %5003 = vmatprep.subr.bf16.mxu0 %v3130
    %5004 = vmatpush1.bf16.msra.mxu0 %v3129
    %5005 = vmatprep.subr.bf16.mxu0 %v3122
    %5006 = vmatpush1.bf16.msra.mxu0 %v3121
    %5007 = vmatprep.subr.bf16.mxu0 %v3114
    %5008 = vmatpush1.bf16.msra.mxu0 %v3113
    %5009 = vmatprep.subr.bf16.mxu0 %v3106
    %5010 = vmatpush1.bf16.msra.mxu0 %v3105
    %5011 = vmatprep.subr.bf16.mxu0 %v3098
    %5012 = vmatpush1.bf16.msra.mxu0 %v3097
    %5013 = vmatprep.subr.bf16.mxu0 %v3090
    %5014 = vmatpush1.bf16.msra.mxu0 %v3089
    %5015 = vmatprep.subr.bf16.mxu0 %v3082
    %5016 = vmatpush1.bf16.msra.mxu0 %v3081
    %5017 = vmatprep.subr.bf16.mxu0 %v3202
    %5018 = vmatpush2.bf16.msra.mxu0 %v3201
    %5019 = vmatprep.subr.bf16.mxu0 %v3194
    %5020 = vmatpush2.bf16.msra.mxu0 %v3193
    %5021 = vmatprep.subr.bf16.mxu0 %v3186
    %5022 = vmatpush2.bf16.msra.mxu0 %v3185
    %5023 = vmatprep.subr.bf16.mxu0 %v3178
    %5024 = vmatpush2.bf16.msra.mxu0 %v3177
    %5025 = vmatprep.subr.bf16.mxu0 %v3170
    %5026 = vmatpush2.bf16.msra.mxu0 %v3169
    %5027 = vmatprep.subr.bf16.mxu0 %v3162
    %5028 = vmatpush2.bf16.msra.mxu0 %v3161
    %5029 = vmatprep.subr.bf16.mxu0 %v3154
    %5030 = vmatpush2.bf16.msra.mxu0 %v3153
    %5031 = vmatprep.subr.bf16.mxu0 %v3146
    %5032 = vmatpush2.bf16.msra.mxu0 %v3145
    %5033 = vmatprep.mubr.bf16.mxu0 %v944
    %5034 = vmatmul.mubr.bf16.gmra.mxu0 %v943
    %v5035 = vpop.f32.mrf.mxu0
    %v5036 = vadd.f32 %v888, %v5035
    %v5037 = vpop.f32.mrf.mxu0
    %v5038 = vadd.f32 %v892, %v5037
    %v5039 = vpop.f32.mrf.mxu0
    %v5040 = vadd.f32 %v888, %v5039
    %v5041 = vpop.f32.mrf.mxu0
    %v5042 = vadd.f32 %v892, %v5041
    %5043 = vdwg.mxu0
    %5044 = vmatprep.subr.bf16.mxu0 %v3266
    %5045 = vmatpush1.bf16.msra.mxu0 %v3265
    %5046 = vmatprep.subr.bf16.mxu0 %v3258
    %5047 = vmatpush1.bf16.msra.mxu0 %v3257
    %5048 = vmatprep.subr.bf16.mxu0 %v3250
    %5049 = vmatpush1.bf16.msra.mxu0 %v3249
    %5050 = vmatprep.subr.bf16.mxu0 %v3242
    %5051 = vmatpush1.bf16.msra.mxu0 %v3241
    %5052 = vmatprep.subr.bf16.mxu0 %v3234
    %5053 = vmatpush1.bf16.msra.mxu0 %v3233
    %5054 = vmatprep.subr.bf16.mxu0 %v3226
    %5055 = vmatpush1.bf16.msra.mxu0 %v3225
    %5056 = vmatprep.subr.bf16.mxu0 %v3218
    %5057 = vmatpush1.bf16.msra.mxu0 %v3217
    %5058 = vmatprep.subr.bf16.mxu0 %v3210
    %5059 = vmatpush1.bf16.msra.mxu0 %v3209
    %5060 = vmatprep.subr.bf16.mxu0 %v3330
    %5061 = vmatpush2.bf16.msra.mxu0 %v3329
    %5062 = vmatprep.subr.bf16.mxu0 %v3322
    %5063 = vmatpush2.bf16.msra.mxu0 %v3321
    %5064 = vmatprep.subr.bf16.mxu0 %v3314
    %5065 = vmatpush2.bf16.msra.mxu0 %v3313
    %5066 = vmatprep.subr.bf16.mxu0 %v3306
    %5067 = vmatpush2.bf16.msra.mxu0 %v3305
    %5068 = vmatprep.subr.bf16.mxu0 %v3298
    %5069 = vmatpush2.bf16.msra.mxu0 %v3297
    %5070 = vmatprep.subr.bf16.mxu0 %v3290
    %5071 = vmatpush2.bf16.msra.mxu0 %v3289
    %5072 = vmatprep.subr.bf16.mxu0 %v3282
    %5073 = vmatpush2.bf16.msra.mxu0 %v3281
    %5074 = vmatprep.subr.bf16.mxu0 %v3274
    %5075 = vmatpush2.bf16.msra.mxu0 %v3273
    %5076 = vmatprep.mubr.bf16.mxu0 %v946
    %5077 = vmatmul.mubr.bf16.gmra.mxu0 %v945
    %v5078 = vpop.f32.mrf.mxu0
    %v5079 = vadd.f32 %v5036, %v5078
    %v5080 = vpop.f32.mrf.mxu0
    %v5081 = vadd.f32 %v5038, %v5080
    %v5082 = vpop.f32.mrf.mxu0
    %v5083 = vadd.f32 %v5040, %v5082
    %v5084 = vpop.f32.mrf.mxu0
    %v5085 = vadd.f32 %v5042, %v5084
    %5086 = vdwg.mxu0
    %5087 = vmatprep.subr.bf16.mxu0 %v3394
    %5088 = vmatpush1.bf16.msra.mxu0 %v3393
    %5089 = vmatprep.subr.bf16.mxu0 %v3386
    %5090 = vmatpush1.bf16.msra.mxu0 %v3385
    %5091 = vmatprep.subr.bf16.mxu0 %v3378
    %5092 = vmatpush1.bf16.msra.mxu0 %v3377
    %5093 = vmatprep.subr.bf16.mxu0 %v3370
    %5094 = vmatpush1.bf16.msra.mxu0 %v3369
    %5095 = vmatprep.subr.bf16.mxu0 %v3362
    %5096 = vmatpush1.bf16.msra.mxu0 %v3361
    %5097 = vmatprep.subr.bf16.mxu0 %v3354
    %5098 = vmatpush1.bf16.msra.mxu0 %v3353
    %5099 = vmatprep.subr.bf16.mxu0 %v3346
    %5100 = vmatpush1.bf16.msra.mxu0 %v3345
    %5101 = vmatprep.subr.bf16.mxu0 %v3338
    %5102 = vmatpush1.bf16.msra.mxu0 %v3337
    %5103 = vmatprep.subr.bf16.mxu0 %v3458
    %5104 = vmatpush2.bf16.msra.mxu0 %v3457
    %5105 = vmatprep.subr.bf16.mxu0 %v3450
    %5106 = vmatpush2.bf16.msra.mxu0 %v3449
    %5107 = vmatprep.subr.bf16.mxu0 %v3442
    %5108 = vmatpush2.bf16.msra.mxu0 %v3441
    %5109 = vmatprep.subr.bf16.mxu0 %v3434
    %5110 = vmatpush2.bf16.msra.mxu0 %v3433
    %5111 = vmatprep.subr.bf16.mxu0 %v3426
    %5112 = vmatpush2.bf16.msra.mxu0 %v3425
    %5113 = vmatprep.subr.bf16.mxu0 %v3418
    %5114 = vmatpush2.bf16.msra.mxu0 %v3417
    %5115 = vmatprep.subr.bf16.mxu0 %v3410
    %5116 = vmatpush2.bf16.msra.mxu0 %v3409
    %5117 = vmatprep.subr.bf16.mxu0 %v3402
    %5118 = vmatpush2.bf16.msra.mxu0 %v3401
    %5119 = vmatprep.mubr.bf16.mxu0 %v948
    %5120 = vmatmul.mubr.bf16.gmra.mxu0 %v947
    %v5121 = vpop.f32.mrf.mxu0
    %v5122 = vadd.f32 %v5079, %v5121
    %v5123 = vpop.f32.mrf.mxu0
    %v5124 = vadd.f32 %v5081, %v5123
    %v5125 = vpop.f32.mrf.mxu0
    %v5126 = vadd.f32 %v5083, %v5125
    %v5127 = vpop.f32.mrf.mxu0
    %v5128 = vadd.f32 %v5085, %v5127
    %5129 = vdwg.mxu0
    %5130 = vmatprep.subr.bf16.mxu0 %v3522
    %5131 = vmatpush1.bf16.msra.mxu0 %v3521
    %5132 = vmatprep.subr.bf16.mxu0 %v3514
    %5133 = vmatpush1.bf16.msra.mxu0 %v3513
    %5134 = vmatprep.subr.bf16.mxu0 %v3506
    %5135 = vmatpush1.bf16.msra.mxu0 %v3505
    %5136 = vmatprep.subr.bf16.mxu0 %v3498
    %5137 = vmatpush1.bf16.msra.mxu0 %v3497
    %5138 = vmatprep.subr.bf16.mxu0 %v3490
    %5139 = vmatpush1.bf16.msra.mxu0 %v3489
    %5140 = vmatprep.subr.bf16.mxu0 %v3482
    %5141 = vmatpush1.bf16.msra.mxu0 %v3481
    %5142 = vmatprep.subr.bf16.mxu0 %v3474
    %5143 = vmatpush1.bf16.msra.mxu0 %v3473
    %5144 = vmatprep.subr.bf16.mxu0 %v3466
    %5145 = vmatpush1.bf16.msra.mxu0 %v3465
    %5146 = vmatprep.subr.bf16.mxu0 %v3586
    %5147 = vmatpush2.bf16.msra.mxu0 %v3585
    %5148 = vmatprep.subr.bf16.mxu0 %v3578
    %5149 = vmatpush2.bf16.msra.mxu0 %v3577
    %5150 = vmatprep.subr.bf16.mxu0 %v3570
    %5151 = vmatpush2.bf16.msra.mxu0 %v3569
    %5152 = vmatprep.subr.bf16.mxu0 %v3562
    %5153 = vmatpush2.bf16.msra.mxu0 %v3561
    %5154 = vmatprep.subr.bf16.mxu0 %v3554
    %5155 = vmatpush2.bf16.msra.mxu0 %v3553
    %5156 = vmatprep.subr.bf16.mxu0 %v3546
    %5157 = vmatpush2.bf16.msra.mxu0 %v3545
    %5158 = vmatprep.subr.bf16.mxu0 %v3538
    %5159 = vmatpush2.bf16.msra.mxu0 %v3537
    %5160 = vmatprep.subr.bf16.mxu0 %v3530
    %5161 = vmatpush2.bf16.msra.mxu0 %v3529
    %5162 = vmatprep.mubr.bf16.mxu0 %v950
    %5163 = vmatmul.mubr.bf16.gmra.mxu0 %v949
    %v5164 = vpop.f32.mrf.mxu0
    %v5165 = vadd.f32 %v5122, %v5164
    %v5166 = vpop.f32.mrf.mxu0
    %v5167 = vadd.f32 %v5124, %v5166
    %v5168 = vpop.f32.mrf.mxu0
    %v5169 = vadd.f32 %v5126, %v5168
    %v5170 = vpop.f32.mrf.mxu0
    %v5171 = vadd.f32 %v5128, %v5170
    %5172 = vdwg.mxu0
    %5173 = vmatprep.subr.bf16.mxu0 %v3650
    %5174 = vmatpush1.bf16.msra.mxu0 %v3649
    %5175 = vmatprep.subr.bf16.mxu0 %v3642
    %5176 = vmatpush1.bf16.msra.mxu0 %v3641
    %5177 = vmatprep.subr.bf16.mxu0 %v3634
    %5178 = vmatpush1.bf16.msra.mxu0 %v3633
    %5179 = vmatprep.subr.bf16.mxu0 %v3626
    %5180 = vmatpush1.bf16.msra.mxu0 %v3625
    %5181 = vmatprep.subr.bf16.mxu0 %v3618
    %5182 = vmatpush1.bf16.msra.mxu0 %v3617
    %5183 = vmatprep.subr.bf16.mxu0 %v3610
    %5184 = vmatpush1.bf16.msra.mxu0 %v3609
    %5185 = vmatprep.subr.bf16.mxu0 %v3602
    %5186 = vmatpush1.bf16.msra.mxu0 %v3601
    %5187 = vmatprep.subr.bf16.mxu0 %v3594
    %5188 = vmatpush1.bf16.msra.mxu0 %v3593
    %5189 = vmatprep.subr.bf16.mxu0 %v3714
    %5190 = vmatpush2.bf16.msra.mxu0 %v3713
    %5191 = vmatprep.subr.bf16.mxu0 %v3706
    %5192 = vmatpush2.bf16.msra.mxu0 %v3705
    %5193 = vmatprep.subr.bf16.mxu0 %v3698
    %5194 = vmatpush2.bf16.msra.mxu0 %v3697
    %5195 = vmatprep.subr.bf16.mxu0 %v3690
    %5196 = vmatpush2.bf16.msra.mxu0 %v3689
    %5197 = vmatprep.subr.bf16.mxu0 %v3682
    %5198 = vmatpush2.bf16.msra.mxu0 %v3681
    %5199 = vmatprep.subr.bf16.mxu0 %v3674
    %5200 = vmatpush2.bf16.msra.mxu0 %v3673
    %5201 = vmatprep.subr.bf16.mxu0 %v3666
    %5202 = vmatpush2.bf16.msra.mxu0 %v3665
    %5203 = vmatprep.subr.bf16.mxu0 %v3658
    %5204 = vmatpush2.bf16.msra.mxu0 %v3657
    %5205 = vmatprep.mubr.bf16.mxu0 %v952
    %5206 = vmatmul.mubr.bf16.gmra.mxu0 %v951
    %v5207 = vpop.f32.mrf.mxu0
    %v5208 = vadd.f32 %v5165, %v5207
    %v5209 = vpop.f32.mrf.mxu0
    %v5210 = vadd.f32 %v5167, %v5209
    %v5211 = vpop.f32.mrf.mxu0
    %v5212 = vadd.f32 %v5169, %v5211
    %v5213 = vpop.f32.mrf.mxu0
    %v5214 = vadd.f32 %v5171, %v5213
    %5215 = vdwg.mxu0
    %5216 = vmatprep.subr.bf16.mxu0 %v3778
    %5217 = vmatpush1.bf16.msra.mxu0 %v3777
    %5218 = vmatprep.subr.bf16.mxu0 %v3770
    %5219 = vmatpush1.bf16.msra.mxu0 %v3769
    %5220 = vmatprep.subr.bf16.mxu0 %v3762
    %5221 = vmatpush1.bf16.msra.mxu0 %v3761
    %5222 = vmatprep.subr.bf16.mxu0 %v3754
    %5223 = vmatpush1.bf16.msra.mxu0 %v3753
    %5224 = vmatprep.subr.bf16.mxu0 %v3746
    %5225 = vmatpush1.bf16.msra.mxu0 %v3745
    %5226 = vmatprep.subr.bf16.mxu0 %v3738
    %5227 = vmatpush1.bf16.msra.mxu0 %v3737
    %5228 = vmatprep.subr.bf16.mxu0 %v3730
    %5229 = vmatpush1.bf16.msra.mxu0 %v3729
    %5230 = vmatprep.subr.bf16.mxu0 %v3722
    %5231 = vmatpush1.bf16.msra.mxu0 %v3721
    %5232 = vmatprep.subr.bf16.mxu0 0
    %5233 = vmatpush2.bf16.msra.mxu0 0
    %5234 = vmatprep.subr.bf16.mxu0 0
    %5235 = vmatpush2.bf16.msra.mxu0 0
    %5236 = vmatprep.subr.bf16.mxu0 0
    %5237 = vmatpush2.bf16.msra.mxu0 0
    %5238 = vmatprep.subr.bf16.mxu0 0
    %5239 = vmatpush2.bf16.msra.mxu0 0
    %5240 = vmatprep.subr.bf16.mxu0 0
    %5241 = vmatpush2.bf16.msra.mxu0 0
    %5242 = vmatprep.subr.bf16.mxu0 0
    %5243 = vmatpush2.bf16.msra.mxu0 0
    %5244 = vmatprep.subr.bf16.mxu0 0
    %5245 = vmatpush2.bf16.msra.mxu0 0
    %5246 = vmatprep.subr.bf16.mxu0 0
    %5247 = vmatpush2.bf16.msra.mxu0 0
    %5248 = vmatprep.mubr.bf16.mxu0 0
    %5249 = vmatmul.mubr.bf16.gmra.mxu0 %v953
    %v5250 = vpop.f32.mrf.mxu0
    %v5251 = vadd.f32 %v5208, %v5250
    %v5252 = vpop.f32.mrf.mxu0
    %v5253 = vadd.f32 %v5210, %v5252
    %v5254 = vpop.f32.mrf.mxu0
    %v5255 = vadd.f32 %v5212, %v5254
    %v5256 = vpop.f32.mrf.mxu0
    %v5257 = vadd.f32 %v5214, %v5256
    %5258 = vdwg.mxu0
    %5259 = vmatprep.subr.bf16.mxu0 %v3140
    %5260 = vmatpush1.bf16.msra.mxu0 %v3139
    %5261 = vmatprep.subr.bf16.mxu0 %v3132
    %5262 = vmatpush1.bf16.msra.mxu0 %v3131
    %5263 = vmatprep.subr.bf16.mxu0 %v3124
    %5264 = vmatpush1.bf16.msra.mxu0 %v3123
    %5265 = vmatprep.subr.bf16.mxu0 %v3116
    %5266 = vmatpush1.bf16.msra.mxu0 %v3115
    %5267 = vmatprep.subr.bf16.mxu0 %v3108
    %5268 = vmatpush1.bf16.msra.mxu0 %v3107
    %5269 = vmatprep.subr.bf16.mxu0 %v3100
    %5270 = vmatpush1.bf16.msra.mxu0 %v3099
    %5271 = vmatprep.subr.bf16.mxu0 %v3092
    %5272 = vmatpush1.bf16.msra.mxu0 %v3091
    %5273 = vmatprep.subr.bf16.mxu0 %v3084
    %5274 = vmatpush1.bf16.msra.mxu0 %v3083
    %5275 = vmatprep.subr.bf16.mxu0 %v3204
    %5276 = vmatpush2.bf16.msra.mxu0 %v3203
    %5277 = vmatprep.subr.bf16.mxu0 %v3196
    %5278 = vmatpush2.bf16.msra.mxu0 %v3195
    %5279 = vmatprep.subr.bf16.mxu0 %v3188
    %5280 = vmatpush2.bf16.msra.mxu0 %v3187
    %5281 = vmatprep.subr.bf16.mxu0 %v3180
    %5282 = vmatpush2.bf16.msra.mxu0 %v3179
    %5283 = vmatprep.subr.bf16.mxu0 %v3172
    %5284 = vmatpush2.bf16.msra.mxu0 %v3171
    %5285 = vmatprep.subr.bf16.mxu0 %v3164
    %5286 = vmatpush2.bf16.msra.mxu0 %v3163
    %5287 = vmatprep.subr.bf16.mxu0 %v3156
    %5288 = vmatpush2.bf16.msra.mxu0 %v3155
    %5289 = vmatprep.subr.bf16.mxu0 %v3148
    %5290 = vmatpush2.bf16.msra.mxu0 %v3147
    %5291 = vmatprep.mubr.bf16.mxu0 %v944
    %5292 = vmatmul.mubr.bf16.gmra.mxu0 %v943
    %v5293 = vpop.f32.mrf.mxu0
    %v5294 = vadd.f32 %v896, %v5293
    %v5295 = vpop.f32.mrf.mxu0
    %v5296 = vadd.f32 %v900, %v5295
    %v5297 = vpop.f32.mrf.mxu0
    %v5298 = vadd.f32 %v896, %v5297
    %v5299 = vpop.f32.mrf.mxu0
    %v5300 = vadd.f32 %v900, %v5299
    %5301 = vdwg.mxu0
    %5302 = vmatprep.subr.bf16.mxu0 %v3268
    %5303 = vmatpush1.bf16.msra.mxu0 %v3267
    %5304 = vmatprep.subr.bf16.mxu0 %v3260
    %5305 = vmatpush1.bf16.msra.mxu0 %v3259
    %5306 = vmatprep.subr.bf16.mxu0 %v3252
    %5307 = vmatpush1.bf16.msra.mxu0 %v3251
    %5308 = vmatprep.subr.bf16.mxu0 %v3244
    %5309 = vmatpush1.bf16.msra.mxu0 %v3243
    %5310 = vmatprep.subr.bf16.mxu0 %v3236
    %5311 = vmatpush1.bf16.msra.mxu0 %v3235
    %5312 = vmatprep.subr.bf16.mxu0 %v3228
    %5313 = vmatpush1.bf16.msra.mxu0 %v3227
    %5314 = vmatprep.subr.bf16.mxu0 %v3220
    %5315 = vmatpush1.bf16.msra.mxu0 %v3219
    %5316 = vmatprep.subr.bf16.mxu0 %v3212
    %5317 = vmatpush1.bf16.msra.mxu0 %v3211
    %5318 = vmatprep.subr.bf16.mxu0 %v3332
    %5319 = vmatpush2.bf16.msra.mxu0 %v3331
    %5320 = vmatprep.subr.bf16.mxu0 %v3324
    %5321 = vmatpush2.bf16.msra.mxu0 %v3323
    %5322 = vmatprep.subr.bf16.mxu0 %v3316
    %5323 = vmatpush2.bf16.msra.mxu0 %v3315
    %5324 = vmatprep.subr.bf16.mxu0 %v3308
    %5325 = vmatpush2.bf16.msra.mxu0 %v3307
    %5326 = vmatprep.subr.bf16.mxu0 %v3300
    %5327 = vmatpush2.bf16.msra.mxu0 %v3299
    %5328 = vmatprep.subr.bf16.mxu0 %v3292
    %5329 = vmatpush2.bf16.msra.mxu0 %v3291
    %5330 = vmatprep.subr.bf16.mxu0 %v3284
    %5331 = vmatpush2.bf16.msra.mxu0 %v3283
    %5332 = vmatprep.subr.bf16.mxu0 %v3276
    %5333 = vmatpush2.bf16.msra.mxu0 %v3275
    %5334 = vmatprep.mubr.bf16.mxu0 %v946
    %5335 = vmatmul.mubr.bf16.gmra.mxu0 %v945
    %v5336 = vpop.f32.mrf.mxu0
    %v5337 = vadd.f32 %v5294, %v5336
    %v5338 = vpop.f32.mrf.mxu0
    %v5339 = vadd.f32 %v5296, %v5338
    %v5340 = vpop.f32.mrf.mxu0
    %v5341 = vadd.f32 %v5298, %v5340
    %v5342 = vpop.f32.mrf.mxu0
    %v5343 = vadd.f32 %v5300, %v5342
    %5344 = vdwg.mxu0
    %5345 = vmatprep.subr.bf16.mxu0 %v3396
    %5346 = vmatpush1.bf16.msra.mxu0 %v3395
    %5347 = vmatprep.subr.bf16.mxu0 %v3388
    %5348 = vmatpush1.bf16.msra.mxu0 %v3387
    %5349 = vmatprep.subr.bf16.mxu0 %v3380
    %5350 = vmatpush1.bf16.msra.mxu0 %v3379
    %5351 = vmatprep.subr.bf16.mxu0 %v3372
    %5352 = vmatpush1.bf16.msra.mxu0 %v3371
    %5353 = vmatprep.subr.bf16.mxu0 %v3364
    %5354 = vmatpush1.bf16.msra.mxu0 %v3363
    %5355 = vmatprep.subr.bf16.mxu0 %v3356
    %5356 = vmatpush1.bf16.msra.mxu0 %v3355
    %5357 = vmatprep.subr.bf16.mxu0 %v3348
    %5358 = vmatpush1.bf16.msra.mxu0 %v3347
    %5359 = vmatprep.subr.bf16.mxu0 %v3340
    %5360 = vmatpush1.bf16.msra.mxu0 %v3339
    %5361 = vmatprep.subr.bf16.mxu0 %v3460
    %5362 = vmatpush2.bf16.msra.mxu0 %v3459
    %5363 = vmatprep.subr.bf16.mxu0 %v3452
    %5364 = vmatpush2.bf16.msra.mxu0 %v3451
    %5365 = vmatprep.subr.bf16.mxu0 %v3444
    %5366 = vmatpush2.bf16.msra.mxu0 %v3443
    %5367 = vmatprep.subr.bf16.mxu0 %v3436
    %5368 = vmatpush2.bf16.msra.mxu0 %v3435
    %5369 = vmatprep.subr.bf16.mxu0 %v3428
    %5370 = vmatpush2.bf16.msra.mxu0 %v3427
    %5371 = vmatprep.subr.bf16.mxu0 %v3420
    %5372 = vmatpush2.bf16.msra.mxu0 %v3419
    %5373 = vmatprep.subr.bf16.mxu0 %v3412
    %5374 = vmatpush2.bf16.msra.mxu0 %v3411
    %5375 = vmatprep.subr.bf16.mxu0 %v3404
    %5376 = vmatpush2.bf16.msra.mxu0 %v3403
    %5377 = vmatprep.mubr.bf16.mxu0 %v948
    %5378 = vmatmul.mubr.bf16.gmra.mxu0 %v947
    %v5379 = vpop.f32.mrf.mxu0
    %v5380 = vadd.f32 %v5337, %v5379
    %v5381 = vpop.f32.mrf.mxu0
    %v5382 = vadd.f32 %v5339, %v5381
    %v5383 = vpop.f32.mrf.mxu0
    %v5384 = vadd.f32 %v5341, %v5383
    %v5385 = vpop.f32.mrf.mxu0
    %v5386 = vadd.f32 %v5343, %v5385
    %5387 = vdwg.mxu0
    %5388 = vmatprep.subr.bf16.mxu0 %v3524
    %5389 = vmatpush1.bf16.msra.mxu0 %v3523
    %5390 = vmatprep.subr.bf16.mxu0 %v3516
    %5391 = vmatpush1.bf16.msra.mxu0 %v3515
    %5392 = vmatprep.subr.bf16.mxu0 %v3508
    %5393 = vmatpush1.bf16.msra.mxu0 %v3507
    %5394 = vmatprep.subr.bf16.mxu0 %v3500
    %5395 = vmatpush1.bf16.msra.mxu0 %v3499
    %5396 = vmatprep.subr.bf16.mxu0 %v3492
    %5397 = vmatpush1.bf16.msra.mxu0 %v3491
    %5398 = vmatprep.subr.bf16.mxu0 %v3484
    %5399 = vmatpush1.bf16.msra.mxu0 %v3483
    %5400 = vmatprep.subr.bf16.mxu0 %v3476
    %5401 = vmatpush1.bf16.msra.mxu0 %v3475
    %5402 = vmatprep.subr.bf16.mxu0 %v3468
    %5403 = vmatpush1.bf16.msra.mxu0 %v3467
    %5404 = vmatprep.subr.bf16.mxu0 %v3588
    %5405 = vmatpush2.bf16.msra.mxu0 %v3587
    %5406 = vmatprep.subr.bf16.mxu0 %v3580
    %5407 = vmatpush2.bf16.msra.mxu0 %v3579
    %5408 = vmatprep.subr.bf16.mxu0 %v3572
    %5409 = vmatpush2.bf16.msra.mxu0 %v3571
    %5410 = vmatprep.subr.bf16.mxu0 %v3564
    %5411 = vmatpush2.bf16.msra.mxu0 %v3563
    %5412 = vmatprep.subr.bf16.mxu0 %v3556
    %5413 = vmatpush2.bf16.msra.mxu0 %v3555
    %5414 = vmatprep.subr.bf16.mxu0 %v3548
    %5415 = vmatpush2.bf16.msra.mxu0 %v3547
    %5416 = vmatprep.subr.bf16.mxu0 %v3540
    %5417 = vmatpush2.bf16.msra.mxu0 %v3539
    %5418 = vmatprep.subr.bf16.mxu0 %v3532
    %5419 = vmatpush2.bf16.msra.mxu0 %v3531
    %5420 = vmatprep.mubr.bf16.mxu0 %v950
    %5421 = vmatmul.mubr.bf16.gmra.mxu0 %v949
    %v5422 = vpop.f32.mrf.mxu0
    %v5423 = vadd.f32 %v5380, %v5422
    %v5424 = vpop.f32.mrf.mxu0
    %v5425 = vadd.f32 %v5382, %v5424
    %v5426 = vpop.f32.mrf.mxu0
    %v5427 = vadd.f32 %v5384, %v5426
    %v5428 = vpop.f32.mrf.mxu0
    %v5429 = vadd.f32 %v5386, %v5428
    %5430 = vdwg.mxu0
    %5431 = vmatprep.subr.bf16.mxu0 %v3652
    %5432 = vmatpush1.bf16.msra.mxu0 %v3651
    %5433 = vmatprep.subr.bf16.mxu0 %v3644
    %5434 = vmatpush1.bf16.msra.mxu0 %v3643
    %5435 = vmatprep.subr.bf16.mxu0 %v3636
    %5436 = vmatpush1.bf16.msra.mxu0 %v3635
    %5437 = vmatprep.subr.bf16.mxu0 %v3628
    %5438 = vmatpush1.bf16.msra.mxu0 %v3627
    %5439 = vmatprep.subr.bf16.mxu0 %v3620
    %5440 = vmatpush1.bf16.msra.mxu0 %v3619
    %5441 = vmatprep.subr.bf16.mxu0 %v3612
    %5442 = vmatpush1.bf16.msra.mxu0 %v3611
    %5443 = vmatprep.subr.bf16.mxu0 %v3604
    %5444 = vmatpush1.bf16.msra.mxu0 %v3603
    %5445 = vmatprep.subr.bf16.mxu0 %v3596
    %5446 = vmatpush1.bf16.msra.mxu0 %v3595
    %5447 = vmatprep.subr.bf16.mxu0 %v3716
    %5448 = vmatpush2.bf16.msra.mxu0 %v3715
    %5449 = vmatprep.subr.bf16.mxu0 %v3708
    %5450 = vmatpush2.bf16.msra.mxu0 %v3707
    %5451 = vmatprep.subr.bf16.mxu0 %v3700
    %5452 = vmatpush2.bf16.msra.mxu0 %v3699
    %5453 = vmatprep.subr.bf16.mxu0 %v3692
    %5454 = vmatpush2.bf16.msra.mxu0 %v3691
    %5455 = vmatprep.subr.bf16.mxu0 %v3684
    %5456 = vmatpush2.bf16.msra.mxu0 %v3683
    %5457 = vmatprep.subr.bf16.mxu0 %v3676
    %5458 = vmatpush2.bf16.msra.mxu0 %v3675
    %5459 = vmatprep.subr.bf16.mxu0 %v3668
    %5460 = vmatpush2.bf16.msra.mxu0 %v3667
    %5461 = vmatprep.subr.bf16.mxu0 %v3660
    %5462 = vmatpush2.bf16.msra.mxu0 %v3659
    %5463 = vmatprep.mubr.bf16.mxu0 %v952
    %5464 = vmatmul.mubr.bf16.gmra.mxu0 %v951
    %v5465 = vpop.f32.mrf.mxu0
    %v5466 = vadd.f32 %v5423, %v5465
    %v5467 = vpop.f32.mrf.mxu0
    %v5468 = vadd.f32 %v5425, %v5467
    %v5469 = vpop.f32.mrf.mxu0
    %v5470 = vadd.f32 %v5427, %v5469
    %v5471 = vpop.f32.mrf.mxu0
    %v5472 = vadd.f32 %v5429, %v5471
    %5473 = vdwg.mxu0
    %5474 = vmatprep.subr.bf16.mxu0 %v3780
    %5475 = vmatpush1.bf16.msra.mxu0 %v3779
    %5476 = vmatprep.subr.bf16.mxu0 %v3772
    %5477 = vmatpush1.bf16.msra.mxu0 %v3771
    %5478 = vmatprep.subr.bf16.mxu0 %v3764
    %5479 = vmatpush1.bf16.msra.mxu0 %v3763
    %5480 = vmatprep.subr.bf16.mxu0 %v3756
    %5481 = vmatpush1.bf16.msra.mxu0 %v3755
    %5482 = vmatprep.subr.bf16.mxu0 %v3748
    %5483 = vmatpush1.bf16.msra.mxu0 %v3747
    %5484 = vmatprep.subr.bf16.mxu0 %v3740
    %5485 = vmatpush1.bf16.msra.mxu0 %v3739
    %5486 = vmatprep.subr.bf16.mxu0 %v3732
    %5487 = vmatpush1.bf16.msra.mxu0 %v3731
    %5488 = vmatprep.subr.bf16.mxu0 %v3724
    %5489 = vmatpush1.bf16.msra.mxu0 %v3723
    %5490 = vmatprep.subr.bf16.mxu0 0
    %5491 = vmatpush2.bf16.msra.mxu0 0
    %5492 = vmatprep.subr.bf16.mxu0 0
    %5493 = vmatpush2.bf16.msra.mxu0 0
    %5494 = vmatprep.subr.bf16.mxu0 0
    %5495 = vmatpush2.bf16.msra.mxu0 0
    %5496 = vmatprep.subr.bf16.mxu0 0
    %5497 = vmatpush2.bf16.msra.mxu0 0
    %5498 = vmatprep.subr.bf16.mxu0 0
    %5499 = vmatpush2.bf16.msra.mxu0 0
    %5500 = vmatprep.subr.bf16.mxu0 0
    %5501 = vmatpush2.bf16.msra.mxu0 0
    %5502 = vmatprep.subr.bf16.mxu0 0
    %5503 = vmatpush2.bf16.msra.mxu0 0
    %5504 = vmatprep.subr.bf16.mxu0 0
    %5505 = vmatpush2.bf16.msra.mxu0 0
    %5506 = vmatprep.mubr.bf16.mxu0 0
    %5507 = vmatmul.mubr.bf16.gmra.mxu0 %v953
    %v5508 = vpop.f32.mrf.mxu0
    %v5509 = vadd.f32 %v5466, %v5508
    %v5510 = vpop.f32.mrf.mxu0
    %v5511 = vadd.f32 %v5468, %v5510
    %v5512 = vpop.f32.mrf.mxu0
    %v5513 = vadd.f32 %v5470, %v5512
    %v5514 = vpop.f32.mrf.mxu0
    %v5515 = vadd.f32 %v5472, %v5514
    %5516 = vdwg.mxu0
    %v5517 = vmax.f32 %v4735, 0.0
    %v5518 = vmax.f32 %v4737, 0.0
    %v5519 = vmax.f32 %v4993, 0.0
    %v5520 = vmax.f32 %v4995, 0.0
    %v5521 = vmax.f32 %v5251, 0.0
    %v5522 = vmax.f32 %v5253, 0.0
    %v5523 = vmax.f32 %v5509, 0.0
    %v5524 = vmax.f32 %v5511, 0.0
    %v5525 = vmax.f32 %v4739, 0.0
    %v5526 = vmax.f32 %v4741, 0.0
    %v5527 = vmax.f32 %v4997, 0.0
    %v5528 = vmax.f32 %v4999, 0.0
    %v5529 = vmax.f32 %v5255, 0.0
    %v5530 = vmax.f32 %v5257, 0.0
    %v5531 = vmax.f32 %v5513, 0.0
    %v5532 = vmax.f32 %v5515, 0.0
    %v5533 = vpack.c.bf16 %v5525, %v5517
    %v5534 = vpack.c.bf16 %v5526, %v5518
    %v5535 = vpack.c.bf16 %v5527, %v5519
    %v5536 = vpack.c.bf16 %v5528, %v5520
    %v5537 = vpack.c.bf16 %v5529, %v5521
    %v5538 = vpack.c.bf16 %v5530, %v5522
    %v5539 = vpack.c.bf16 %v5531, %v5523
    %v5540 = vpack.c.bf16 %v5532, %v5524
    %v5541 = vld [vmem:[#allocation8] sm:$0xff]
    %v5542 = vld [vmem:[#allocation8 + $0x8] sm:$0xff]
    %v5543 = vld [vmem:[#allocation8 + $0x10] sm:$0xff]
    %v5544 = vld [vmem:[#allocation8 + $0x18] sm:$0xff]
    %v5545 = vld [vmem:[#allocation8 + $0x20] sm:$0xff]
    %v5546 = vld [vmem:[#allocation8 + $0x28] sm:$0xff]
    %v5547 = vld [vmem:[#allocation8 + $0x30] sm:$0xff]
    %v5548 = vld [vmem:[#allocation8 + $0x38] sm:$0xff]
    %v5549 = vld [vmem:[#allocation8 + $0x40] sm:$0xff]
    %v5550 = vld [vmem:[#allocation8 + $0x48] sm:$0xff]
    %v5551 = vld [vmem:[#allocation8 + $0x50] sm:$0xff]
    %v5552 = vld [vmem:[#allocation8 + $0x58] sm:$0xff]
    %v5553 = vld [vmem:[#allocation8 + $0x60] sm:$0xff]
    %v5554 = vld [vmem:[#allocation8 + $0x68] sm:$0xff]
    %v5555 = vld [vmem:[#allocation8 + $0x70] sm:$0xff]
    %v5556 = vld [vmem:[#allocation8 + $0x78] sm:$0xff]
    %v5557 = vld [vmem:[#allocation8 + $0x80] sm:$0xff]
    %v5558 = vld [vmem:[#allocation8 + $0x88] sm:$0xff]
    %v5559 = vld [vmem:[#allocation8 + $0x90] sm:$0xff]
    %v5560 = vld [vmem:[#allocation8 + $0x98] sm:$0xff]
    %v5561 = vld [vmem:[#allocation8 + $0xa0] sm:$0xff]
    %v5562 = vld [vmem:[#allocation8 + $0xa8] sm:$0xff]
    %v5563 = vld [vmem:[#allocation8 + $0xb0] sm:$0xff]
    %v5564 = vld [vmem:[#allocation8 + $0xb8] sm:$0xff]
    %v5565 = vld [vmem:[#allocation8 + $0xc0] sm:$0xff]
    %v5566 = vld [vmem:[#allocation8 + $0xc8] sm:$0xff]
    %v5567 = vld [vmem:[#allocation8 + $0xd0] sm:$0xff]
    %v5568 = vld [vmem:[#allocation8 + $0xd8] sm:$0xff]
    %v5569 = vld [vmem:[#allocation8 + $0xe0] sm:$0xff]
    %v5570 = vld [vmem:[#allocation8 + $0xe8] sm:$0xff]
    %v5571 = vld [vmem:[#allocation8 + $0xf0] sm:$0xff]
    %v5572 = vld [vmem:[#allocation8 + $0xf8] sm:$0xff]
    %v5573 = vld [vmem:[#allocation8 + $0x100] sm:$0xff]
    %v5574 = vld [vmem:[#allocation8 + $0x108] sm:$0xff]
    %v5575 = vld [vmem:[#allocation8 + $0x110] sm:$0xff]
    %v5576 = vld [vmem:[#allocation8 + $0x118] sm:$0xff]
    %v5577 = vld [vmem:[#allocation8 + $0x120] sm:$0xff]
    %v5578 = vld [vmem:[#allocation8 + $0x128] sm:$0xff]
    %v5579 = vld [vmem:[#allocation8 + $0x130] sm:$0xff]
    %v5580 = vld [vmem:[#allocation8 + $0x138] sm:$0xff]
    %v5581 = vld [vmem:[#allocation8 + $0x140] sm:$0xff]
    %v5582 = vld [vmem:[#allocation8 + $0x148] sm:$0xff]
    %v5583 = vld [vmem:[#allocation8 + $0x150] sm:$0xff]
    %v5584 = vld [vmem:[#allocation8 + $0x158] sm:$0xff]
    %v5585 = vld [vmem:[#allocation8 + $0x160] sm:$0xff]
    %v5586 = vld [vmem:[#allocation8 + $0x168] sm:$0xff]
    %v5587 = vld [vmem:[#allocation8 + $0x170] sm:$0xff]
    %v5588 = vld [vmem:[#allocation8 + $0x178] sm:$0xff]
    %v5589 = vld [vmem:[#allocation8 + $0x180] sm:$0xff]
    %v5590 = vld [vmem:[#allocation8 + $0x188] sm:$0xff]
    %v5591 = vld [vmem:[#allocation8 + $0x190] sm:$0xff]
    %v5592 = vld [vmem:[#allocation8 + $0x198] sm:$0xff]
    %v5593 = vld [vmem:[#allocation8 + $0x1a0] sm:$0xff]
    %v5594 = vld [vmem:[#allocation8 + $0x1a8] sm:$0xff]
    %v5595 = vld [vmem:[#allocation8 + $0x1b0] sm:$0xff]
    %v5596 = vld [vmem:[#allocation8 + $0x1b8] sm:$0xff]
    %v5597 = vld [vmem:[#allocation8 + $0x1c0] sm:$0xff]
    %v5598 = vld [vmem:[#allocation8 + $0x1c8] sm:$0xff]
    %v5599 = vld [vmem:[#allocation8 + $0x1d0] sm:$0xff]
    %v5600 = vld [vmem:[#allocation8 + $0x1d8] sm:$0xff]
    %v5601 = vld [vmem:[#allocation8 + $0x1e0] sm:$0xff]
    %v5602 = vld [vmem:[#allocation8 + $0x1e8] sm:$0xff]
    %v5603 = vld [vmem:[#allocation8 + $0x1f0] sm:$0xff]
    %v5604 = vld [vmem:[#allocation8 + $0x1f8] sm:$0xff]
    %v5605 = vld [vmem:[#allocation8 + $0x200] sm:$0xff]
    %v5606 = vld [vmem:[#allocation8 + $0x208] sm:$0xff]
    %v5607 = vld [vmem:[#allocation8 + $0x210] sm:$0xff]
    %v5608 = vld [vmem:[#allocation8 + $0x218] sm:$0xff]
    %v5609 = vld [vmem:[#allocation8 + $0x220] sm:$0xff]
    %v5610 = vld [vmem:[#allocation8 + $0x228] sm:$0xff]
    %v5611 = vld [vmem:[#allocation8 + $0x230] sm:$0xff]
    %v5612 = vld [vmem:[#allocation8 + $0x238] sm:$0xff]
    %v5613 = vld [vmem:[#allocation8 + $0x240] sm:$0xff]
    %v5614 = vld [vmem:[#allocation8 + $0x248] sm:$0xff]
    %v5615 = vld [vmem:[#allocation8 + $0x250] sm:$0xff]
    %v5616 = vld [vmem:[#allocation8 + $0x258] sm:$0xff]
    %v5617 = vld [vmem:[#allocation8 + $0x260] sm:$0xff]
    %v5618 = vld [vmem:[#allocation8 + $0x268] sm:$0xff]
    %v5619 = vld [vmem:[#allocation8 + $0x270] sm:$0xff]
    %v5620 = vld [vmem:[#allocation8 + $0x278] sm:$0xff]
    %v5621 = vld [vmem:[#allocation8 + $0x280] sm:$0xff]
    %v5622 = vld [vmem:[#allocation8 + $0x288] sm:$0xff]
    %v5623 = vld [vmem:[#allocation8 + $0x290] sm:$0xff]
    %v5624 = vld [vmem:[#allocation8 + $0x298] sm:$0xff]
    %v5625 = vld [vmem:[#allocation8 + $0x2a0] sm:$0xff]
    %v5626 = vld [vmem:[#allocation8 + $0x2a8] sm:$0xff]
    %v5627 = vld [vmem:[#allocation8 + $0x2b0] sm:$0xff]
    %v5628 = vld [vmem:[#allocation8 + $0x2b8] sm:$0xff]
    %v5629 = vld [vmem:[#allocation8 + $0x2c0] sm:$0xff]
    %v5630 = vld [vmem:[#allocation8 + $0x2c8] sm:$0xff]
    %v5631 = vld [vmem:[#allocation8 + $0x2d0] sm:$0xff]
    %v5632 = vld [vmem:[#allocation8 + $0x2d8] sm:$0xff]
    %v5633 = vld [vmem:[#allocation8 + $0x2e0] sm:$0xff]
    %v5634 = vld [vmem:[#allocation8 + $0x2e8] sm:$0xff]
    %v5635 = vld [vmem:[#allocation8 + $0x2f0] sm:$0xff]
    %v5636 = vld [vmem:[#allocation8 + $0x2f8] sm:$0xff]
    %v5637 = vld [vmem:[#allocation8 + $0x300] sm:$0xff]
    %v5638 = vld [vmem:[#allocation8 + $0x308] sm:$0xff]
    %v5639 = vld [vmem:[#allocation8 + $0x310] sm:$0xff]
    %v5640 = vld [vmem:[#allocation8 + $0x318] sm:$0xff]
    %v5641 = vld [vmem:[#allocation8 + $0x320] sm:$0xff]
    %v5642 = vld [vmem:[#allocation8 + $0x328] sm:$0xff]
    %v5643 = vld [vmem:[#allocation8 + $0x330] sm:$0xff]
    %v5644 = vld [vmem:[#allocation8 + $0x338] sm:$0xff]
    %v5645 = vld [vmem:[#allocation8 + $0x340] sm:$0xff]
    %v5646 = vld [vmem:[#allocation8 + $0x348] sm:$0xff]
    %v5647 = vld [vmem:[#allocation8 + $0x350] sm:$0xff]
    %v5648 = vld [vmem:[#allocation8 + $0x358] sm:$0xff]
    %v5649 = vld [vmem:[#allocation8 + $0x360] sm:$0xff]
    %v5650 = vld [vmem:[#allocation8 + $0x368] sm:$0xff]
    %v5651 = vld [vmem:[#allocation8 + $0x370] sm:$0xff]
    %v5652 = vld [vmem:[#allocation8 + $0x378] sm:$0xff]
    %v5653 = vld [vmem:[#allocation8 + $0x380] sm:$0xff]
    %v5654 = vld [vmem:[#allocation8 + $0x388] sm:$0xff]
    %v5655 = vld [vmem:[#allocation8 + $0x390] sm:$0xff]
    %v5656 = vld [vmem:[#allocation8 + $0x398] sm:$0xff]
    %v5657 = vld [vmem:[#allocation8 + $0x3a0] sm:$0xff]
    %v5658 = vld [vmem:[#allocation8 + $0x3a8] sm:$0xff]
    %v5659 = vld [vmem:[#allocation8 + $0x3b0] sm:$0xff]
    %v5660 = vld [vmem:[#allocation8 + $0x3b8] sm:$0xff]
    %v5661 = vld [vmem:[#allocation8 + $0x3c0] sm:$0xff]
    %v5662 = vld [vmem:[#allocation8 + $0x3c8] sm:$0xff]
    %v5663 = vld [vmem:[#allocation8 + $0x3d0] sm:$0xff]
    %v5664 = vld [vmem:[#allocation8 + $0x3d8] sm:$0xff]
    %v5665 = vld [vmem:[#allocation8 + $0x3e0] sm:$0xff]
    %v5666 = vld [vmem:[#allocation8 + $0x3e8] sm:$0xff]
    %v5667 = vld [vmem:[#allocation8 + $0x3f0] sm:$0xff]
    %v5668 = vld [vmem:[#allocation8 + $0x3f8] sm:$0xff]
    %v5669 = vld [vmem:[#allocation8 + $0x400] sm:$0xff]
    %v5670 = vld [vmem:[#allocation8 + $0x408] sm:$0xff]
    %v5671 = vld [vmem:[#allocation8 + $0x410] sm:$0xff]
    %v5672 = vld [vmem:[#allocation8 + $0x418] sm:$0xff]
    %v5673 = vld [vmem:[#allocation8 + $0x420] sm:$0xff]
    %v5674 = vld [vmem:[#allocation8 + $0x428] sm:$0xff]
    %v5675 = vld [vmem:[#allocation8 + $0x430] sm:$0xff]
    %v5676 = vld [vmem:[#allocation8 + $0x438] sm:$0xff]
    %v5677 = vld [vmem:[#allocation8 + $0x440] sm:$0xff]
    %v5678 = vld [vmem:[#allocation8 + $0x448] sm:$0xff]
    %v5679 = vld [vmem:[#allocation8 + $0x450] sm:$0xff]
    %v5680 = vld [vmem:[#allocation8 + $0x458] sm:$0xff]
    %v5681 = vld [vmem:[#allocation8 + $0x460] sm:$0xff]
    %v5682 = vld [vmem:[#allocation8 + $0x468] sm:$0xff]
    %v5683 = vld [vmem:[#allocation8 + $0x470] sm:$0xff]
    %v5684 = vld [vmem:[#allocation8 + $0x478] sm:$0xff]
    %v5685 = vld [vmem:[#allocation8 + $0x480] sm:$0xff]
    %v5686 = vld [vmem:[#allocation8 + $0x488] sm:$0xff]
    %v5687 = vld [vmem:[#allocation8 + $0x490] sm:$0xff]
    %v5688 = vld [vmem:[#allocation8 + $0x498] sm:$0xff]
    %v5689 = vld [vmem:[#allocation8 + $0x4a0] sm:$0xff]
    %v5690 = vld [vmem:[#allocation8 + $0x4a8] sm:$0xff]
    %v5691 = vld [vmem:[#allocation8 + $0x4b0] sm:$0xff]
    %v5692 = vld [vmem:[#allocation8 + $0x4b8] sm:$0xff]
    %v5693 = vld [vmem:[#allocation8 + $0x4c0] sm:$0xff]
    %v5694 = vld [vmem:[#allocation8 + $0x4c8] sm:$0xff]
    %v5695 = vld [vmem:[#allocation8 + $0x4d0] sm:$0xff]
    %v5696 = vld [vmem:[#allocation8 + $0x4d8] sm:$0xff]
    %v5697 = vld [vmem:[#allocation8 + $0x4e0] sm:$0xff]
    %v5698 = vld [vmem:[#allocation8 + $0x4e8] sm:$0xff]
    %v5699 = vld [vmem:[#allocation8 + $0x4f0] sm:$0xff]
    %v5700 = vld [vmem:[#allocation8 + $0x4f8] sm:$0xff]
    %v5701 = vld [vmem:[#allocation8 + $0x500] sm:$0xff]
    %v5702 = vld [vmem:[#allocation8 + $0x508] sm:$0xff]
    %v5703 = vld [vmem:[#allocation8 + $0x510] sm:$0xff]
    %v5704 = vld [vmem:[#allocation8 + $0x518] sm:$0xff]
    %v5705 = vld [vmem:[#allocation8 + $0x520] sm:$0xff]
    %v5706 = vld [vmem:[#allocation8 + $0x528] sm:$0xff]
    %v5707 = vld [vmem:[#allocation8 + $0x530] sm:$0xff]
    %v5708 = vld [vmem:[#allocation8 + $0x538] sm:$0xff]
    %v5709 = vld [vmem:[#allocation8 + $0x540] sm:$0xff]
    %v5710 = vld [vmem:[#allocation8 + $0x548] sm:$0xff]
    %v5711 = vld [vmem:[#allocation8 + $0x550] sm:$0xff]
    %v5712 = vld [vmem:[#allocation8 + $0x558] sm:$0xff]
    %v5713 = vld [vmem:[#allocation8 + $0x560] sm:$0xff]
    %v5714 = vld [vmem:[#allocation8 + $0x568] sm:$0xff]
    %v5715 = vld [vmem:[#allocation8 + $0x570] sm:$0xff]
    %v5716 = vld [vmem:[#allocation8 + $0x578] sm:$0xff]
    %v5717 = vld [vmem:[#allocation8 + $0x580] sm:$0xff]
    %v5718 = vld [vmem:[#allocation8 + $0x588] sm:$0xff]
    %v5719 = vld [vmem:[#allocation8 + $0x590] sm:$0xff]
    %v5720 = vld [vmem:[#allocation8 + $0x598] sm:$0xff]
    %v5721 = vld [vmem:[#allocation8 + $0x5a0] sm:$0xff]
    %v5722 = vld [vmem:[#allocation8 + $0x5a8] sm:$0xff]
    %v5723 = vld [vmem:[#allocation8 + $0x5b0] sm:$0xff]
    %v5724 = vld [vmem:[#allocation8 + $0x5b8] sm:$0xff]
    %v5725 = vld [vmem:[#allocation8 + $0x5c0] sm:$0xff]
    %v5726 = vld [vmem:[#allocation8 + $0x5c8] sm:$0xff]
    %v5727 = vld [vmem:[#allocation8 + $0x5d0] sm:$0xff]
    %v5728 = vld [vmem:[#allocation8 + $0x5d8] sm:$0xff]
    %v5729 = vld [vmem:[#allocation8 + $0x5e0] sm:$0xff]
    %v5730 = vld [vmem:[#allocation8 + $0x5e8] sm:$0xff]
    %v5731 = vld [vmem:[#allocation8 + $0x5f0] sm:$0xff]
    %v5732 = vld [vmem:[#allocation8 + $0x5f8] sm:$0xff]
    %v5733 = vld [vmem:[#allocation8 + $0x600] sm:$0xff]
    %v5734 = vld [vmem:[#allocation8 + $0x608] sm:$0xff]
    %v5735 = vld [vmem:[#allocation8 + $0x610] sm:$0xff]
    %v5736 = vld [vmem:[#allocation8 + $0x618] sm:$0xff]
    %v5737 = vld [vmem:[#allocation8 + $0x620] sm:$0xff]
    %v5738 = vld [vmem:[#allocation8 + $0x628] sm:$0xff]
    %v5739 = vld [vmem:[#allocation8 + $0x630] sm:$0xff]
    %v5740 = vld [vmem:[#allocation8 + $0x638] sm:$0xff]
    %v5741 = vld [vmem:[#allocation8 + $0x640] sm:$0xff]
    %v5742 = vld [vmem:[#allocation8 + $0x648] sm:$0xff]
    %v5743 = vld [vmem:[#allocation8 + $0x650] sm:$0xff]
    %v5744 = vld [vmem:[#allocation8 + $0x658] sm:$0xff]
    %v5745 = vld [vmem:[#allocation8 + $0x660] sm:$0xff]
    %v5746 = vld [vmem:[#allocation8 + $0x668] sm:$0xff]
    %v5747 = vld [vmem:[#allocation8 + $0x670] sm:$0xff]
    %v5748 = vld [vmem:[#allocation8 + $0x678] sm:$0xff]
    %v5749 = vld [vmem:[#allocation8 + $0x680] sm:$0xff]
    %v5750 = vld [vmem:[#allocation8 + $0x688] sm:$0xff]
    %v5751 = vld [vmem:[#allocation8 + $0x690] sm:$0xff]
    %v5752 = vld [vmem:[#allocation8 + $0x698] sm:$0xff]
    %v5753 = vld [vmem:[#allocation8 + $0x6a0] sm:$0xff]
    %v5754 = vld [vmem:[#allocation8 + $0x6a8] sm:$0xff]
    %v5755 = vld [vmem:[#allocation8 + $0x6b0] sm:$0xff]
    %v5756 = vld [vmem:[#allocation8 + $0x6b8] sm:$0xff]
    %v5757 = vld [vmem:[#allocation8 + $0x6c0] sm:$0xff]
    %v5758 = vld [vmem:[#allocation8 + $0x6c8] sm:$0xff]
    %v5759 = vld [vmem:[#allocation8 + $0x6d0] sm:$0xff]
    %v5760 = vld [vmem:[#allocation8 + $0x6d8] sm:$0xff]
    %v5761 = vld [vmem:[#allocation8 + $0x6e0] sm:$0xff]
    %v5762 = vld [vmem:[#allocation8 + $0x6e8] sm:$0xff]
    %v5763 = vld [vmem:[#allocation8 + $0x6f0] sm:$0xff]
    %v5764 = vld [vmem:[#allocation8 + $0x6f8] sm:$0xff]
    %v5765 = vld [vmem:[#allocation8 + $0x700] sm:$0xff]
    %v5766 = vld [vmem:[#allocation8 + $0x708] sm:$0xff]
    %v5767 = vld [vmem:[#allocation8 + $0x710] sm:$0xff]
    %v5768 = vld [vmem:[#allocation8 + $0x718] sm:$0xff]
    %v5769 = vld [vmem:[#allocation8 + $0x720] sm:$0xff]
    %v5770 = vld [vmem:[#allocation8 + $0x728] sm:$0xff]
    %v5771 = vld [vmem:[#allocation8 + $0x730] sm:$0xff]
    %v5772 = vld [vmem:[#allocation8 + $0x738] sm:$0xff]
    %v5773 = vld [vmem:[#allocation8 + $0x740] sm:$0xff]
    %v5774 = vld [vmem:[#allocation8 + $0x748] sm:$0xff]
    %v5775 = vld [vmem:[#allocation8 + $0x750] sm:$0xff]
    %v5776 = vld [vmem:[#allocation8 + $0x758] sm:$0xff]
    %v5777 = vld [vmem:[#allocation8 + $0x760] sm:$0xff]
    %v5778 = vld [vmem:[#allocation8 + $0x768] sm:$0xff]
    %v5779 = vld [vmem:[#allocation8 + $0x770] sm:$0xff]
    %v5780 = vld [vmem:[#allocation8 + $0x778] sm:$0xff]
    %v5781 = vld [vmem:[#allocation8 + $0x780] sm:$0xff]
    %v5782 = vld [vmem:[#allocation8 + $0x788] sm:$0xff]
    %v5783 = vld [vmem:[#allocation8 + $0x790] sm:$0xff]
    %v5784 = vld [vmem:[#allocation8 + $0x798] sm:$0xff]
    %v5785 = vld [vmem:[#allocation8 + $0x7a0] sm:$0xff]
    %v5786 = vld [vmem:[#allocation8 + $0x7a8] sm:$0xff]
    %v5787 = vld [vmem:[#allocation8 + $0x7b0] sm:$0xff]
    %v5788 = vld [vmem:[#allocation8 + $0x7b8] sm:$0xff]
    %v5789 = vld [vmem:[#allocation8 + $0x7c0] sm:$0xff]
    %v5790 = vld [vmem:[#allocation8 + $0x7c8] sm:$0xff]
    %v5791 = vld [vmem:[#allocation8 + $0x7d0] sm:$0xff]
    %v5792 = vld [vmem:[#allocation8 + $0x7d8] sm:$0xff]
    %v5793 = vld [vmem:[#allocation8 + $0x7e0] sm:$0xff]
    %v5794 = vld [vmem:[#allocation8 + $0x7e8] sm:$0xff]
    %v5795 = vld [vmem:[#allocation8 + $0x7f0] sm:$0xff]
    %v5796 = vld [vmem:[#allocation8 + $0x7f8] sm:$0xff]
    %v5797 = vld [vmem:[#allocation10] sm:$0xf]
    %v5799 = vlaneseq
    %v5800 = vshrl.u32 %v5799, 7
    %v5801 = vsub.s32 0, %v5800
    %v5802 = vrot.slane %v5797, %v5801
    %v5803 = vlaneseq
    %v5804 = vshrl.u32 %v5803, 7
    %v5805 = vsub.s32 1, %v5804
    %v5806 = vrot.slane %v5797, %v5805
    %v5807 = vlaneseq
    %v5808 = vshrl.u32 %v5807, 7
    %v5809 = vsub.s32 2, %v5808
    %v5810 = vrot.slane %v5797, %v5809
    %v5811 = vlaneseq
    %v5812 = vshrl.u32 %v5811, 7
    %v5813 = vsub.s32 3, %v5812
    %v5814 = vrot.slane %v5797, %v5813
    %v6075 = vunpack.c.l.b16 %v5541
    %v6076 = vunpack.c.h.b16 %v5541
    %v6077 = vunpack.c.l.b16 %v5542
    %v6078 = vunpack.c.h.b16 %v5542
    %v6079 = vunpack.c.l.b16 %v5543
    %v6080 = vunpack.c.h.b16 %v5543
    %v6081 = vunpack.c.l.b16 %v5544
    %v6082 = vunpack.c.h.b16 %v5544
    %v6083 = vunpack.c.l.b16 %v5545
    %v6084 = vunpack.c.h.b16 %v5545
    %v6085 = vunpack.c.l.b16 %v5546
    %v6086 = vunpack.c.h.b16 %v5546
    %v6087 = vunpack.c.l.b16 %v5547
    %v6088 = vunpack.c.h.b16 %v5547
    %v6089 = vunpack.c.l.b16 %v5548
    %v6090 = vunpack.c.h.b16 %v5548
    %v6091 = vunpack.c.l.b16 %v5549
    %v6092 = vunpack.c.h.b16 %v5549
    %v6093 = vunpack.c.l.b16 %v5550
    %v6094 = vunpack.c.h.b16 %v5550
    %v6095 = vunpack.c.l.b16 %v5551
    %v6096 = vunpack.c.h.b16 %v5551
    %v6097 = vunpack.c.l.b16 %v5552
    %v6098 = vunpack.c.h.b16 %v5552
    %v6099 = vunpack.c.l.b16 %v5553
    %v6100 = vunpack.c.h.b16 %v5553
    %v6101 = vunpack.c.l.b16 %v5554
    %v6102 = vunpack.c.h.b16 %v5554
    %v6103 = vunpack.c.l.b16 %v5555
    %v6104 = vunpack.c.h.b16 %v5555
    %v6105 = vunpack.c.l.b16 %v5556
    %v6106 = vunpack.c.h.b16 %v5556
    %v6107 = vunpack.c.l.b16 %v5557
    %v6108 = vunpack.c.h.b16 %v5557
    %v6109 = vunpack.c.l.b16 %v5558
    %v6110 = vunpack.c.h.b16 %v5558
    %v6111 = vunpack.c.l.b16 %v5559
    %v6112 = vunpack.c.h.b16 %v5559
    %v6113 = vunpack.c.l.b16 %v5560
    %v6114 = vunpack.c.h.b16 %v5560
    %v6115 = vunpack.c.l.b16 %v5561
    %v6116 = vunpack.c.h.b16 %v5561
    %v6117 = vunpack.c.l.b16 %v5562
    %v6118 = vunpack.c.h.b16 %v5562
    %v6119 = vunpack.c.l.b16 %v5563
    %v6120 = vunpack.c.h.b16 %v5563
    %v6121 = vunpack.c.l.b16 %v5564
    %v6122 = vunpack.c.h.b16 %v5564
    %v6123 = vunpack.c.l.b16 %v5565
    %v6124 = vunpack.c.h.b16 %v5565
    %v6125 = vunpack.c.l.b16 %v5566
    %v6126 = vunpack.c.h.b16 %v5566
    %v6127 = vunpack.c.l.b16 %v5567
    %v6128 = vunpack.c.h.b16 %v5567
    %v6129 = vunpack.c.l.b16 %v5568
    %v6130 = vunpack.c.h.b16 %v5568
    %v6131 = vunpack.c.l.b16 %v5569
    %v6132 = vunpack.c.h.b16 %v5569
    %v6133 = vunpack.c.l.b16 %v5570
    %v6134 = vunpack.c.h.b16 %v5570
    %v6135 = vunpack.c.l.b16 %v5571
    %v6136 = vunpack.c.h.b16 %v5571
    %v6137 = vunpack.c.l.b16 %v5572
    %v6138 = vunpack.c.h.b16 %v5572
    %v6139 = vunpack.c.l.b16 %v5573
    %v6140 = vunpack.c.h.b16 %v5573
    %v6141 = vunpack.c.l.b16 %v5574
    %v6142 = vunpack.c.h.b16 %v5574
    %v6143 = vunpack.c.l.b16 %v5575
    %v6144 = vunpack.c.h.b16 %v5575
    %v6145 = vunpack.c.l.b16 %v5576
    %v6146 = vunpack.c.h.b16 %v5576
    %v6147 = vunpack.c.l.b16 %v5577
    %v6148 = vunpack.c.h.b16 %v5577
    %v6149 = vunpack.c.l.b16 %v5578
    %v6150 = vunpack.c.h.b16 %v5578
    %v6151 = vunpack.c.l.b16 %v5579
    %v6152 = vunpack.c.h.b16 %v5579
    %v6153 = vunpack.c.l.b16 %v5580
    %v6154 = vunpack.c.h.b16 %v5580
    %v6155 = vunpack.c.l.b16 %v5581
    %v6156 = vunpack.c.h.b16 %v5581
    %v6157 = vunpack.c.l.b16 %v5582
    %v6158 = vunpack.c.h.b16 %v5582
    %v6159 = vunpack.c.l.b16 %v5583
    %v6160 = vunpack.c.h.b16 %v5583
    %v6161 = vunpack.c.l.b16 %v5584
    %v6162 = vunpack.c.h.b16 %v5584
    %v6163 = vunpack.c.l.b16 %v5585
    %v6164 = vunpack.c.h.b16 %v5585
    %v6165 = vunpack.c.l.b16 %v5586
    %v6166 = vunpack.c.h.b16 %v5586
    %v6167 = vunpack.c.l.b16 %v5587
    %v6168 = vunpack.c.h.b16 %v5587
    %v6169 = vunpack.c.l.b16 %v5588
    %v6170 = vunpack.c.h.b16 %v5588
    %v6171 = vunpack.c.l.b16 %v5589
    %v6172 = vunpack.c.h.b16 %v5589
    %v6173 = vunpack.c.l.b16 %v5590
    %v6174 = vunpack.c.h.b16 %v5590
    %v6175 = vunpack.c.l.b16 %v5591
    %v6176 = vunpack.c.h.b16 %v5591
    %v6177 = vunpack.c.l.b16 %v5592
    %v6178 = vunpack.c.h.b16 %v5592
    %v6179 = vunpack.c.l.b16 %v5593
    %v6180 = vunpack.c.h.b16 %v5593
    %v6181 = vunpack.c.l.b16 %v5594
    %v6182 = vunpack.c.h.b16 %v5594
    %v6183 = vunpack.c.l.b16 %v5595
    %v6184 = vunpack.c.h.b16 %v5595
    %v6185 = vunpack.c.l.b16 %v5596
    %v6186 = vunpack.c.h.b16 %v5596
    %v6187 = vunpack.c.l.b16 %v5597
    %v6188 = vunpack.c.h.b16 %v5597
    %v6189 = vunpack.c.l.b16 %v5598
    %v6190 = vunpack.c.h.b16 %v5598
    %v6191 = vunpack.c.l.b16 %v5599
    %v6192 = vunpack.c.h.b16 %v5599
    %v6193 = vunpack.c.l.b16 %v5600
    %v6194 = vunpack.c.h.b16 %v5600
    %v6195 = vunpack.c.l.b16 %v5601
    %v6196 = vunpack.c.h.b16 %v5601
    %v6197 = vunpack.c.l.b16 %v5602
    %v6198 = vunpack.c.h.b16 %v5602
    %v6199 = vunpack.c.l.b16 %v5603
    %v6200 = vunpack.c.h.b16 %v5603
    %v6201 = vunpack.c.l.b16 %v5604
    %v6202 = vunpack.c.h.b16 %v5604
    %v6203 = vunpack.c.l.b16 %v5605
    %v6204 = vunpack.c.h.b16 %v5605
    %v6205 = vunpack.c.l.b16 %v5606
    %v6206 = vunpack.c.h.b16 %v5606
    %v6207 = vunpack.c.l.b16 %v5607
    %v6208 = vunpack.c.h.b16 %v5607
    %v6209 = vunpack.c.l.b16 %v5608
    %v6210 = vunpack.c.h.b16 %v5608
    %v6211 = vunpack.c.l.b16 %v5609
    %v6212 = vunpack.c.h.b16 %v5609
    %v6213 = vunpack.c.l.b16 %v5610
    %v6214 = vunpack.c.h.b16 %v5610
    %v6215 = vunpack.c.l.b16 %v5611
    %v6216 = vunpack.c.h.b16 %v5611
    %v6217 = vunpack.c.l.b16 %v5612
    %v6218 = vunpack.c.h.b16 %v5612
    %v6219 = vunpack.c.l.b16 %v5613
    %v6220 = vunpack.c.h.b16 %v5613
    %v6221 = vunpack.c.l.b16 %v5614
    %v6222 = vunpack.c.h.b16 %v5614
    %v6223 = vunpack.c.l.b16 %v5615
    %v6224 = vunpack.c.h.b16 %v5615
    %v6225 = vunpack.c.l.b16 %v5616
    %v6226 = vunpack.c.h.b16 %v5616
    %v6227 = vunpack.c.l.b16 %v5617
    %v6228 = vunpack.c.h.b16 %v5617
    %v6229 = vunpack.c.l.b16 %v5618
    %v6230 = vunpack.c.h.b16 %v5618
    %v6231 = vunpack.c.l.b16 %v5619
    %v6232 = vunpack.c.h.b16 %v5619
    %v6233 = vunpack.c.l.b16 %v5620
    %v6234 = vunpack.c.h.b16 %v5620
    %v6235 = vunpack.c.l.b16 %v5621
    %v6236 = vunpack.c.h.b16 %v5621
    %v6237 = vunpack.c.l.b16 %v5622
    %v6238 = vunpack.c.h.b16 %v5622
    %v6239 = vunpack.c.l.b16 %v5623
    %v6240 = vunpack.c.h.b16 %v5623
    %v6241 = vunpack.c.l.b16 %v5624
    %v6242 = vunpack.c.h.b16 %v5624
    %v6243 = vunpack.c.l.b16 %v5625
    %v6244 = vunpack.c.h.b16 %v5625
    %v6245 = vunpack.c.l.b16 %v5626
    %v6246 = vunpack.c.h.b16 %v5626
    %v6247 = vunpack.c.l.b16 %v5627
    %v6248 = vunpack.c.h.b16 %v5627
    %v6249 = vunpack.c.l.b16 %v5628
    %v6250 = vunpack.c.h.b16 %v5628
    %v6251 = vunpack.c.l.b16 %v5629
    %v6252 = vunpack.c.h.b16 %v5629
    %v6253 = vunpack.c.l.b16 %v5630
    %v6254 = vunpack.c.h.b16 %v5630
    %v6255 = vunpack.c.l.b16 %v5631
    %v6256 = vunpack.c.h.b16 %v5631
    %v6257 = vunpack.c.l.b16 %v5632
    %v6258 = vunpack.c.h.b16 %v5632
    %v6259 = vunpack.c.l.b16 %v5633
    %v6260 = vunpack.c.h.b16 %v5633
    %v6261 = vunpack.c.l.b16 %v5634
    %v6262 = vunpack.c.h.b16 %v5634
    %v6263 = vunpack.c.l.b16 %v5635
    %v6264 = vunpack.c.h.b16 %v5635
    %v6265 = vunpack.c.l.b16 %v5636
    %v6266 = vunpack.c.h.b16 %v5636
    %v6267 = vunpack.c.l.b16 %v5637
    %v6268 = vunpack.c.h.b16 %v5637
    %v6269 = vunpack.c.l.b16 %v5638
    %v6270 = vunpack.c.h.b16 %v5638
    %v6271 = vunpack.c.l.b16 %v5639
    %v6272 = vunpack.c.h.b16 %v5639
    %v6273 = vunpack.c.l.b16 %v5640
    %v6274 = vunpack.c.h.b16 %v5640
    %v6275 = vunpack.c.l.b16 %v5641
    %v6276 = vunpack.c.h.b16 %v5641
    %v6277 = vunpack.c.l.b16 %v5642
    %v6278 = vunpack.c.h.b16 %v5642
    %v6279 = vunpack.c.l.b16 %v5643
    %v6280 = vunpack.c.h.b16 %v5643
    %v6281 = vunpack.c.l.b16 %v5644
    %v6282 = vunpack.c.h.b16 %v5644
    %v6283 = vunpack.c.l.b16 %v5645
    %v6284 = vunpack.c.h.b16 %v5645
    %v6285 = vunpack.c.l.b16 %v5646
    %v6286 = vunpack.c.h.b16 %v5646
    %v6287 = vunpack.c.l.b16 %v5647
    %v6288 = vunpack.c.h.b16 %v5647
    %v6289 = vunpack.c.l.b16 %v5648
    %v6290 = vunpack.c.h.b16 %v5648
    %v6291 = vunpack.c.l.b16 %v5649
    %v6292 = vunpack.c.h.b16 %v5649
    %v6293 = vunpack.c.l.b16 %v5650
    %v6294 = vunpack.c.h.b16 %v5650
    %v6295 = vunpack.c.l.b16 %v5651
    %v6296 = vunpack.c.h.b16 %v5651
    %v6297 = vunpack.c.l.b16 %v5652
    %v6298 = vunpack.c.h.b16 %v5652
    %v6299 = vunpack.c.l.b16 %v5653
    %v6300 = vunpack.c.h.b16 %v5653
    %v6301 = vunpack.c.l.b16 %v5654
    %v6302 = vunpack.c.h.b16 %v5654
    %v6303 = vunpack.c.l.b16 %v5655
    %v6304 = vunpack.c.h.b16 %v5655
    %v6305 = vunpack.c.l.b16 %v5656
    %v6306 = vunpack.c.h.b16 %v5656
    %v6307 = vunpack.c.l.b16 %v5657
    %v6308 = vunpack.c.h.b16 %v5657
    %v6309 = vunpack.c.l.b16 %v5658
    %v6310 = vunpack.c.h.b16 %v5658
    %v6311 = vunpack.c.l.b16 %v5659
    %v6312 = vunpack.c.h.b16 %v5659
    %v6313 = vunpack.c.l.b16 %v5660
    %v6314 = vunpack.c.h.b16 %v5660
    %v6315 = vunpack.c.l.b16 %v5661
    %v6316 = vunpack.c.h.b16 %v5661
    %v6317 = vunpack.c.l.b16 %v5662
    %v6318 = vunpack.c.h.b16 %v5662
    %v6319 = vunpack.c.l.b16 %v5663
    %v6320 = vunpack.c.h.b16 %v5663
    %v6321 = vunpack.c.l.b16 %v5664
    %v6322 = vunpack.c.h.b16 %v5664
    %v6323 = vunpack.c.l.b16 %v5665
    %v6324 = vunpack.c.h.b16 %v5665
    %v6325 = vunpack.c.l.b16 %v5666
    %v6326 = vunpack.c.h.b16 %v5666
    %v6327 = vunpack.c.l.b16 %v5667
    %v6328 = vunpack.c.h.b16 %v5667
    %v6329 = vunpack.c.l.b16 %v5668
    %v6330 = vunpack.c.h.b16 %v5668
    %v6331 = vunpack.c.l.b16 %v5669
    %v6332 = vunpack.c.h.b16 %v5669
    %v6333 = vunpack.c.l.b16 %v5670
    %v6334 = vunpack.c.h.b16 %v5670
    %v6335 = vunpack.c.l.b16 %v5671
    %v6336 = vunpack.c.h.b16 %v5671
    %v6337 = vunpack.c.l.b16 %v5672
    %v6338 = vunpack.c.h.b16 %v5672
    %v6339 = vunpack.c.l.b16 %v5673
    %v6340 = vunpack.c.h.b16 %v5673
    %v6341 = vunpack.c.l.b16 %v5674
    %v6342 = vunpack.c.h.b16 %v5674
    %v6343 = vunpack.c.l.b16 %v5675
    %v6344 = vunpack.c.h.b16 %v5675
    %v6345 = vunpack.c.l.b16 %v5676
    %v6346 = vunpack.c.h.b16 %v5676
    %v6347 = vunpack.c.l.b16 %v5677
    %v6348 = vunpack.c.h.b16 %v5677
    %v6349 = vunpack.c.l.b16 %v5678
    %v6350 = vunpack.c.h.b16 %v5678
    %v6351 = vunpack.c.l.b16 %v5679
    %v6352 = vunpack.c.h.b16 %v5679
    %v6353 = vunpack.c.l.b16 %v5680
    %v6354 = vunpack.c.h.b16 %v5680
    %v6355 = vunpack.c.l.b16 %v5681
    %v6356 = vunpack.c.h.b16 %v5681
    %v6357 = vunpack.c.l.b16 %v5682
    %v6358 = vunpack.c.h.b16 %v5682
    %v6359 = vunpack.c.l.b16 %v5683
    %v6360 = vunpack.c.h.b16 %v5683
    %v6361 = vunpack.c.l.b16 %v5684
    %v6362 = vunpack.c.h.b16 %v5684
    %v6363 = vunpack.c.l.b16 %v5685
    %v6364 = vunpack.c.h.b16 %v5685
    %v6365 = vunpack.c.l.b16 %v5686
    %v6366 = vunpack.c.h.b16 %v5686
    %v6367 = vunpack.c.l.b16 %v5687
    %v6368 = vunpack.c.h.b16 %v5687
    %v6369 = vunpack.c.l.b16 %v5688
    %v6370 = vunpack.c.h.b16 %v5688
    %v6371 = vunpack.c.l.b16 %v5689
    %v6372 = vunpack.c.h.b16 %v5689
    %v6373 = vunpack.c.l.b16 %v5690
    %v6374 = vunpack.c.h.b16 %v5690
    %v6375 = vunpack.c.l.b16 %v5691
    %v6376 = vunpack.c.h.b16 %v5691
    %v6377 = vunpack.c.l.b16 %v5692
    %v6378 = vunpack.c.h.b16 %v5692
    %v6379 = vunpack.c.l.b16 %v5693
    %v6380 = vunpack.c.h.b16 %v5693
    %v6381 = vunpack.c.l.b16 %v5694
    %v6382 = vunpack.c.h.b16 %v5694
    %v6383 = vunpack.c.l.b16 %v5695
    %v6384 = vunpack.c.h.b16 %v5695
    %v6385 = vunpack.c.l.b16 %v5696
    %v6386 = vunpack.c.h.b16 %v5696
    %v6387 = vunpack.c.l.b16 %v5697
    %v6388 = vunpack.c.h.b16 %v5697
    %v6389 = vunpack.c.l.b16 %v5698
    %v6390 = vunpack.c.h.b16 %v5698
    %v6391 = vunpack.c.l.b16 %v5699
    %v6392 = vunpack.c.h.b16 %v5699
    %v6393 = vunpack.c.l.b16 %v5700
    %v6394 = vunpack.c.h.b16 %v5700
    %v6395 = vunpack.c.l.b16 %v5701
    %v6396 = vunpack.c.h.b16 %v5701
    %v6397 = vunpack.c.l.b16 %v5702
    %v6398 = vunpack.c.h.b16 %v5702
    %v6399 = vunpack.c.l.b16 %v5703
    %v6400 = vunpack.c.h.b16 %v5703
    %v6401 = vunpack.c.l.b16 %v5704
    %v6402 = vunpack.c.h.b16 %v5704
    %v6403 = vunpack.c.l.b16 %v5705
    %v6404 = vunpack.c.h.b16 %v5705
    %v6405 = vunpack.c.l.b16 %v5706
    %v6406 = vunpack.c.h.b16 %v5706
    %v6407 = vunpack.c.l.b16 %v5707
    %v6408 = vunpack.c.h.b16 %v5707
    %v6409 = vunpack.c.l.b16 %v5708
    %v6410 = vunpack.c.h.b16 %v5708
    %v6411 = vunpack.c.l.b16 %v5709
    %v6412 = vunpack.c.h.b16 %v5709
    %v6413 = vunpack.c.l.b16 %v5710
    %v6414 = vunpack.c.h.b16 %v5710
    %v6415 = vunpack.c.l.b16 %v5711
    %v6416 = vunpack.c.h.b16 %v5711
    %v6417 = vunpack.c.l.b16 %v5712
    %v6418 = vunpack.c.h.b16 %v5712
    %v6419 = vunpack.c.l.b16 %v5713
    %v6420 = vunpack.c.h.b16 %v5713
    %v6421 = vunpack.c.l.b16 %v5714
    %v6422 = vunpack.c.h.b16 %v5714
    %v6423 = vunpack.c.l.b16 %v5715
    %v6424 = vunpack.c.h.b16 %v5715
    %v6425 = vunpack.c.l.b16 %v5716
    %v6426 = vunpack.c.h.b16 %v5716
    %v6427 = vunpack.c.l.b16 %v5717
    %v6428 = vunpack.c.h.b16 %v5717
    %v6429 = vunpack.c.l.b16 %v5718
    %v6430 = vunpack.c.h.b16 %v5718
    %v6431 = vunpack.c.l.b16 %v5719
    %v6432 = vunpack.c.h.b16 %v5719
    %v6433 = vunpack.c.l.b16 %v5720
    %v6434 = vunpack.c.h.b16 %v5720
    %v6435 = vunpack.c.l.b16 %v5721
    %v6436 = vunpack.c.h.b16 %v5721
    %v6437 = vunpack.c.l.b16 %v5722
    %v6438 = vunpack.c.h.b16 %v5722
    %v6439 = vunpack.c.l.b16 %v5723
    %v6440 = vunpack.c.h.b16 %v5723
    %v6441 = vunpack.c.l.b16 %v5724
    %v6442 = vunpack.c.h.b16 %v5724
    %v6443 = vunpack.c.l.b16 %v5725
    %v6444 = vunpack.c.h.b16 %v5725
    %v6445 = vunpack.c.l.b16 %v5726
    %v6446 = vunpack.c.h.b16 %v5726
    %v6447 = vunpack.c.l.b16 %v5727
    %v6448 = vunpack.c.h.b16 %v5727
    %v6449 = vunpack.c.l.b16 %v5728
    %v6450 = vunpack.c.h.b16 %v5728
    %v6451 = vunpack.c.l.b16 %v5729
    %v6452 = vunpack.c.h.b16 %v5729
    %v6453 = vunpack.c.l.b16 %v5730
    %v6454 = vunpack.c.h.b16 %v5730
    %v6455 = vunpack.c.l.b16 %v5731
    %v6456 = vunpack.c.h.b16 %v5731
    %v6457 = vunpack.c.l.b16 %v5732
    %v6458 = vunpack.c.h.b16 %v5732
    %v6459 = vunpack.c.l.b16 %v5733
    %v6460 = vunpack.c.h.b16 %v5733
    %v6461 = vunpack.c.l.b16 %v5734
    %v6462 = vunpack.c.h.b16 %v5734
    %v6463 = vunpack.c.l.b16 %v5735
    %v6464 = vunpack.c.h.b16 %v5735
    %v6465 = vunpack.c.l.b16 %v5736
    %v6466 = vunpack.c.h.b16 %v5736
    %v6467 = vunpack.c.l.b16 %v5737
    %v6468 = vunpack.c.h.b16 %v5737
    %v6469 = vunpack.c.l.b16 %v5738
    %v6470 = vunpack.c.h.b16 %v5738
    %v6471 = vunpack.c.l.b16 %v5739
    %v6472 = vunpack.c.h.b16 %v5739
    %v6473 = vunpack.c.l.b16 %v5740
    %v6474 = vunpack.c.h.b16 %v5740
    %v6475 = vunpack.c.l.b16 %v5741
    %v6476 = vunpack.c.h.b16 %v5741
    %v6477 = vunpack.c.l.b16 %v5742
    %v6478 = vunpack.c.h.b16 %v5742
    %v6479 = vunpack.c.l.b16 %v5743
    %v6480 = vunpack.c.h.b16 %v5743
    %v6481 = vunpack.c.l.b16 %v5744
    %v6482 = vunpack.c.h.b16 %v5744
    %v6483 = vunpack.c.l.b16 %v5745
    %v6484 = vunpack.c.h.b16 %v5745
    %v6485 = vunpack.c.l.b16 %v5746
    %v6486 = vunpack.c.h.b16 %v5746
    %v6487 = vunpack.c.l.b16 %v5747
    %v6488 = vunpack.c.h.b16 %v5747
    %v6489 = vunpack.c.l.b16 %v5748
    %v6490 = vunpack.c.h.b16 %v5748
    %v6491 = vunpack.c.l.b16 %v5749
    %v6492 = vunpack.c.h.b16 %v5749
    %v6493 = vunpack.c.l.b16 %v5750
    %v6494 = vunpack.c.h.b16 %v5750
    %v6495 = vunpack.c.l.b16 %v5751
    %v6496 = vunpack.c.h.b16 %v5751
    %v6497 = vunpack.c.l.b16 %v5752
    %v6498 = vunpack.c.h.b16 %v5752
    %v6499 = vunpack.c.l.b16 %v5753
    %v6500 = vunpack.c.h.b16 %v5753
    %v6501 = vunpack.c.l.b16 %v5754
    %v6502 = vunpack.c.h.b16 %v5754
    %v6503 = vunpack.c.l.b16 %v5755
    %v6504 = vunpack.c.h.b16 %v5755
    %v6505 = vunpack.c.l.b16 %v5756
    %v6506 = vunpack.c.h.b16 %v5756
    %v6507 = vunpack.c.l.b16 %v5757
    %v6508 = vunpack.c.h.b16 %v5757
    %v6509 = vunpack.c.l.b16 %v5758
    %v6510 = vunpack.c.h.b16 %v5758
    %v6511 = vunpack.c.l.b16 %v5759
    %v6512 = vunpack.c.h.b16 %v5759
    %v6513 = vunpack.c.l.b16 %v5760
    %v6514 = vunpack.c.h.b16 %v5760
    %v6515 = vunpack.c.l.b16 %v5761
    %v6516 = vunpack.c.h.b16 %v5761
    %v6517 = vunpack.c.l.b16 %v5762
    %v6518 = vunpack.c.h.b16 %v5762
    %v6519 = vunpack.c.l.b16 %v5763
    %v6520 = vunpack.c.h.b16 %v5763
    %v6521 = vunpack.c.l.b16 %v5764
    %v6522 = vunpack.c.h.b16 %v5764
    %v6523 = vunpack.c.l.b16 %v5765
    %v6524 = vunpack.c.h.b16 %v5765
    %v6525 = vunpack.c.l.b16 %v5766
    %v6526 = vunpack.c.h.b16 %v5766
    %v6527 = vunpack.c.l.b16 %v5767
    %v6528 = vunpack.c.h.b16 %v5767
    %v6529 = vunpack.c.l.b16 %v5768
    %v6530 = vunpack.c.h.b16 %v5768
    %v6531 = vunpack.c.l.b16 %v5769
    %v6532 = vunpack.c.h.b16 %v5769
    %v6533 = vunpack.c.l.b16 %v5770
    %v6534 = vunpack.c.h.b16 %v5770
    %v6535 = vunpack.c.l.b16 %v5771
    %v6536 = vunpack.c.h.b16 %v5771
    %v6537 = vunpack.c.l.b16 %v5772
    %v6538 = vunpack.c.h.b16 %v5772
    %v6539 = vunpack.c.l.b16 %v5773
    %v6540 = vunpack.c.h.b16 %v5773
    %v6541 = vunpack.c.l.b16 %v5774
    %v6542 = vunpack.c.h.b16 %v5774
    %v6543 = vunpack.c.l.b16 %v5775
    %v6544 = vunpack.c.h.b16 %v5775
    %v6545 = vunpack.c.l.b16 %v5776
    %v6546 = vunpack.c.h.b16 %v5776
    %v6547 = vunpack.c.l.b16 %v5777
    %v6548 = vunpack.c.h.b16 %v5777
    %v6549 = vunpack.c.l.b16 %v5778
    %v6550 = vunpack.c.h.b16 %v5778
    %v6551 = vunpack.c.l.b16 %v5779
    %v6552 = vunpack.c.h.b16 %v5779
    %v6553 = vunpack.c.l.b16 %v5780
    %v6554 = vunpack.c.h.b16 %v5780
    %v6555 = vunpack.c.l.b16 %v5781
    %v6556 = vunpack.c.h.b16 %v5781
    %v6557 = vunpack.c.l.b16 %v5782
    %v6558 = vunpack.c.h.b16 %v5782
    %v6559 = vunpack.c.l.b16 %v5783
    %v6560 = vunpack.c.h.b16 %v5783
    %v6561 = vunpack.c.l.b16 %v5784
    %v6562 = vunpack.c.h.b16 %v5784
    %v6563 = vunpack.c.l.b16 %v5785
    %v6564 = vunpack.c.h.b16 %v5785
    %v6565 = vunpack.c.l.b16 %v5786
    %v6566 = vunpack.c.h.b16 %v5786
    %v6567 = vunpack.c.l.b16 %v5787
    %v6568 = vunpack.c.h.b16 %v5787
    %v6569 = vunpack.c.l.b16 %v5788
    %v6570 = vunpack.c.h.b16 %v5788
    %v6571 = vunpack.c.l.b16 %v5789
    %v6572 = vunpack.c.h.b16 %v5789
    %v6573 = vunpack.c.l.b16 %v5790
    %v6574 = vunpack.c.h.b16 %v5790
    %v6575 = vunpack.c.l.b16 %v5791
    %v6576 = vunpack.c.h.b16 %v5791
    %v6577 = vunpack.c.l.b16 %v5792
    %v6578 = vunpack.c.h.b16 %v5792
    %v6579 = vunpack.c.l.b16 %v5793
    %v6580 = vunpack.c.h.b16 %v5793
    %v6581 = vunpack.c.l.b16 %v5794
    %v6582 = vunpack.c.h.b16 %v5794
    %v6583 = vunpack.c.l.b16 %v5795
    %v6584 = vunpack.c.h.b16 %v5795
    %v6585 = vunpack.c.l.b16 %v5796
    %v6586 = vunpack.c.h.b16 %v5796
    %v6587 = vpack.c.b16 %v6079, %v6075
    %v6588 = vpack.c.b16 %v6080, %v6076
    %v6589 = vpack.c.b16 %v6081, %v6077
    %v6590 = vpack.c.b16 %v6082, %v6078
    %v6591 = vpack.c.b16 %v6087, %v6083
    %v6592 = vpack.c.b16 %v6088, %v6084
    %v6593 = vpack.c.b16 %v6089, %v6085
    %v6594 = vpack.c.b16 %v6090, %v6086
    %v6595 = vpack.c.b16 %v6095, %v6091
    %v6596 = vpack.c.b16 %v6096, %v6092
    %v6597 = vpack.c.b16 %v6097, %v6093
    %v6598 = vpack.c.b16 %v6098, %v6094
    %v6599 = vpack.c.b16 %v6103, %v6099
    %v6600 = vpack.c.b16 %v6104, %v6100
    %v6601 = vpack.c.b16 %v6105, %v6101
    %v6602 = vpack.c.b16 %v6106, %v6102
    %v6603 = vpack.c.b16 %v6111, %v6107
    %v6604 = vpack.c.b16 %v6112, %v6108
    %v6605 = vpack.c.b16 %v6113, %v6109
    %v6606 = vpack.c.b16 %v6114, %v6110
    %v6607 = vpack.c.b16 %v6119, %v6115
    %v6608 = vpack.c.b16 %v6120, %v6116
    %v6609 = vpack.c.b16 %v6121, %v6117
    %v6610 = vpack.c.b16 %v6122, %v6118
    %v6611 = vpack.c.b16 %v6127, %v6123
    %v6612 = vpack.c.b16 %v6128, %v6124
    %v6613 = vpack.c.b16 %v6129, %v6125
    %v6614 = vpack.c.b16 %v6130, %v6126
    %v6615 = vpack.c.b16 %v6135, %v6131
    %v6616 = vpack.c.b16 %v6136, %v6132
    %v6617 = vpack.c.b16 %v6137, %v6133
    %v6618 = vpack.c.b16 %v6138, %v6134
    %v6619 = vpack.c.b16 %v6143, %v6139
    %v6620 = vpack.c.b16 %v6144, %v6140
    %v6621 = vpack.c.b16 %v6145, %v6141
    %v6622 = vpack.c.b16 %v6146, %v6142
    %v6623 = vpack.c.b16 %v6151, %v6147
    %v6624 = vpack.c.b16 %v6152, %v6148
    %v6625 = vpack.c.b16 %v6153, %v6149
    %v6626 = vpack.c.b16 %v6154, %v6150
    %v6627 = vpack.c.b16 %v6159, %v6155
    %v6628 = vpack.c.b16 %v6160, %v6156
    %v6629 = vpack.c.b16 %v6161, %v6157
    %v6630 = vpack.c.b16 %v6162, %v6158
    %v6631 = vpack.c.b16 %v6167, %v6163
    %v6632 = vpack.c.b16 %v6168, %v6164
    %v6633 = vpack.c.b16 %v6169, %v6165
    %v6634 = vpack.c.b16 %v6170, %v6166
    %v6635 = vpack.c.b16 %v6175, %v6171
    %v6636 = vpack.c.b16 %v6176, %v6172
    %v6637 = vpack.c.b16 %v6177, %v6173
    %v6638 = vpack.c.b16 %v6178, %v6174
    %v6639 = vpack.c.b16 %v6183, %v6179
    %v6640 = vpack.c.b16 %v6184, %v6180
    %v6641 = vpack.c.b16 %v6185, %v6181
    %v6642 = vpack.c.b16 %v6186, %v6182
    %v6643 = vpack.c.b16 %v6191, %v6187
    %v6644 = vpack.c.b16 %v6192, %v6188
    %v6645 = vpack.c.b16 %v6193, %v6189
    %v6646 = vpack.c.b16 %v6194, %v6190
    %v6647 = vpack.c.b16 %v6199, %v6195
    %v6648 = vpack.c.b16 %v6200, %v6196
    %v6649 = vpack.c.b16 %v6201, %v6197
    %v6650 = vpack.c.b16 %v6202, %v6198
    %v6651 = vpack.c.b16 %v6207, %v6203
    %v6652 = vpack.c.b16 %v6208, %v6204
    %v6653 = vpack.c.b16 %v6209, %v6205
    %v6654 = vpack.c.b16 %v6210, %v6206
    %v6655 = vpack.c.b16 %v6215, %v6211
    %v6656 = vpack.c.b16 %v6216, %v6212
    %v6657 = vpack.c.b16 %v6217, %v6213
    %v6658 = vpack.c.b16 %v6218, %v6214
    %v6659 = vpack.c.b16 %v6223, %v6219
    %v6660 = vpack.c.b16 %v6224, %v6220
    %v6661 = vpack.c.b16 %v6225, %v6221
    %v6662 = vpack.c.b16 %v6226, %v6222
    %v6663 = vpack.c.b16 %v6231, %v6227
    %v6664 = vpack.c.b16 %v6232, %v6228
    %v6665 = vpack.c.b16 %v6233, %v6229
    %v6666 = vpack.c.b16 %v6234, %v6230
    %v6667 = vpack.c.b16 %v6239, %v6235
    %v6668 = vpack.c.b16 %v6240, %v6236
    %v6669 = vpack.c.b16 %v6241, %v6237
    %v6670 = vpack.c.b16 %v6242, %v6238
    %v6671 = vpack.c.b16 %v6247, %v6243
    %v6672 = vpack.c.b16 %v6248, %v6244
    %v6673 = vpack.c.b16 %v6249, %v6245
    %v6674 = vpack.c.b16 %v6250, %v6246
    %v6675 = vpack.c.b16 %v6255, %v6251
    %v6676 = vpack.c.b16 %v6256, %v6252
    %v6677 = vpack.c.b16 %v6257, %v6253
    %v6678 = vpack.c.b16 %v6258, %v6254
    %v6679 = vpack.c.b16 %v6263, %v6259
    %v6680 = vpack.c.b16 %v6264, %v6260
    %v6681 = vpack.c.b16 %v6265, %v6261
    %v6682 = vpack.c.b16 %v6266, %v6262
    %v6683 = vpack.c.b16 %v6271, %v6267
    %v6684 = vpack.c.b16 %v6272, %v6268
    %v6685 = vpack.c.b16 %v6273, %v6269
    %v6686 = vpack.c.b16 %v6274, %v6270
    %v6687 = vpack.c.b16 %v6279, %v6275
    %v6688 = vpack.c.b16 %v6280, %v6276
    %v6689 = vpack.c.b16 %v6281, %v6277
    %v6690 = vpack.c.b16 %v6282, %v6278
    %v6691 = vpack.c.b16 %v6287, %v6283
    %v6692 = vpack.c.b16 %v6288, %v6284
    %v6693 = vpack.c.b16 %v6289, %v6285
    %v6694 = vpack.c.b16 %v6290, %v6286
    %v6695 = vpack.c.b16 %v6295, %v6291
    %v6696 = vpack.c.b16 %v6296, %v6292
    %v6697 = vpack.c.b16 %v6297, %v6293
    %v6698 = vpack.c.b16 %v6298, %v6294
    %v6699 = vpack.c.b16 %v6303, %v6299
    %v6700 = vpack.c.b16 %v6304, %v6300
    %v6701 = vpack.c.b16 %v6305, %v6301
    %v6702 = vpack.c.b16 %v6306, %v6302
    %v6703 = vpack.c.b16 %v6311, %v6307
    %v6704 = vpack.c.b16 %v6312, %v6308
    %v6705 = vpack.c.b16 %v6313, %v6309
    %v6706 = vpack.c.b16 %v6314, %v6310
    %v6707 = vpack.c.b16 %v6319, %v6315
    %v6708 = vpack.c.b16 %v6320, %v6316
    %v6709 = vpack.c.b16 %v6321, %v6317
    %v6710 = vpack.c.b16 %v6322, %v6318
    %v6711 = vpack.c.b16 %v6327, %v6323
    %v6712 = vpack.c.b16 %v6328, %v6324
    %v6713 = vpack.c.b16 %v6329, %v6325
    %v6714 = vpack.c.b16 %v6330, %v6326
    %v6715 = vpack.c.b16 %v6335, %v6331
    %v6716 = vpack.c.b16 %v6336, %v6332
    %v6717 = vpack.c.b16 %v6337, %v6333
    %v6718 = vpack.c.b16 %v6338, %v6334
    %v6719 = vpack.c.b16 %v6343, %v6339
    %v6720 = vpack.c.b16 %v6344, %v6340
    %v6721 = vpack.c.b16 %v6345, %v6341
    %v6722 = vpack.c.b16 %v6346, %v6342
    %v6723 = vpack.c.b16 %v6351, %v6347
    %v6724 = vpack.c.b16 %v6352, %v6348
    %v6725 = vpack.c.b16 %v6353, %v6349
    %v6726 = vpack.c.b16 %v6354, %v6350
    %v6727 = vpack.c.b16 %v6359, %v6355
    %v6728 = vpack.c.b16 %v6360, %v6356
    %v6729 = vpack.c.b16 %v6361, %v6357
    %v6730 = vpack.c.b16 %v6362, %v6358
    %v6731 = vpack.c.b16 %v6367, %v6363
    %v6732 = vpack.c.b16 %v6368, %v6364
    %v6733 = vpack.c.b16 %v6369, %v6365
    %v6734 = vpack.c.b16 %v6370, %v6366
    %v6735 = vpack.c.b16 %v6375, %v6371
    %v6736 = vpack.c.b16 %v6376, %v6372
    %v6737 = vpack.c.b16 %v6377, %v6373
    %v6738 = vpack.c.b16 %v6378, %v6374
    %v6739 = vpack.c.b16 %v6383, %v6379
    %v6740 = vpack.c.b16 %v6384, %v6380
    %v6741 = vpack.c.b16 %v6385, %v6381
    %v6742 = vpack.c.b16 %v6386, %v6382
    %v6743 = vpack.c.b16 %v6391, %v6387
    %v6744 = vpack.c.b16 %v6392, %v6388
    %v6745 = vpack.c.b16 %v6393, %v6389
    %v6746 = vpack.c.b16 %v6394, %v6390
    %v6747 = vpack.c.b16 %v6399, %v6395
    %v6748 = vpack.c.b16 %v6400, %v6396
    %v6749 = vpack.c.b16 %v6401, %v6397
    %v6750 = vpack.c.b16 %v6402, %v6398
    %v6751 = vpack.c.b16 %v6407, %v6403
    %v6752 = vpack.c.b16 %v6408, %v6404
    %v6753 = vpack.c.b16 %v6409, %v6405
    %v6754 = vpack.c.b16 %v6410, %v6406
    %v6755 = vpack.c.b16 %v6415, %v6411
    %v6756 = vpack.c.b16 %v6416, %v6412
    %v6757 = vpack.c.b16 %v6417, %v6413
    %v6758 = vpack.c.b16 %v6418, %v6414
    %v6759 = vpack.c.b16 %v6423, %v6419
    %v6760 = vpack.c.b16 %v6424, %v6420
    %v6761 = vpack.c.b16 %v6425, %v6421
    %v6762 = vpack.c.b16 %v6426, %v6422
    %v6763 = vpack.c.b16 %v6431, %v6427
    %v6764 = vpack.c.b16 %v6432, %v6428
    %v6765 = vpack.c.b16 %v6433, %v6429
    %v6766 = vpack.c.b16 %v6434, %v6430
    %v6767 = vpack.c.b16 %v6439, %v6435
    %v6768 = vpack.c.b16 %v6440, %v6436
    %v6769 = vpack.c.b16 %v6441, %v6437
    %v6770 = vpack.c.b16 %v6442, %v6438
    %v6771 = vpack.c.b16 %v6447, %v6443
    %v6772 = vpack.c.b16 %v6448, %v6444
    %v6773 = vpack.c.b16 %v6449, %v6445
    %v6774 = vpack.c.b16 %v6450, %v6446
    %v6775 = vpack.c.b16 %v6455, %v6451
    %v6776 = vpack.c.b16 %v6456, %v6452
    %v6777 = vpack.c.b16 %v6457, %v6453
    %v6778 = vpack.c.b16 %v6458, %v6454
    %v6779 = vpack.c.b16 %v6463, %v6459
    %v6780 = vpack.c.b16 %v6464, %v6460
    %v6781 = vpack.c.b16 %v6465, %v6461
    %v6782 = vpack.c.b16 %v6466, %v6462
    %v6783 = vpack.c.b16 %v6471, %v6467
    %v6784 = vpack.c.b16 %v6472, %v6468
    %v6785 = vpack.c.b16 %v6473, %v6469
    %v6786 = vpack.c.b16 %v6474, %v6470
    %v6787 = vpack.c.b16 %v6479, %v6475
    %v6788 = vpack.c.b16 %v6480, %v6476
    %v6789 = vpack.c.b16 %v6481, %v6477
    %v6790 = vpack.c.b16 %v6482, %v6478
    %v6791 = vpack.c.b16 %v6487, %v6483
    %v6792 = vpack.c.b16 %v6488, %v6484
    %v6793 = vpack.c.b16 %v6489, %v6485
    %v6794 = vpack.c.b16 %v6490, %v6486
    %v6795 = vpack.c.b16 %v6495, %v6491
    %v6796 = vpack.c.b16 %v6496, %v6492
    %v6797 = vpack.c.b16 %v6497, %v6493
    %v6798 = vpack.c.b16 %v6498, %v6494
    %v6799 = vpack.c.b16 %v6503, %v6499
    %v6800 = vpack.c.b16 %v6504, %v6500
    %v6801 = vpack.c.b16 %v6505, %v6501
    %v6802 = vpack.c.b16 %v6506, %v6502
    %v6803 = vpack.c.b16 %v6511, %v6507
    %v6804 = vpack.c.b16 %v6512, %v6508
    %v6805 = vpack.c.b16 %v6513, %v6509
    %v6806 = vpack.c.b16 %v6514, %v6510
    %v6807 = vpack.c.b16 %v6519, %v6515
    %v6808 = vpack.c.b16 %v6520, %v6516
    %v6809 = vpack.c.b16 %v6521, %v6517
    %v6810 = vpack.c.b16 %v6522, %v6518
    %v6811 = vpack.c.b16 %v6527, %v6523
    %v6812 = vpack.c.b16 %v6528, %v6524
    %v6813 = vpack.c.b16 %v6529, %v6525
    %v6814 = vpack.c.b16 %v6530, %v6526
    %v6815 = vpack.c.b16 %v6535, %v6531
    %v6816 = vpack.c.b16 %v6536, %v6532
    %v6817 = vpack.c.b16 %v6537, %v6533
    %v6818 = vpack.c.b16 %v6538, %v6534
    %v6819 = vpack.c.b16 %v6543, %v6539
    %v6820 = vpack.c.b16 %v6544, %v6540
    %v6821 = vpack.c.b16 %v6545, %v6541
    %v6822 = vpack.c.b16 %v6546, %v6542
    %v6823 = vpack.c.b16 %v6551, %v6547
    %v6824 = vpack.c.b16 %v6552, %v6548
    %v6825 = vpack.c.b16 %v6553, %v6549
    %v6826 = vpack.c.b16 %v6554, %v6550
    %v6827 = vpack.c.b16 %v6559, %v6555
    %v6828 = vpack.c.b16 %v6560, %v6556
    %v6829 = vpack.c.b16 %v6561, %v6557
    %v6830 = vpack.c.b16 %v6562, %v6558
    %v6831 = vpack.c.b16 %v6567, %v6563
    %v6832 = vpack.c.b16 %v6568, %v6564
    %v6833 = vpack.c.b16 %v6569, %v6565
    %v6834 = vpack.c.b16 %v6570, %v6566
    %v6835 = vpack.c.b16 %v6575, %v6571
    %v6836 = vpack.c.b16 %v6576, %v6572
    %v6837 = vpack.c.b16 %v6577, %v6573
    %v6838 = vpack.c.b16 %v6578, %v6574
    %v6839 = vpack.c.b16 %v6583, %v6579
    %v6840 = vpack.c.b16 %v6584, %v6580
    %v6841 = vpack.c.b16 %v6585, %v6581
    %v6842 = vpack.c.b16 %v6586, %v6582
    %7099 = vmatprep.subr.bf16.mxu0 %v6616
    %7100 = vmatpush1.bf16.msra.mxu0 %v6615
    %7101 = vmatprep.subr.bf16.mxu0 %v6612
    %7102 = vmatpush1.bf16.msra.mxu0 %v6611
    %7103 = vmatprep.subr.bf16.mxu0 %v6608
    %7104 = vmatpush1.bf16.msra.mxu0 %v6607
    %7105 = vmatprep.subr.bf16.mxu0 %v6604
    %7106 = vmatpush1.bf16.msra.mxu0 %v6603
    %7107 = vmatprep.subr.bf16.mxu0 %v6600
    %7108 = vmatpush1.bf16.msra.mxu0 %v6599
    %7109 = vmatprep.subr.bf16.mxu0 %v6596
    %7110 = vmatpush1.bf16.msra.mxu0 %v6595
    %7111 = vmatprep.subr.bf16.mxu0 %v6592
    %7112 = vmatpush1.bf16.msra.mxu0 %v6591
    %7113 = vmatprep.subr.bf16.mxu0 %v6588
    %7114 = vmatpush1.bf16.msra.mxu0 %v6587
    %7115 = vmatprep.subr.bf16.mxu0 %v6648
    %7116 = vmatpush2.bf16.msra.mxu0 %v6647
    %7117 = vmatprep.subr.bf16.mxu0 %v6644
    %7118 = vmatpush2.bf16.msra.mxu0 %v6643
    %7119 = vmatprep.subr.bf16.mxu0 %v6640
    %7120 = vmatpush2.bf16.msra.mxu0 %v6639
    %7121 = vmatprep.subr.bf16.mxu0 %v6636
    %7122 = vmatpush2.bf16.msra.mxu0 %v6635
    %7123 = vmatprep.subr.bf16.mxu0 %v6632
    %7124 = vmatpush2.bf16.msra.mxu0 %v6631
    %7125 = vmatprep.subr.bf16.mxu0 %v6628
    %7126 = vmatpush2.bf16.msra.mxu0 %v6627
    %7127 = vmatprep.subr.bf16.mxu0 %v6624
    %7128 = vmatpush2.bf16.msra.mxu0 %v6623
    %7129 = vmatprep.subr.bf16.mxu0 %v6620
    %7130 = vmatpush2.bf16.msra.mxu0 %v6619
    %7131 = vmatprep.mubr.bf16.mxu0 %v5534
    %7132 = vmatmul.mubr.bf16.gmra.mxu0 %v5533
    %v7133 = vpop.f32.mrf.mxu0
    %v7134 = vadd.f32 %v5802, %v7133
    %v7135 = vpop.f32.mrf.mxu0
    %v7136 = vadd.f32 %v5806, %v7135
    %v7137 = vpop.f32.mrf.mxu0
    %v7138 = vadd.f32 %v5802, %v7137
    %v7139 = vpop.f32.mrf.mxu0
    %v7140 = vadd.f32 %v5806, %v7139
    %7141 = vdwg.mxu0
    %7142 = vmatprep.subr.bf16.mxu0 %v6680
    %7143 = vmatpush1.bf16.msra.mxu0 %v6679
    %7144 = vmatprep.subr.bf16.mxu0 %v6676
    %7145 = vmatpush1.bf16.msra.mxu0 %v6675
    %7146 = vmatprep.subr.bf16.mxu0 %v6672
    %7147 = vmatpush1.bf16.msra.mxu0 %v6671
    %7148 = vmatprep.subr.bf16.mxu0 %v6668
    %7149 = vmatpush1.bf16.msra.mxu0 %v6667
    %7150 = vmatprep.subr.bf16.mxu0 %v6664
    %7151 = vmatpush1.bf16.msra.mxu0 %v6663
    %7152 = vmatprep.subr.bf16.mxu0 %v6660
    %7153 = vmatpush1.bf16.msra.mxu0 %v6659
    %7154 = vmatprep.subr.bf16.mxu0 %v6656
    %7155 = vmatpush1.bf16.msra.mxu0 %v6655
    %7156 = vmatprep.subr.bf16.mxu0 %v6652
    %7157 = vmatpush1.bf16.msra.mxu0 %v6651
    %7158 = vmatprep.subr.bf16.mxu0 %v6712
    %7159 = vmatpush2.bf16.msra.mxu0 %v6711
    %7160 = vmatprep.subr.bf16.mxu0 %v6708
    %7161 = vmatpush2.bf16.msra.mxu0 %v6707
    %7162 = vmatprep.subr.bf16.mxu0 %v6704
    %7163 = vmatpush2.bf16.msra.mxu0 %v6703
    %7164 = vmatprep.subr.bf16.mxu0 %v6700
    %7165 = vmatpush2.bf16.msra.mxu0 %v6699
    %7166 = vmatprep.subr.bf16.mxu0 %v6696
    %7167 = vmatpush2.bf16.msra.mxu0 %v6695
    %7168 = vmatprep.subr.bf16.mxu0 %v6692
    %7169 = vmatpush2.bf16.msra.mxu0 %v6691
    %7170 = vmatprep.subr.bf16.mxu0 %v6688
    %7171 = vmatpush2.bf16.msra.mxu0 %v6687
    %7172 = vmatprep.subr.bf16.mxu0 %v6684
    %7173 = vmatpush2.bf16.msra.mxu0 %v6683
    %7174 = vmatprep.mubr.bf16.mxu0 %v5536
    %7175 = vmatmul.mubr.bf16.gmra.mxu0 %v5535
    %v7176 = vpop.f32.mrf.mxu0
    %v7177 = vadd.f32 %v7134, %v7176
    %v7178 = vpop.f32.mrf.mxu0
    %v7179 = vadd.f32 %v7136, %v7178
    %v7180 = vpop.f32.mrf.mxu0
    %v7181 = vadd.f32 %v7138, %v7180
    %v7182 = vpop.f32.mrf.mxu0
    %v7183 = vadd.f32 %v7140, %v7182
    %7184 = vdwg.mxu0
    %7185 = vmatprep.subr.bf16.mxu0 %v6744
    %7186 = vmatpush1.bf16.msra.mxu0 %v6743
    %7187 = vmatprep.subr.bf16.mxu0 %v6740
    %7188 = vmatpush1.bf16.msra.mxu0 %v6739
    %7189 = vmatprep.subr.bf16.mxu0 %v6736
    %7190 = vmatpush1.bf16.msra.mxu0 %v6735
    %7191 = vmatprep.subr.bf16.mxu0 %v6732
    %7192 = vmatpush1.bf16.msra.mxu0 %v6731
    %7193 = vmatprep.subr.bf16.mxu0 %v6728
    %7194 = vmatpush1.bf16.msra.mxu0 %v6727
    %7195 = vmatprep.subr.bf16.mxu0 %v6724
    %7196 = vmatpush1.bf16.msra.mxu0 %v6723
    %7197 = vmatprep.subr.bf16.mxu0 %v6720
    %7198 = vmatpush1.bf16.msra.mxu0 %v6719
    %7199 = vmatprep.subr.bf16.mxu0 %v6716
    %7200 = vmatpush1.bf16.msra.mxu0 %v6715
    %7201 = vmatprep.subr.bf16.mxu0 %v6776
    %7202 = vmatpush2.bf16.msra.mxu0 %v6775
    %7203 = vmatprep.subr.bf16.mxu0 %v6772
    %7204 = vmatpush2.bf16.msra.mxu0 %v6771
    %7205 = vmatprep.subr.bf16.mxu0 %v6768
    %7206 = vmatpush2.bf16.msra.mxu0 %v6767
    %7207 = vmatprep.subr.bf16.mxu0 %v6764
    %7208 = vmatpush2.bf16.msra.mxu0 %v6763
    %7209 = vmatprep.subr.bf16.mxu0 %v6760
    %7210 = vmatpush2.bf16.msra.mxu0 %v6759
    %7211 = vmatprep.subr.bf16.mxu0 %v6756
    %7212 = vmatpush2.bf16.msra.mxu0 %v6755
    %7213 = vmatprep.subr.bf16.mxu0 %v6752
    %7214 = vmatpush2.bf16.msra.mxu0 %v6751
    %7215 = vmatprep.subr.bf16.mxu0 %v6748
    %7216 = vmatpush2.bf16.msra.mxu0 %v6747
    %7217 = vmatprep.mubr.bf16.mxu0 %v5538
    %7218 = vmatmul.mubr.bf16.gmra.mxu0 %v5537
    %v7219 = vpop.f32.mrf.mxu0
    %v7220 = vadd.f32 %v7177, %v7219
    %v7221 = vpop.f32.mrf.mxu0
    %v7222 = vadd.f32 %v7179, %v7221
    %v7223 = vpop.f32.mrf.mxu0
    %v7224 = vadd.f32 %v7181, %v7223
    %v7225 = vpop.f32.mrf.mxu0
    %v7226 = vadd.f32 %v7183, %v7225
    %7227 = vdwg.mxu0
    %7228 = vmatprep.subr.bf16.mxu0 %v6808
    %7229 = vmatpush1.bf16.msra.mxu0 %v6807
    %7230 = vmatprep.subr.bf16.mxu0 %v6804
    %7231 = vmatpush1.bf16.msra.mxu0 %v6803
    %7232 = vmatprep.subr.bf16.mxu0 %v6800
    %7233 = vmatpush1.bf16.msra.mxu0 %v6799
    %7234 = vmatprep.subr.bf16.mxu0 %v6796
    %7235 = vmatpush1.bf16.msra.mxu0 %v6795
    %7236 = vmatprep.subr.bf16.mxu0 %v6792
    %7237 = vmatpush1.bf16.msra.mxu0 %v6791
    %7238 = vmatprep.subr.bf16.mxu0 %v6788
    %7239 = vmatpush1.bf16.msra.mxu0 %v6787
    %7240 = vmatprep.subr.bf16.mxu0 %v6784
    %7241 = vmatpush1.bf16.msra.mxu0 %v6783
    %7242 = vmatprep.subr.bf16.mxu0 %v6780
    %7243 = vmatpush1.bf16.msra.mxu0 %v6779
    %7244 = vmatprep.subr.bf16.mxu0 %v6840
    %7245 = vmatpush2.bf16.msra.mxu0 %v6839
    %7246 = vmatprep.subr.bf16.mxu0 %v6836
    %7247 = vmatpush2.bf16.msra.mxu0 %v6835
    %7248 = vmatprep.subr.bf16.mxu0 %v6832
    %7249 = vmatpush2.bf16.msra.mxu0 %v6831
    %7250 = vmatprep.subr.bf16.mxu0 %v6828
    %7251 = vmatpush2.bf16.msra.mxu0 %v6827
    %7252 = vmatprep.subr.bf16.mxu0 %v6824
    %7253 = vmatpush2.bf16.msra.mxu0 %v6823
    %7254 = vmatprep.subr.bf16.mxu0 %v6820
    %7255 = vmatpush2.bf16.msra.mxu0 %v6819
    %7256 = vmatprep.subr.bf16.mxu0 %v6816
    %7257 = vmatpush2.bf16.msra.mxu0 %v6815
    %7258 = vmatprep.subr.bf16.mxu0 %v6812
    %7259 = vmatpush2.bf16.msra.mxu0 %v6811
    %7260 = vmatprep.mubr.bf16.mxu0 %v5540
    %7261 = vmatmul.mubr.bf16.gmra.mxu0 %v5539
    %v7262 = vpop.f32.mrf.mxu0
    %v7263 = vadd.f32 %v7220, %v7262
    %v7264 = vpop.f32.mrf.mxu0
    %v7265 = vadd.f32 %v7222, %v7264
    %v7266 = vpop.f32.mrf.mxu0
    %v7267 = vadd.f32 %v7224, %v7266
    %v7268 = vpop.f32.mrf.mxu0
    %v7269 = vadd.f32 %v7226, %v7268
    %7270 = vdwg.mxu0
    %7271 = vmatprep.subr.bf16.mxu0 %v6618
    %7272 = vmatpush1.bf16.msra.mxu0 %v6617
    %7273 = vmatprep.subr.bf16.mxu0 %v6614
    %7274 = vmatpush1.bf16.msra.mxu0 %v6613
    %7275 = vmatprep.subr.bf16.mxu0 %v6610
    %7276 = vmatpush1.bf16.msra.mxu0 %v6609
    %7277 = vmatprep.subr.bf16.mxu0 %v6606
    %7278 = vmatpush1.bf16.msra.mxu0 %v6605
    %7279 = vmatprep.subr.bf16.mxu0 %v6602
    %7280 = vmatpush1.bf16.msra.mxu0 %v6601
    %7281 = vmatprep.subr.bf16.mxu0 %v6598
    %7282 = vmatpush1.bf16.msra.mxu0 %v6597
    %7283 = vmatprep.subr.bf16.mxu0 %v6594
    %7284 = vmatpush1.bf16.msra.mxu0 %v6593
    %7285 = vmatprep.subr.bf16.mxu0 %v6590
    %7286 = vmatpush1.bf16.msra.mxu0 %v6589
    %7287 = vmatprep.subr.bf16.mxu0 %v6650
    %7288 = vmatpush2.bf16.msra.mxu0 %v6649
    %7289 = vmatprep.subr.bf16.mxu0 %v6646
    %7290 = vmatpush2.bf16.msra.mxu0 %v6645
    %7291 = vmatprep.subr.bf16.mxu0 %v6642
    %7292 = vmatpush2.bf16.msra.mxu0 %v6641
    %7293 = vmatprep.subr.bf16.mxu0 %v6638
    %7294 = vmatpush2.bf16.msra.mxu0 %v6637
    %7295 = vmatprep.subr.bf16.mxu0 %v6634
    %7296 = vmatpush2.bf16.msra.mxu0 %v6633
    %7297 = vmatprep.subr.bf16.mxu0 %v6630
    %7298 = vmatpush2.bf16.msra.mxu0 %v6629
    %7299 = vmatprep.subr.bf16.mxu0 %v6626
    %7300 = vmatpush2.bf16.msra.mxu0 %v6625
    %7301 = vmatprep.subr.bf16.mxu0 %v6622
    %7302 = vmatpush2.bf16.msra.mxu0 %v6621
    %7303 = vmatprep.mubr.bf16.mxu0 %v5534
    %7304 = vmatmul.mubr.bf16.gmra.mxu0 %v5533
    %v7305 = vpop.f32.mrf.mxu0
    %v7306 = vadd.f32 %v5810, %v7305
    %v7307 = vpop.f32.mrf.mxu0
    %v7308 = vadd.f32 %v5814, %v7307
    %v7309 = vpop.f32.mrf.mxu0
    %v7310 = vadd.f32 %v5810, %v7309
    %v7311 = vpop.f32.mrf.mxu0
    %v7312 = vadd.f32 %v5814, %v7311
    %7313 = vdwg.mxu0
    %7314 = vmatprep.subr.bf16.mxu0 %v6682
    %7315 = vmatpush1.bf16.msra.mxu0 %v6681
    %7316 = vmatprep.subr.bf16.mxu0 %v6678
    %7317 = vmatpush1.bf16.msra.mxu0 %v6677
    %7318 = vmatprep.subr.bf16.mxu0 %v6674
    %7319 = vmatpush1.bf16.msra.mxu0 %v6673
    %7320 = vmatprep.subr.bf16.mxu0 %v6670
    %7321 = vmatpush1.bf16.msra.mxu0 %v6669
    %7322 = vmatprep.subr.bf16.mxu0 %v6666
    %7323 = vmatpush1.bf16.msra.mxu0 %v6665
    %7324 = vmatprep.subr.bf16.mxu0 %v6662
    %7325 = vmatpush1.bf16.msra.mxu0 %v6661
    %7326 = vmatprep.subr.bf16.mxu0 %v6658
    %7327 = vmatpush1.bf16.msra.mxu0 %v6657
    %7328 = vmatprep.subr.bf16.mxu0 %v6654
    %7329 = vmatpush1.bf16.msra.mxu0 %v6653
    %7330 = vmatprep.subr.bf16.mxu0 %v6714
    %7331 = vmatpush2.bf16.msra.mxu0 %v6713
    %7332 = vmatprep.subr.bf16.mxu0 %v6710
    %7333 = vmatpush2.bf16.msra.mxu0 %v6709
    %7334 = vmatprep.subr.bf16.mxu0 %v6706
    %7335 = vmatpush2.bf16.msra.mxu0 %v6705
    %7336 = vmatprep.subr.bf16.mxu0 %v6702
    %7337 = vmatpush2.bf16.msra.mxu0 %v6701
    %7338 = vmatprep.subr.bf16.mxu0 %v6698
    %7339 = vmatpush2.bf16.msra.mxu0 %v6697
    %7340 = vmatprep.subr.bf16.mxu0 %v6694
    %7341 = vmatpush2.bf16.msra.mxu0 %v6693
    %7342 = vmatprep.subr.bf16.mxu0 %v6690
    %7343 = vmatpush2.bf16.msra.mxu0 %v6689
    %7344 = vmatprep.subr.bf16.mxu0 %v6686
    %7345 = vmatpush2.bf16.msra.mxu0 %v6685
    %7346 = vmatprep.mubr.bf16.mxu0 %v5536
    %7347 = vmatmul.mubr.bf16.gmra.mxu0 %v5535
    %v7348 = vpop.f32.mrf.mxu0
    %v7349 = vadd.f32 %v7306, %v7348
    %v7350 = vpop.f32.mrf.mxu0
    %v7351 = vadd.f32 %v7308, %v7350
    %v7352 = vpop.f32.mrf.mxu0
    %v7353 = vadd.f32 %v7310, %v7352
    %v7354 = vpop.f32.mrf.mxu0
    %v7355 = vadd.f32 %v7312, %v7354
    %7356 = vdwg.mxu0
    %7357 = vmatprep.subr.bf16.mxu0 %v6746
    %7358 = vmatpush1.bf16.msra.mxu0 %v6745
    %7359 = vmatprep.subr.bf16.mxu0 %v6742
    %7360 = vmatpush1.bf16.msra.mxu0 %v6741
    %7361 = vmatprep.subr.bf16.mxu0 %v6738
    %7362 = vmatpush1.bf16.msra.mxu0 %v6737
    %7363 = vmatprep.subr.bf16.mxu0 %v6734
    %7364 = vmatpush1.bf16.msra.mxu0 %v6733
    %7365 = vmatprep.subr.bf16.mxu0 %v6730
    %7366 = vmatpush1.bf16.msra.mxu0 %v6729
    %7367 = vmatprep.subr.bf16.mxu0 %v6726
    %7368 = vmatpush1.bf16.msra.mxu0 %v6725
    %7369 = vmatprep.subr.bf16.mxu0 %v6722
    %7370 = vmatpush1.bf16.msra.mxu0 %v6721
    %7371 = vmatprep.subr.bf16.mxu0 %v6718
    %7372 = vmatpush1.bf16.msra.mxu0 %v6717
    %7373 = vmatprep.subr.bf16.mxu0 %v6778
    %7374 = vmatpush2.bf16.msra.mxu0 %v6777
    %7375 = vmatprep.subr.bf16.mxu0 %v6774
    %7376 = vmatpush2.bf16.msra.mxu0 %v6773
    %7377 = vmatprep.subr.bf16.mxu0 %v6770
    %7378 = vmatpush2.bf16.msra.mxu0 %v6769
    %7379 = vmatprep.subr.bf16.mxu0 %v6766
    %7380 = vmatpush2.bf16.msra.mxu0 %v6765
    %7381 = vmatprep.subr.bf16.mxu0 %v6762
    %7382 = vmatpush2.bf16.msra.mxu0 %v6761
    %7383 = vmatprep.subr.bf16.mxu0 %v6758
    %7384 = vmatpush2.bf16.msra.mxu0 %v6757
    %7385 = vmatprep.subr.bf16.mxu0 %v6754
    %7386 = vmatpush2.bf16.msra.mxu0 %v6753
    %7387 = vmatprep.subr.bf16.mxu0 %v6750
    %7388 = vmatpush2.bf16.msra.mxu0 %v6749
    %7389 = vmatprep.mubr.bf16.mxu0 %v5538
    %7390 = vmatmul.mubr.bf16.gmra.mxu0 %v5537
    %v7391 = vpop.f32.mrf.mxu0
    %v7392 = vadd.f32 %v7349, %v7391
    %v7393 = vpop.f32.mrf.mxu0
    %v7394 = vadd.f32 %v7351, %v7393
    %v7395 = vpop.f32.mrf.mxu0
    %v7396 = vadd.f32 %v7353, %v7395
    %v7397 = vpop.f32.mrf.mxu0
    %v7398 = vadd.f32 %v7355, %v7397
    %7399 = vdwg.mxu0
    %7400 = vmatprep.subr.bf16.mxu0 %v6810
    %7401 = vmatpush1.bf16.msra.mxu0 %v6809
    %7402 = vmatprep.subr.bf16.mxu0 %v6806
    %7403 = vmatpush1.bf16.msra.mxu0 %v6805
    %7404 = vmatprep.subr.bf16.mxu0 %v6802
    %7405 = vmatpush1.bf16.msra.mxu0 %v6801
    %7406 = vmatprep.subr.bf16.mxu0 %v6798
    %7407 = vmatpush1.bf16.msra.mxu0 %v6797
    %7408 = vmatprep.subr.bf16.mxu0 %v6794
    %7409 = vmatpush1.bf16.msra.mxu0 %v6793
    %7410 = vmatprep.subr.bf16.mxu0 %v6790
    %7411 = vmatpush1.bf16.msra.mxu0 %v6789
    %7412 = vmatprep.subr.bf16.mxu0 %v6786
    %7413 = vmatpush1.bf16.msra.mxu0 %v6785
    %7414 = vmatprep.subr.bf16.mxu0 %v6782
    %7415 = vmatpush1.bf16.msra.mxu0 %v6781
    %7416 = vmatprep.subr.bf16.mxu0 %v6842
    %7417 = vmatpush2.bf16.msra.mxu0 %v6841
    %7418 = vmatprep.subr.bf16.mxu0 %v6838
    %7419 = vmatpush2.bf16.msra.mxu0 %v6837
    %7420 = vmatprep.subr.bf16.mxu0 %v6834
    %7421 = vmatpush2.bf16.msra.mxu0 %v6833
    %7422 = vmatprep.subr.bf16.mxu0 %v6830
    %7423 = vmatpush2.bf16.msra.mxu0 %v6829
    %7424 = vmatprep.subr.bf16.mxu0 %v6826
    %7425 = vmatpush2.bf16.msra.mxu0 %v6825
    %7426 = vmatprep.subr.bf16.mxu0 %v6822
    %7427 = vmatpush2.bf16.msra.mxu0 %v6821
    %7428 = vmatprep.subr.bf16.mxu0 %v6818
    %7429 = vmatpush2.bf16.msra.mxu0 %v6817
    %7430 = vmatprep.subr.bf16.mxu0 %v6814
    %7431 = vmatpush2.bf16.msra.mxu0 %v6813
    %7432 = vmatprep.mubr.bf16.mxu0 %v5540
    %7433 = vmatmul.mubr.bf16.gmra.mxu0 %v5539
    %v7434 = vpop.f32.mrf.mxu0
    %v7435 = vadd.f32 %v7392, %v7434
    %v7436 = vpop.f32.mrf.mxu0
    %v7437 = vadd.f32 %v7394, %v7436
    %v7438 = vpop.f32.mrf.mxu0
    %v7439 = vadd.f32 %v7396, %v7438
    %v7440 = vpop.f32.mrf.mxu0
    %v7441 = vadd.f32 %v7398, %v7440
    %7442 = vdwg.mxu0
    %v7443 = vmax.f32 %v7263, 0.0
    %v7444 = vmax.f32 %v7265, 0.0
    %v7445 = vmax.f32 %v7435, 0.0
    %v7446 = vmax.f32 %v7437, 0.0
    %v7447 = vmax.f32 %v7267, 0.0
    %v7448 = vmax.f32 %v7269, 0.0
    %v7449 = vmax.f32 %v7439, 0.0
    %v7450 = vmax.f32 %v7441, 0.0
    %v7451 = vpack.c.bf16 %v7447, %v7443
    %v7452 = vpack.c.bf16 %v7448, %v7444
    %v7453 = vpack.c.bf16 %v7449, %v7445
    %v7454 = vpack.c.bf16 %v7450, %v7446
    %v7455 = vld [vmem:[#allocation11] sm:$0xf]
    %v7456 = vld [vmem:[#allocation11 + $0x4] sm:$0xf]
    %v7457 = vld [vmem:[#allocation11 + $0x8] sm:$0xf]
    %v7458 = vld [vmem:[#allocation11 + $0xc] sm:$0xf]
    %v7459 = vld [vmem:[#allocation11 + $0x10] sm:$0xf]
    %v7460 = vld [vmem:[#allocation11 + $0x14] sm:$0xf]
    %v7461 = vld [vmem:[#allocation11 + $0x18] sm:$0xf]
    %v7462 = vld [vmem:[#allocation11 + $0x1c] sm:$0xf]
    %v7463 = vld [vmem:[#allocation11 + $0x20] sm:$0xf]
    %v7464 = vld [vmem:[#allocation11 + $0x24] sm:$0xf]
    %v7465 = vld [vmem:[#allocation11 + $0x28] sm:$0xf]
    %v7466 = vld [vmem:[#allocation11 + $0x2c] sm:$0xf]
    %v7467 = vld [vmem:[#allocation11 + $0x30] sm:$0xf]
    %v7468 = vld [vmem:[#allocation11 + $0x34] sm:$0xf]
    %v7469 = vld [vmem:[#allocation11 + $0x38] sm:$0xf]
    %v7470 = vld [vmem:[#allocation11 + $0x3c] sm:$0xf]
    %v7471 = vld [vmem:[#allocation11 + $0x40] sm:$0xf]
    %v7472 = vld [vmem:[#allocation11 + $0x44] sm:$0xf]
    %v7473 = vld [vmem:[#allocation11 + $0x48] sm:$0xf]
    %v7474 = vld [vmem:[#allocation11 + $0x4c] sm:$0xf]
    %v7475 = vld [vmem:[#allocation11 + $0x50] sm:$0xf]
    %v7476 = vld [vmem:[#allocation11 + $0x54] sm:$0xf]
    %v7477 = vld [vmem:[#allocation11 + $0x58] sm:$0xf]
    %v7478 = vld [vmem:[#allocation11 + $0x5c] sm:$0xf]
    %v7479 = vld [vmem:[#allocation11 + $0x60] sm:$0xf]
    %v7480 = vld [vmem:[#allocation11 + $0x64] sm:$0xf]
    %v7481 = vld [vmem:[#allocation11 + $0x68] sm:$0xf]
    %v7482 = vld [vmem:[#allocation11 + $0x6c] sm:$0xf]
    %v7483 = vld [vmem:[#allocation11 + $0x70] sm:$0xf]
    %v7484 = vld [vmem:[#allocation11 + $0x74] sm:$0xf]
    %v7485 = vld [vmem:[#allocation11 + $0x78] sm:$0xf]
    %v7486 = vld [vmem:[#allocation11 + $0x7c] sm:$0xf]
    %v7487 = vld [vmem:[#allocation11 + $0x80] sm:$0xf]
    %v7488 = vld [vmem:[#allocation11 + $0x84] sm:$0xf]
    %v7489 = vld [vmem:[#allocation11 + $0x88] sm:$0xf]
    %v7490 = vld [vmem:[#allocation11 + $0x8c] sm:$0xf]
    %v7491 = vld [vmem:[#allocation11 + $0x90] sm:$0xf]
    %v7492 = vld [vmem:[#allocation11 + $0x94] sm:$0xf]
    %v7493 = vld [vmem:[#allocation11 + $0x98] sm:$0xf]
    %v7494 = vld [vmem:[#allocation11 + $0x9c] sm:$0xf]
    %v7495 = vld [vmem:[#allocation11 + $0xa0] sm:$0xf]
    %v7496 = vld [vmem:[#allocation11 + $0xa4] sm:$0xf]
    %v7497 = vld [vmem:[#allocation11 + $0xa8] sm:$0xf]
    %v7498 = vld [vmem:[#allocation11 + $0xac] sm:$0xf]
    %v7499 = vld [vmem:[#allocation11 + $0xb0] sm:$0xf]
    %v7500 = vld [vmem:[#allocation11 + $0xb4] sm:$0xf]
    %v7501 = vld [vmem:[#allocation11 + $0xb8] sm:$0xf]
    %v7502 = vld [vmem:[#allocation11 + $0xbc] sm:$0xf]
    %v7503 = vld [vmem:[#allocation11 + $0xc0] sm:$0xf]
    %v7504 = vld [vmem:[#allocation11 + $0xc4] sm:$0xf]
    %v7505 = vld [vmem:[#allocation11 + $0xc8] sm:$0xf]
    %v7506 = vld [vmem:[#allocation11 + $0xcc] sm:$0xf]
    %v7507 = vld [vmem:[#allocation11 + $0xd0] sm:$0xf]
    %v7508 = vld [vmem:[#allocation11 + $0xd4] sm:$0xf]
    %v7509 = vld [vmem:[#allocation11 + $0xd8] sm:$0xf]
    %v7510 = vld [vmem:[#allocation11 + $0xdc] sm:$0xf]
    %v7511 = vld [vmem:[#allocation11 + $0xe0] sm:$0xf]
    %v7512 = vld [vmem:[#allocation11 + $0xe4] sm:$0xf]
    %v7513 = vld [vmem:[#allocation11 + $0xe8] sm:$0xf]
    %v7514 = vld [vmem:[#allocation11 + $0xec] sm:$0xf]
    %v7515 = vld [vmem:[#allocation11 + $0xf0] sm:$0xf]
    %v7516 = vld [vmem:[#allocation11 + $0xf4] sm:$0xf]
    %v7517 = vld [vmem:[#allocation11 + $0xf8] sm:$0xf]
    %v7518 = vld [vmem:[#allocation11 + $0xfc] sm:$0xf]
    %v7519 = vld [vmem:[#allocation13] sm:$0x1]
    %v7521 = vlaneseq
    %v7522 = vshrl.u32 %v7521, 7
    %v7523 = vsub.s32 0, %v7522
    %v7524 = vrot.slane %v7519, %v7523
    %v7590 = vunpack.c.l.b16 %v7455
    %v7591 = vunpack.c.l.b16 %v7456
    %v7592 = vunpack.c.l.b16 %v7457
    %v7593 = vunpack.c.l.b16 %v7458
    %v7594 = vunpack.c.l.b16 %v7459
    %v7595 = vunpack.c.l.b16 %v7460
    %v7596 = vunpack.c.l.b16 %v7461
    %v7597 = vunpack.c.l.b16 %v7462
    %v7598 = vunpack.c.l.b16 %v7463
    %v7599 = vunpack.c.l.b16 %v7464
    %v7600 = vunpack.c.l.b16 %v7465
    %v7601 = vunpack.c.l.b16 %v7466
    %v7602 = vunpack.c.l.b16 %v7467
    %v7603 = vunpack.c.l.b16 %v7468
    %v7604 = vunpack.c.l.b16 %v7469
    %v7605 = vunpack.c.l.b16 %v7470
    %v7606 = vunpack.c.l.b16 %v7471
    %v7607 = vunpack.c.l.b16 %v7472
    %v7608 = vunpack.c.l.b16 %v7473
    %v7609 = vunpack.c.l.b16 %v7474
    %v7610 = vunpack.c.l.b16 %v7475
    %v7611 = vunpack.c.l.b16 %v7476
    %v7612 = vunpack.c.l.b16 %v7477
    %v7613 = vunpack.c.l.b16 %v7478
    %v7614 = vunpack.c.l.b16 %v7479
    %v7615 = vunpack.c.l.b16 %v7480
    %v7616 = vunpack.c.l.b16 %v7481
    %v7617 = vunpack.c.l.b16 %v7482
    %v7618 = vunpack.c.l.b16 %v7483
    %v7619 = vunpack.c.l.b16 %v7484
    %v7620 = vunpack.c.l.b16 %v7485
    %v7621 = vunpack.c.l.b16 %v7486
    %v7622 = vunpack.c.l.b16 %v7487
    %v7623 = vunpack.c.l.b16 %v7488
    %v7624 = vunpack.c.l.b16 %v7489
    %v7625 = vunpack.c.l.b16 %v7490
    %v7626 = vunpack.c.l.b16 %v7491
    %v7627 = vunpack.c.l.b16 %v7492
    %v7628 = vunpack.c.l.b16 %v7493
    %v7629 = vunpack.c.l.b16 %v7494
    %v7630 = vunpack.c.l.b16 %v7495
    %v7631 = vunpack.c.l.b16 %v7496
    %v7632 = vunpack.c.l.b16 %v7497
    %v7633 = vunpack.c.l.b16 %v7498
    %v7634 = vunpack.c.l.b16 %v7499
    %v7635 = vunpack.c.l.b16 %v7500
    %v7636 = vunpack.c.l.b16 %v7501
    %v7637 = vunpack.c.l.b16 %v7502
    %v7638 = vunpack.c.l.b16 %v7503
    %v7639 = vunpack.c.l.b16 %v7504
    %v7640 = vunpack.c.l.b16 %v7505
    %v7641 = vunpack.c.l.b16 %v7506
    %v7642 = vunpack.c.l.b16 %v7507
    %v7643 = vunpack.c.l.b16 %v7508
    %v7644 = vunpack.c.l.b16 %v7509
    %v7645 = vunpack.c.l.b16 %v7510
    %v7646 = vunpack.c.l.b16 %v7511
    %v7647 = vunpack.c.l.b16 %v7512
    %v7648 = vunpack.c.l.b16 %v7513
    %v7649 = vunpack.c.l.b16 %v7514
    %v7650 = vunpack.c.l.b16 %v7515
    %v7651 = vunpack.c.l.b16 %v7516
    %v7652 = vunpack.c.l.b16 %v7517
    %v7653 = vunpack.c.l.b16 %v7518
    %v7654 = vpack.c.b16 %v7591, %v7590
    %v7655 = vpack.c.b16 %v7593, %v7592
    %v7656 = vpack.c.b16 %v7595, %v7594
    %v7657 = vpack.c.b16 %v7597, %v7596
    %v7658 = vpack.c.b16 %v7599, %v7598
    %v7659 = vpack.c.b16 %v7601, %v7600
    %v7660 = vpack.c.b16 %v7603, %v7602
    %v7661 = vpack.c.b16 %v7605, %v7604
    %v7662 = vpack.c.b16 %v7607, %v7606
    %v7663 = vpack.c.b16 %v7609, %v7608
    %v7664 = vpack.c.b16 %v7611, %v7610
    %v7665 = vpack.c.b16 %v7613, %v7612
    %v7666 = vpack.c.b16 %v7615, %v7614
    %v7667 = vpack.c.b16 %v7617, %v7616
    %v7668 = vpack.c.b16 %v7619, %v7618
    %v7669 = vpack.c.b16 %v7621, %v7620
    %v7670 = vpack.c.b16 %v7623, %v7622
    %v7671 = vpack.c.b16 %v7625, %v7624
    %v7672 = vpack.c.b16 %v7627, %v7626
    %v7673 = vpack.c.b16 %v7629, %v7628
    %v7674 = vpack.c.b16 %v7631, %v7630
    %v7675 = vpack.c.b16 %v7633, %v7632
    %v7676 = vpack.c.b16 %v7635, %v7634
    %v7677 = vpack.c.b16 %v7637, %v7636
    %v7678 = vpack.c.b16 %v7639, %v7638
    %v7679 = vpack.c.b16 %v7641, %v7640
    %v7680 = vpack.c.b16 %v7643, %v7642
    %v7681 = vpack.c.b16 %v7645, %v7644
    %v7682 = vpack.c.b16 %v7647, %v7646
    %v7683 = vpack.c.b16 %v7649, %v7648
    %v7684 = vpack.c.b16 %v7651, %v7650
    %v7685 = vpack.c.b16 %v7653, %v7652
    %7718 = vmatprep.subr.bf16.mxu0 0
    %7719 = vmatpush1.bf16.msra.mxu0 %v7661
    %7720 = vmatprep.subr.bf16.mxu0 0
    %7721 = vmatpush1.bf16.msra.mxu0 %v7660
    %7722 = vmatprep.subr.bf16.mxu0 0
    %7723 = vmatpush1.bf16.msra.mxu0 %v7659
    %7724 = vmatprep.subr.bf16.mxu0 0
    %7725 = vmatpush1.bf16.msra.mxu0 %v7658
    %7726 = vmatprep.subr.bf16.mxu0 0
    %7727 = vmatpush1.bf16.msra.mxu0 %v7657
    %7728 = vmatprep.subr.bf16.mxu0 0
    %7729 = vmatpush1.bf16.msra.mxu0 %v7656
    %7730 = vmatprep.subr.bf16.mxu0 0
    %7731 = vmatpush1.bf16.msra.mxu0 %v7655
    %7732 = vmatprep.subr.bf16.mxu0 0
    %7733 = vmatpush1.bf16.msra.mxu0 %v7654
    %7734 = vmatprep.subr.bf16.mxu0 0
    %7735 = vmatpush2.bf16.msra.mxu0 %v7669
    %7736 = vmatprep.subr.bf16.mxu0 0
    %7737 = vmatpush2.bf16.msra.mxu0 %v7668
    %7738 = vmatprep.subr.bf16.mxu0 0
    %7739 = vmatpush2.bf16.msra.mxu0 %v7667
    %7740 = vmatprep.subr.bf16.mxu0 0
    %7741 = vmatpush2.bf16.msra.mxu0 %v7666
    %7742 = vmatprep.subr.bf16.mxu0 0
    %7743 = vmatpush2.bf16.msra.mxu0 %v7665
    %7744 = vmatprep.subr.bf16.mxu0 0
    %7745 = vmatpush2.bf16.msra.mxu0 %v7664
    %7746 = vmatprep.subr.bf16.mxu0 0
    %7747 = vmatpush2.bf16.msra.mxu0 %v7663
    %7748 = vmatprep.subr.bf16.mxu0 0
    %7749 = vmatpush2.bf16.msra.mxu0 %v7662
    %7750 = vmatprep.mubr.bf16.mxu0 %v7452
    %7751 = vmatmul.mubr.bf16.gmra.mxu0 %v7451
    %v7752 = vpop.f32.mrf.mxu0
    %v7753 = vadd.f32 %v7524, %v7752
    %v7754 = vpop.f32.mrf.mxu0
    %v7755 = vpop.f32.mrf.mxu0
    %v7756 = vadd.f32 %v7524, %v7755
    %v7757 = vpop.f32.mrf.mxu0
    %7758 = vdwg.mxu0
    %7759 = vmatprep.subr.bf16.mxu0 0
    %7760 = vmatpush1.bf16.msra.mxu0 %v7677
    %7761 = vmatprep.subr.bf16.mxu0 0
    %7762 = vmatpush1.bf16.msra.mxu0 %v7676
    %7763 = vmatprep.subr.bf16.mxu0 0
    %7764 = vmatpush1.bf16.msra.mxu0 %v7675
    %7765 = vmatprep.subr.bf16.mxu0 0
    %7766 = vmatpush1.bf16.msra.mxu0 %v7674
    %7767 = vmatprep.subr.bf16.mxu0 0
    %7768 = vmatpush1.bf16.msra.mxu0 %v7673
    %7769 = vmatprep.subr.bf16.mxu0 0
    %7770 = vmatpush1.bf16.msra.mxu0 %v7672
    %7771 = vmatprep.subr.bf16.mxu0 0
    %7772 = vmatpush1.bf16.msra.mxu0 %v7671
    %7773 = vmatprep.subr.bf16.mxu0 0
    %7774 = vmatpush1.bf16.msra.mxu0 %v7670
    %7775 = vmatprep.subr.bf16.mxu0 0
    %7776 = vmatpush2.bf16.msra.mxu0 %v7685
    %7777 = vmatprep.subr.bf16.mxu0 0
    %7778 = vmatpush2.bf16.msra.mxu0 %v7684
    %7779 = vmatprep.subr.bf16.mxu0 0
    %7780 = vmatpush2.bf16.msra.mxu0 %v7683
    %7781 = vmatprep.subr.bf16.mxu0 0
    %7782 = vmatpush2.bf16.msra.mxu0 %v7682
    %7783 = vmatprep.subr.bf16.mxu0 0
    %7784 = vmatpush2.bf16.msra.mxu0 %v7681
    %7785 = vmatprep.subr.bf16.mxu0 0
    %7786 = vmatpush2.bf16.msra.mxu0 %v7680
    %7787 = vmatprep.subr.bf16.mxu0 0
    %7788 = vmatpush2.bf16.msra.mxu0 %v7679
    %7789 = vmatprep.subr.bf16.mxu0 0
    %7790 = vmatpush2.bf16.msra.mxu0 %v7678
    %7791 = vmatprep.mubr.bf16.mxu0 %v7454
    %7792 = vmatmul.mubr.bf16.gmra.mxu0 %v7453
    %v7793 = vpop.f32.mrf.mxu0
    %v7794 = vadd.f32 %v7753, %v7793
    %v7795 = vpop.f32.mrf.mxu0
    %v7796 = vpop.f32.mrf.mxu0
    %v7797 = vadd.f32 %v7756, %v7796
    %v7798 = vpop.f32.mrf.mxu0
    %7799 = vdwg.mxu0
    %v7800 = vmax.f32 %v7794, 0.0
    %v7801 = vmax.f32 %v7797, 0.0
    %v7802 = vpack.c.bf16 %v7801, %v7800
    %v7803 = vld [vmem:[#allocation14] sm:$0xf]
    %v7804 = vld [vmem:[#allocation14 + $0x4] sm:$0xf]
    %v7805 = vld [vmem:[#allocation14 + $0x8] sm:$0xf]
    %v7806 = vld [vmem:[#allocation14 + $0xc] sm:$0xf]
    %v7807 = vld [vmem:[#allocation14 + $0x10] sm:$0xf]
    %v7808 = vld [vmem:[#allocation14 + $0x14] sm:$0xf]
    %v7809 = vld [vmem:[#allocation14 + $0x18] sm:$0xf]
    %v7810 = vld [vmem:[#allocation14 + $0x1c] sm:$0xf]
    %v7811 = vld [vmem:[#allocation14 + $0x20] sm:$0xf]
    %v7812 = vld [vmem:[#allocation14 + $0x24] sm:$0xf]
    %v7813 = vld [vmem:[#allocation14 + $0x28] sm:$0xf]
    %v7814 = vld [vmem:[#allocation14 + $0x2c] sm:$0xf]
    %v7815 = vld [vmem:[#allocation14 + $0x30] sm:$0xf]
    %v7816 = vld [vmem:[#allocation14 + $0x34] sm:$0xf]
    %v7817 = vld [vmem:[#allocation14 + $0x38] sm:$0xf]
    %v7818 = vld [vmem:[#allocation14 + $0x3c] sm:$0xf]
    %v7819 = vld [vmem:[#allocation16] sm:$0x1]
    %v7821 = vlaneseq
    %v7822 = vshrl.u32 %v7821, 7
    %v7823 = vsub.s32 0, %v7822
    %v7824 = vrot.slane %v7819, %v7823
    %v7842 = vunpack.c.l.b16 %v7803
    %v7843 = vunpack.c.l.b16 %v7804
    %v7844 = vunpack.c.l.b16 %v7805
    %v7845 = vunpack.c.l.b16 %v7806
    %v7846 = vunpack.c.l.b16 %v7807
    %v7847 = vunpack.c.l.b16 %v7808
    %v7848 = vunpack.c.l.b16 %v7809
    %v7849 = vunpack.c.l.b16 %v7810
    %v7850 = vunpack.c.l.b16 %v7811
    %v7851 = vunpack.c.l.b16 %v7812
    %v7852 = vunpack.c.l.b16 %v7813
    %v7853 = vunpack.c.l.b16 %v7814
    %v7854 = vunpack.c.l.b16 %v7815
    %v7855 = vunpack.c.l.b16 %v7816
    %v7856 = vunpack.c.l.b16 %v7817
    %v7857 = vunpack.c.l.b16 %v7818
    %v7858 = vpack.c.b16 %v7843, %v7842
    %v7859 = vpack.c.b16 %v7845, %v7844
    %v7860 = vpack.c.b16 %v7847, %v7846
    %v7861 = vpack.c.b16 %v7849, %v7848
    %v7862 = vpack.c.b16 %v7851, %v7850
    %v7863 = vpack.c.b16 %v7853, %v7852
    %v7864 = vpack.c.b16 %v7855, %v7854
    %v7865 = vpack.c.b16 %v7857, %v7856
    %7874 = vmatprep.subr.bf16.mxu0 0
    %7875 = vmatpush1.bf16.msra.mxu0 %v7865
    %7876 = vmatprep.subr.bf16.mxu0 0
    %7877 = vmatpush1.bf16.msra.mxu0 %v7864
    %7878 = vmatprep.subr.bf16.mxu0 0
    %7879 = vmatpush1.bf16.msra.mxu0 %v7863
    %7880 = vmatprep.subr.bf16.mxu0 0
    %7881 = vmatpush1.bf16.msra.mxu0 %v7862
    %7882 = vmatprep.subr.bf16.mxu0 0
    %7883 = vmatpush1.bf16.msra.mxu0 %v7861
    %7884 = vmatprep.subr.bf16.mxu0 0
    %7885 = vmatpush1.bf16.msra.mxu0 %v7860
    %7886 = vmatprep.subr.bf16.mxu0 0
    %7887 = vmatpush1.bf16.msra.mxu0 %v7859
    %7888 = vmatprep.subr.bf16.mxu0 0
    %7889 = vmatpush1.bf16.msra.mxu0 %v7858
    %7890 = vmatprep.subr.bf16.mxu0 0
    %7891 = vmatpush2.bf16.msra.mxu0 0
    %7892 = vmatprep.subr.bf16.mxu0 0
    %7893 = vmatpush2.bf16.msra.mxu0 0
    %7894 = vmatprep.subr.bf16.mxu0 0
    %7895 = vmatpush2.bf16.msra.mxu0 0
    %7896 = vmatprep.subr.bf16.mxu0 0
    %7897 = vmatpush2.bf16.msra.mxu0 0
    %7898 = vmatprep.subr.bf16.mxu0 0
    %7899 = vmatpush2.bf16.msra.mxu0 0
    %7900 = vmatprep.subr.bf16.mxu0 0
    %7901 = vmatpush2.bf16.msra.mxu0 0
    %7902 = vmatprep.subr.bf16.mxu0 0
    %7903 = vmatpush2.bf16.msra.mxu0 0
    %7904 = vmatprep.subr.bf16.mxu0 0
    %7905 = vmatpush2.bf16.msra.mxu0 0
    %7906 = vmatprep.mubr.bf16.mxu0 0
    %7907 = vmatmul.mubr.bf16.gmra.mxu0 %v7802
    %v7908 = vpop.f32.mrf.mxu0
    %v7909 = vadd.f32 %v7824, %v7908
    %v7910 = vpop.f32.mrf.mxu0
    %v7911 = vpop.f32.mrf.mxu0
    %v7912 = vadd.f32 %v7824, %v7911
    %v7913 = vpop.f32.mrf.mxu0
    %7914 = vdwg.mxu0
    %7915 = vst [vmem:[#allocation17] sm:$0xff] %v7909
    %7916 = vst [vmem:[#allocation17 + $0x8] sm:$0xff] %v7912
    %v7917 = vlaneseq
    %v7918 = vshrl.u32 %v7917, 7
    %v7919 = vadd.s32 %v7918, 8
    %s7920 = smul.u32 0, 16
    %v7921 = vstv %s7920
    %v7922 = vadd.s32 %v7918, %v7921
    %v7923 = vadd.s32 %v7919, %v7921
    %vm7924 = vcmp.lt.s32.totalorder %v7922, 8
    %vm7925 = vcmp.lt.s32.totalorder %v7923, 8
    %v7926 = vsel %vm7924, %v7909, 0.0
    %v7927 = vsel %vm7925, %v7912, 0.0
    %v7928 = vadd.f32 %v7926, %v7927
    %v7929 = vrot.slane %v7928, 4
    %v7930 = vadd.f32 %v7928, %v7929
    %v7931 = vrot.slane %v7930, 2
    %v7932 = vadd.f32 %v7930, %v7931
    %v7933 = vrot.slane %v7932, 1
    %v7934 = vadd.f32 %v7932, %v7933
    %v7935 = vmul.f32 %v7926, %v7926
    %v7936 = vmul.f32 %v7927, %v7927
    %v7937 = vadd.f32 %v7935, %v7936
    %v7938 = vrot.slane %v7937, 4
    %v7939 = vadd.f32 %v7937, %v7938
    %v7940 = vrot.slane %v7939, 2
    %v7941 = vadd.f32 %v7939, %v7940
    %v7942 = vrot.slane %v7941, 1
    %v7943 = vadd.f32 %v7941, %v7942
    %vm7944 = vcmask 1040384
    %v7945 = vsel %vm7944, %v7934, %v7943
    %7946 = vst [vmem:[#allocation18] sm:$0x3] %v7945
    // Predicated region
    $region74: #{tpu_custom_call.1} parent=1 // pred_check
      _
    $region75: #{tpu_custom_call.1} parent=1 // pred_check_branch
      %7948 = sbr.rel (0) target = $region77
    $region76: #{tpu_custom_call.1} parent=1 // pred_region
      %s7950 = ssub.s32 256, 256
      %7951 = vsyncadd [#allocation4], %s7950
      %s7952 = sshll.u32 [#allocation17], 4
      %s7953 = int_to_ptr.vmem [resolvable:$true] %s7952
      %7958 = dma.vmem_to_hbm [thread:$0]  %s7953, 256, %s9, [#allocation4], 128, 128, 8
    $region77: #{tpu_custom_call.1} parent=1 // pred_fallthru
      _
    // Predicated region
    $region78: #{tpu_custom_call.1} parent=1 // pred_check
      _
    $region79: #{tpu_custom_call.1} parent=1 // pred_check_branch
      %7960 = sbr.rel (0) target = $region81
    $region80: #{tpu_custom_call.1} parent=1 // pred_region
      %s7962 = ssub.s32 32, 32
      %7963 = vsyncadd [#allocation19], %s7962
      %s7965 = sshll.u32 [#allocation18], 4
      %s7966 = int_to_ptr.vmem [resolvable:$true] %s7965
      %7968 = dma.vmem_to_hbm [thread:$0]  %s7966, 32, %s10, [#allocation19]
    $region81: #{tpu_custom_call.1} parent=1 // pred_fallthru
      _
    // Predicated region
    $region82: #{tpu_custom_call.1} parent=1 // pred_check
      _
    $region83: #{tpu_custom_call.1} parent=1 // pred_check_branch
      %7970 = sbr.rel (0) target = $region85
    $region84: #{tpu_custom_call.1} parent=1 // pred_region
      %7971 = dma.done [#allocation4], 256
    $region85: #{tpu_custom_call.1} parent=1 // pred_fallthru
      _
    // Predicated region
    $region86: #{tpu_custom_call.1} parent=1 // pred_check
      _
    $region87: #{tpu_custom_call.1} parent=1 // pred_check_branch
      %7973 = sbr.rel (0) target = $region89
    $region88: #{tpu_custom_call.1} parent=1 // pred_region
      %7974 = dma.done [#allocation19], 32
    $region89: #{tpu_custom_call.1} parent=1 // pred_fallthru
      _
    %7975 = vsyncpa [#allocation3], 1
    %7976 = vsyncpa [#allocation6], 1
    %7977 = vsyncpa [#allocation9], 1
    %7978 = vsyncpa [#allocation12], 1
    %7979 = vsyncpa [#allocation15], 1
    %7980 = vsyncpa [#allocation4], 1
    %7981 = vsyncpa [#allocation19], 1

</llo_original>
